<compile_context>
chip_gen: v7x
topology: tpu7x:2x2x1
jax: 0.10.0
libtpu: 0.0.40
codegen_flags: <defaults>
</compile_context>

<pallas_src>
import functools

import jax
import jax.numpy as jnp
from jax.experimental import pallas as pl
from jax.experimental.pallas import tpu as pltpu

# MXU operand dtype for the recurrence (weights, h, hoisted pre-activations).
MXU_DTYPE = jnp.float32
# Explicit scoped-VMEM limit: above the 16/32 MiB defaults, with headroom under v7x's 64 MiB.
_VMEM_LIMIT = 48 * 1024 * 1024


def _resident_spec(block_shape, index_map):
    """Constant-index (resident) block -> single-buffered to halve its VMEM footprint."""
    try:
        return pl.BlockSpec(block_shape, index_map, pipeline_mode=pl.Buffered(1))
    except Exception:  # older jax without pipeline_mode / Buffered
        return pl.BlockSpec(block_shape, index_map)


def _pick_time_block(seq_len, max_tb):
    for tb in range(min(max_tb, seq_len), 0, -1):
        if seq_len % tb == 0:
            return tb
    return 1


# ----------------------------------------------------------------------------
# Kernel 1: fused bidirectional LSTM recurrence for one layer.
# Grid iterates sequentially over time blocks; h/c state for both directions
# lives in VMEM scratch; fwd/bwd outputs are streamed per block (bwd via a
# reversed index_map), so nothing large stays resident.
# ----------------------------------------------------------------------------
def _bilstm_kernel(pre_f_ref, pre_b_ref, whh_f_ref, whh_b_ref, yf_ref, yb_ref,
                   h_ref, c_ref, *, hidden, time_block):
    H = hidden
    Tb = time_block
    j = pl.program_id(0)

    @pl.when(j == 0)
    def _init():
        h_ref[...] = jnp.zeros_like(h_ref)   # h0 = 0 (row 0 = fwd, row 1 = bwd)
        c_ref[...] = jnp.zeros_like(c_ref)   # c0 = 0

    mxu_dt = whh_f_ref.dtype

    def body(tt, carry):
        # Single fused (H, 4H) recurrent matmul per direction: 2 MXU ops / step, not 8.
        gates_f = pre_f_ref[tt].astype(jnp.float32) + jnp.dot(
            h_ref[0].astype(mxu_dt), whh_f_ref[...], preferred_element_type=jnp.float32)
        gates_b = pre_b_ref[Tb - 1 - tt].astype(jnp.float32) + jnp.dot(
            h_ref[1].astype(mxu_dt), whh_b_ref[...], preferred_element_type=jnp.float32)
        # Stack the two directions so the sigmoid/tanh/elementwise chain is emitted once.
        # TODO(synk): at production B (multiple of 8) concatenate along sublanes (2B, 4H)
        # instead, for denser vregs when B < 8.
        g = jnp.stack([gates_f, gates_b], axis=0)            # (2, B, 4H); gate order i,f,g,o
        i_g = jax.nn.sigmoid(g[:, :, 0:H])
        f_g = jax.nn.sigmoid(g[:, :, H:2 * H])
        g_g = jnp.tanh(g[:, :, 2 * H:3 * H])
        o_g = jax.nn.sigmoid(g[:, :, 3 * H:4 * H])
        c_new = f_g * c_ref[...] + i_g * g_g
        h_new = o_g * jnp.tanh(c_new)
        h_ref[...] = h_new
        c_ref[...] = c_new
        yf_ref[tt] = h_new[0]                 # lane-dense (B, H) streamed stores
        yb_ref[Tb - 1 - tt] = h_new[1]
        return carry

    jax.lax.fori_loop(0, Tb, body, 0, unroll=True)


def _input_preactivations(x_pieces, w_ih, b):
    """Hoisted input projection for one direction, lane-dense (T, B, 4H).

    x_pieces: tuple of (T, B, Dk) arrays whose feature concatenation is the layer input
    (fed separately to avoid materialising the (T, B, 2H) concat between layers).
    w_ih: (4H, sum Dk); b: (4H,) = bias_ih + bias_hh.
    """
    w = w_ih.astype(jnp.float32)
    off = 0
    pre = None
    for xp in x_pieces:
        d = xp.shape[-1]
        contrib = jnp.einsum('tbd,gd->tbg', xp.astype(jnp.float32), w[:, off:off + d],
                             preferred_element_type=jnp.float32)
        pre = contrib if pre is None else pre + contrib
        off += d
    return pre + b.reshape(1, 1, -1).astype(jnp.float32)


def bilstm_layer(x_pieces, p, hidden, time_block=None):
    """One fused bidirectional LSTM layer. Returns (y_fwd, y_bwd), each (T, B, H) f32."""
    T, B = x_pieces[0].shape[0], x_pieces[0].shape[1]
    H = hidden
    tb = _pick_time_block(T, 16) if time_block is None else time_block
    assert T % tb == 0
    nblk = T // tb

    pre_f = _input_preactivations(x_pieces, p["w_ih_f"], p["b_f"]).astype(MXU_DTYPE)
    pre_b = _input_preactivations(x_pieces, p["w_ih_b"], p["b_b"]).astype(MXU_DTYPE)
    whh_f = jnp.transpose(p["w_hh_f"]).astype(MXU_DTYPE)   # (H, 4H), columns i|f|g|o
    whh_b = jnp.transpose(p["w_hh_b"]).astype(MXU_DTYPE)

    kern = functools.partial(_bilstm_kernel, hidden=H, time_block=tb)
    yf, yb = pl.pallas_call(
        kern,
        out_shape=(jax.ShapeDtypeStruct((T, B, H), jnp.float32),
                   jax.ShapeDtypeStruct((T, B, H), jnp.float32)),
        grid_spec=pltpu.PrefetchScalarGridSpec(
            num_scalar_prefetch=0,
            grid=(nblk,),
            in_specs=[
                pl.BlockSpec((tb, B, 4 * H), lambda j: (j, 0, 0)),             # fwd pre-acts
                pl.BlockSpec((tb, B, 4 * H), lambda j: (nblk - 1 - j, 0, 0)),  # bwd pre-acts (reversed)
                _resident_spec((H, 4 * H), lambda j: (0, 0)),                  # W_hh fwd (resident)
                _resident_spec((H, 4 * H), lambda j: (0, 0)),                  # W_hh bwd (resident)
            ],
            out_specs=[
                pl.BlockSpec((tb, B, H), lambda j: (j, 0, 0)),                 # streamed fwd out
                pl.BlockSpec((tb, B, H), lambda j: (nblk - 1 - j, 0, 0)),      # streamed bwd out
            ],
            scratch_shapes=[
                pltpu.VMEM((2, B, H), jnp.float32),   # h state (fwd, bwd)
                pltpu.VMEM((2, B, H), jnp.float32),   # c state (fwd, bwd)
            ],
        ),
        compiler_params=pltpu.CompilerParams(
            dimension_semantics=("arbitrary",),
            vmem_limit_bytes=_VMEM_LIMIT),
    )(pre_f, pre_b, whh_f, whh_b)
    return yf, yb


# ----------------------------------------------------------------------------
# Kernel 2: LayerNorm -> attention (Linear(F,1) + softmax over time + weighted
# sum) -> final Linear, tiled over time with an online softmax. Consumes the
# fwd/bwd streams directly (no concat); output is lane-padded to 128.
# ----------------------------------------------------------------------------
def _head_kernel(yf_ref, yb_ref, gf_ref, gb_ref, bf_ref, bb_ref,
                 awf_ref, awb_ref, ab_ref, fwf_ref, fwb_ref, fb_ref,
                 out_ref, m_sc, l_sc, cf_sc, cb_sc, *, eps, feat):
    j = pl.program_id(0)

    @pl.when(j == 0)
    def _init():
        m_sc[...] = jnp.full_like(m_sc, -jnp.inf)
        l_sc[...] = jnp.zeros_like(l_sc)
        cf_sc[...] = jnp.zeros_like(cf_sc)
        cb_sc[...] = jnp.zeros_like(cb_sc)

    yf = yf_ref[...]                                        # (tb, B, H)
    yb = yb_ref[...]

    # LayerNorm over the concatenated 2H features, without materialising the concat.
    s = jnp.sum(yf, axis=-1, keepdims=True) + jnp.sum(yb, axis=-1, keepdims=True)
    mean = s / feat
    sq = (jnp.sum((yf - mean) ** 2, axis=-1, keepdims=True)
          + jnp.sum((yb - mean) ** 2, axis=-1, keepdims=True))
    inv = jax.lax.rsqrt(sq / feat + eps)
    ynf = (yf - mean) * inv * gf_ref[...] + bf_ref[...]
    ynb = (yb - mean) * inv * gb_ref[...] + bb_ref[...]

    # attention scores: Linear(2H, 1) -> (tb, B, 1)
    scores = (jnp.sum(ynf * awf_ref[...], axis=-1, keepdims=True)
              + jnp.sum(ynb * awb_ref[...], axis=-1, keepdims=True)
              + ab_ref[...])

    # online softmax over the time axis (spread across grid steps)
    m_old = m_sc[...]                                       # (B, 1)
    m_new = jnp.maximum(m_old, jnp.max(scores, axis=0))     # (B, 1)
    alpha = jnp.exp(m_old - m_new)
    p = jnp.exp(scores - m_new)                             # (tb, B, 1)
    l_sc[...] = alpha * l_sc[...] + jnp.sum(p, axis=0)
    cf_sc[...] = alpha * cf_sc[...] + jnp.sum(p * ynf, axis=0)
    cb_sc[...] = alpha * cb_sc[...] + jnp.sum(p * ynb, axis=0)
    m_sc[...] = m_new

    @pl.when(j == pl.num_programs(0) - 1)
    def _final():
        inv_l = 1.0 / l_sc[...]
        ctx_f = cf_sc[...] * inv_l                          # (B, H)
        ctx_b = cb_sc[...] * inv_l
        out = (jnp.dot(ctx_f, fwf_ref[...], preferred_element_type=jnp.float32)
               + jnp.dot(ctx_b, fwb_ref[...], preferred_element_type=jnp.float32)
               + fb_ref[...])
        out_ref[...] = out.astype(out_ref.dtype)


def head(yf, yb, ln_g, ln_b, attn_w, attn_b, fc_w, fc_b, eps=1e-5, time_block=None):
    """yf/yb: (T, B, H) fwd/bwd LSTM streams. Returns (B, O)."""
    T, B, H = yf.shape
    F = 2 * H
    O = fc_w.shape[0]
    O_pad = pl.cdiv(O, 128) * 128                           # lane-dense output
    tb = _pick_time_block(T, 8) if time_block is None else time_block  # tune upward for prod
    nblk = T // tb

    gf = ln_g[:H].reshape(1, H).astype(jnp.float32)
    gb = ln_g[H:].reshape(1, H).astype(jnp.float32)
    bf = ln_b[:H].reshape(1, H).astype(jnp.float32)
    bb = ln_b[H:].reshape(1, H).astype(jnp.float32)
    awf = attn_w[:, :H].astype(jnp.float32)
    awb = attn_w[:, H:].astype(jnp.float32)
    ab = attn_b.reshape(1, 1).astype(jnp.float32)
    fwf = jnp.pad(jnp.transpose(fc_w[:, :H]).astype(jnp.float32), ((0, 0), (0, O_pad - O)))
    fwb = jnp.pad(jnp.transpose(fc_w[:, H:]).astype(jnp.float32), ((0, 0), (0, O_pad - O)))
    fb = jnp.pad(fc_b.reshape(1, O).astype(jnp.float32), ((0, 0), (0, O_pad - O)))

    kern = functools.partial(_head_kernel, eps=eps, feat=float(F))
    out = pl.pallas_call(
        kern,
        out_shape=jax.ShapeDtypeStruct((B, O_pad), jnp.float32),
        grid_spec=pltpu.PrefetchScalarGridSpec(
            num_scalar_prefetch=0,
            grid=(nblk,),
            in_specs=[
                pl.BlockSpec((tb, B, H), lambda j: (j, 0, 0)),
                pl.BlockSpec((tb, B, H), lambda j: (j, 0, 0)),
                _resident_spec((1, H), lambda j: (0, 0)),      # ln gamma fwd half
                _resident_spec((1, H), lambda j: (0, 0)),      # ln gamma bwd half
                _resident_spec((1, H), lambda j: (0, 0)),      # ln beta fwd half
                _resident_spec((1, H), lambda j: (0, 0)),      # ln beta bwd half
                _resident_spec((1, H), lambda j: (0, 0)),      # attn W fwd half
                _resident_spec((1, H), lambda j: (0, 0)),      # attn W bwd half
                _resident_spec((1, 1), lambda j: (0, 0)),      # attn bias
                _resident_spec((H, O_pad), lambda j: (0, 0)),  # fc W fwd half (padded)
                _resident_spec((H, O_pad), lambda j: (0, 0)),  # fc W bwd half (padded)
                _resident_spec((1, O_pad), lambda j: (0, 0)),  # fc bias (padded)
            ],
            out_specs=pl.BlockSpec((B, O_pad), lambda j: (0, 0)),   # small resident output
            scratch_shapes=[
                pltpu.VMEM((B, 1), jnp.float32),   # running max
                pltpu.VMEM((B, 1), jnp.float32),   # running denom
                pltpu.VMEM((B, H), jnp.float32),   # fwd context accumulator
                pltpu.VMEM((B, H), jnp.float32),   # bwd context accumulator
            ],
        ),
        compiler_params=pltpu.CompilerParams(
            dimension_semantics=("arbitrary",),
            vmem_limit_bytes=_VMEM_LIMIT),
    )(yf, yb, gf, gb, bf, bb, awf, awb, ab, fwf, fwb, fb)
    return out[:, :O]


# ----------------------------------------------------------------------------
# Full model forward (JAX glue: initial transpose, layer loop, input projections)
# ----------------------------------------------------------------------------
def lstm_model_forward(x, params, hidden, num_layers):
    """x: (B, T, input_size) -> (B, output_size). Eval-mode forward."""
    x_t = jnp.transpose(x, (1, 0, 2)).astype(jnp.float32)   # time-major (T, B, D)
    pieces = (x_t,)
    for l in range(num_layers):
        pieces = bilstm_layer(pieces, params["lstm"][l], hidden)   # (yf, yb), no concat
        # TODO(synk): inter-layer dropout (p=0.2) and post-LSTM dropout use eval-mode
        # identity semantics; stochastic training dropout not implemented.
    yf, yb = pieces
    return head(yf, yb, params["ln_g"], params["ln_b"],
                params["attn_w"], params["attn_b"],
                params["fc_w"], params["fc_b"])


# ----------------------------------------------------------------------------
# Pure-JAX reference (for correctness check)
# ----------------------------------------------------------------------------
def ref_forward(x, params, hidden, num_layers, eps=1e-5):
    def cell(x_seq, w_ih, w_hh, b):
        T, B, _ = x_seq.shape

        def step(carry, xt):
            h, c = carry
            gates = xt @ w_ih.T + h @ w_hh.T + b
            i, f, g, o = jnp.split(gates, 4, axis=-1)
            c = jax.nn.sigmoid(f) * c + jax.nn.sigmoid(i) * jnp.tanh(g)
            h = jax.nn.sigmoid(o) * jnp.tanh(c)
            return (h, c), h

        h0 = jnp.zeros((B, hidden), jnp.float32)
        c0 = jnp.zeros((B, hidden), jnp.float32)
        _, hs = jax.lax.scan(step, (h0, c0), x_seq)
        return hs

    y = jnp.transpose(x, (1, 0, 2)).astype(jnp.float32)
    for l in range(num_layers):
        p = params["lstm"][l]
        fwd = cell(y, p["w_ih_f"], p["w_hh_f"], p["b_f"])
        bwd = cell(y[::-1], p["w_ih_b"], p["w_hh_b"], p["b_b"])[::-1]
        y = jnp.concatenate([fwd, bwd], axis=-1)
    out = jnp.transpose(y, (1, 0, 2))
    mean = out.mean(-1, keepdims=True)
    var = ((out - mean) ** 2).mean(-1, keepdims=True)
    out = (out - mean) / jnp.sqrt(var + eps) * params["ln_g"] + params["ln_b"]
    scores = jnp.sum(out * params["attn_w"], axis=-1, keepdims=True) + params["attn_b"]
    w = jax.nn.softmax(scores, axis=1)
    ctx = jnp.sum(w * out, axis=1)
    return ctx @ params["fc_w"].T + params["fc_b"]


# ----------------------------------------------------------------------------
# Deterministic parameter init (shapes mirror the PyTorch module)
# ----------------------------------------------------------------------------
def init_params(key, input_size, hidden, num_layers, output_size):
    F = 2 * hidden  # bidirectional feature width
    params = {"lstm": []}
    for l in range(num_layers):
        d_in = input_size if l == 0 else F
        key, *ks = jax.random.split(key, 9)
        layer = {
            "w_ih_f": 0.1 * jax.random.normal(ks[0], (4 * hidden, d_in), jnp.float32),
            "w_hh_f": 0.1 * jax.random.normal(ks[1], (4 * hidden, hidden), jnp.float32),
            "b_f": (0.1 * jax.random.normal(ks[2], (4 * hidden,), jnp.float32)
                    + 0.1 * jax.random.normal(ks[3], (4 * hidden,), jnp.float32)),  # bias_ih + bias_hh
            "w_ih_b": 0.1 * jax.random.normal(ks[4], (4 * hidden, d_in), jnp.float32),
            "w_hh_b": 0.1 * jax.random.normal(ks[5], (4 * hidden, hidden), jnp.float32),
            "b_b": (0.1 * jax.random.normal(ks[6], (4 * hidden,), jnp.float32)
                    + 0.1 * jax.random.normal(ks[7], (4 * hidden,), jnp.float32)),
        }
        params["lstm"].append(layer)
    key, k1, k2, k3, k4 = jax.random.split(key, 5)
    params["ln_g"] = jnp.ones((F,), jnp.float32)
    params["ln_b"] = jnp.zeros((F,), jnp.float32)
    params["attn_w"] = 0.1 * jax.random.normal(k1, (1, F), jnp.float32)
    params["attn_b"] = 0.1 * jax.random.normal(k2, (1,), jnp.float32)
    params["fc_w"] = 0.1 * jax.random.normal(k3, (output_size, F), jnp.float32)
    params["fc_b"] = 0.1 * jax.random.normal(k4, (output_size,), jnp.float32)
    return params


if __name__ == "__main__":
    # Small shapes; T=32 so both the streamed LSTM pipeline (2 time blocks) and the
    # online-softmax head (4 time blocks) exercise their multi-block paths.
    B, T = 2, 32
    input_size, hidden, num_layers, output_size = 8, 32, 2, 4

    key = jax.random.PRNGKey(0)
    kx, kp = jax.random.split(key)
    x = jax.random.normal(kx, (B, T, input_size), jnp.float32)
    params = init_params(kp, input_size, hidden, num_layers, output_size)

    fwd = jax.jit(functools.partial(lstm_model_forward, hidden=hidden, num_layers=num_layers))
    out = jax.block_until_ready(fwd(x, params))

    ref = jax.block_until_ready(ref_forward(x, params, hidden, num_layers))
    assert out.shape == (B, output_size), out.shape
    assert jnp.allclose(out, ref, rtol=2e-3, atol=2e-3), (out, ref)

    print("KERNEL_OK")
</pallas_src>

<mosaic_0001>
module attributes {stable_mosaic.version = 11 : i64} {
  func.func @_bilstm_kernel(%arg0: i32, %arg1: memref<16x2x128xf32, #tpu.memory_space<vmem>>, %arg2: memref<16x2x128xf32, #tpu.memory_space<vmem>>, %arg3: memref<32x128xf32, #tpu.memory_space<vmem>>, %arg4: memref<32x128xf32, #tpu.memory_space<vmem>>, %arg5: memref<16x2x32xf32, #tpu.memory_space<vmem>>, %arg6: memref<16x2x32xf32, #tpu.memory_space<vmem>>, %arg7: memref<2x2x32xf32, #tpu.memory_space<vmem>>, %arg8: memref<2x2x32xf32, #tpu.memory_space<vmem>>) attributes {dimension_semantics = [#tpu.dimension_semantics<arbitrary>], iteration_bounds = array<i64: 2>, scalar_prefetch = 0 : i64, scratch_operands = 2 : i64, tpu.core_type = #tpu.core_type<tc>, window_params = [{transform_indices = @transform_0, window_bounds = array<i64: 16, 2, 128>}, {transform_indices = @transform_1, window_bounds = array<i64: 16, 2, 128>}, {pipeline_mode = #tpu.pipeline_mode<synchronous>, transform_indices = @transform_2, window_bounds = array<i64: 32, 128>}, {pipeline_mode = #tpu.pipeline_mode<synchronous>, transform_indices = @transform_3, window_bounds = array<i64: 32, 128>}, {transform_indices = @transform_4, window_bounds = array<i64: 16, 2, 32>}, {transform_indices = @transform_5, window_bounds = array<i64: 16, 2, 32>}]} {
    %c0_i32 = arith.constant 0 : i32
    %0 = arith.cmpi eq, %arg0, %c0_i32 : i32
    %1 = arith.extui %0 : i1 to i32
    %c0_i32_0 = arith.constant 0 : i32
    %2 = arith.cmpi ne, %1, %c0_i32_0 : i32
    scf.if %2 {
      %cst_543 = arith.constant 0.000000e+00 : f32
      %979 = vector.broadcast %cst_543 : f32 to vector<2x2x32xf32>
      %c0_544 = arith.constant 0 : index
      %c0_545 = arith.constant 0 : index
      %c0_546 = arith.constant 0 : index
      %980 = vector.load %arg7[%c0_544, %c0_545, %c0_546] : memref<2x2x32xf32, #tpu.memory_space<vmem>>, vector<2x2x32xf32>
      tpu.vector_store %arg7[%c0_544, %c0_545, %c0_546], %979 {strides = array<i32>} : memref<2x2x32xf32, #tpu.memory_space<vmem>>, vector<2x2x32xf32>,
      %cst_547 = arith.constant 0.000000e+00 : f32
      %981 = vector.broadcast %cst_547 : f32 to vector<2x2x32xf32>
      %c0_548 = arith.constant 0 : index
      %c0_549 = arith.constant 0 : index
      %c0_550 = arith.constant 0 : index
      %982 = vector.load %arg8[%c0_548, %c0_549, %c0_550] : memref<2x2x32xf32, #tpu.memory_space<vmem>>, vector<2x2x32xf32>
      tpu.vector_store %arg8[%c0_548, %c0_549, %c0_550], %981 {strides = array<i32>} : memref<2x2x32xf32, #tpu.memory_space<vmem>>, vector<2x2x32xf32>,
    } else {
    }
    %c0_i32_1 = arith.constant 0 : i32
    %3 = arith.index_cast %c0_i32_1 : i32 to index
    %c0 = arith.constant 0 : index
    %c0_2 = arith.constant 0 : index
    %4 = vector.load %arg1[%3, %c0, %c0_2] : memref<16x2x128xf32, #tpu.memory_space<vmem>>, vector<1x2x128xf32>
    %5 = vector.shape_cast %4 : vector<1x2x128xf32> to vector<2x128xf32>
    %c0_3 = arith.constant 0 : index
    %c0_4 = arith.constant 0 : index
    %c0_5 = arith.constant 0 : index
    %6 = vector.load %arg7[%c0_3, %c0_4, %c0_5] : memref<2x2x32xf32, #tpu.memory_space<vmem>>, vector<1x2x32xf32>
    %7 = vector.shape_cast %6 : vector<1x2x32xf32> to vector<2x32xf32>
    %c0_6 = arith.constant 0 : index
    %c0_7 = arith.constant 0 : index
    %8 = vector.load %arg3[%c0_6, %c0_7] : memref<32x128xf32, #tpu.memory_space<vmem>>, vector<32x128xf32>
    %cst = arith.constant dense<0.000000e+00> : vector<2x128xf32>
    %9 = tpu.matmul %7, %8, %cst {dimension_numbers = #tpu.dot_dimension_numbers<[1], [0], [0], [1], [0, 0, 1, 1], [], []>} : vector<2x32xf32>, vector<32x128xf32>, vector<2x128xf32> -> vector<2x128xf32>
    %10 = arith.addf %5, %9 : vector<2x128xf32>
    %c15_i32 = arith.constant 15 : i32
    %11 = arith.subi %c15_i32, %c0_i32_1 : i32
    %12 = arith.index_cast %11 : i32 to index
    %c0_8 = arith.constant 0 : index
    %c0_9 = arith.constant 0 : index
    %13 = vector.load %arg2[%12, %c0_8, %c0_9] : memref<16x2x128xf32, #tpu.memory_space<vmem>>, vector<1x2x128xf32>
    %14 = vector.shape_cast %13 : vector<1x2x128xf32> to vector<2x128xf32>
    %c1 = arith.constant 1 : index
    %c0_10 = arith.constant 0 : index
    %c0_11 = arith.constant 0 : index
    %15 = vector.load %arg7[%c1, %c0_10, %c0_11] : memref<2x2x32xf32, #tpu.memory_space<vmem>>, vector<1x2x32xf32>
    %16 = vector.shape_cast %15 : vector<1x2x32xf32> to vector<2x32xf32>
    %c0_12 = arith.constant 0 : index
    %c0_13 = arith.constant 0 : index
    %17 = vector.load %arg4[%c0_12, %c0_13] : memref<32x128xf32, #tpu.memory_space<vmem>>, vector<32x128xf32>
    %cst_14 = arith.constant dense<0.000000e+00> : vector<2x128xf32>
    %18 = tpu.matmul %16, %17, %cst_14 {dimension_numbers = #tpu.dot_dimension_numbers<[1], [0], [0], [1], [0, 0, 1, 1], [], []>} : vector<2x32xf32>, vector<32x128xf32>, vector<2x128xf32> -> vector<2x128xf32>
    %19 = arith.addf %14, %18 : vector<2x128xf32>
    %20 = vector.shape_cast %10 : vector<2x128xf32> to vector<1x2x128xf32>
    %21 = vector.shape_cast %19 : vector<2x128xf32> to vector<1x2x128xf32>
    %22 = tpu.concatenate %20, %21 in 0 : vector<1x2x128xf32>, vector<1x2x128xf32> -> vector<2x2x128xf32>
    %23 = vector.extract_strided_slice %22 {offsets = [0, 0, 0], sizes = [2, 2, 32], strides = [1, 1, 1]} : vector<2x2x128xf32> to vector<2x2x32xf32>
    %24 = arith.negf %23 : vector<2x2x32xf32>
    %25 = math.exp %24 : vector<2x2x32xf32>
    %cst_15 = arith.constant 1.000000e+00 : f32
    %26 = vector.broadcast %cst_15 : f32 to vector<2x2x32xf32>
    %27 = arith.addf %26, %25 : vector<2x2x32xf32>
    %28 = arith.divf %26, %27 : vector<2x2x32xf32>
    %29 = vector.extract_strided_slice %22 {offsets = [0, 0, 32], sizes = [2, 2, 32], strides = [1, 1, 1]} : vector<2x2x128xf32> to vector<2x2x32xf32>
    %30 = arith.negf %29 : vector<2x2x32xf32>
    %31 = math.exp %30 : vector<2x2x32xf32>
    %cst_16 = arith.constant 1.000000e+00 : f32
    %32 = vector.broadcast %cst_16 : f32 to vector<2x2x32xf32>
    %33 = arith.addf %32, %31 : vector<2x2x32xf32>
    %34 = arith.divf %32, %33 : vector<2x2x32xf32>
    %35 = vector.extract_strided_slice %22 {offsets = [0, 0, 64], sizes = [2, 2, 32], strides = [1, 1, 1]} : vector<2x2x128xf32> to vector<2x2x32xf32>
    %36 = math.tanh %35 : vector<2x2x32xf32>
    %37 = vector.extract_strided_slice %22 {offsets = [0, 0, 96], sizes = [2, 2, 32], strides = [1, 1, 1]} : vector<2x2x128xf32> to vector<2x2x32xf32>
    %38 = arith.negf %37 : vector<2x2x32xf32>
    %39 = math.exp %38 : vector<2x2x32xf32>
    %cst_17 = arith.constant 1.000000e+00 : f32
    %40 = vector.broadcast %cst_17 : f32 to vector<2x2x32xf32>
    %41 = arith.addf %40, %39 : vector<2x2x32xf32>
    %42 = arith.divf %40, %41 : vector<2x2x32xf32>
    %c0_18 = arith.constant 0 : index
    %c0_19 = arith.constant 0 : index
    %c0_20 = arith.constant 0 : index
    %43 = vector.load %arg8[%c0_18, %c0_19, %c0_20] : memref<2x2x32xf32, #tpu.memory_space<vmem>>, vector<2x2x32xf32>
    %44 = arith.mulf %34, %43 : vector<2x2x32xf32>
    %45 = arith.mulf %28, %36 : vector<2x2x32xf32>
    %46 = arith.addf %44, %45 : vector<2x2x32xf32>
    %47 = math.tanh %46 : vector<2x2x32xf32>
    %48 = arith.mulf %42, %47 : vector<2x2x32xf32>
    %c0_21 = arith.constant 0 : index
    %c0_22 = arith.constant 0 : index
    %c0_23 = arith.constant 0 : index
    %49 = vector.load %arg7[%c0_21, %c0_22, %c0_23] : memref<2x2x32xf32, #tpu.memory_space<vmem>>, vector<2x2x32xf32>
    tpu.vector_store %arg7[%c0_21, %c0_22, %c0_23], %48 {strides = array<i32>} : memref<2x2x32xf32, #tpu.memory_space<vmem>>, vector<2x2x32xf32>,
    %c0_24 = arith.constant 0 : index
    %c0_25 = arith.constant 0 : index
    %c0_26 = arith.constant 0 : index
    %50 = vector.load %arg8[%c0_24, %c0_25, %c0_26] : memref<2x2x32xf32, #tpu.memory_space<vmem>>, vector<2x2x32xf32>
    tpu.vector_store %arg8[%c0_24, %c0_25, %c0_26], %46 {strides = array<i32>} : memref<2x2x32xf32, #tpu.memory_space<vmem>>, vector<2x2x32xf32>,
    %51 = vector.extract_strided_slice %48 {offsets = [0, 0, 0], sizes = [1, 2, 32], strides = [1, 1, 1]} : vector<2x2x32xf32> to vector<1x2x32xf32>
    %52 = vector.shape_cast %51 : vector<1x2x32xf32> to vector<2x32xf32>
    %53 = arith.index_cast %c0_i32_1 : i32 to index
    %c0_27 = arith.constant 0 : index
    %c0_28 = arith.constant 0 : index
    %54 = vector.load %arg5[%53, %c0_27, %c0_28] : memref<16x2x32xf32, #tpu.memory_space<vmem>>, vector<1x2x32xf32>
    %55 = vector.shape_cast %54 : vector<1x2x32xf32> to vector<2x32xf32>
    %56 = vector.shape_cast %52 : vector<2x32xf32> to vector<1x2x32xf32>
    tpu.vector_store %arg5[%53, %c0_27, %c0_28], %56 {strides = array<i32>} : memref<16x2x32xf32, #tpu.memory_space<vmem>>, vector<1x2x32xf32>,
    %57 = vector.extract_strided_slice %48 {offsets = [1, 0, 0], sizes = [1, 2, 32], strides = [1, 1, 1]} : vector<2x2x32xf32> to vector<1x2x32xf32>
    %58 = vector.shape_cast %57 : vector<1x2x32xf32> to vector<2x32xf32>
    %c15_i32_29 = arith.constant 15 : i32
    %59 = arith.subi %c15_i32_29, %c0_i32_1 : i32
    %60 = arith.index_cast %59 : i32 to index
    %c0_30 = arith.constant 0 : index
    %c0_31 = arith.constant 0 : index
    %61 = vector.load %arg6[%60, %c0_30, %c0_31] : memref<16x2x32xf32, #tpu.memory_space<vmem>>, vector<1x2x32xf32>
    %62 = vector.shape_cast %61 : vector<1x2x32xf32> to vector<2x32xf32>
    %63 = vector.shape_cast %58 : vector<2x32xf32> to vector<1x2x32xf32>
    tpu.vector_store %arg6[%60, %c0_30, %c0_31], %63 {strides = array<i32>} : memref<16x2x32xf32, #tpu.memory_space<vmem>>, vector<1x2x32xf32>,
    %c1_i32 = arith.constant 1 : i32
    %64 = arith.index_cast %c1_i32 : i32 to index
    %c0_32 = arith.constant 0 : index
    %c0_33 = arith.constant 0 : index
    %65 = vector.load %arg1[%64, %c0_32, %c0_33] : memref<16x2x128xf32, #tpu.memory_space<vmem>>, vector<1x2x128xf32>
    %66 = vector.shape_cast %65 : vector<1x2x128xf32> to vector<2x128xf32>
    %c0_34 = arith.constant 0 : index
    %c0_35 = arith.constant 0 : index
    %c0_36 = arith.constant 0 : index
    %67 = vector.load %arg7[%c0_34, %c0_35, %c0_36] : memref<2x2x32xf32, #tpu.memory_space<vmem>>, vector<1x2x32xf32>
    %68 = vector.shape_cast %67 : vector<1x2x32xf32> to vector<2x32xf32>
    %c0_37 = arith.constant 0 : index
    %c0_38 = arith.constant 0 : index
    %69 = vector.load %arg3[%c0_37, %c0_38] : memref<32x128xf32, #tpu.memory_space<vmem>>, vector<32x128xf32>
    %cst_39 = arith.constant dense<0.000000e+00> : vector<2x128xf32>
    %70 = tpu.matmul %68, %69, %cst_39 {dimension_numbers = #tpu.dot_dimension_numbers<[1], [0], [0], [1], [0, 0, 1, 1], [], []>} : vector<2x32xf32>, vector<32x128xf32>, vector<2x128xf32> -> vector<2x128xf32>
    %71 = arith.addf %66, %70 : vector<2x128xf32>
    %c15_i32_40 = arith.constant 15 : i32
    %72 = arith.subi %c15_i32_40, %c1_i32 : i32
    %73 = arith.index_cast %72 : i32 to index
    %c0_41 = arith.constant 0 : index
    %c0_42 = arith.constant 0 : index
    %74 = vector.load %arg2[%73, %c0_41, %c0_42] : memref<16x2x128xf32, #tpu.memory_space<vmem>>, vector<1x2x128xf32>
    %75 = vector.shape_cast %74 : vector<1x2x128xf32> to vector<2x128xf32>
    %c1_43 = arith.constant 1 : index
    %c0_44 = arith.constant 0 : index
    %c0_45 = arith.constant 0 : index
    %76 = vector.load %arg7[%c1_43, %c0_44, %c0_45] : memref<2x2x32xf32, #tpu.memory_space<vmem>>, vector<1x2x32xf32>
    %77 = vector.shape_cast %76 : vector<1x2x32xf32> to vector<2x32xf32>
    %c0_46 = arith.constant 0 : index
    %c0_47 = arith.constant 0 : index
    %78 = vector.load %arg4[%c0_46, %c0_47] : memref<32x128xf32, #tpu.memory_space<vmem>>, vector<32x128xf32>
    %cst_48 = arith.constant dense<0.000000e+00> : vector<2x128xf32>
    %79 = tpu.matmul %77, %78, %cst_48 {dimension_numbers = #tpu.dot_dimension_numbers<[1], [0], [0], [1], [0, 0, 1, 1], [], []>} : vector<2x32xf32>, vector<32x128xf32>, vector<2x128xf32> -> vector<2x128xf32>
    %80 = arith.addf %75, %79 : vector<2x128xf32>
    %81 = vector.shape_cast %71 : vector<2x128xf32> to vector<1x2x128xf32>
    %82 = vector.shape_cast %80 : vector<2x128xf32> to vector<1x2x128xf32>
    %83 = tpu.concatenate %81, %82 in 0 : vector<1x2x128xf32>, vector<1x2x128xf32> -> vector<2x2x128xf32>
    %84 = vector.extract_strided_slice %83 {offsets = [0, 0, 0], sizes = [2, 2, 32], strides = [1, 1, 1]} : vector<2x2x128xf32> to vector<2x2x32xf32>
    %85 = arith.negf %84 : vector<2x2x32xf32>
    %86 = math.exp %85 : vector<2x2x32xf32>
    %cst_49 = arith.constant 1.000000e+00 : f32
    %87 = vector.broadcast %cst_49 : f32 to vector<2x2x32xf32>
    %88 = arith.addf %87, %86 : vector<2x2x32xf32>
    %89 = arith.divf %87, %88 : vector<2x2x32xf32>
    %90 = vector.extract_strided_slice %83 {offsets = [0, 0, 32], sizes = [2, 2, 32], strides = [1, 1, 1]} : vector<2x2x128xf32> to vector<2x2x32xf32>
    %91 = arith.negf %90 : vector<2x2x32xf32>
    %92 = math.exp %91 : vector<2x2x32xf32>
    %cst_50 = arith.constant 1.000000e+00 : f32
    %93 = vector.broadcast %cst_50 : f32 to vector<2x2x32xf32>
    %94 = arith.addf %93, %92 : vector<2x2x32xf32>
    %95 = arith.divf %93, %94 : vector<2x2x32xf32>
    %96 = vector.extract_strided_slice %83 {offsets = [0, 0, 64], sizes = [2, 2, 32], strides = [1, 1, 1]} : vector<2x2x128xf32> to vector<2x2x32xf32>
    %97 = math.tanh %96 : vector<2x2x32xf32>
    %98 = vector.extract_strided_slice %83 {offsets = [0, 0, 96], sizes = [2, 2, 32], strides = [1, 1, 1]} : vector<2x2x128xf32> to vector<2x2x32xf32>
    %99 = arith.negf %98 : vector<2x2x32xf32>
    %100 = math.exp %99 : vector<2x2x32xf32>
    %cst_51 = arith.constant 1.000000e+00 : f32
    %101 = vector.broadcast %cst_51 : f32 to vector<2x2x32xf32>
    %102 = arith.addf %101, %100 : vector<2x2x32xf32>
    %103 = arith.divf %101, %102 : vector<2x2x32xf32>
    %c0_52 = arith.constant 0 : index
    %c0_53 = arith.constant 0 : index
    %c0_54 = arith.constant 0 : index
    %104 = vector.load %arg8[%c0_52, %c0_53, %c0_54] : memref<2x2x32xf32, #tpu.memory_space<vmem>>, vector<2x2x32xf32>
    %105 = arith.mulf %95, %104 : vector<2x2x32xf32>
    %106 = arith.mulf %89, %97 : vector<2x2x32xf32>
    %107 = arith.addf %105, %106 : vector<2x2x32xf32>
    %108 = math.tanh %107 : vector<2x2x32xf32>
    %109 = arith.mulf %103, %108 : vector<2x2x32xf32>
    %c0_55 = arith.constant 0 : index
    %c0_56 = arith.constant 0 : index
    %c0_57 = arith.constant 0 : index
    %110 = vector.load %arg7[%c0_55, %c0_56, %c0_57] : memref<2x2x32xf32, #tpu.memory_space<vmem>>, vector<2x2x32xf32>
    tpu.vector_store %arg7[%c0_55, %c0_56, %c0_57], %109 {strides = array<i32>} : memref<2x2x32xf32, #tpu.memory_space<vmem>>, vector<2x2x32xf32>,
    %c0_58 = arith.constant 0 : index
    %c0_59 = arith.constant 0 : index
    %c0_60 = arith.constant 0 : index
    %111 = vector.load %arg8[%c0_58, %c0_59, %c0_60] : memref<2x2x32xf32, #tpu.memory_space<vmem>>, vector<2x2x32xf32>
    tpu.vector_store %arg8[%c0_58, %c0_59, %c0_60], %107 {strides = array<i32>} : memref<2x2x32xf32, #tpu.memory_space<vmem>>, vector<2x2x32xf32>,
    %112 = vector.extract_strided_slice %109 {offsets = [0, 0, 0], sizes = [1, 2, 32], strides = [1, 1, 1]} : vector<2x2x32xf32> to vector<1x2x32xf32>
    %113 = vector.shape_cast %112 : vector<1x2x32xf32> to vector<2x32xf32>
    %114 = arith.index_cast %c1_i32 : i32 to index
    %c0_61 = arith.constant 0 : index
    %c0_62 = arith.constant 0 : index
    %115 = vector.load %arg5[%114, %c0_61, %c0_62] : memref<16x2x32xf32, #tpu.memory_space<vmem>>, vector<1x2x32xf32>
    %116 = vector.shape_cast %115 : vector<1x2x32xf32> to vector<2x32xf32>
    %117 = vector.shape_cast %113 : vector<2x32xf32> to vector<1x2x32xf32>
    tpu.vector_store %arg5[%114, %c0_61, %c0_62], %117 {strides = array<i32>} : memref<16x2x32xf32, #tpu.memory_space<vmem>>, vector<1x2x32xf32>,
    %118 = vector.extract_strided_slice %109 {offsets = [1, 0, 0], sizes = [1, 2, 32], strides = [1, 1, 1]} : vector<2x2x32xf32> to vector<1x2x32xf32>
    %119 = vector.shape_cast %118 : vector<1x2x32xf32> to vector<2x32xf32>
    %c15_i32_63 = arith.constant 15 : i32
    %120 = arith.subi %c15_i32_63, %c1_i32 : i32
    %121 = arith.index_cast %120 : i32 to index
    %c0_64 = arith.constant 0 : index
    %c0_65 = arith.constant 0 : index
    %122 = vector.load %arg6[%121, %c0_64, %c0_65] : memref<16x2x32xf32, #tpu.memory_space<vmem>>, vector<1x2x32xf32>
    %123 = vector.shape_cast %122 : vector<1x2x32xf32> to vector<2x32xf32>
    %124 = vector.shape_cast %119 : vector<2x32xf32> to vector<1x2x32xf32>
    tpu.vector_store %arg6[%121, %c0_64, %c0_65], %124 {strides = array<i32>} : memref<16x2x32xf32, #tpu.memory_space<vmem>>, vector<1x2x32xf32>,
    %c2_i32 = arith.constant 2 : i32
    %125 = arith.index_cast %c2_i32 : i32 to index
    %c0_66 = arith.constant 0 : index
    %c0_67 = arith.constant 0 : index
    %126 = vector.load %arg1[%125, %c0_66, %c0_67] : memref<16x2x128xf32, #tpu.memory_space<vmem>>, vector<1x2x128xf32>
    %127 = vector.shape_cast %126 : vector<1x2x128xf32> to vector<2x128xf32>
    %c0_68 = arith.constant 0 : index
    %c0_69 = arith.constant 0 : index
    %c0_70 = arith.constant 0 : index
    %128 = vector.load %arg7[%c0_68, %c0_69, %c0_70] : memref<2x2x32xf32, #tpu.memory_space<vmem>>, vector<1x2x32xf32>
    %129 = vector.shape_cast %128 : vector<1x2x32xf32> to vector<2x32xf32>
    %c0_71 = arith.constant 0 : index
    %c0_72 = arith.constant 0 : index
    %130 = vector.load %arg3[%c0_71, %c0_72] : memref<32x128xf32, #tpu.memory_space<vmem>>, vector<32x128xf32>
    %cst_73 = arith.constant dense<0.000000e+00> : vector<2x128xf32>
    %131 = tpu.matmul %129, %130, %cst_73 {dimension_numbers = #tpu.dot_dimension_numbers<[1], [0], [0], [1], [0, 0, 1, 1], [], []>} : vector<2x32xf32>, vector<32x128xf32>, vector<2x128xf32> -> vector<2x128xf32>
    %132 = arith.addf %127, %131 : vector<2x128xf32>
    %c15_i32_74 = arith.constant 15 : i32
    %133 = arith.subi %c15_i32_74, %c2_i32 : i32
    %134 = arith.index_cast %133 : i32 to index
    %c0_75 = arith.constant 0 : index
    %c0_76 = arith.constant 0 : index
    %135 = vector.load %arg2[%134, %c0_75, %c0_76] : memref<16x2x128xf32, #tpu.memory_space<vmem>>, vector<1x2x128xf32>
    %136 = vector.shape_cast %135 : vector<1x2x128xf32> to vector<2x128xf32>
    %c1_77 = arith.constant 1 : index
    %c0_78 = arith.constant 0 : index
    %c0_79 = arith.constant 0 : index
    %137 = vector.load %arg7[%c1_77, %c0_78, %c0_79] : memref<2x2x32xf32, #tpu.memory_space<vmem>>, vector<1x2x32xf32>
    %138 = vector.shape_cast %137 : vector<1x2x32xf32> to vector<2x32xf32>
    %c0_80 = arith.constant 0 : index
    %c0_81 = arith.constant 0 : index
    %139 = vector.load %arg4[%c0_80, %c0_81] : memref<32x128xf32, #tpu.memory_space<vmem>>, vector<32x128xf32>
    %cst_82 = arith.constant dense<0.000000e+00> : vector<2x128xf32>
    %140 = tpu.matmul %138, %139, %cst_82 {dimension_numbers = #tpu.dot_dimension_numbers<[1], [0], [0], [1], [0, 0, 1, 1], [], []>} : vector<2x32xf32>, vector<32x128xf32>, vector<2x128xf32> -> vector<2x128xf32>
    %141 = arith.addf %136, %140 : vector<2x128xf32>
    %142 = vector.shape_cast %132 : vector<2x128xf32> to vector<1x2x128xf32>
    %143 = vector.shape_cast %141 : vector<2x128xf32> to vector<1x2x128xf32>
    %144 = tpu.concatenate %142, %143 in 0 : vector<1x2x128xf32>, vector<1x2x128xf32> -> vector<2x2x128xf32>
    %145 = vector.extract_strided_slice %144 {offsets = [0, 0, 0], sizes = [2, 2, 32], strides = [1, 1, 1]} : vector<2x2x128xf32> to vector<2x2x32xf32>
    %146 = arith.negf %145 : vector<2x2x32xf32>
    %147 = math.exp %146 : vector<2x2x32xf32>
    %cst_83 = arith.constant 1.000000e+00 : f32
    %148 = vector.broadcast %cst_83 : f32 to vector<2x2x32xf32>
    %149 = arith.addf %148, %147 : vector<2x2x32xf32>
    %150 = arith.divf %148, %149 : vector<2x2x32xf32>
    %151 = vector.extract_strided_slice %144 {offsets = [0, 0, 32], sizes = [2, 2, 32], strides = [1, 1, 1]} : vector<2x2x128xf32> to vector<2x2x32xf32>
    %152 = arith.negf %151 : vector<2x2x32xf32>
    %153 = math.exp %152 : vector<2x2x32xf32>
    %cst_84 = arith.constant 1.000000e+00 : f32
    %154 = vector.broadcast %cst_84 : f32 to vector<2x2x32xf32>
    %155 = arith.addf %154, %153 : vector<2x2x32xf32>
    %156 = arith.divf %154, %155 : vector<2x2x32xf32>
    %157 = vector.extract_strided_slice %144 {offsets = [0, 0, 64], sizes = [2, 2, 32], strides = [1, 1, 1]} : vector<2x2x128xf32> to vector<2x2x32xf32>
    %158 = math.tanh %157 : vector<2x2x32xf32>
    %159 = vector.extract_strided_slice %144 {offsets = [0, 0, 96], sizes = [2, 2, 32], strides = [1, 1, 1]} : vector<2x2x128xf32> to vector<2x2x32xf32>
    %160 = arith.negf %159 : vector<2x2x32xf32>
    %161 = math.exp %160 : vector<2x2x32xf32>
    %cst_85 = arith.constant 1.000000e+00 : f32
    %162 = vector.broadcast %cst_85 : f32 to vector<2x2x32xf32>
    %163 = arith.addf %162, %161 : vector<2x2x32xf32>
    %164 = arith.divf %162, %163 : vector<2x2x32xf32>
    %c0_86 = arith.constant 0 : index
    %c0_87 = arith.constant 0 : index
    %c0_88 = arith.constant 0 : index
    %165 = vector.load %arg8[%c0_86, %c0_87, %c0_88] : memref<2x2x32xf32, #tpu.memory_space<vmem>>, vector<2x2x32xf32>
    %166 = arith.mulf %156, %165 : vector<2x2x32xf32>
    %167 = arith.mulf %150, %158 : vector<2x2x32xf32>
    %168 = arith.addf %166, %167 : vector<2x2x32xf32>
    %169 = math.tanh %168 : vector<2x2x32xf32>
    %170 = arith.mulf %164, %169 : vector<2x2x32xf32>
    %c0_89 = arith.constant 0 : index
    %c0_90 = arith.constant 0 : index
    %c0_91 = arith.constant 0 : index
    %171 = vector.load %arg7[%c0_89, %c0_90, %c0_91] : memref<2x2x32xf32, #tpu.memory_space<vmem>>, vector<2x2x32xf32>
    tpu.vector_store %arg7[%c0_89, %c0_90, %c0_91], %170 {strides = array<i32>} : memref<2x2x32xf32, #tpu.memory_space<vmem>>, vector<2x2x32xf32>,
    %c0_92 = arith.constant 0 : index
    %c0_93 = arith.constant 0 : index
    %c0_94 = arith.constant 0 : index
    %172 = vector.load %arg8[%c0_92, %c0_93, %c0_94] : memref<2x2x32xf32, #tpu.memory_space<vmem>>, vector<2x2x32xf32>
    tpu.vector_store %arg8[%c0_92, %c0_93, %c0_94], %168 {strides = array<i32>} : memref<2x2x32xf32, #tpu.memory_space<vmem>>, vector<2x2x32xf32>,
    %173 = vector.extract_strided_slice %170 {offsets = [0, 0, 0], sizes = [1, 2, 32], strides = [1, 1, 1]} : vector<2x2x32xf32> to vector<1x2x32xf32>
    %174 = vector.shape_cast %173 : vector<1x2x32xf32> to vector<2x32xf32>
    %175 = arith.index_cast %c2_i32 : i32 to index
    %c0_95 = arith.constant 0 : index
    %c0_96 = arith.constant 0 : index
    %176 = vector.load %arg5[%175, %c0_95, %c0_96] : memref<16x2x32xf32, #tpu.memory_space<vmem>>, vector<1x2x32xf32>
    %177 = vector.shape_cast %176 : vector<1x2x32xf32> to vector<2x32xf32>
    %178 = vector.shape_cast %174 : vector<2x32xf32> to vector<1x2x32xf32>
    tpu.vector_store %arg5[%175, %c0_95, %c0_96], %178 {strides = array<i32>} : memref<16x2x32xf32, #tpu.memory_space<vmem>>, vector<1x2x32xf32>,
    %179 = vector.extract_strided_slice %170 {offsets = [1, 0, 0], sizes = [1, 2, 32], strides = [1, 1, 1]} : vector<2x2x32xf32> to vector<1x2x32xf32>
    %180 = vector.shape_cast %179 : vector<1x2x32xf32> to vector<2x32xf32>
    %c15_i32_97 = arith.constant 15 : i32
    %181 = arith.subi %c15_i32_97, %c2_i32 : i32
    %182 = arith.index_cast %181 : i32 to index
    %c0_98 = arith.constant 0 : index
    %c0_99 = arith.constant 0 : index
    %183 = vector.load %arg6[%182, %c0_98, %c0_99] : memref<16x2x32xf32, #tpu.memory_space<vmem>>, vector<1x2x32xf32>
    %184 = vector.shape_cast %183 : vector<1x2x32xf32> to vector<2x32xf32>
    %185 = vector.shape_cast %180 : vector<2x32xf32> to vector<1x2x32xf32>
    tpu.vector_store %arg6[%182, %c0_98, %c0_99], %185 {strides = array<i32>} : memref<16x2x32xf32, #tpu.memory_space<vmem>>, vector<1x2x32xf32>,
    %c3_i32 = arith.constant 3 : i32
    %186 = arith.index_cast %c3_i32 : i32 to index
    %c0_100 = arith.constant 0 : index
    %c0_101 = arith.constant 0 : index
    %187 = vector.load %arg1[%186, %c0_100, %c0_101] : memref<16x2x128xf32, #tpu.memory_space<vmem>>, vector<1x2x128xf32>
    %188 = vector.shape_cast %187 : vector<1x2x128xf32> to vector<2x128xf32>
    %c0_102 = arith.constant 0 : index
    %c0_103 = arith.constant 0 : index
    %c0_104 = arith.constant 0 : index
    %189 = vector.load %arg7[%c0_102, %c0_103, %c0_104] : memref<2x2x32xf32, #tpu.memory_space<vmem>>, vector<1x2x32xf32>
    %190 = vector.shape_cast %189 : vector<1x2x32xf32> to vector<2x32xf32>
    %c0_105 = arith.constant 0 : index
    %c0_106 = arith.constant 0 : index
    %191 = vector.load %arg3[%c0_105, %c0_106] : memref<32x128xf32, #tpu.memory_space<vmem>>, vector<32x128xf32>
    %cst_107 = arith.constant dense<0.000000e+00> : vector<2x128xf32>
    %192 = tpu.matmul %190, %191, %cst_107 {dimension_numbers = #tpu.dot_dimension_numbers<[1], [0], [0], [1], [0, 0, 1, 1], [], []>} : vector<2x32xf32>, vector<32x128xf32>, vector<2x128xf32> -> vector<2x128xf32>
    %193 = arith.addf %188, %192 : vector<2x128xf32>
    %c15_i32_108 = arith.constant 15 : i32
    %194 = arith.subi %c15_i32_108, %c3_i32 : i32
    %195 = arith.index_cast %194 : i32 to index
    %c0_109 = arith.constant 0 : index
    %c0_110 = arith.constant 0 : index
    %196 = vector.load %arg2[%195, %c0_109, %c0_110] : memref<16x2x128xf32, #tpu.memory_space<vmem>>, vector<1x2x128xf32>
    %197 = vector.shape_cast %196 : vector<1x2x128xf32> to vector<2x128xf32>
    %c1_111 = arith.constant 1 : index
    %c0_112 = arith.constant 0 : index
    %c0_113 = arith.constant 0 : index
    %198 = vector.load %arg7[%c1_111, %c0_112, %c0_113] : memref<2x2x32xf32, #tpu.memory_space<vmem>>, vector<1x2x32xf32>
    %199 = vector.shape_cast %198 : vector<1x2x32xf32> to vector<2x32xf32>
    %c0_114 = arith.constant 0 : index
    %c0_115 = arith.constant 0 : index
    %200 = vector.load %arg4[%c0_114, %c0_115] : memref<32x128xf32, #tpu.memory_space<vmem>>, vector<32x128xf32>
    %cst_116 = arith.constant dense<0.000000e+00> : vector<2x128xf32>
    %201 = tpu.matmul %199, %200, %cst_116 {dimension_numbers = #tpu.dot_dimension_numbers<[1], [0], [0], [1], [0, 0, 1, 1], [], []>} : vector<2x32xf32>, vector<32x128xf32>, vector<2x128xf32> -> vector<2x128xf32>
    %202 = arith.addf %197, %201 : vector<2x128xf32>
    %203 = vector.shape_cast %193 : vector<2x128xf32> to vector<1x2x128xf32>
    %204 = vector.shape_cast %202 : vector<2x128xf32> to vector<1x2x128xf32>
    %205 = tpu.concatenate %203, %204 in 0 : vector<1x2x128xf32>, vector<1x2x128xf32> -> vector<2x2x128xf32>
    %206 = vector.extract_strided_slice %205 {offsets = [0, 0, 0], sizes = [2, 2, 32], strides = [1, 1, 1]} : vector<2x2x128xf32> to vector<2x2x32xf32>
    %207 = arith.negf %206 : vector<2x2x32xf32>
    %208 = math.exp %207 : vector<2x2x32xf32>
    %cst_117 = arith.constant 1.000000e+00 : f32
    %209 = vector.broadcast %cst_117 : f32 to vector<2x2x32xf32>
    %210 = arith.addf %209, %208 : vector<2x2x32xf32>
    %211 = arith.divf %209, %210 : vector<2x2x32xf32>
    %212 = vector.extract_strided_slice %205 {offsets = [0, 0, 32], sizes = [2, 2, 32], strides = [1, 1, 1]} : vector<2x2x128xf32> to vector<2x2x32xf32>
    %213 = arith.negf %212 : vector<2x2x32xf32>
    %214 = math.exp %213 : vector<2x2x32xf32>
    %cst_118 = arith.constant 1.000000e+00 : f32
    %215 = vector.broadcast %cst_118 : f32 to vector<2x2x32xf32>
    %216 = arith.addf %215, %214 : vector<2x2x32xf32>
    %217 = arith.divf %215, %216 : vector<2x2x32xf32>
    %218 = vector.extract_strided_slice %205 {offsets = [0, 0, 64], sizes = [2, 2, 32], strides = [1, 1, 1]} : vector<2x2x128xf32> to vector<2x2x32xf32>
    %219 = math.tanh %218 : vector<2x2x32xf32>
    %220 = vector.extract_strided_slice %205 {offsets = [0, 0, 96], sizes = [2, 2, 32], strides = [1, 1, 1]} : vector<2x2x128xf32> to vector<2x2x32xf32>
    %221 = arith.negf %220 : vector<2x2x32xf32>
    %222 = math.exp %221 : vector<2x2x32xf32>
    %cst_119 = arith.constant 1.000000e+00 : f32
    %223 = vector.broadcast %cst_119 : f32 to vector<2x2x32xf32>
    %224 = arith.addf %223, %222 : vector<2x2x32xf32>
    %225 = arith.divf %223, %224 : vector<2x2x32xf32>
    %c0_120 = arith.constant 0 : index
    %c0_121 = arith.constant 0 : index
    %c0_122 = arith.constant 0 : index
    %226 = vector.load %arg8[%c0_120, %c0_121, %c0_122] : memref<2x2x32xf32, #tpu.memory_space<vmem>>, vector<2x2x32xf32>
    %227 = arith.mulf %217, %226 : vector<2x2x32xf32>
    %228 = arith.mulf %211, %219 : vector<2x2x32xf32>
    %229 = arith.addf %227, %228 : vector<2x2x32xf32>
    %230 = math.tanh %229 : vector<2x2x32xf32>
    %231 = arith.mulf %225, %230 : vector<2x2x32xf32>
    %c0_123 = arith.constant 0 : index
    %c0_124 = arith.constant 0 : index
    %c0_125 = arith.constant 0 : index
    %232 = vector.load %arg7[%c0_123, %c0_124, %c0_125] : memref<2x2x32xf32, #tpu.memory_space<vmem>>, vector<2x2x32xf32>
    tpu.vector_store %arg7[%c0_123, %c0_124, %c0_125], %231 {strides = array<i32>} : memref<2x2x32xf32, #tpu.memory_space<vmem>>, vector<2x2x32xf32>,
    %c0_126 = arith.constant 0 : index
    %c0_127 = arith.constant 0 : index
    %c0_128 = arith.constant 0 : index
    %233 = vector.load %arg8[%c0_126, %c0_127, %c0_128] : memref<2x2x32xf32, #tpu.memory_space<vmem>>, vector<2x2x32xf32>
    tpu.vector_store %arg8[%c0_126, %c0_127, %c0_128], %229 {strides = array<i32>} : memref<2x2x32xf32, #tpu.memory_space<vmem>>, vector<2x2x32xf32>,
    %234 = vector.extract_strided_slice %231 {offsets = [0, 0, 0], sizes = [1, 2, 32], strides = [1, 1, 1]} : vector<2x2x32xf32> to vector<1x2x32xf32>
    %235 = vector.shape_cast %234 : vector<1x2x32xf32> to vector<2x32xf32>
    %236 = arith.index_cast %c3_i32 : i32 to index
    %c0_129 = arith.constant 0 : index
    %c0_130 = arith.constant 0 : index
    %237 = vector.load %arg5[%236, %c0_129, %c0_130] : memref<16x2x32xf32, #tpu.memory_space<vmem>>, vector<1x2x32xf32>
    %238 = vector.shape_cast %237 : vector<1x2x32xf32> to vector<2x32xf32>
    %239 = vector.shape_cast %235 : vector<2x32xf32> to vector<1x2x32xf32>
    tpu.vector_store %arg5[%236, %c0_129, %c0_130], %239 {strides = array<i32>} : memref<16x2x32xf32, #tpu.memory_space<vmem>>, vector<1x2x32xf32>,
    %240 = vector.extract_strided_slice %231 {offsets = [1, 0, 0], sizes = [1, 2, 32], strides = [1, 1, 1]} : vector<2x2x32xf32> to vector<1x2x32xf32>
    %241 = vector.shape_cast %240 : vector<1x2x32xf32> to vector<2x32xf32>
    %c15_i32_131 = arith.constant 15 : i32
    %242 = arith.subi %c15_i32_131, %c3_i32 : i32
    %243 = arith.index_cast %242 : i32 to index
    %c0_132 = arith.constant 0 : index
    %c0_133 = arith.constant 0 : index
    %244 = vector.load %arg6[%243, %c0_132, %c0_133] : memref<16x2x32xf32, #tpu.memory_space<vmem>>, vector<1x2x32xf32>
    %245 = vector.shape_cast %244 : vector<1x2x32xf32> to vector<2x32xf32>
    %246 = vector.shape_cast %241 : vector<2x32xf32> to vector<1x2x32xf32>
    tpu.vector_store %arg6[%243, %c0_132, %c0_133], %246 {strides = array<i32>} : memref<16x2x32xf32, #tpu.memory_space<vmem>>, vector<1x2x32xf32>,
    %c4_i32 = arith.constant 4 : i32
    %247 = arith.index_cast %c4_i32 : i32 to index
    %c0_134 = arith.constant 0 : index
    %c0_135 = arith.constant 0 : index
    %248 = vector.load %arg1[%247, %c0_134, %c0_135] : memref<16x2x128xf32, #tpu.memory_space<vmem>>, vector<1x2x128xf32>
    %249 = vector.shape_cast %248 : vector<1x2x128xf32> to vector<2x128xf32>
    %c0_136 = arith.constant 0 : index
    %c0_137 = arith.constant 0 : index
    %c0_138 = arith.constant 0 : index
    %250 = vector.load %arg7[%c0_136, %c0_137, %c0_138] : memref<2x2x32xf32, #tpu.memory_space<vmem>>, vector<1x2x32xf32>
    %251 = vector.shape_cast %250 : vector<1x2x32xf32> to vector<2x32xf32>
    %c0_139 = arith.constant 0 : index
    %c0_140 = arith.constant 0 : index
    %252 = vector.load %arg3[%c0_139, %c0_140] : memref<32x128xf32, #tpu.memory_space<vmem>>, vector<32x128xf32>
    %cst_141 = arith.constant dense<0.000000e+00> : vector<2x128xf32>
    %253 = tpu.matmul %251, %252, %cst_141 {dimension_numbers = #tpu.dot_dimension_numbers<[1], [0], [0], [1], [0, 0, 1, 1], [], []>} : vector<2x32xf32>, vector<32x128xf32>, vector<2x128xf32> -> vector<2x128xf32>
    %254 = arith.addf %249, %253 : vector<2x128xf32>
    %c15_i32_142 = arith.constant 15 : i32
    %255 = arith.subi %c15_i32_142, %c4_i32 : i32
    %256 = arith.index_cast %255 : i32 to index
    %c0_143 = arith.constant 0 : index
    %c0_144 = arith.constant 0 : index
    %257 = vector.load %arg2[%256, %c0_143, %c0_144] : memref<16x2x128xf32, #tpu.memory_space<vmem>>, vector<1x2x128xf32>
    %258 = vector.shape_cast %257 : vector<1x2x128xf32> to vector<2x128xf32>
    %c1_145 = arith.constant 1 : index
    %c0_146 = arith.constant 0 : index
    %c0_147 = arith.constant 0 : index
    %259 = vector.load %arg7[%c1_145, %c0_146, %c0_147] : memref<2x2x32xf32, #tpu.memory_space<vmem>>, vector<1x2x32xf32>
    %260 = vector.shape_cast %259 : vector<1x2x32xf32> to vector<2x32xf32>
    %c0_148 = arith.constant 0 : index
    %c0_149 = arith.constant 0 : index
    %261 = vector.load %arg4[%c0_148, %c0_149] : memref<32x128xf32, #tpu.memory_space<vmem>>, vector<32x128xf32>
    %cst_150 = arith.constant dense<0.000000e+00> : vector<2x128xf32>
    %262 = tpu.matmul %260, %261, %cst_150 {dimension_numbers = #tpu.dot_dimension_numbers<[1], [0], [0], [1], [0, 0, 1, 1], [], []>} : vector<2x32xf32>, vector<32x128xf32>, vector<2x128xf32> -> vector<2x128xf32>
    %263 = arith.addf %258, %262 : vector<2x128xf32>
    %264 = vector.shape_cast %254 : vector<2x128xf32> to vector<1x2x128xf32>
    %265 = vector.shape_cast %263 : vector<2x128xf32> to vector<1x2x128xf32>
    %266 = tpu.concatenate %264, %265 in 0 : vector<1x2x128xf32>, vector<1x2x128xf32> -> vector<2x2x128xf32>
    %267 = vector.extract_strided_slice %266 {offsets = [0, 0, 0], sizes = [2, 2, 32], strides = [1, 1, 1]} : vector<2x2x128xf32> to vector<2x2x32xf32>
    %268 = arith.negf %267 : vector<2x2x32xf32>
    %269 = math.exp %268 : vector<2x2x32xf32>
    %cst_151 = arith.constant 1.000000e+00 : f32
    %270 = vector.broadcast %cst_151 : f32 to vector<2x2x32xf32>
    %271 = arith.addf %270, %269 : vector<2x2x32xf32>
    %272 = arith.divf %270, %271 : vector<2x2x32xf32>
    %273 = vector.extract_strided_slice %266 {offsets = [0, 0, 32], sizes = [2, 2, 32], strides = [1, 1, 1]} : vector<2x2x128xf32> to vector<2x2x32xf32>
    %274 = arith.negf %273 : vector<2x2x32xf32>
    %275 = math.exp %274 : vector<2x2x32xf32>
    %cst_152 = arith.constant 1.000000e+00 : f32
    %276 = vector.broadcast %cst_152 : f32 to vector<2x2x32xf32>
    %277 = arith.addf %276, %275 : vector<2x2x32xf32>
    %278 = arith.divf %276, %277 : vector<2x2x32xf32>
    %279 = vector.extract_strided_slice %266 {offsets = [0, 0, 64], sizes = [2, 2, 32], strides = [1, 1, 1]} : vector<2x2x128xf32> to vector<2x2x32xf32>
    %280 = math.tanh %279 : vector<2x2x32xf32>
    %281 = vector.extract_strided_slice %266 {offsets = [0, 0, 96], sizes = [2, 2, 32], strides = [1, 1, 1]} : vector<2x2x128xf32> to vector<2x2x32xf32>
    %282 = arith.negf %281 : vector<2x2x32xf32>
    %283 = math.exp %282 : vector<2x2x32xf32>
    %cst_153 = arith.constant 1.000000e+00 : f32
    %284 = vector.broadcast %cst_153 : f32 to vector<2x2x32xf32>
    %285 = arith.addf %284, %283 : vector<2x2x32xf32>
    %286 = arith.divf %284, %285 : vector<2x2x32xf32>
    %c0_154 = arith.constant 0 : index
    %c0_155 = arith.constant 0 : index
    %c0_156 = arith.constant 0 : index
    %287 = vector.load %arg8[%c0_154, %c0_155, %c0_156] : memref<2x2x32xf32, #tpu.memory_space<vmem>>, vector<2x2x32xf32>
    %288 = arith.mulf %278, %287 : vector<2x2x32xf32>
    %289 = arith.mulf %272, %280 : vector<2x2x32xf32>
    %290 = arith.addf %288, %289 : vector<2x2x32xf32>
    %291 = math.tanh %290 : vector<2x2x32xf32>
    %292 = arith.mulf %286, %291 : vector<2x2x32xf32>
    %c0_157 = arith.constant 0 : index
    %c0_158 = arith.constant 0 : index
    %c0_159 = arith.constant 0 : index
    %293 = vector.load %arg7[%c0_157, %c0_158, %c0_159] : memref<2x2x32xf32, #tpu.memory_space<vmem>>, vector<2x2x32xf32>
    tpu.vector_store %arg7[%c0_157, %c0_158, %c0_159], %292 {strides = array<i32>} : memref<2x2x32xf32, #tpu.memory_space<vmem>>, vector<2x2x32xf32>,
    %c0_160 = arith.constant 0 : index
    %c0_161 = arith.constant 0 : index
    %c0_162 = arith.constant 0 : index
    %294 = vector.load %arg8[%c0_160, %c0_161, %c0_162] : memref<2x2x32xf32, #tpu.memory_space<vmem>>, vector<2x2x32xf32>
    tpu.vector_store %arg8[%c0_160, %c0_161, %c0_162], %290 {strides = array<i32>} : memref<2x2x32xf32, #tpu.memory_space<vmem>>, vector<2x2x32xf32>,
    %295 = vector.extract_strided_slice %292 {offsets = [0, 0, 0], sizes = [1, 2, 32], strides = [1, 1, 1]} : vector<2x2x32xf32> to vector<1x2x32xf32>
    %296 = vector.shape_cast %295 : vector<1x2x32xf32> to vector<2x32xf32>
    %297 = arith.index_cast %c4_i32 : i32 to index
    %c0_163 = arith.constant 0 : index
    %c0_164 = arith.constant 0 : index
    %298 = vector.load %arg5[%297, %c0_163, %c0_164] : memref<16x2x32xf32, #tpu.memory_space<vmem>>, vector<1x2x32xf32>
    %299 = vector.shape_cast %298 : vector<1x2x32xf32> to vector<2x32xf32>
    %300 = vector.shape_cast %296 : vector<2x32xf32> to vector<1x2x32xf32>
    tpu.vector_store %arg5[%297, %c0_163, %c0_164], %300 {strides = array<i32>} : memref<16x2x32xf32, #tpu.memory_space<vmem>>, vector<1x2x32xf32>,
    %301 = vector.extract_strided_slice %292 {offsets = [1, 0, 0], sizes = [1, 2, 32], strides = [1, 1, 1]} : vector<2x2x32xf32> to vector<1x2x32xf32>
    %302 = vector.shape_cast %301 : vector<1x2x32xf32> to vector<2x32xf32>
    %c15_i32_165 = arith.constant 15 : i32
    %303 = arith.subi %c15_i32_165, %c4_i32 : i32
    %304 = arith.index_cast %303 : i32 to index
    %c0_166 = arith.constant 0 : index
    %c0_167 = arith.constant 0 : index
    %305 = vector.load %arg6[%304, %c0_166, %c0_167] : memref<16x2x32xf32, #tpu.memory_space<vmem>>, vector<1x2x32xf32>
    %306 = vector.shape_cast %305 : vector<1x2x32xf32> to vector<2x32xf32>
    %307 = vector.shape_cast %302 : vector<2x32xf32> to vector<1x2x32xf32>
    tpu.vector_store %arg6[%304, %c0_166, %c0_167], %307 {strides = array<i32>} : memref<16x2x32xf32, #tpu.memory_space<vmem>>, vector<1x2x32xf32>,
    %c5_i32 = arith.constant 5 : i32
    %308 = arith.index_cast %c5_i32 : i32 to index
    %c0_168 = arith.constant 0 : index
    %c0_169 = arith.constant 0 : index
    %309 = vector.load %arg1[%308, %c0_168, %c0_169] : memref<16x2x128xf32, #tpu.memory_space<vmem>>, vector<1x2x128xf32>
    %310 = vector.shape_cast %309 : vector<1x2x128xf32> to vector<2x128xf32>
    %c0_170 = arith.constant 0 : index
    %c0_171 = arith.constant 0 : index
    %c0_172 = arith.constant 0 : index
    %311 = vector.load %arg7[%c0_170, %c0_171, %c0_172] : memref<2x2x32xf32, #tpu.memory_space<vmem>>, vector<1x2x32xf32>
    %312 = vector.shape_cast %311 : vector<1x2x32xf32> to vector<2x32xf32>
    %c0_173 = arith.constant 0 : index
    %c0_174 = arith.constant 0 : index
    %313 = vector.load %arg3[%c0_173, %c0_174] : memref<32x128xf32, #tpu.memory_space<vmem>>, vector<32x128xf32>
    %cst_175 = arith.constant dense<0.000000e+00> : vector<2x128xf32>
    %314 = tpu.matmul %312, %313, %cst_175 {dimension_numbers = #tpu.dot_dimension_numbers<[1], [0], [0], [1], [0, 0, 1, 1], [], []>} : vector<2x32xf32>, vector<32x128xf32>, vector<2x128xf32> -> vector<2x128xf32>
    %315 = arith.addf %310, %314 : vector<2x128xf32>
    %c15_i32_176 = arith.constant 15 : i32
    %316 = arith.subi %c15_i32_176, %c5_i32 : i32
    %317 = arith.index_cast %316 : i32 to index
    %c0_177 = arith.constant 0 : index
    %c0_178 = arith.constant 0 : index
    %318 = vector.load %arg2[%317, %c0_177, %c0_178] : memref<16x2x128xf32, #tpu.memory_space<vmem>>, vector<1x2x128xf32>
    %319 = vector.shape_cast %318 : vector<1x2x128xf32> to vector<2x128xf32>
    %c1_179 = arith.constant 1 : index
    %c0_180 = arith.constant 0 : index
    %c0_181 = arith.constant 0 : index
    %320 = vector.load %arg7[%c1_179, %c0_180, %c0_181] : memref<2x2x32xf32, #tpu.memory_space<vmem>>, vector<1x2x32xf32>
    %321 = vector.shape_cast %320 : vector<1x2x32xf32> to vector<2x32xf32>
    %c0_182 = arith.constant 0 : index
    %c0_183 = arith.constant 0 : index
    %322 = vector.load %arg4[%c0_182, %c0_183] : memref<32x128xf32, #tpu.memory_space<vmem>>, vector<32x128xf32>
    %cst_184 = arith.constant dense<0.000000e+00> : vector<2x128xf32>
    %323 = tpu.matmul %321, %322, %cst_184 {dimension_numbers = #tpu.dot_dimension_numbers<[1], [0], [0], [1], [0, 0, 1, 1], [], []>} : vector<2x32xf32>, vector<32x128xf32>, vector<2x128xf32> -> vector<2x128xf32>
    %324 = arith.addf %319, %323 : vector<2x128xf32>
    %325 = vector.shape_cast %315 : vector<2x128xf32> to vector<1x2x128xf32>
    %326 = vector.shape_cast %324 : vector<2x128xf32> to vector<1x2x128xf32>
    %327 = tpu.concatenate %325, %326 in 0 : vector<1x2x128xf32>, vector<1x2x128xf32> -> vector<2x2x128xf32>
    %328 = vector.extract_strided_slice %327 {offsets = [0, 0, 0], sizes = [2, 2, 32], strides = [1, 1, 1]} : vector<2x2x128xf32> to vector<2x2x32xf32>
    %329 = arith.negf %328 : vector<2x2x32xf32>
    %330 = math.exp %329 : vector<2x2x32xf32>
    %cst_185 = arith.constant 1.000000e+00 : f32
    %331 = vector.broadcast %cst_185 : f32 to vector<2x2x32xf32>
    %332 = arith.addf %331, %330 : vector<2x2x32xf32>
    %333 = arith.divf %331, %332 : vector<2x2x32xf32>
    %334 = vector.extract_strided_slice %327 {offsets = [0, 0, 32], sizes = [2, 2, 32], strides = [1, 1, 1]} : vector<2x2x128xf32> to vector<2x2x32xf32>
    %335 = arith.negf %334 : vector<2x2x32xf32>
    %336 = math.exp %335 : vector<2x2x32xf32>
    %cst_186 = arith.constant 1.000000e+00 : f32
    %337 = vector.broadcast %cst_186 : f32 to vector<2x2x32xf32>
    %338 = arith.addf %337, %336 : vector<2x2x32xf32>
    %339 = arith.divf %337, %338 : vector<2x2x32xf32>
    %340 = vector.extract_strided_slice %327 {offsets = [0, 0, 64], sizes = [2, 2, 32], strides = [1, 1, 1]} : vector<2x2x128xf32> to vector<2x2x32xf32>
    %341 = math.tanh %340 : vector<2x2x32xf32>
    %342 = vector.extract_strided_slice %327 {offsets = [0, 0, 96], sizes = [2, 2, 32], strides = [1, 1, 1]} : vector<2x2x128xf32> to vector<2x2x32xf32>
    %343 = arith.negf %342 : vector<2x2x32xf32>
    %344 = math.exp %343 : vector<2x2x32xf32>
    %cst_187 = arith.constant 1.000000e+00 : f32
    %345 = vector.broadcast %cst_187 : f32 to vector<2x2x32xf32>
    %346 = arith.addf %345, %344 : vector<2x2x32xf32>
    %347 = arith.divf %345, %346 : vector<2x2x32xf32>
    %c0_188 = arith.constant 0 : index
    %c0_189 = arith.constant 0 : index
    %c0_190 = arith.constant 0 : index
    %348 = vector.load %arg8[%c0_188, %c0_189, %c0_190] : memref<2x2x32xf32, #tpu.memory_space<vmem>>, vector<2x2x32xf32>
    %349 = arith.mulf %339, %348 : vector<2x2x32xf32>
    %350 = arith.mulf %333, %341 : vector<2x2x32xf32>
    %351 = arith.addf %349, %350 : vector<2x2x32xf32>
    %352 = math.tanh %351 : vector<2x2x32xf32>
    %353 = arith.mulf %347, %352 : vector<2x2x32xf32>
    %c0_191 = arith.constant 0 : index
    %c0_192 = arith.constant 0 : index
    %c0_193 = arith.constant 0 : index
    %354 = vector.load %arg7[%c0_191, %c0_192, %c0_193] : memref<2x2x32xf32, #tpu.memory_space<vmem>>, vector<2x2x32xf32>
    tpu.vector_store %arg7[%c0_191, %c0_192, %c0_193], %353 {strides = array<i32>} : memref<2x2x32xf32, #tpu.memory_space<vmem>>, vector<2x2x32xf32>,
    %c0_194 = arith.constant 0 : index
    %c0_195 = arith.constant 0 : index
    %c0_196 = arith.constant 0 : index
    %355 = vector.load %arg8[%c0_194, %c0_195, %c0_196] : memref<2x2x32xf32, #tpu.memory_space<vmem>>, vector<2x2x32xf32>
    tpu.vector_store %arg8[%c0_194, %c0_195, %c0_196], %351 {strides = array<i32>} : memref<2x2x32xf32, #tpu.memory_space<vmem>>, vector<2x2x32xf32>,
    %356 = vector.extract_strided_slice %353 {offsets = [0, 0, 0], sizes = [1, 2, 32], strides = [1, 1, 1]} : vector<2x2x32xf32> to vector<1x2x32xf32>
    %357 = vector.shape_cast %356 : vector<1x2x32xf32> to vector<2x32xf32>
    %358 = arith.index_cast %c5_i32 : i32 to index
    %c0_197 = arith.constant 0 : index
    %c0_198 = arith.constant 0 : index
    %359 = vector.load %arg5[%358, %c0_197, %c0_198] : memref<16x2x32xf32, #tpu.memory_space<vmem>>, vector<1x2x32xf32>
    %360 = vector.shape_cast %359 : vector<1x2x32xf32> to vector<2x32xf32>
    %361 = vector.shape_cast %357 : vector<2x32xf32> to vector<1x2x32xf32>
    tpu.vector_store %arg5[%358, %c0_197, %c0_198], %361 {strides = array<i32>} : memref<16x2x32xf32, #tpu.memory_space<vmem>>, vector<1x2x32xf32>,
    %362 = vector.extract_strided_slice %353 {offsets = [1, 0, 0], sizes = [1, 2, 32], strides = [1, 1, 1]} : vector<2x2x32xf32> to vector<1x2x32xf32>
    %363 = vector.shape_cast %362 : vector<1x2x32xf32> to vector<2x32xf32>
    %c15_i32_199 = arith.constant 15 : i32
    %364 = arith.subi %c15_i32_199, %c5_i32 : i32
    %365 = arith.index_cast %364 : i32 to index
    %c0_200 = arith.constant 0 : index
    %c0_201 = arith.constant 0 : index
    %366 = vector.load %arg6[%365, %c0_200, %c0_201] : memref<16x2x32xf32, #tpu.memory_space<vmem>>, vector<1x2x32xf32>
    %367 = vector.shape_cast %366 : vector<1x2x32xf32> to vector<2x32xf32>
    %368 = vector.shape_cast %363 : vector<2x32xf32> to vector<1x2x32xf32>
    tpu.vector_store %arg6[%365, %c0_200, %c0_201], %368 {strides = array<i32>} : memref<16x2x32xf32, #tpu.memory_space<vmem>>, vector<1x2x32xf32>,
    %c6_i32 = arith.constant 6 : i32
    %369 = arith.index_cast %c6_i32 : i32 to index
    %c0_202 = arith.constant 0 : index
    %c0_203 = arith.constant 0 : index
    %370 = vector.load %arg1[%369, %c0_202, %c0_203] : memref<16x2x128xf32, #tpu.memory_space<vmem>>, vector<1x2x128xf32>
    %371 = vector.shape_cast %370 : vector<1x2x128xf32> to vector<2x128xf32>
    %c0_204 = arith.constant 0 : index
    %c0_205 = arith.constant 0 : index
    %c0_206 = arith.constant 0 : index
    %372 = vector.load %arg7[%c0_204, %c0_205, %c0_206] : memref<2x2x32xf32, #tpu.memory_space<vmem>>, vector<1x2x32xf32>
    %373 = vector.shape_cast %372 : vector<1x2x32xf32> to vector<2x32xf32>
    %c0_207 = arith.constant 0 : index
    %c0_208 = arith.constant 0 : index
    %374 = vector.load %arg3[%c0_207, %c0_208] : memref<32x128xf32, #tpu.memory_space<vmem>>, vector<32x128xf32>
    %cst_209 = arith.constant dense<0.000000e+00> : vector<2x128xf32>
    %375 = tpu.matmul %373, %374, %cst_209 {dimension_numbers = #tpu.dot_dimension_numbers<[1], [0], [0], [1], [0, 0, 1, 1], [], []>} : vector<2x32xf32>, vector<32x128xf32>, vector<2x128xf32> -> vector<2x128xf32>
    %376 = arith.addf %371, %375 : vector<2x128xf32>
    %c15_i32_210 = arith.constant 15 : i32
    %377 = arith.subi %c15_i32_210, %c6_i32 : i32
    %378 = arith.index_cast %377 : i32 to index
    %c0_211 = arith.constant 0 : index
    %c0_212 = arith.constant 0 : index
    %379 = vector.load %arg2[%378, %c0_211, %c0_212] : memref<16x2x128xf32, #tpu.memory_space<vmem>>, vector<1x2x128xf32>
    %380 = vector.shape_cast %379 : vector<1x2x128xf32> to vector<2x128xf32>
    %c1_213 = arith.constant 1 : index
    %c0_214 = arith.constant 0 : index
    %c0_215 = arith.constant 0 : index
    %381 = vector.load %arg7[%c1_213, %c0_214, %c0_215] : memref<2x2x32xf32, #tpu.memory_space<vmem>>, vector<1x2x32xf32>
    %382 = vector.shape_cast %381 : vector<1x2x32xf32> to vector<2x32xf32>
    %c0_216 = arith.constant 0 : index
    %c0_217 = arith.constant 0 : index
    %383 = vector.load %arg4[%c0_216, %c0_217] : memref<32x128xf32, #tpu.memory_space<vmem>>, vector<32x128xf32>
    %cst_218 = arith.constant dense<0.000000e+00> : vector<2x128xf32>
    %384 = tpu.matmul %382, %383, %cst_218 {dimension_numbers = #tpu.dot_dimension_numbers<[1], [0], [0], [1], [0, 0, 1, 1], [], []>} : vector<2x32xf32>, vector<32x128xf32>, vector<2x128xf32> -> vector<2x128xf32>
    %385 = arith.addf %380, %384 : vector<2x128xf32>
    %386 = vector.shape_cast %376 : vector<2x128xf32> to vector<1x2x128xf32>
    %387 = vector.shape_cast %385 : vector<2x128xf32> to vector<1x2x128xf32>
    %388 = tpu.concatenate %386, %387 in 0 : vector<1x2x128xf32>, vector<1x2x128xf32> -> vector<2x2x128xf32>
    %389 = vector.extract_strided_slice %388 {offsets = [0, 0, 0], sizes = [2, 2, 32], strides = [1, 1, 1]} : vector<2x2x128xf32> to vector<2x2x32xf32>
    %390 = arith.negf %389 : vector<2x2x32xf32>
    %391 = math.exp %390 : vector<2x2x32xf32>
    %cst_219 = arith.constant 1.000000e+00 : f32
    %392 = vector.broadcast %cst_219 : f32 to vector<2x2x32xf32>
    %393 = arith.addf %392, %391 : vector<2x2x32xf32>
    %394 = arith.divf %392, %393 : vector<2x2x32xf32>
    %395 = vector.extract_strided_slice %388 {offsets = [0, 0, 32], sizes = [2, 2, 32], strides = [1, 1, 1]} : vector<2x2x128xf32> to vector<2x2x32xf32>
    %396 = arith.negf %395 : vector<2x2x32xf32>
    %397 = math.exp %396 : vector<2x2x32xf32>
    %cst_220 = arith.constant 1.000000e+00 : f32
    %398 = vector.broadcast %cst_220 : f32 to vector<2x2x32xf32>
    %399 = arith.addf %398, %397 : vector<2x2x32xf32>
    %400 = arith.divf %398, %399 : vector<2x2x32xf32>
    %401 = vector.extract_strided_slice %388 {offsets = [0, 0, 64], sizes = [2, 2, 32], strides = [1, 1, 1]} : vector<2x2x128xf32> to vector<2x2x32xf32>
    %402 = math.tanh %401 : vector<2x2x32xf32>
    %403 = vector.extract_strided_slice %388 {offsets = [0, 0, 96], sizes = [2, 2, 32], strides = [1, 1, 1]} : vector<2x2x128xf32> to vector<2x2x32xf32>
    %404 = arith.negf %403 : vector<2x2x32xf32>
    %405 = math.exp %404 : vector<2x2x32xf32>
    %cst_221 = arith.constant 1.000000e+00 : f32
    %406 = vector.broadcast %cst_221 : f32 to vector<2x2x32xf32>
    %407 = arith.addf %406, %405 : vector<2x2x32xf32>
    %408 = arith.divf %406, %407 : vector<2x2x32xf32>
    %c0_222 = arith.constant 0 : index
    %c0_223 = arith.constant 0 : index
    %c0_224 = arith.constant 0 : index
    %409 = vector.load %arg8[%c0_222, %c0_223, %c0_224] : memref<2x2x32xf32, #tpu.memory_space<vmem>>, vector<2x2x32xf32>
    %410 = arith.mulf %400, %409 : vector<2x2x32xf32>
    %411 = arith.mulf %394, %402 : vector<2x2x32xf32>
    %412 = arith.addf %410, %411 : vector<2x2x32xf32>
    %413 = math.tanh %412 : vector<2x2x32xf32>
    %414 = arith.mulf %408, %413 : vector<2x2x32xf32>
    %c0_225 = arith.constant 0 : index
    %c0_226 = arith.constant 0 : index
    %c0_227 = arith.constant 0 : index
    %415 = vector.load %arg7[%c0_225, %c0_226, %c0_227] : memref<2x2x32xf32, #tpu.memory_space<vmem>>, vector<2x2x32xf32>
    tpu.vector_store %arg7[%c0_225, %c0_226, %c0_227], %414 {strides = array<i32>} : memref<2x2x32xf32, #tpu.memory_space<vmem>>, vector<2x2x32xf32>,
    %c0_228 = arith.constant 0 : index
    %c0_229 = arith.constant 0 : index
    %c0_230 = arith.constant 0 : index
    %416 = vector.load %arg8[%c0_228, %c0_229, %c0_230] : memref<2x2x32xf32, #tpu.memory_space<vmem>>, vector<2x2x32xf32>
    tpu.vector_store %arg8[%c0_228, %c0_229, %c0_230], %412 {strides = array<i32>} : memref<2x2x32xf32, #tpu.memory_space<vmem>>, vector<2x2x32xf32>,
    %417 = vector.extract_strided_slice %414 {offsets = [0, 0, 0], sizes = [1, 2, 32], strides = [1, 1, 1]} : vector<2x2x32xf32> to vector<1x2x32xf32>
    %418 = vector.shape_cast %417 : vector<1x2x32xf32> to vector<2x32xf32>
    %419 = arith.index_cast %c6_i32 : i32 to index
    %c0_231 = arith.constant 0 : index
    %c0_232 = arith.constant 0 : index
    %420 = vector.load %arg5[%419, %c0_231, %c0_232] : memref<16x2x32xf32, #tpu.memory_space<vmem>>, vector<1x2x32xf32>
    %421 = vector.shape_cast %420 : vector<1x2x32xf32> to vector<2x32xf32>
    %422 = vector.shape_cast %418 : vector<2x32xf32> to vector<1x2x32xf32>
    tpu.vector_store %arg5[%419, %c0_231, %c0_232], %422 {strides = array<i32>} : memref<16x2x32xf32, #tpu.memory_space<vmem>>, vector<1x2x32xf32>,
    %423 = vector.extract_strided_slice %414 {offsets = [1, 0, 0], sizes = [1, 2, 32], strides = [1, 1, 1]} : vector<2x2x32xf32> to vector<1x2x32xf32>
    %424 = vector.shape_cast %423 : vector<1x2x32xf32> to vector<2x32xf32>
    %c15_i32_233 = arith.constant 15 : i32
    %425 = arith.subi %c15_i32_233, %c6_i32 : i32
    %426 = arith.index_cast %425 : i32 to index
    %c0_234 = arith.constant 0 : index
    %c0_235 = arith.constant 0 : index
    %427 = vector.load %arg6[%426, %c0_234, %c0_235] : memref<16x2x32xf32, #tpu.memory_space<vmem>>, vector<1x2x32xf32>
    %428 = vector.shape_cast %427 : vector<1x2x32xf32> to vector<2x32xf32>
    %429 = vector.shape_cast %424 : vector<2x32xf32> to vector<1x2x32xf32>
    tpu.vector_store %arg6[%426, %c0_234, %c0_235], %429 {strides = array<i32>} : memref<16x2x32xf32, #tpu.memory_space<vmem>>, vector<1x2x32xf32>,
    %c7_i32 = arith.constant 7 : i32
    %430 = arith.index_cast %c7_i32 : i32 to index
    %c0_236 = arith.constant 0 : index
    %c0_237 = arith.constant 0 : index
    %431 = vector.load %arg1[%430, %c0_236, %c0_237] : memref<16x2x128xf32, #tpu.memory_space<vmem>>, vector<1x2x128xf32>
    %432 = vector.shape_cast %431 : vector<1x2x128xf32> to vector<2x128xf32>
    %c0_238 = arith.constant 0 : index
    %c0_239 = arith.constant 0 : index
    %c0_240 = arith.constant 0 : index
    %433 = vector.load %arg7[%c0_238, %c0_239, %c0_240] : memref<2x2x32xf32, #tpu.memory_space<vmem>>, vector<1x2x32xf32>
    %434 = vector.shape_cast %433 : vector<1x2x32xf32> to vector<2x32xf32>
    %c0_241 = arith.constant 0 : index
    %c0_242 = arith.constant 0 : index
    %435 = vector.load %arg3[%c0_241, %c0_242] : memref<32x128xf32, #tpu.memory_space<vmem>>, vector<32x128xf32>
    %cst_243 = arith.constant dense<0.000000e+00> : vector<2x128xf32>
    %436 = tpu.matmul %434, %435, %cst_243 {dimension_numbers = #tpu.dot_dimension_numbers<[1], [0], [0], [1], [0, 0, 1, 1], [], []>} : vector<2x32xf32>, vector<32x128xf32>, vector<2x128xf32> -> vector<2x128xf32>
    %437 = arith.addf %432, %436 : vector<2x128xf32>
    %c15_i32_244 = arith.constant 15 : i32
    %438 = arith.subi %c15_i32_244, %c7_i32 : i32
    %439 = arith.index_cast %438 : i32 to index
    %c0_245 = arith.constant 0 : index
    %c0_246 = arith.constant 0 : index
    %440 = vector.load %arg2[%439, %c0_245, %c0_246] : memref<16x2x128xf32, #tpu.memory_space<vmem>>, vector<1x2x128xf32>
    %441 = vector.shape_cast %440 : vector<1x2x128xf32> to vector<2x128xf32>
    %c1_247 = arith.constant 1 : index
    %c0_248 = arith.constant 0 : index
    %c0_249 = arith.constant 0 : index
    %442 = vector.load %arg7[%c1_247, %c0_248, %c0_249] : memref<2x2x32xf32, #tpu.memory_space<vmem>>, vector<1x2x32xf32>
    %443 = vector.shape_cast %442 : vector<1x2x32xf32> to vector<2x32xf32>
    %c0_250 = arith.constant 0 : index
    %c0_251 = arith.constant 0 : index
    %444 = vector.load %arg4[%c0_250, %c0_251] : memref<32x128xf32, #tpu.memory_space<vmem>>, vector<32x128xf32>
    %cst_252 = arith.constant dense<0.000000e+00> : vector<2x128xf32>
    %445 = tpu.matmul %443, %444, %cst_252 {dimension_numbers = #tpu.dot_dimension_numbers<[1], [0], [0], [1], [0, 0, 1, 1], [], []>} : vector<2x32xf32>, vector<32x128xf32>, vector<2x128xf32> -> vector<2x128xf32>
    %446 = arith.addf %441, %445 : vector<2x128xf32>
    %447 = vector.shape_cast %437 : vector<2x128xf32> to vector<1x2x128xf32>
    %448 = vector.shape_cast %446 : vector<2x128xf32> to vector<1x2x128xf32>
    %449 = tpu.concatenate %447, %448 in 0 : vector<1x2x128xf32>, vector<1x2x128xf32> -> vector<2x2x128xf32>
    %450 = vector.extract_strided_slice %449 {offsets = [0, 0, 0], sizes = [2, 2, 32], strides = [1, 1, 1]} : vector<2x2x128xf32> to vector<2x2x32xf32>
    %451 = arith.negf %450 : vector<2x2x32xf32>
    %452 = math.exp %451 : vector<2x2x32xf32>
    %cst_253 = arith.constant 1.000000e+00 : f32
    %453 = vector.broadcast %cst_253 : f32 to vector<2x2x32xf32>
    %454 = arith.addf %453, %452 : vector<2x2x32xf32>
    %455 = arith.divf %453, %454 : vector<2x2x32xf32>
    %456 = vector.extract_strided_slice %449 {offsets = [0, 0, 32], sizes = [2, 2, 32], strides = [1, 1, 1]} : vector<2x2x128xf32> to vector<2x2x32xf32>
    %457 = arith.negf %456 : vector<2x2x32xf32>
    %458 = math.exp %457 : vector<2x2x32xf32>
    %cst_254 = arith.constant 1.000000e+00 : f32
    %459 = vector.broadcast %cst_254 : f32 to vector<2x2x32xf32>
    %460 = arith.addf %459, %458 : vector<2x2x32xf32>
    %461 = arith.divf %459, %460 : vector<2x2x32xf32>
    %462 = vector.extract_strided_slice %449 {offsets = [0, 0, 64], sizes = [2, 2, 32], strides = [1, 1, 1]} : vector<2x2x128xf32> to vector<2x2x32xf32>
    %463 = math.tanh %462 : vector<2x2x32xf32>
    %464 = vector.extract_strided_slice %449 {offsets = [0, 0, 96], sizes = [2, 2, 32], strides = [1, 1, 1]} : vector<2x2x128xf32> to vector<2x2x32xf32>
    %465 = arith.negf %464 : vector<2x2x32xf32>
    %466 = math.exp %465 : vector<2x2x32xf32>
    %cst_255 = arith.constant 1.000000e+00 : f32
    %467 = vector.broadcast %cst_255 : f32 to vector<2x2x32xf32>
    %468 = arith.addf %467, %466 : vector<2x2x32xf32>
    %469 = arith.divf %467, %468 : vector<2x2x32xf32>
    %c0_256 = arith.constant 0 : index
    %c0_257 = arith.constant 0 : index
    %c0_258 = arith.constant 0 : index
    %470 = vector.load %arg8[%c0_256, %c0_257, %c0_258] : memref<2x2x32xf32, #tpu.memory_space<vmem>>, vector<2x2x32xf32>
    %471 = arith.mulf %461, %470 : vector<2x2x32xf32>
    %472 = arith.mulf %455, %463 : vector<2x2x32xf32>
    %473 = arith.addf %471, %472 : vector<2x2x32xf32>
    %474 = math.tanh %473 : vector<2x2x32xf32>
    %475 = arith.mulf %469, %474 : vector<2x2x32xf32>
    %c0_259 = arith.constant 0 : index
    %c0_260 = arith.constant 0 : index
    %c0_261 = arith.constant 0 : index
    %476 = vector.load %arg7[%c0_259, %c0_260, %c0_261] : memref<2x2x32xf32, #tpu.memory_space<vmem>>, vector<2x2x32xf32>
    tpu.vector_store %arg7[%c0_259, %c0_260, %c0_261], %475 {strides = array<i32>} : memref<2x2x32xf32, #tpu.memory_space<vmem>>, vector<2x2x32xf32>,
    %c0_262 = arith.constant 0 : index
    %c0_263 = arith.constant 0 : index
    %c0_264 = arith.constant 0 : index
    %477 = vector.load %arg8[%c0_262, %c0_263, %c0_264] : memref<2x2x32xf32, #tpu.memory_space<vmem>>, vector<2x2x32xf32>
    tpu.vector_store %arg8[%c0_262, %c0_263, %c0_264], %473 {strides = array<i32>} : memref<2x2x32xf32, #tpu.memory_space<vmem>>, vector<2x2x32xf32>,
    %478 = vector.extract_strided_slice %475 {offsets = [0, 0, 0], sizes = [1, 2, 32], strides = [1, 1, 1]} : vector<2x2x32xf32> to vector<1x2x32xf32>
    %479 = vector.shape_cast %478 : vector<1x2x32xf32> to vector<2x32xf32>
    %480 = arith.index_cast %c7_i32 : i32 to index
    %c0_265 = arith.constant 0 : index
    %c0_266 = arith.constant 0 : index
    %481 = vector.load %arg5[%480, %c0_265, %c0_266] : memref<16x2x32xf32, #tpu.memory_space<vmem>>, vector<1x2x32xf32>
    %482 = vector.shape_cast %481 : vector<1x2x32xf32> to vector<2x32xf32>
    %483 = vector.shape_cast %479 : vector<2x32xf32> to vector<1x2x32xf32>
    tpu.vector_store %arg5[%480, %c0_265, %c0_266], %483 {strides = array<i32>} : memref<16x2x32xf32, #tpu.memory_space<vmem>>, vector<1x2x32xf32>,
    %484 = vector.extract_strided_slice %475 {offsets = [1, 0, 0], sizes = [1, 2, 32], strides = [1, 1, 1]} : vector<2x2x32xf32> to vector<1x2x32xf32>
    %485 = vector.shape_cast %484 : vector<1x2x32xf32> to vector<2x32xf32>
    %c15_i32_267 = arith.constant 15 : i32
    %486 = arith.subi %c15_i32_267, %c7_i32 : i32
    %487 = arith.index_cast %486 : i32 to index
    %c0_268 = arith.constant 0 : index
    %c0_269 = arith.constant 0 : index
    %488 = vector.load %arg6[%487, %c0_268, %c0_269] : memref<16x2x32xf32, #tpu.memory_space<vmem>>, vector<1x2x32xf32>
    %489 = vector.shape_cast %488 : vector<1x2x32xf32> to vector<2x32xf32>
    %490 = vector.shape_cast %485 : vector<2x32xf32> to vector<1x2x32xf32>
    tpu.vector_store %arg6[%487, %c0_268, %c0_269], %490 {strides = array<i32>} : memref<16x2x32xf32, #tpu.memory_space<vmem>>, vector<1x2x32xf32>,
    %c8_i32 = arith.constant 8 : i32
    %491 = arith.index_cast %c8_i32 : i32 to index
    %c0_270 = arith.constant 0 : index
    %c0_271 = arith.constant 0 : index
    %492 = vector.load %arg1[%491, %c0_270, %c0_271] : memref<16x2x128xf32, #tpu.memory_space<vmem>>, vector<1x2x128xf32>
    %493 = vector.shape_cast %492 : vector<1x2x128xf32> to vector<2x128xf32>
    %c0_272 = arith.constant 0 : index
    %c0_273 = arith.constant 0 : index
    %c0_274 = arith.constant 0 : index
    %494 = vector.load %arg7[%c0_272, %c0_273, %c0_274] : memref<2x2x32xf32, #tpu.memory_space<vmem>>, vector<1x2x32xf32>
    %495 = vector.shape_cast %494 : vector<1x2x32xf32> to vector<2x32xf32>
    %c0_275 = arith.constant 0 : index
    %c0_276 = arith.constant 0 : index
    %496 = vector.load %arg3[%c0_275, %c0_276] : memref<32x128xf32, #tpu.memory_space<vmem>>, vector<32x128xf32>
    %cst_277 = arith.constant dense<0.000000e+00> : vector<2x128xf32>
    %497 = tpu.matmul %495, %496, %cst_277 {dimension_numbers = #tpu.dot_dimension_numbers<[1], [0], [0], [1], [0, 0, 1, 1], [], []>} : vector<2x32xf32>, vector<32x128xf32>, vector<2x128xf32> -> vector<2x128xf32>
    %498 = arith.addf %493, %497 : vector<2x128xf32>
    %c15_i32_278 = arith.constant 15 : i32
    %499 = arith.subi %c15_i32_278, %c8_i32 : i32
    %500 = arith.index_cast %499 : i32 to index
    %c0_279 = arith.constant 0 : index
    %c0_280 = arith.constant 0 : index
    %501 = vector.load %arg2[%500, %c0_279, %c0_280] : memref<16x2x128xf32, #tpu.memory_space<vmem>>, vector<1x2x128xf32>
    %502 = vector.shape_cast %501 : vector<1x2x128xf32> to vector<2x128xf32>
    %c1_281 = arith.constant 1 : index
    %c0_282 = arith.constant 0 : index
    %c0_283 = arith.constant 0 : index
    %503 = vector.load %arg7[%c1_281, %c0_282, %c0_283] : memref<2x2x32xf32, #tpu.memory_space<vmem>>, vector<1x2x32xf32>
    %504 = vector.shape_cast %503 : vector<1x2x32xf32> to vector<2x32xf32>
    %c0_284 = arith.constant 0 : index
    %c0_285 = arith.constant 0 : index
    %505 = vector.load %arg4[%c0_284, %c0_285] : memref<32x128xf32, #tpu.memory_space<vmem>>, vector<32x128xf32>
    %cst_286 = arith.constant dense<0.000000e+00> : vector<2x128xf32>
    %506 = tpu.matmul %504, %505, %cst_286 {dimension_numbers = #tpu.dot_dimension_numbers<[1], [0], [0], [1], [0, 0, 1, 1], [], []>} : vector<2x32xf32>, vector<32x128xf32>, vector<2x128xf32> -> vector<2x128xf32>
    %507 = arith.addf %502, %506 : vector<2x128xf32>
    %508 = vector.shape_cast %498 : vector<2x128xf32> to vector<1x2x128xf32>
    %509 = vector.shape_cast %507 : vector<2x128xf32> to vector<1x2x128xf32>
    %510 = tpu.concatenate %508, %509 in 0 : vector<1x2x128xf32>, vector<1x2x128xf32> -> vector<2x2x128xf32>
    %511 = vector.extract_strided_slice %510 {offsets = [0, 0, 0], sizes = [2, 2, 32], strides = [1, 1, 1]} : vector<2x2x128xf32> to vector<2x2x32xf32>
    %512 = arith.negf %511 : vector<2x2x32xf32>
    %513 = math.exp %512 : vector<2x2x32xf32>
    %cst_287 = arith.constant 1.000000e+00 : f32
    %514 = vector.broadcast %cst_287 : f32 to vector<2x2x32xf32>
    %515 = arith.addf %514, %513 : vector<2x2x32xf32>
    %516 = arith.divf %514, %515 : vector<2x2x32xf32>
    %517 = vector.extract_strided_slice %510 {offsets = [0, 0, 32], sizes = [2, 2, 32], strides = [1, 1, 1]} : vector<2x2x128xf32> to vector<2x2x32xf32>
    %518 = arith.negf %517 : vector<2x2x32xf32>
    %519 = math.exp %518 : vector<2x2x32xf32>
    %cst_288 = arith.constant 1.000000e+00 : f32
    %520 = vector.broadcast %cst_288 : f32 to vector<2x2x32xf32>
    %521 = arith.addf %520, %519 : vector<2x2x32xf32>
    %522 = arith.divf %520, %521 : vector<2x2x32xf32>
    %523 = vector.extract_strided_slice %510 {offsets = [0, 0, 64], sizes = [2, 2, 32], strides = [1, 1, 1]} : vector<2x2x128xf32> to vector<2x2x32xf32>
    %524 = math.tanh %523 : vector<2x2x32xf32>
    %525 = vector.extract_strided_slice %510 {offsets = [0, 0, 96], sizes = [2, 2, 32], strides = [1, 1, 1]} : vector<2x2x128xf32> to vector<2x2x32xf32>
    %526 = arith.negf %525 : vector<2x2x32xf32>
    %527 = math.exp %526 : vector<2x2x32xf32>
    %cst_289 = arith.constant 1.000000e+00 : f32
    %528 = vector.broadcast %cst_289 : f32 to vector<2x2x32xf32>
    %529 = arith.addf %528, %527 : vector<2x2x32xf32>
    %530 = arith.divf %528, %529 : vector<2x2x32xf32>
    %c0_290 = arith.constant 0 : index
    %c0_291 = arith.constant 0 : index
    %c0_292 = arith.constant 0 : index
    %531 = vector.load %arg8[%c0_290, %c0_291, %c0_292] : memref<2x2x32xf32, #tpu.memory_space<vmem>>, vector<2x2x32xf32>
    %532 = arith.mulf %522, %531 : vector<2x2x32xf32>
    %533 = arith.mulf %516, %524 : vector<2x2x32xf32>
    %534 = arith.addf %532, %533 : vector<2x2x32xf32>
    %535 = math.tanh %534 : vector<2x2x32xf32>
    %536 = arith.mulf %530, %535 : vector<2x2x32xf32>
    %c0_293 = arith.constant 0 : index
    %c0_294 = arith.constant 0 : index
    %c0_295 = arith.constant 0 : index
    %537 = vector.load %arg7[%c0_293, %c0_294, %c0_295] : memref<2x2x32xf32, #tpu.memory_space<vmem>>, vector<2x2x32xf32>
    tpu.vector_store %arg7[%c0_293, %c0_294, %c0_295], %536 {strides = array<i32>} : memref<2x2x32xf32, #tpu.memory_space<vmem>>, vector<2x2x32xf32>,
    %c0_296 = arith.constant 0 : index
    %c0_297 = arith.constant 0 : index
    %c0_298 = arith.constant 0 : index
    %538 = vector.load %arg8[%c0_296, %c0_297, %c0_298] : memref<2x2x32xf32, #tpu.memory_space<vmem>>, vector<2x2x32xf32>
    tpu.vector_store %arg8[%c0_296, %c0_297, %c0_298], %534 {strides = array<i32>} : memref<2x2x32xf32, #tpu.memory_space<vmem>>, vector<2x2x32xf32>,
    %539 = vector.extract_strided_slice %536 {offsets = [0, 0, 0], sizes = [1, 2, 32], strides = [1, 1, 1]} : vector<2x2x32xf32> to vector<1x2x32xf32>
    %540 = vector.shape_cast %539 : vector<1x2x32xf32> to vector<2x32xf32>
    %541 = arith.index_cast %c8_i32 : i32 to index
    %c0_299 = arith.constant 0 : index
    %c0_300 = arith.constant 0 : index
    %542 = vector.load %arg5[%541, %c0_299, %c0_300] : memref<16x2x32xf32, #tpu.memory_space<vmem>>, vector<1x2x32xf32>
    %543 = vector.shape_cast %542 : vector<1x2x32xf32> to vector<2x32xf32>
    %544 = vector.shape_cast %540 : vector<2x32xf32> to vector<1x2x32xf32>
    tpu.vector_store %arg5[%541, %c0_299, %c0_300], %544 {strides = array<i32>} : memref<16x2x32xf32, #tpu.memory_space<vmem>>, vector<1x2x32xf32>,
    %545 = vector.extract_strided_slice %536 {offsets = [1, 0, 0], sizes = [1, 2, 32], strides = [1, 1, 1]} : vector<2x2x32xf32> to vector<1x2x32xf32>
    %546 = vector.shape_cast %545 : vector<1x2x32xf32> to vector<2x32xf32>
    %c15_i32_301 = arith.constant 15 : i32
    %547 = arith.subi %c15_i32_301, %c8_i32 : i32
    %548 = arith.index_cast %547 : i32 to index
    %c0_302 = arith.constant 0 : index
    %c0_303 = arith.constant 0 : index
    %549 = vector.load %arg6[%548, %c0_302, %c0_303] : memref<16x2x32xf32, #tpu.memory_space<vmem>>, vector<1x2x32xf32>
    %550 = vector.shape_cast %549 : vector<1x2x32xf32> to vector<2x32xf32>
    %551 = vector.shape_cast %546 : vector<2x32xf32> to vector<1x2x32xf32>
    tpu.vector_store %arg6[%548, %c0_302, %c0_303], %551 {strides = array<i32>} : memref<16x2x32xf32, #tpu.memory_space<vmem>>, vector<1x2x32xf32>,
    %c9_i32 = arith.constant 9 : i32
    %552 = arith.index_cast %c9_i32 : i32 to index
    %c0_304 = arith.constant 0 : index
    %c0_305 = arith.constant 0 : index
    %553 = vector.load %arg1[%552, %c0_304, %c0_305] : memref<16x2x128xf32, #tpu.memory_space<vmem>>, vector<1x2x128xf32>
    %554 = vector.shape_cast %553 : vector<1x2x128xf32> to vector<2x128xf32>
    %c0_306 = arith.constant 0 : index
    %c0_307 = arith.constant 0 : index
    %c0_308 = arith.constant 0 : index
    %555 = vector.load %arg7[%c0_306, %c0_307, %c0_308] : memref<2x2x32xf32, #tpu.memory_space<vmem>>, vector<1x2x32xf32>
    %556 = vector.shape_cast %555 : vector<1x2x32xf32> to vector<2x32xf32>
    %c0_309 = arith.constant 0 : index
    %c0_310 = arith.constant 0 : index
    %557 = vector.load %arg3[%c0_309, %c0_310] : memref<32x128xf32, #tpu.memory_space<vmem>>, vector<32x128xf32>
    %cst_311 = arith.constant dense<0.000000e+00> : vector<2x128xf32>
    %558 = tpu.matmul %556, %557, %cst_311 {dimension_numbers = #tpu.dot_dimension_numbers<[1], [0], [0], [1], [0, 0, 1, 1], [], []>} : vector<2x32xf32>, vector<32x128xf32>, vector<2x128xf32> -> vector<2x128xf32>
    %559 = arith.addf %554, %558 : vector<2x128xf32>
    %c15_i32_312 = arith.constant 15 : i32
    %560 = arith.subi %c15_i32_312, %c9_i32 : i32
    %561 = arith.index_cast %560 : i32 to index
    %c0_313 = arith.constant 0 : index
    %c0_314 = arith.constant 0 : index
    %562 = vector.load %arg2[%561, %c0_313, %c0_314] : memref<16x2x128xf32, #tpu.memory_space<vmem>>, vector<1x2x128xf32>
    %563 = vector.shape_cast %562 : vector<1x2x128xf32> to vector<2x128xf32>
    %c1_315 = arith.constant 1 : index
    %c0_316 = arith.constant 0 : index
    %c0_317 = arith.constant 0 : index
    %564 = vector.load %arg7[%c1_315, %c0_316, %c0_317] : memref<2x2x32xf32, #tpu.memory_space<vmem>>, vector<1x2x32xf32>
    %565 = vector.shape_cast %564 : vector<1x2x32xf32> to vector<2x32xf32>
    %c0_318 = arith.constant 0 : index
    %c0_319 = arith.constant 0 : index
    %566 = vector.load %arg4[%c0_318, %c0_319] : memref<32x128xf32, #tpu.memory_space<vmem>>, vector<32x128xf32>
    %cst_320 = arith.constant dense<0.000000e+00> : vector<2x128xf32>
    %567 = tpu.matmul %565, %566, %cst_320 {dimension_numbers = #tpu.dot_dimension_numbers<[1], [0], [0], [1], [0, 0, 1, 1], [], []>} : vector<2x32xf32>, vector<32x128xf32>, vector<2x128xf32> -> vector<2x128xf32>
    %568 = arith.addf %563, %567 : vector<2x128xf32>
    %569 = vector.shape_cast %559 : vector<2x128xf32> to vector<1x2x128xf32>
    %570 = vector.shape_cast %568 : vector<2x128xf32> to vector<1x2x128xf32>
    %571 = tpu.concatenate %569, %570 in 0 : vector<1x2x128xf32>, vector<1x2x128xf32> -> vector<2x2x128xf32>
    %572 = vector.extract_strided_slice %571 {offsets = [0, 0, 0], sizes = [2, 2, 32], strides = [1, 1, 1]} : vector<2x2x128xf32> to vector<2x2x32xf32>
    %573 = arith.negf %572 : vector<2x2x32xf32>
    %574 = math.exp %573 : vector<2x2x32xf32>
    %cst_321 = arith.constant 1.000000e+00 : f32
    %575 = vector.broadcast %cst_321 : f32 to vector<2x2x32xf32>
    %576 = arith.addf %575, %574 : vector<2x2x32xf32>
    %577 = arith.divf %575, %576 : vector<2x2x32xf32>
    %578 = vector.extract_strided_slice %571 {offsets = [0, 0, 32], sizes = [2, 2, 32], strides = [1, 1, 1]} : vector<2x2x128xf32> to vector<2x2x32xf32>
    %579 = arith.negf %578 : vector<2x2x32xf32>
    %580 = math.exp %579 : vector<2x2x32xf32>
    %cst_322 = arith.constant 1.000000e+00 : f32
    %581 = vector.broadcast %cst_322 : f32 to vector<2x2x32xf32>
    %582 = arith.addf %581, %580 : vector<2x2x32xf32>
    %583 = arith.divf %581, %582 : vector<2x2x32xf32>
    %584 = vector.extract_strided_slice %571 {offsets = [0, 0, 64], sizes = [2, 2, 32], strides = [1, 1, 1]} : vector<2x2x128xf32> to vector<2x2x32xf32>
    %585 = math.tanh %584 : vector<2x2x32xf32>
    %586 = vector.extract_strided_slice %571 {offsets = [0, 0, 96], sizes = [2, 2, 32], strides = [1, 1, 1]} : vector<2x2x128xf32> to vector<2x2x32xf32>
    %587 = arith.negf %586 : vector<2x2x32xf32>
    %588 = math.exp %587 : vector<2x2x32xf32>
    %cst_323 = arith.constant 1.000000e+00 : f32
    %589 = vector.broadcast %cst_323 : f32 to vector<2x2x32xf32>
    %590 = arith.addf %589, %588 : vector<2x2x32xf32>
    %591 = arith.divf %589, %590 : vector<2x2x32xf32>
    %c0_324 = arith.constant 0 : index
    %c0_325 = arith.constant 0 : index
    %c0_326 = arith.constant 0 : index
    %592 = vector.load %arg8[%c0_324, %c0_325, %c0_326] : memref<2x2x32xf32, #tpu.memory_space<vmem>>, vector<2x2x32xf32>
    %593 = arith.mulf %583, %592 : vector<2x2x32xf32>
    %594 = arith.mulf %577, %585 : vector<2x2x32xf32>
    %595 = arith.addf %593, %594 : vector<2x2x32xf32>
    %596 = math.tanh %595 : vector<2x2x32xf32>
    %597 = arith.mulf %591, %596 : vector<2x2x32xf32>
    %c0_327 = arith.constant 0 : index
    %c0_328 = arith.constant 0 : index
    %c0_329 = arith.constant 0 : index
    %598 = vector.load %arg7[%c0_327, %c0_328, %c0_329] : memref<2x2x32xf32, #tpu.memory_space<vmem>>, vector<2x2x32xf32>
    tpu.vector_store %arg7[%c0_327, %c0_328, %c0_329], %597 {strides = array<i32>} : memref<2x2x32xf32, #tpu.memory_space<vmem>>, vector<2x2x32xf32>,
    %c0_330 = arith.constant 0 : index
    %c0_331 = arith.constant 0 : index
    %c0_332 = arith.constant 0 : index
    %599 = vector.load %arg8[%c0_330, %c0_331, %c0_332] : memref<2x2x32xf32, #tpu.memory_space<vmem>>, vector<2x2x32xf32>
    tpu.vector_store %arg8[%c0_330, %c0_331, %c0_332], %595 {strides = array<i32>} : memref<2x2x32xf32, #tpu.memory_space<vmem>>, vector<2x2x32xf32>,
    %600 = vector.extract_strided_slice %597 {offsets = [0, 0, 0], sizes = [1, 2, 32], strides = [1, 1, 1]} : vector<2x2x32xf32> to vector<1x2x32xf32>
    %601 = vector.shape_cast %600 : vector<1x2x32xf32> to vector<2x32xf32>
    %602 = arith.index_cast %c9_i32 : i32 to index
    %c0_333 = arith.constant 0 : index
    %c0_334 = arith.constant 0 : index
    %603 = vector.load %arg5[%602, %c0_333, %c0_334] : memref<16x2x32xf32, #tpu.memory_space<vmem>>, vector<1x2x32xf32>
    %604 = vector.shape_cast %603 : vector<1x2x32xf32> to vector<2x32xf32>
    %605 = vector.shape_cast %601 : vector<2x32xf32> to vector<1x2x32xf32>
    tpu.vector_store %arg5[%602, %c0_333, %c0_334], %605 {strides = array<i32>} : memref<16x2x32xf32, #tpu.memory_space<vmem>>, vector<1x2x32xf32>,
    %606 = vector.extract_strided_slice %597 {offsets = [1, 0, 0], sizes = [1, 2, 32], strides = [1, 1, 1]} : vector<2x2x32xf32> to vector<1x2x32xf32>
    %607 = vector.shape_cast %606 : vector<1x2x32xf32> to vector<2x32xf32>
    %c15_i32_335 = arith.constant 15 : i32
    %608 = arith.subi %c15_i32_335, %c9_i32 : i32
    %609 = arith.index_cast %608 : i32 to index
    %c0_336 = arith.constant 0 : index
    %c0_337 = arith.constant 0 : index
    %610 = vector.load %arg6[%609, %c0_336, %c0_337] : memref<16x2x32xf32, #tpu.memory_space<vmem>>, vector<1x2x32xf32>
    %611 = vector.shape_cast %610 : vector<1x2x32xf32> to vector<2x32xf32>
    %612 = vector.shape_cast %607 : vector<2x32xf32> to vector<1x2x32xf32>
    tpu.vector_store %arg6[%609, %c0_336, %c0_337], %612 {strides = array<i32>} : memref<16x2x32xf32, #tpu.memory_space<vmem>>, vector<1x2x32xf32>,
    %c10_i32 = arith.constant 10 : i32
    %613 = arith.index_cast %c10_i32 : i32 to index
    %c0_338 = arith.constant 0 : index
    %c0_339 = arith.constant 0 : index
    %614 = vector.load %arg1[%613, %c0_338, %c0_339] : memref<16x2x128xf32, #tpu.memory_space<vmem>>, vector<1x2x128xf32>
    %615 = vector.shape_cast %614 : vector<1x2x128xf32> to vector<2x128xf32>
    %c0_340 = arith.constant 0 : index
    %c0_341 = arith.constant 0 : index
    %c0_342 = arith.constant 0 : index
    %616 = vector.load %arg7[%c0_340, %c0_341, %c0_342] : memref<2x2x32xf32, #tpu.memory_space<vmem>>, vector<1x2x32xf32>
    %617 = vector.shape_cast %616 : vector<1x2x32xf32> to vector<2x32xf32>
    %c0_343 = arith.constant 0 : index
    %c0_344 = arith.constant 0 : index
    %618 = vector.load %arg3[%c0_343, %c0_344] : memref<32x128xf32, #tpu.memory_space<vmem>>, vector<32x128xf32>
    %cst_345 = arith.constant dense<0.000000e+00> : vector<2x128xf32>
    %619 = tpu.matmul %617, %618, %cst_345 {dimension_numbers = #tpu.dot_dimension_numbers<[1], [0], [0], [1], [0, 0, 1, 1], [], []>} : vector<2x32xf32>, vector<32x128xf32>, vector<2x128xf32> -> vector<2x128xf32>
    %620 = arith.addf %615, %619 : vector<2x128xf32>
    %c15_i32_346 = arith.constant 15 : i32
    %621 = arith.subi %c15_i32_346, %c10_i32 : i32
    %622 = arith.index_cast %621 : i32 to index
    %c0_347 = arith.constant 0 : index
    %c0_348 = arith.constant 0 : index
    %623 = vector.load %arg2[%622, %c0_347, %c0_348] : memref<16x2x128xf32, #tpu.memory_space<vmem>>, vector<1x2x128xf32>
    %624 = vector.shape_cast %623 : vector<1x2x128xf32> to vector<2x128xf32>
    %c1_349 = arith.constant 1 : index
    %c0_350 = arith.constant 0 : index
    %c0_351 = arith.constant 0 : index
    %625 = vector.load %arg7[%c1_349, %c0_350, %c0_351] : memref<2x2x32xf32, #tpu.memory_space<vmem>>, vector<1x2x32xf32>
    %626 = vector.shape_cast %625 : vector<1x2x32xf32> to vector<2x32xf32>
    %c0_352 = arith.constant 0 : index
    %c0_353 = arith.constant 0 : index
    %627 = vector.load %arg4[%c0_352, %c0_353] : memref<32x128xf32, #tpu.memory_space<vmem>>, vector<32x128xf32>
    %cst_354 = arith.constant dense<0.000000e+00> : vector<2x128xf32>
    %628 = tpu.matmul %626, %627, %cst_354 {dimension_numbers = #tpu.dot_dimension_numbers<[1], [0], [0], [1], [0, 0, 1, 1], [], []>} : vector<2x32xf32>, vector<32x128xf32>, vector<2x128xf32> -> vector<2x128xf32>
    %629 = arith.addf %624, %628 : vector<2x128xf32>
    %630 = vector.shape_cast %620 : vector<2x128xf32> to vector<1x2x128xf32>
    %631 = vector.shape_cast %629 : vector<2x128xf32> to vector<1x2x128xf32>
    %632 = tpu.concatenate %630, %631 in 0 : vector<1x2x128xf32>, vector<1x2x128xf32> -> vector<2x2x128xf32>
    %633 = vector.extract_strided_slice %632 {offsets = [0, 0, 0], sizes = [2, 2, 32], strides = [1, 1, 1]} : vector<2x2x128xf32> to vector<2x2x32xf32>
    %634 = arith.negf %633 : vector<2x2x32xf32>
    %635 = math.exp %634 : vector<2x2x32xf32>
    %cst_355 = arith.constant 1.000000e+00 : f32
    %636 = vector.broadcast %cst_355 : f32 to vector<2x2x32xf32>
    %637 = arith.addf %636, %635 : vector<2x2x32xf32>
    %638 = arith.divf %636, %637 : vector<2x2x32xf32>
    %639 = vector.extract_strided_slice %632 {offsets = [0, 0, 32], sizes = [2, 2, 32], strides = [1, 1, 1]} : vector<2x2x128xf32> to vector<2x2x32xf32>
    %640 = arith.negf %639 : vector<2x2x32xf32>
    %641 = math.exp %640 : vector<2x2x32xf32>
    %cst_356 = arith.constant 1.000000e+00 : f32
    %642 = vector.broadcast %cst_356 : f32 to vector<2x2x32xf32>
    %643 = arith.addf %642, %641 : vector<2x2x32xf32>
    %644 = arith.divf %642, %643 : vector<2x2x32xf32>
    %645 = vector.extract_strided_slice %632 {offsets = [0, 0, 64], sizes = [2, 2, 32], strides = [1, 1, 1]} : vector<2x2x128xf32> to vector<2x2x32xf32>
    %646 = math.tanh %645 : vector<2x2x32xf32>
    %647 = vector.extract_strided_slice %632 {offsets = [0, 0, 96], sizes = [2, 2, 32], strides = [1, 1, 1]} : vector<2x2x128xf32> to vector<2x2x32xf32>
    %648 = arith.negf %647 : vector<2x2x32xf32>
    %649 = math.exp %648 : vector<2x2x32xf32>
    %cst_357 = arith.constant 1.000000e+00 : f32
    %650 = vector.broadcast %cst_357 : f32 to vector<2x2x32xf32>
    %651 = arith.addf %650, %649 : vector<2x2x32xf32>
    %652 = arith.divf %650, %651 : vector<2x2x32xf32>
    %c0_358 = arith.constant 0 : index
    %c0_359 = arith.constant 0 : index
    %c0_360 = arith.constant 0 : index
    %653 = vector.load %arg8[%c0_358, %c0_359, %c0_360] : memref<2x2x32xf32, #tpu.memory_space<vmem>>, vector<2x2x32xf32>
    %654 = arith.mulf %644, %653 : vector<2x2x32xf32>
    %655 = arith.mulf %638, %646 : vector<2x2x32xf32>
    %656 = arith.addf %654, %655 : vector<2x2x32xf32>
    %657 = math.tanh %656 : vector<2x2x32xf32>
    %658 = arith.mulf %652, %657 : vector<2x2x32xf32>
    %c0_361 = arith.constant 0 : index
    %c0_362 = arith.constant 0 : index
    %c0_363 = arith.constant 0 : index
    %659 = vector.load %arg7[%c0_361, %c0_362, %c0_363] : memref<2x2x32xf32, #tpu.memory_space<vmem>>, vector<2x2x32xf32>
    tpu.vector_store %arg7[%c0_361, %c0_362, %c0_363], %658 {strides = array<i32>} : memref<2x2x32xf32, #tpu.memory_space<vmem>>, vector<2x2x32xf32>,
    %c0_364 = arith.constant 0 : index
    %c0_365 = arith.constant 0 : index
    %c0_366 = arith.constant 0 : index
    %660 = vector.load %arg8[%c0_364, %c0_365, %c0_366] : memref<2x2x32xf32, #tpu.memory_space<vmem>>, vector<2x2x32xf32>
    tpu.vector_store %arg8[%c0_364, %c0_365, %c0_366], %656 {strides = array<i32>} : memref<2x2x32xf32, #tpu.memory_space<vmem>>, vector<2x2x32xf32>,
    %661 = vector.extract_strided_slice %658 {offsets = [0, 0, 0], sizes = [1, 2, 32], strides = [1, 1, 1]} : vector<2x2x32xf32> to vector<1x2x32xf32>
    %662 = vector.shape_cast %661 : vector<1x2x32xf32> to vector<2x32xf32>
    %663 = arith.index_cast %c10_i32 : i32 to index
    %c0_367 = arith.constant 0 : index
    %c0_368 = arith.constant 0 : index
    %664 = vector.load %arg5[%663, %c0_367, %c0_368] : memref<16x2x32xf32, #tpu.memory_space<vmem>>, vector<1x2x32xf32>
    %665 = vector.shape_cast %664 : vector<1x2x32xf32> to vector<2x32xf32>
    %666 = vector.shape_cast %662 : vector<2x32xf32> to vector<1x2x32xf32>
    tpu.vector_store %arg5[%663, %c0_367, %c0_368], %666 {strides = array<i32>} : memref<16x2x32xf32, #tpu.memory_space<vmem>>, vector<1x2x32xf32>,
    %667 = vector.extract_strided_slice %658 {offsets = [1, 0, 0], sizes = [1, 2, 32], strides = [1, 1, 1]} : vector<2x2x32xf32> to vector<1x2x32xf32>
    %668 = vector.shape_cast %667 : vector<1x2x32xf32> to vector<2x32xf32>
    %c15_i32_369 = arith.constant 15 : i32
    %669 = arith.subi %c15_i32_369, %c10_i32 : i32
    %670 = arith.index_cast %669 : i32 to index
    %c0_370 = arith.constant 0 : index
    %c0_371 = arith.constant 0 : index
    %671 = vector.load %arg6[%670, %c0_370, %c0_371] : memref<16x2x32xf32, #tpu.memory_space<vmem>>, vector<1x2x32xf32>
    %672 = vector.shape_cast %671 : vector<1x2x32xf32> to vector<2x32xf32>
    %673 = vector.shape_cast %668 : vector<2x32xf32> to vector<1x2x32xf32>
    tpu.vector_store %arg6[%670, %c0_370, %c0_371], %673 {strides = array<i32>} : memref<16x2x32xf32, #tpu.memory_space<vmem>>, vector<1x2x32xf32>,
    %c11_i32 = arith.constant 11 : i32
    %674 = arith.index_cast %c11_i32 : i32 to index
    %c0_372 = arith.constant 0 : index
    %c0_373 = arith.constant 0 : index
    %675 = vector.load %arg1[%674, %c0_372, %c0_373] : memref<16x2x128xf32, #tpu.memory_space<vmem>>, vector<1x2x128xf32>
    %676 = vector.shape_cast %675 : vector<1x2x128xf32> to vector<2x128xf32>
    %c0_374 = arith.constant 0 : index
    %c0_375 = arith.constant 0 : index
    %c0_376 = arith.constant 0 : index
    %677 = vector.load %arg7[%c0_374, %c0_375, %c0_376] : memref<2x2x32xf32, #tpu.memory_space<vmem>>, vector<1x2x32xf32>
    %678 = vector.shape_cast %677 : vector<1x2x32xf32> to vector<2x32xf32>
    %c0_377 = arith.constant 0 : index
    %c0_378 = arith.constant 0 : index
    %679 = vector.load %arg3[%c0_377, %c0_378] : memref<32x128xf32, #tpu.memory_space<vmem>>, vector<32x128xf32>
    %cst_379 = arith.constant dense<0.000000e+00> : vector<2x128xf32>
    %680 = tpu.matmul %678, %679, %cst_379 {dimension_numbers = #tpu.dot_dimension_numbers<[1], [0], [0], [1], [0, 0, 1, 1], [], []>} : vector<2x32xf32>, vector<32x128xf32>, vector<2x128xf32> -> vector<2x128xf32>
    %681 = arith.addf %676, %680 : vector<2x128xf32>
    %c15_i32_380 = arith.constant 15 : i32
    %682 = arith.subi %c15_i32_380, %c11_i32 : i32
    %683 = arith.index_cast %682 : i32 to index
    %c0_381 = arith.constant 0 : index
    %c0_382 = arith.constant 0 : index
    %684 = vector.load %arg2[%683, %c0_381, %c0_382] : memref<16x2x128xf32, #tpu.memory_space<vmem>>, vector<1x2x128xf32>
    %685 = vector.shape_cast %684 : vector<1x2x128xf32> to vector<2x128xf32>
    %c1_383 = arith.constant 1 : index
    %c0_384 = arith.constant 0 : index
    %c0_385 = arith.constant 0 : index
    %686 = vector.load %arg7[%c1_383, %c0_384, %c0_385] : memref<2x2x32xf32, #tpu.memory_space<vmem>>, vector<1x2x32xf32>
    %687 = vector.shape_cast %686 : vector<1x2x32xf32> to vector<2x32xf32>
    %c0_386 = arith.constant 0 : index
    %c0_387 = arith.constant 0 : index
    %688 = vector.load %arg4[%c0_386, %c0_387] : memref<32x128xf32, #tpu.memory_space<vmem>>, vector<32x128xf32>
    %cst_388 = arith.constant dense<0.000000e+00> : vector<2x128xf32>
    %689 = tpu.matmul %687, %688, %cst_388 {dimension_numbers = #tpu.dot_dimension_numbers<[1], [0], [0], [1], [0, 0, 1, 1], [], []>} : vector<2x32xf32>, vector<32x128xf32>, vector<2x128xf32> -> vector<2x128xf32>
    %690 = arith.addf %685, %689 : vector<2x128xf32>
    %691 = vector.shape_cast %681 : vector<2x128xf32> to vector<1x2x128xf32>
    %692 = vector.shape_cast %690 : vector<2x128xf32> to vector<1x2x128xf32>
    %693 = tpu.concatenate %691, %692 in 0 : vector<1x2x128xf32>, vector<1x2x128xf32> -> vector<2x2x128xf32>
    %694 = vector.extract_strided_slice %693 {offsets = [0, 0, 0], sizes = [2, 2, 32], strides = [1, 1, 1]} : vector<2x2x128xf32> to vector<2x2x32xf32>
    %695 = arith.negf %694 : vector<2x2x32xf32>
    %696 = math.exp %695 : vector<2x2x32xf32>
    %cst_389 = arith.constant 1.000000e+00 : f32
    %697 = vector.broadcast %cst_389 : f32 to vector<2x2x32xf32>
    %698 = arith.addf %697, %696 : vector<2x2x32xf32>
    %699 = arith.divf %697, %698 : vector<2x2x32xf32>
    %700 = vector.extract_strided_slice %693 {offsets = [0, 0, 32], sizes = [2, 2, 32], strides = [1, 1, 1]} : vector<2x2x128xf32> to vector<2x2x32xf32>
    %701 = arith.negf %700 : vector<2x2x32xf32>
    %702 = math.exp %701 : vector<2x2x32xf32>
    %cst_390 = arith.constant 1.000000e+00 : f32
    %703 = vector.broadcast %cst_390 : f32 to vector<2x2x32xf32>
    %704 = arith.addf %703, %702 : vector<2x2x32xf32>
    %705 = arith.divf %703, %704 : vector<2x2x32xf32>
    %706 = vector.extract_strided_slice %693 {offsets = [0, 0, 64], sizes = [2, 2, 32], strides = [1, 1, 1]} : vector<2x2x128xf32> to vector<2x2x32xf32>
    %707 = math.tanh %706 : vector<2x2x32xf32>
    %708 = vector.extract_strided_slice %693 {offsets = [0, 0, 96], sizes = [2, 2, 32], strides = [1, 1, 1]} : vector<2x2x128xf32> to vector<2x2x32xf32>
    %709 = arith.negf %708 : vector<2x2x32xf32>
    %710 = math.exp %709 : vector<2x2x32xf32>
    %cst_391 = arith.constant 1.000000e+00 : f32
    %711 = vector.broadcast %cst_391 : f32 to vector<2x2x32xf32>
    %712 = arith.addf %711, %710 : vector<2x2x32xf32>
    %713 = arith.divf %711, %712 : vector<2x2x32xf32>
    %c0_392 = arith.constant 0 : index
    %c0_393 = arith.constant 0 : index
    %c0_394 = arith.constant 0 : index
    %714 = vector.load %arg8[%c0_392, %c0_393, %c0_394] : memref<2x2x32xf32, #tpu.memory_space<vmem>>, vector<2x2x32xf32>
    %715 = arith.mulf %705, %714 : vector<2x2x32xf32>
    %716 = arith.mulf %699, %707 : vector<2x2x32xf32>
    %717 = arith.addf %715, %716 : vector<2x2x32xf32>
    %718 = math.tanh %717 : vector<2x2x32xf32>
    %719 = arith.mulf %713, %718 : vector<2x2x32xf32>
    %c0_395 = arith.constant 0 : index
    %c0_396 = arith.constant 0 : index
    %c0_397 = arith.constant 0 : index
    %720 = vector.load %arg7[%c0_395, %c0_396, %c0_397] : memref<2x2x32xf32, #tpu.memory_space<vmem>>, vector<2x2x32xf32>
    tpu.vector_store %arg7[%c0_395, %c0_396, %c0_397], %719 {strides = array<i32>} : memref<2x2x32xf32, #tpu.memory_space<vmem>>, vector<2x2x32xf32>,
    %c0_398 = arith.constant 0 : index
    %c0_399 = arith.constant 0 : index
    %c0_400 = arith.constant 0 : index
    %721 = vector.load %arg8[%c0_398, %c0_399, %c0_400] : memref<2x2x32xf32, #tpu.memory_space<vmem>>, vector<2x2x32xf32>
    tpu.vector_store %arg8[%c0_398, %c0_399, %c0_400], %717 {strides = array<i32>} : memref<2x2x32xf32, #tpu.memory_space<vmem>>, vector<2x2x32xf32>,
    %722 = vector.extract_strided_slice %719 {offsets = [0, 0, 0], sizes = [1, 2, 32], strides = [1, 1, 1]} : vector<2x2x32xf32> to vector<1x2x32xf32>
    %723 = vector.shape_cast %722 : vector<1x2x32xf32> to vector<2x32xf32>
    %724 = arith.index_cast %c11_i32 : i32 to index
    %c0_401 = arith.constant 0 : index
    %c0_402 = arith.constant 0 : index
    %725 = vector.load %arg5[%724, %c0_401, %c0_402] : memref<16x2x32xf32, #tpu.memory_space<vmem>>, vector<1x2x32xf32>
    %726 = vector.shape_cast %725 : vector<1x2x32xf32> to vector<2x32xf32>
    %727 = vector.shape_cast %723 : vector<2x32xf32> to vector<1x2x32xf32>
    tpu.vector_store %arg5[%724, %c0_401, %c0_402], %727 {strides = array<i32>} : memref<16x2x32xf32, #tpu.memory_space<vmem>>, vector<1x2x32xf32>,
    %728 = vector.extract_strided_slice %719 {offsets = [1, 0, 0], sizes = [1, 2, 32], strides = [1, 1, 1]} : vector<2x2x32xf32> to vector<1x2x32xf32>
    %729 = vector.shape_cast %728 : vector<1x2x32xf32> to vector<2x32xf32>
    %c15_i32_403 = arith.constant 15 : i32
    %730 = arith.subi %c15_i32_403, %c11_i32 : i32
    %731 = arith.index_cast %730 : i32 to index
    %c0_404 = arith.constant 0 : index
    %c0_405 = arith.constant 0 : index
    %732 = vector.load %arg6[%731, %c0_404, %c0_405] : memref<16x2x32xf32, #tpu.memory_space<vmem>>, vector<1x2x32xf32>
    %733 = vector.shape_cast %732 : vector<1x2x32xf32> to vector<2x32xf32>
    %734 = vector.shape_cast %729 : vector<2x32xf32> to vector<1x2x32xf32>
    tpu.vector_store %arg6[%731, %c0_404, %c0_405], %734 {strides = array<i32>} : memref<16x2x32xf32, #tpu.memory_space<vmem>>, vector<1x2x32xf32>,
    %c12_i32 = arith.constant 12 : i32
    %735 = arith.index_cast %c12_i32 : i32 to index
    %c0_406 = arith.constant 0 : index
    %c0_407 = arith.constant 0 : index
    %736 = vector.load %arg1[%735, %c0_406, %c0_407] : memref<16x2x128xf32, #tpu.memory_space<vmem>>, vector<1x2x128xf32>
    %737 = vector.shape_cast %736 : vector<1x2x128xf32> to vector<2x128xf32>
    %c0_408 = arith.constant 0 : index
    %c0_409 = arith.constant 0 : index
    %c0_410 = arith.constant 0 : index
    %738 = vector.load %arg7[%c0_408, %c0_409, %c0_410] : memref<2x2x32xf32, #tpu.memory_space<vmem>>, vector<1x2x32xf32>
    %739 = vector.shape_cast %738 : vector<1x2x32xf32> to vector<2x32xf32>
    %c0_411 = arith.constant 0 : index
    %c0_412 = arith.constant 0 : index
    %740 = vector.load %arg3[%c0_411, %c0_412] : memref<32x128xf32, #tpu.memory_space<vmem>>, vector<32x128xf32>
    %cst_413 = arith.constant dense<0.000000e+00> : vector<2x128xf32>
    %741 = tpu.matmul %739, %740, %cst_413 {dimension_numbers = #tpu.dot_dimension_numbers<[1], [0], [0], [1], [0, 0, 1, 1], [], []>} : vector<2x32xf32>, vector<32x128xf32>, vector<2x128xf32> -> vector<2x128xf32>
    %742 = arith.addf %737, %741 : vector<2x128xf32>
    %c15_i32_414 = arith.constant 15 : i32
    %743 = arith.subi %c15_i32_414, %c12_i32 : i32
    %744 = arith.index_cast %743 : i32 to index
    %c0_415 = arith.constant 0 : index
    %c0_416 = arith.constant 0 : index
    %745 = vector.load %arg2[%744, %c0_415, %c0_416] : memref<16x2x128xf32, #tpu.memory_space<vmem>>, vector<1x2x128xf32>
    %746 = vector.shape_cast %745 : vector<1x2x128xf32> to vector<2x128xf32>
    %c1_417 = arith.constant 1 : index
    %c0_418 = arith.constant 0 : index
    %c0_419 = arith.constant 0 : index
    %747 = vector.load %arg7[%c1_417, %c0_418, %c0_419] : memref<2x2x32xf32, #tpu.memory_space<vmem>>, vector<1x2x32xf32>
    %748 = vector.shape_cast %747 : vector<1x2x32xf32> to vector<2x32xf32>
    %c0_420 = arith.constant 0 : index
    %c0_421 = arith.constant 0 : index
    %749 = vector.load %arg4[%c0_420, %c0_421] : memref<32x128xf32, #tpu.memory_space<vmem>>, vector<32x128xf32>
    %cst_422 = arith.constant dense<0.000000e+00> : vector<2x128xf32>
    %750 = tpu.matmul %748, %749, %cst_422 {dimension_numbers = #tpu.dot_dimension_numbers<[1], [0], [0], [1], [0, 0, 1, 1], [], []>} : vector<2x32xf32>, vector<32x128xf32>, vector<2x128xf32> -> vector<2x128xf32>
    %751 = arith.addf %746, %750 : vector<2x128xf32>
    %752 = vector.shape_cast %742 : vector<2x128xf32> to vector<1x2x128xf32>
    %753 = vector.shape_cast %751 : vector<2x128xf32> to vector<1x2x128xf32>
    %754 = tpu.concatenate %752, %753 in 0 : vector<1x2x128xf32>, vector<1x2x128xf32> -> vector<2x2x128xf32>
    %755 = vector.extract_strided_slice %754 {offsets = [0, 0, 0], sizes = [2, 2, 32], strides = [1, 1, 1]} : vector<2x2x128xf32> to vector<2x2x32xf32>
    %756 = arith.negf %755 : vector<2x2x32xf32>
    %757 = math.exp %756 : vector<2x2x32xf32>
    %cst_423 = arith.constant 1.000000e+00 : f32
    %758 = vector.broadcast %cst_423 : f32 to vector<2x2x32xf32>
    %759 = arith.addf %758, %757 : vector<2x2x32xf32>
    %760 = arith.divf %758, %759 : vector<2x2x32xf32>
    %761 = vector.extract_strided_slice %754 {offsets = [0, 0, 32], sizes = [2, 2, 32], strides = [1, 1, 1]} : vector<2x2x128xf32> to vector<2x2x32xf32>
    %762 = arith.negf %761 : vector<2x2x32xf32>
    %763 = math.exp %762 : vector<2x2x32xf32>
    %cst_424 = arith.constant 1.000000e+00 : f32
    %764 = vector.broadcast %cst_424 : f32 to vector<2x2x32xf32>
    %765 = arith.addf %764, %763 : vector<2x2x32xf32>
    %766 = arith.divf %764, %765 : vector<2x2x32xf32>
    %767 = vector.extract_strided_slice %754 {offsets = [0, 0, 64], sizes = [2, 2, 32], strides = [1, 1, 1]} : vector<2x2x128xf32> to vector<2x2x32xf32>
    %768 = math.tanh %767 : vector<2x2x32xf32>
    %769 = vector.extract_strided_slice %754 {offsets = [0, 0, 96], sizes = [2, 2, 32], strides = [1, 1, 1]} : vector<2x2x128xf32> to vector<2x2x32xf32>
    %770 = arith.negf %769 : vector<2x2x32xf32>
    %771 = math.exp %770 : vector<2x2x32xf32>
    %cst_425 = arith.constant 1.000000e+00 : f32
    %772 = vector.broadcast %cst_425 : f32 to vector<2x2x32xf32>
    %773 = arith.addf %772, %771 : vector<2x2x32xf32>
    %774 = arith.divf %772, %773 : vector<2x2x32xf32>
    %c0_426 = arith.constant 0 : index
    %c0_427 = arith.constant 0 : index
    %c0_428 = arith.constant 0 : index
    %775 = vector.load %arg8[%c0_426, %c0_427, %c0_428] : memref<2x2x32xf32, #tpu.memory_space<vmem>>, vector<2x2x32xf32>
    %776 = arith.mulf %766, %775 : vector<2x2x32xf32>
    %777 = arith.mulf %760, %768 : vector<2x2x32xf32>
    %778 = arith.addf %776, %777 : vector<2x2x32xf32>
    %779 = math.tanh %778 : vector<2x2x32xf32>
    %780 = arith.mulf %774, %779 : vector<2x2x32xf32>
    %c0_429 = arith.constant 0 : index
    %c0_430 = arith.constant 0 : index
    %c0_431 = arith.constant 0 : index
    %781 = vector.load %arg7[%c0_429, %c0_430, %c0_431] : memref<2x2x32xf32, #tpu.memory_space<vmem>>, vector<2x2x32xf32>
    tpu.vector_store %arg7[%c0_429, %c0_430, %c0_431], %780 {strides = array<i32>} : memref<2x2x32xf32, #tpu.memory_space<vmem>>, vector<2x2x32xf32>,
    %c0_432 = arith.constant 0 : index
    %c0_433 = arith.constant 0 : index
    %c0_434 = arith.constant 0 : index
    %782 = vector.load %arg8[%c0_432, %c0_433, %c0_434] : memref<2x2x32xf32, #tpu.memory_space<vmem>>, vector<2x2x32xf32>
    tpu.vector_store %arg8[%c0_432, %c0_433, %c0_434], %778 {strides = array<i32>} : memref<2x2x32xf32, #tpu.memory_space<vmem>>, vector<2x2x32xf32>,
    %783 = vector.extract_strided_slice %780 {offsets = [0, 0, 0], sizes = [1, 2, 32], strides = [1, 1, 1]} : vector<2x2x32xf32> to vector<1x2x32xf32>
    %784 = vector.shape_cast %783 : vector<1x2x32xf32> to vector<2x32xf32>
    %785 = arith.index_cast %c12_i32 : i32 to index
    %c0_435 = arith.constant 0 : index
    %c0_436 = arith.constant 0 : index
    %786 = vector.load %arg5[%785, %c0_435, %c0_436] : memref<16x2x32xf32, #tpu.memory_space<vmem>>, vector<1x2x32xf32>
    %787 = vector.shape_cast %786 : vector<1x2x32xf32> to vector<2x32xf32>
    %788 = vector.shape_cast %784 : vector<2x32xf32> to vector<1x2x32xf32>
    tpu.vector_store %arg5[%785, %c0_435, %c0_436], %788 {strides = array<i32>} : memref<16x2x32xf32, #tpu.memory_space<vmem>>, vector<1x2x32xf32>,
    %789 = vector.extract_strided_slice %780 {offsets = [1, 0, 0], sizes = [1, 2, 32], strides = [1, 1, 1]} : vector<2x2x32xf32> to vector<1x2x32xf32>
    %790 = vector.shape_cast %789 : vector<1x2x32xf32> to vector<2x32xf32>
    %c15_i32_437 = arith.constant 15 : i32
    %791 = arith.subi %c15_i32_437, %c12_i32 : i32
    %792 = arith.index_cast %791 : i32 to index
    %c0_438 = arith.constant 0 : index
    %c0_439 = arith.constant 0 : index
    %793 = vector.load %arg6[%792, %c0_438, %c0_439] : memref<16x2x32xf32, #tpu.memory_space<vmem>>, vector<1x2x32xf32>
    %794 = vector.shape_cast %793 : vector<1x2x32xf32> to vector<2x32xf32>
    %795 = vector.shape_cast %790 : vector<2x32xf32> to vector<1x2x32xf32>
    tpu.vector_store %arg6[%792, %c0_438, %c0_439], %795 {strides = array<i32>} : memref<16x2x32xf32, #tpu.memory_space<vmem>>, vector<1x2x32xf32>,
    %c13_i32 = arith.constant 13 : i32
    %796 = arith.index_cast %c13_i32 : i32 to index
    %c0_440 = arith.constant 0 : index
    %c0_441 = arith.constant 0 : index
    %797 = vector.load %arg1[%796, %c0_440, %c0_441] : memref<16x2x128xf32, #tpu.memory_space<vmem>>, vector<1x2x128xf32>
    %798 = vector.shape_cast %797 : vector<1x2x128xf32> to vector<2x128xf32>
    %c0_442 = arith.constant 0 : index
    %c0_443 = arith.constant 0 : index
    %c0_444 = arith.constant 0 : index
    %799 = vector.load %arg7[%c0_442, %c0_443, %c0_444] : memref<2x2x32xf32, #tpu.memory_space<vmem>>, vector<1x2x32xf32>
    %800 = vector.shape_cast %799 : vector<1x2x32xf32> to vector<2x32xf32>
    %c0_445 = arith.constant 0 : index
    %c0_446 = arith.constant 0 : index
    %801 = vector.load %arg3[%c0_445, %c0_446] : memref<32x128xf32, #tpu.memory_space<vmem>>, vector<32x128xf32>
    %cst_447 = arith.constant dense<0.000000e+00> : vector<2x128xf32>
    %802 = tpu.matmul %800, %801, %cst_447 {dimension_numbers = #tpu.dot_dimension_numbers<[1], [0], [0], [1], [0, 0, 1, 1], [], []>} : vector<2x32xf32>, vector<32x128xf32>, vector<2x128xf32> -> vector<2x128xf32>
    %803 = arith.addf %798, %802 : vector<2x128xf32>
    %c15_i32_448 = arith.constant 15 : i32
    %804 = arith.subi %c15_i32_448, %c13_i32 : i32
    %805 = arith.index_cast %804 : i32 to index
    %c0_449 = arith.constant 0 : index
    %c0_450 = arith.constant 0 : index
    %806 = vector.load %arg2[%805, %c0_449, %c0_450] : memref<16x2x128xf32, #tpu.memory_space<vmem>>, vector<1x2x128xf32>
    %807 = vector.shape_cast %806 : vector<1x2x128xf32> to vector<2x128xf32>
    %c1_451 = arith.constant 1 : index
    %c0_452 = arith.constant 0 : index
    %c0_453 = arith.constant 0 : index
    %808 = vector.load %arg7[%c1_451, %c0_452, %c0_453] : memref<2x2x32xf32, #tpu.memory_space<vmem>>, vector<1x2x32xf32>
    %809 = vector.shape_cast %808 : vector<1x2x32xf32> to vector<2x32xf32>
    %c0_454 = arith.constant 0 : index
    %c0_455 = arith.constant 0 : index
    %810 = vector.load %arg4[%c0_454, %c0_455] : memref<32x128xf32, #tpu.memory_space<vmem>>, vector<32x128xf32>
    %cst_456 = arith.constant dense<0.000000e+00> : vector<2x128xf32>
    %811 = tpu.matmul %809, %810, %cst_456 {dimension_numbers = #tpu.dot_dimension_numbers<[1], [0], [0], [1], [0, 0, 1, 1], [], []>} : vector<2x32xf32>, vector<32x128xf32>, vector<2x128xf32> -> vector<2x128xf32>
    %812 = arith.addf %807, %811 : vector<2x128xf32>
    %813 = vector.shape_cast %803 : vector<2x128xf32> to vector<1x2x128xf32>
    %814 = vector.shape_cast %812 : vector<2x128xf32> to vector<1x2x128xf32>
    %815 = tpu.concatenate %813, %814 in 0 : vector<1x2x128xf32>, vector<1x2x128xf32> -> vector<2x2x128xf32>
    %816 = vector.extract_strided_slice %815 {offsets = [0, 0, 0], sizes = [2, 2, 32], strides = [1, 1, 1]} : vector<2x2x128xf32> to vector<2x2x32xf32>
    %817 = arith.negf %816 : vector<2x2x32xf32>
    %818 = math.exp %817 : vector<2x2x32xf32>
    %cst_457 = arith.constant 1.000000e+00 : f32
    %819 = vector.broadcast %cst_457 : f32 to vector<2x2x32xf32>
    %820 = arith.addf %819, %818 : vector<2x2x32xf32>
    %821 = arith.divf %819, %820 : vector<2x2x32xf32>
    %822 = vector.extract_strided_slice %815 {offsets = [0, 0, 32], sizes = [2, 2, 32], strides = [1, 1, 1]} : vector<2x2x128xf32> to vector<2x2x32xf32>
    %823 = arith.negf %822 : vector<2x2x32xf32>
    %824 = math.exp %823 : vector<2x2x32xf32>
    %cst_458 = arith.constant 1.000000e+00 : f32
    %825 = vector.broadcast %cst_458 : f32 to vector<2x2x32xf32>
    %826 = arith.addf %825, %824 : vector<2x2x32xf32>
    %827 = arith.divf %825, %826 : vector<2x2x32xf32>
    %828 = vector.extract_strided_slice %815 {offsets = [0, 0, 64], sizes = [2, 2, 32], strides = [1, 1, 1]} : vector<2x2x128xf32> to vector<2x2x32xf32>
    %829 = math.tanh %828 : vector<2x2x32xf32>
    %830 = vector.extract_strided_slice %815 {offsets = [0, 0, 96], sizes = [2, 2, 32], strides = [1, 1, 1]} : vector<2x2x128xf32> to vector<2x2x32xf32>
    %831 = arith.negf %830 : vector<2x2x32xf32>
    %832 = math.exp %831 : vector<2x2x32xf32>
    %cst_459 = arith.constant 1.000000e+00 : f32
    %833 = vector.broadcast %cst_459 : f32 to vector<2x2x32xf32>
    %834 = arith.addf %833, %832 : vector<2x2x32xf32>
    %835 = arith.divf %833, %834 : vector<2x2x32xf32>
    %c0_460 = arith.constant 0 : index
    %c0_461 = arith.constant 0 : index
    %c0_462 = arith.constant 0 : index
    %836 = vector.load %arg8[%c0_460, %c0_461, %c0_462] : memref<2x2x32xf32, #tpu.memory_space<vmem>>, vector<2x2x32xf32>
    %837 = arith.mulf %827, %836 : vector<2x2x32xf32>
    %838 = arith.mulf %821, %829 : vector<2x2x32xf32>
    %839 = arith.addf %837, %838 : vector<2x2x32xf32>
    %840 = math.tanh %839 : vector<2x2x32xf32>
    %841 = arith.mulf %835, %840 : vector<2x2x32xf32>
    %c0_463 = arith.constant 0 : index
    %c0_464 = arith.constant 0 : index
    %c0_465 = arith.constant 0 : index
    %842 = vector.load %arg7[%c0_463, %c0_464, %c0_465] : memref<2x2x32xf32, #tpu.memory_space<vmem>>, vector<2x2x32xf32>
    tpu.vector_store %arg7[%c0_463, %c0_464, %c0_465], %841 {strides = array<i32>} : memref<2x2x32xf32, #tpu.memory_space<vmem>>, vector<2x2x32xf32>,
    %c0_466 = arith.constant 0 : index
    %c0_467 = arith.constant 0 : index
    %c0_468 = arith.constant 0 : index
    %843 = vector.load %arg8[%c0_466, %c0_467, %c0_468] : memref<2x2x32xf32, #tpu.memory_space<vmem>>, vector<2x2x32xf32>
    tpu.vector_store %arg8[%c0_466, %c0_467, %c0_468], %839 {strides = array<i32>} : memref<2x2x32xf32, #tpu.memory_space<vmem>>, vector<2x2x32xf32>,
    %844 = vector.extract_strided_slice %841 {offsets = [0, 0, 0], sizes = [1, 2, 32], strides = [1, 1, 1]} : vector<2x2x32xf32> to vector<1x2x32xf32>
    %845 = vector.shape_cast %844 : vector<1x2x32xf32> to vector<2x32xf32>
    %846 = arith.index_cast %c13_i32 : i32 to index
    %c0_469 = arith.constant 0 : index
    %c0_470 = arith.constant 0 : index
    %847 = vector.load %arg5[%846, %c0_469, %c0_470] : memref<16x2x32xf32, #tpu.memory_space<vmem>>, vector<1x2x32xf32>
    %848 = vector.shape_cast %847 : vector<1x2x32xf32> to vector<2x32xf32>
    %849 = vector.shape_cast %845 : vector<2x32xf32> to vector<1x2x32xf32>
    tpu.vector_store %arg5[%846, %c0_469, %c0_470], %849 {strides = array<i32>} : memref<16x2x32xf32, #tpu.memory_space<vmem>>, vector<1x2x32xf32>,
    %850 = vector.extract_strided_slice %841 {offsets = [1, 0, 0], sizes = [1, 2, 32], strides = [1, 1, 1]} : vector<2x2x32xf32> to vector<1x2x32xf32>
    %851 = vector.shape_cast %850 : vector<1x2x32xf32> to vector<2x32xf32>
    %c15_i32_471 = arith.constant 15 : i32
    %852 = arith.subi %c15_i32_471, %c13_i32 : i32
    %853 = arith.index_cast %852 : i32 to index
    %c0_472 = arith.constant 0 : index
    %c0_473 = arith.constant 0 : index
    %854 = vector.load %arg6[%853, %c0_472, %c0_473] : memref<16x2x32xf32, #tpu.memory_space<vmem>>, vector<1x2x32xf32>
    %855 = vector.shape_cast %854 : vector<1x2x32xf32> to vector<2x32xf32>
    %856 = vector.shape_cast %851 : vector<2x32xf32> to vector<1x2x32xf32>
    tpu.vector_store %arg6[%853, %c0_472, %c0_473], %856 {strides = array<i32>} : memref<16x2x32xf32, #tpu.memory_space<vmem>>, vector<1x2x32xf32>,
    %c14_i32 = arith.constant 14 : i32
    %857 = arith.index_cast %c14_i32 : i32 to index
    %c0_474 = arith.constant 0 : index
    %c0_475 = arith.constant 0 : index
    %858 = vector.load %arg1[%857, %c0_474, %c0_475] : memref<16x2x128xf32, #tpu.memory_space<vmem>>, vector<1x2x128xf32>
    %859 = vector.shape_cast %858 : vector<1x2x128xf32> to vector<2x128xf32>
    %c0_476 = arith.constant 0 : index
    %c0_477 = arith.constant 0 : index
    %c0_478 = arith.constant 0 : index
    %860 = vector.load %arg7[%c0_476, %c0_477, %c0_478] : memref<2x2x32xf32, #tpu.memory_space<vmem>>, vector<1x2x32xf32>
    %861 = vector.shape_cast %860 : vector<1x2x32xf32> to vector<2x32xf32>
    %c0_479 = arith.constant 0 : index
    %c0_480 = arith.constant 0 : index
    %862 = vector.load %arg3[%c0_479, %c0_480] : memref<32x128xf32, #tpu.memory_space<vmem>>, vector<32x128xf32>
    %cst_481 = arith.constant dense<0.000000e+00> : vector<2x128xf32>
    %863 = tpu.matmul %861, %862, %cst_481 {dimension_numbers = #tpu.dot_dimension_numbers<[1], [0], [0], [1], [0, 0, 1, 1], [], []>} : vector<2x32xf32>, vector<32x128xf32>, vector<2x128xf32> -> vector<2x128xf32>
    %864 = arith.addf %859, %863 : vector<2x128xf32>
    %c15_i32_482 = arith.constant 15 : i32
    %865 = arith.subi %c15_i32_482, %c14_i32 : i32
    %866 = arith.index_cast %865 : i32 to index
    %c0_483 = arith.constant 0 : index
    %c0_484 = arith.constant 0 : index
    %867 = vector.load %arg2[%866, %c0_483, %c0_484] : memref<16x2x128xf32, #tpu.memory_space<vmem>>, vector<1x2x128xf32>
    %868 = vector.shape_cast %867 : vector<1x2x128xf32> to vector<2x128xf32>
    %c1_485 = arith.constant 1 : index
    %c0_486 = arith.constant 0 : index
    %c0_487 = arith.constant 0 : index
    %869 = vector.load %arg7[%c1_485, %c0_486, %c0_487] : memref<2x2x32xf32, #tpu.memory_space<vmem>>, vector<1x2x32xf32>
    %870 = vector.shape_cast %869 : vector<1x2x32xf32> to vector<2x32xf32>
    %c0_488 = arith.constant 0 : index
    %c0_489 = arith.constant 0 : index
    %871 = vector.load %arg4[%c0_488, %c0_489] : memref<32x128xf32, #tpu.memory_space<vmem>>, vector<32x128xf32>
    %cst_490 = arith.constant dense<0.000000e+00> : vector<2x128xf32>
    %872 = tpu.matmul %870, %871, %cst_490 {dimension_numbers = #tpu.dot_dimension_numbers<[1], [0], [0], [1], [0, 0, 1, 1], [], []>} : vector<2x32xf32>, vector<32x128xf32>, vector<2x128xf32> -> vector<2x128xf32>
    %873 = arith.addf %868, %872 : vector<2x128xf32>
    %874 = vector.shape_cast %864 : vector<2x128xf32> to vector<1x2x128xf32>
    %875 = vector.shape_cast %873 : vector<2x128xf32> to vector<1x2x128xf32>
    %876 = tpu.concatenate %874, %875 in 0 : vector<1x2x128xf32>, vector<1x2x128xf32> -> vector<2x2x128xf32>
    %877 = vector.extract_strided_slice %876 {offsets = [0, 0, 0], sizes = [2, 2, 32], strides = [1, 1, 1]} : vector<2x2x128xf32> to vector<2x2x32xf32>
    %878 = arith.negf %877 : vector<2x2x32xf32>
    %879 = math.exp %878 : vector<2x2x32xf32>
    %cst_491 = arith.constant 1.000000e+00 : f32
    %880 = vector.broadcast %cst_491 : f32 to vector<2x2x32xf32>
    %881 = arith.addf %880, %879 : vector<2x2x32xf32>
    %882 = arith.divf %880, %881 : vector<2x2x32xf32>
    %883 = vector.extract_strided_slice %876 {offsets = [0, 0, 32], sizes = [2, 2, 32], strides = [1, 1, 1]} : vector<2x2x128xf32> to vector<2x2x32xf32>
    %884 = arith.negf %883 : vector<2x2x32xf32>
    %885 = math.exp %884 : vector<2x2x32xf32>
    %cst_492 = arith.constant 1.000000e+00 : f32
    %886 = vector.broadcast %cst_492 : f32 to vector<2x2x32xf32>
    %887 = arith.addf %886, %885 : vector<2x2x32xf32>
    %888 = arith.divf %886, %887 : vector<2x2x32xf32>
    %889 = vector.extract_strided_slice %876 {offsets = [0, 0, 64], sizes = [2, 2, 32], strides = [1, 1, 1]} : vector<2x2x128xf32> to vector<2x2x32xf32>
    %890 = math.tanh %889 : vector<2x2x32xf32>
    %891 = vector.extract_strided_slice %876 {offsets = [0, 0, 96], sizes = [2, 2, 32], strides = [1, 1, 1]} : vector<2x2x128xf32> to vector<2x2x32xf32>
    %892 = arith.negf %891 : vector<2x2x32xf32>
    %893 = math.exp %892 : vector<2x2x32xf32>
    %cst_493 = arith.constant 1.000000e+00 : f32
    %894 = vector.broadcast %cst_493 : f32 to vector<2x2x32xf32>
    %895 = arith.addf %894, %893 : vector<2x2x32xf32>
    %896 = arith.divf %894, %895 : vector<2x2x32xf32>
    %c0_494 = arith.constant 0 : index
    %c0_495 = arith.constant 0 : index
    %c0_496 = arith.constant 0 : index
    %897 = vector.load %arg8[%c0_494, %c0_495, %c0_496] : memref<2x2x32xf32, #tpu.memory_space<vmem>>, vector<2x2x32xf32>
    %898 = arith.mulf %888, %897 : vector<2x2x32xf32>
    %899 = arith.mulf %882, %890 : vector<2x2x32xf32>
    %900 = arith.addf %898, %899 : vector<2x2x32xf32>
    %901 = math.tanh %900 : vector<2x2x32xf32>
    %902 = arith.mulf %896, %901 : vector<2x2x32xf32>
    %c0_497 = arith.constant 0 : index
    %c0_498 = arith.constant 0 : index
    %c0_499 = arith.constant 0 : index
    %903 = vector.load %arg7[%c0_497, %c0_498, %c0_499] : memref<2x2x32xf32, #tpu.memory_space<vmem>>, vector<2x2x32xf32>
    tpu.vector_store %arg7[%c0_497, %c0_498, %c0_499], %902 {strides = array<i32>} : memref<2x2x32xf32, #tpu.memory_space<vmem>>, vector<2x2x32xf32>,
    %c0_500 = arith.constant 0 : index
    %c0_501 = arith.constant 0 : index
    %c0_502 = arith.constant 0 : index
    %904 = vector.load %arg8[%c0_500, %c0_501, %c0_502] : memref<2x2x32xf32, #tpu.memory_space<vmem>>, vector<2x2x32xf32>
    tpu.vector_store %arg8[%c0_500, %c0_501, %c0_502], %900 {strides = array<i32>} : memref<2x2x32xf32, #tpu.memory_space<vmem>>, vector<2x2x32xf32>,
    %905 = vector.extract_strided_slice %902 {offsets = [0, 0, 0], sizes = [1, 2, 32], strides = [1, 1, 1]} : vector<2x2x32xf32> to vector<1x2x32xf32>
    %906 = vector.shape_cast %905 : vector<1x2x32xf32> to vector<2x32xf32>
    %907 = arith.index_cast %c14_i32 : i32 to index
    %c0_503 = arith.constant 0 : index
    %c0_504 = arith.constant 0 : index
    %908 = vector.load %arg5[%907, %c0_503, %c0_504] : memref<16x2x32xf32, #tpu.memory_space<vmem>>, vector<1x2x32xf32>
    %909 = vector.shape_cast %908 : vector<1x2x32xf32> to vector<2x32xf32>
    %910 = vector.shape_cast %906 : vector<2x32xf32> to vector<1x2x32xf32>
    tpu.vector_store %arg5[%907, %c0_503, %c0_504], %910 {strides = array<i32>} : memref<16x2x32xf32, #tpu.memory_space<vmem>>, vector<1x2x32xf32>,
    %911 = vector.extract_strided_slice %902 {offsets = [1, 0, 0], sizes = [1, 2, 32], strides = [1, 1, 1]} : vector<2x2x32xf32> to vector<1x2x32xf32>
    %912 = vector.shape_cast %911 : vector<1x2x32xf32> to vector<2x32xf32>
    %c15_i32_505 = arith.constant 15 : i32
    %913 = arith.subi %c15_i32_505, %c14_i32 : i32
    %914 = arith.index_cast %913 : i32 to index
    %c0_506 = arith.constant 0 : index
    %c0_507 = arith.constant 0 : index
    %915 = vector.load %arg6[%914, %c0_506, %c0_507] : memref<16x2x32xf32, #tpu.memory_space<vmem>>, vector<1x2x32xf32>
    %916 = vector.shape_cast %915 : vector<1x2x32xf32> to vector<2x32xf32>
    %917 = vector.shape_cast %912 : vector<2x32xf32> to vector<1x2x32xf32>
    tpu.vector_store %arg6[%914, %c0_506, %c0_507], %917 {strides = array<i32>} : memref<16x2x32xf32, #tpu.memory_space<vmem>>, vector<1x2x32xf32>,
    %c15_i32_508 = arith.constant 15 : i32
    %918 = arith.index_cast %c15_i32_508 : i32 to index
    %c0_509 = arith.constant 0 : index
    %c0_510 = arith.constant 0 : index
    %919 = vector.load %arg1[%918, %c0_509, %c0_510] : memref<16x2x128xf32, #tpu.memory_space<vmem>>, vector<1x2x128xf32>
    %920 = vector.shape_cast %919 : vector<1x2x128xf32> to vector<2x128xf32>
    %c0_511 = arith.constant 0 : index
    %c0_512 = arith.constant 0 : index
    %c0_513 = arith.constant 0 : index
    %921 = vector.load %arg7[%c0_511, %c0_512, %c0_513] : memref<2x2x32xf32, #tpu.memory_space<vmem>>, vector<1x2x32xf32>
    %922 = vector.shape_cast %921 : vector<1x2x32xf32> to vector<2x32xf32>
    %c0_514 = arith.constant 0 : index
    %c0_515 = arith.constant 0 : index
    %923 = vector.load %arg3[%c0_514, %c0_515] : memref<32x128xf32, #tpu.memory_space<vmem>>, vector<32x128xf32>
    %cst_516 = arith.constant dense<0.000000e+00> : vector<2x128xf32>
    %924 = tpu.matmul %922, %923, %cst_516 {dimension_numbers = #tpu.dot_dimension_numbers<[1], [0], [0], [1], [0, 0, 1, 1], [], []>} : vector<2x32xf32>, vector<32x128xf32>, vector<2x128xf32> -> vector<2x128xf32>
    %925 = arith.addf %920, %924 : vector<2x128xf32>
    %c15_i32_517 = arith.constant 15 : i32
    %926 = arith.subi %c15_i32_517, %c15_i32_508 : i32
    %927 = arith.index_cast %926 : i32 to index
    %c0_518 = arith.constant 0 : index
    %c0_519 = arith.constant 0 : index
    %928 = vector.load %arg2[%927, %c0_518, %c0_519] : memref<16x2x128xf32, #tpu.memory_space<vmem>>, vector<1x2x128xf32>
    %929 = vector.shape_cast %928 : vector<1x2x128xf32> to vector<2x128xf32>
    %c1_520 = arith.constant 1 : index
    %c0_521 = arith.constant 0 : index
    %c0_522 = arith.constant 0 : index
    %930 = vector.load %arg7[%c1_520, %c0_521, %c0_522] : memref<2x2x32xf32, #tpu.memory_space<vmem>>, vector<1x2x32xf32>
    %931 = vector.shape_cast %930 : vector<1x2x32xf32> to vector<2x32xf32>
    %c0_523 = arith.constant 0 : index
    %c0_524 = arith.constant 0 : index
    %932 = vector.load %arg4[%c0_523, %c0_524] : memref<32x128xf32, #tpu.memory_space<vmem>>, vector<32x128xf32>
    %cst_525 = arith.constant dense<0.000000e+00> : vector<2x128xf32>
    %933 = tpu.matmul %931, %932, %cst_525 {dimension_numbers = #tpu.dot_dimension_numbers<[1], [0], [0], [1], [0, 0, 1, 1], [], []>} : vector<2x32xf32>, vector<32x128xf32>, vector<2x128xf32> -> vector<2x128xf32>
    %934 = arith.addf %929, %933 : vector<2x128xf32>
    %935 = vector.shape_cast %925 : vector<2x128xf32> to vector<1x2x128xf32>
    %936 = vector.shape_cast %934 : vector<2x128xf32> to vector<1x2x128xf32>
    %937 = tpu.concatenate %935, %936 in 0 : vector<1x2x128xf32>, vector<1x2x128xf32> -> vector<2x2x128xf32>
    %938 = vector.extract_strided_slice %937 {offsets = [0, 0, 0], sizes = [2, 2, 32], strides = [1, 1, 1]} : vector<2x2x128xf32> to vector<2x2x32xf32>
    %939 = arith.negf %938 : vector<2x2x32xf32>
    %940 = math.exp %939 : vector<2x2x32xf32>
    %cst_526 = arith.constant 1.000000e+00 : f32
    %941 = vector.broadcast %cst_526 : f32 to vector<2x2x32xf32>
    %942 = arith.addf %941, %940 : vector<2x2x32xf32>
    %943 = arith.divf %941, %942 : vector<2x2x32xf32>
    %944 = vector.extract_strided_slice %937 {offsets = [0, 0, 32], sizes = [2, 2, 32], strides = [1, 1, 1]} : vector<2x2x128xf32> to vector<2x2x32xf32>
    %945 = arith.negf %944 : vector<2x2x32xf32>
    %946 = math.exp %945 : vector<2x2x32xf32>
    %cst_527 = arith.constant 1.000000e+00 : f32
    %947 = vector.broadcast %cst_527 : f32 to vector<2x2x32xf32>
    %948 = arith.addf %947, %946 : vector<2x2x32xf32>
    %949 = arith.divf %947, %948 : vector<2x2x32xf32>
    %950 = vector.extract_strided_slice %937 {offsets = [0, 0, 64], sizes = [2, 2, 32], strides = [1, 1, 1]} : vector<2x2x128xf32> to vector<2x2x32xf32>
    %951 = math.tanh %950 : vector<2x2x32xf32>
    %952 = vector.extract_strided_slice %937 {offsets = [0, 0, 96], sizes = [2, 2, 32], strides = [1, 1, 1]} : vector<2x2x128xf32> to vector<2x2x32xf32>
    %953 = arith.negf %952 : vector<2x2x32xf32>
    %954 = math.exp %953 : vector<2x2x32xf32>
    %cst_528 = arith.constant 1.000000e+00 : f32
    %955 = vector.broadcast %cst_528 : f32 to vector<2x2x32xf32>
    %956 = arith.addf %955, %954 : vector<2x2x32xf32>
    %957 = arith.divf %955, %956 : vector<2x2x32xf32>
    %c0_529 = arith.constant 0 : index
    %c0_530 = arith.constant 0 : index
    %c0_531 = arith.constant 0 : index
    %958 = vector.load %arg8[%c0_529, %c0_530, %c0_531] : memref<2x2x32xf32, #tpu.memory_space<vmem>>, vector<2x2x32xf32>
    %959 = arith.mulf %949, %958 : vector<2x2x32xf32>
    %960 = arith.mulf %943, %951 : vector<2x2x32xf32>
    %961 = arith.addf %959, %960 : vector<2x2x32xf32>
    %962 = math.tanh %961 : vector<2x2x32xf32>
    %963 = arith.mulf %957, %962 : vector<2x2x32xf32>
    %c0_532 = arith.constant 0 : index
    %c0_533 = arith.constant 0 : index
    %c0_534 = arith.constant 0 : index
    %964 = vector.load %arg7[%c0_532, %c0_533, %c0_534] : memref<2x2x32xf32, #tpu.memory_space<vmem>>, vector<2x2x32xf32>
    tpu.vector_store %arg7[%c0_532, %c0_533, %c0_534], %963 {strides = array<i32>} : memref<2x2x32xf32, #tpu.memory_space<vmem>>, vector<2x2x32xf32>,
    %c0_535 = arith.constant 0 : index
    %c0_536 = arith.constant 0 : index
    %c0_537 = arith.constant 0 : index
    %965 = vector.load %arg8[%c0_535, %c0_536, %c0_537] : memref<2x2x32xf32, #tpu.memory_space<vmem>>, vector<2x2x32xf32>
    tpu.vector_store %arg8[%c0_535, %c0_536, %c0_537], %961 {strides = array<i32>} : memref<2x2x32xf32, #tpu.memory_space<vmem>>, vector<2x2x32xf32>,
    %966 = vector.extract_strided_slice %963 {offsets = [0, 0, 0], sizes = [1, 2, 32], strides = [1, 1, 1]} : vector<2x2x32xf32> to vector<1x2x32xf32>
    %967 = vector.shape_cast %966 : vector<1x2x32xf32> to vector<2x32xf32>
    %968 = arith.index_cast %c15_i32_508 : i32 to index
    %c0_538 = arith.constant 0 : index
    %c0_539 = arith.constant 0 : index
    %969 = vector.load %arg5[%968, %c0_538, %c0_539] : memref<16x2x32xf32, #tpu.memory_space<vmem>>, vector<1x2x32xf32>
    %970 = vector.shape_cast %969 : vector<1x2x32xf32> to vector<2x32xf32>
    %971 = vector.shape_cast %967 : vector<2x32xf32> to vector<1x2x32xf32>
    tpu.vector_store %arg5[%968, %c0_538, %c0_539], %971 {strides = array<i32>} : memref<16x2x32xf32, #tpu.memory_space<vmem>>, vector<1x2x32xf32>,
    %972 = vector.extract_strided_slice %963 {offsets = [1, 0, 0], sizes = [1, 2, 32], strides = [1, 1, 1]} : vector<2x2x32xf32> to vector<1x2x32xf32>
    %973 = vector.shape_cast %972 : vector<1x2x32xf32> to vector<2x32xf32>
    %c15_i32_540 = arith.constant 15 : i32
    %974 = arith.subi %c15_i32_540, %c15_i32_508 : i32
    %975 = arith.index_cast %974 : i32 to index
    %c0_541 = arith.constant 0 : index
    %c0_542 = arith.constant 0 : index
    %976 = vector.load %arg6[%975, %c0_541, %c0_542] : memref<16x2x32xf32, #tpu.memory_space<vmem>>, vector<1x2x32xf32>
    %977 = vector.shape_cast %976 : vector<1x2x32xf32> to vector<2x32xf32>
    %978 = vector.shape_cast %973 : vector<2x32xf32> to vector<1x2x32xf32>
    tpu.vector_store %arg6[%975, %c0_541, %c0_542], %978 {strides = array<i32>} : memref<16x2x32xf32, #tpu.memory_space<vmem>>, vector<1x2x32xf32>,
    %c16_i32 = arith.constant 16 : i32
    return
  }
  func.func @transform_0(%arg0: i32) -> (i32, i32, i32) {
    %c0_i32 = arith.constant 0 : i32
    %c0_i32_0 = arith.constant 0 : i32
    %c0_i32_1 = arith.constant 0 : i32
    return %arg0, %c0_i32, %c0_i32_0 : i32, i32, i32
  }
  func.func @transform_1(%arg0: i32) -> (i32, i32, i32) {
    %c1_i32 = arith.constant 1 : i32
    %0 = arith.subi %c1_i32, %arg0 : i32
    %c0_i32 = arith.constant 0 : i32
    %c0_i32_0 = arith.constant 0 : i32
    %c0_i32_1 = arith.constant 0 : i32
    return %0, %c0_i32, %c0_i32_0 : i32, i32, i32
  }
  func.func @transform_2(%arg0: i32) -> (i32, i32) {
    %c0_i32 = arith.constant 0 : i32
    %c0_i32_0 = arith.constant 0 : i32
    %c0_i32_1 = arith.constant 0 : i32
    return %c0_i32, %c0_i32_0 : i32, i32
  }
  func.func @transform_3(%arg0: i32) -> (i32, i32) {
    %c0_i32 = arith.constant 0 : i32
    %c0_i32_0 = arith.constant 0 : i32
    %c0_i32_1 = arith.constant 0 : i32
    return %c0_i32, %c0_i32_0 : i32, i32
  }
  func.func @transform_4(%arg0: i32) -> (i32, i32, i32) {
    %c0_i32 = arith.constant 0 : i32
    %c0_i32_0 = arith.constant 0 : i32
    %c0_i32_1 = arith.constant 0 : i32
    return %arg0, %c0_i32, %c0_i32_0 : i32, i32, i32
  }
  func.func @transform_5(%arg0: i32) -> (i32, i32, i32) {
    %c1_i32 = arith.constant 1 : i32
    %0 = arith.subi %c1_i32, %arg0 : i32
    %c0_i32 = arith.constant 0 : i32
    %c0_i32_0 = arith.constant 0 : i32
    %c0_i32_1 = arith.constant 0 : i32
    return %0, %c0_i32, %c0_i32_0 : i32, i32, i32
  }
}

module attributes {stable_mosaic.version = 11 : i64} {
  func.func @_head_kernel(%arg0: i32, %arg1: memref<8x2x32xf32, #tpu.memory_space<vmem>>, %arg2: memref<8x2x32xf32, #tpu.memory_space<vmem>>, %arg3: memref<1x32xf32, #tpu.memory_space<vmem>>, %arg4: memref<1x32xf32, #tpu.memory_space<vmem>>, %arg5: memref<1x32xf32, #tpu.memory_space<vmem>>, %arg6: memref<1x32xf32, #tpu.memory_space<vmem>>, %arg7: memref<1x32xf32, #tpu.memory_space<vmem>>, %arg8: memref<1x32xf32, #tpu.memory_space<vmem>>, %arg9: memref<1x1xf32, #tpu.memory_space<vmem>>, %arg10: memref<32x128xf32, #tpu.memory_space<vmem>>, %arg11: memref<32x128xf32, #tpu.memory_space<vmem>>, %arg12: memref<1x128xf32, #tpu.memory_space<vmem>>, %arg13: memref<2x128xf32, #tpu.memory_space<vmem>>, %arg14: memref<2x1xf32, #tpu.memory_space<vmem>>, %arg15: memref<2x1xf32, #tpu.memory_space<vmem>>, %arg16: memref<2x32xf32, #tpu.memory_space<vmem>>, %arg17: memref<2x32xf32, #tpu.memory_space<vmem>>) attributes {dimension_semantics = [#tpu.dimension_semantics<arbitrary>], iteration_bounds = array<i64: 4>, scalar_prefetch = 0 : i64, scratch_operands = 4 : i64, tpu.core_type = #tpu.core_type<tc>, window_params = [{transform_indices = @transform_0, window_bounds = array<i64: 8, 2, 32>}, {transform_indices = @transform_1, window_bounds = array<i64: 8, 2, 32>}, {pipeline_mode = #tpu.pipeline_mode<synchronous>, transform_indices = @transform_2, window_bounds = array<i64: 1, 32>}, {pipeline_mode = #tpu.pipeline_mode<synchronous>, transform_indices = @transform_3, window_bounds = array<i64: 1, 32>}, {pipeline_mode = #tpu.pipeline_mode<synchronous>, transform_indices = @transform_4, window_bounds = array<i64: 1, 32>}, {pipeline_mode = #tpu.pipeline_mode<synchronous>, transform_indices = @transform_5, window_bounds = array<i64: 1, 32>}, {pipeline_mode = #tpu.pipeline_mode<synchronous>, transform_indices = @transform_6, window_bounds = array<i64: 1, 32>}, {pipeline_mode = #tpu.pipeline_mode<synchronous>, transform_indices = @transform_7, window_bounds = array<i64: 1, 32>}, {pipeline_mode = #tpu.pipeline_mode<synchronous>, transform_indices = @transform_8, window_bounds = array<i64: 1, 1>}, {pipeline_mode = #tpu.pipeline_mode<synchronous>, transform_indices = @transform_9, window_bounds = array<i64: 32, 128>}, {pipeline_mode = #tpu.pipeline_mode<synchronous>, transform_indices = @transform_10, window_bounds = array<i64: 32, 128>}, {pipeline_mode = #tpu.pipeline_mode<synchronous>, transform_indices = @transform_11, window_bounds = array<i64: 1, 128>}, {pipeline_mode = #tpu.pipeline_mode<synchronous>, transform_indices = @transform_12, window_bounds = array<i64: 2, 128>}]} {
    %c0_i32 = arith.constant 0 : i32
    %0 = arith.cmpi eq, %arg0, %c0_i32 : i32
    %1 = arith.extui %0 : i1 to i32
    %c0_i32_0 = arith.constant 0 : i32
    %2 = arith.cmpi ne, %1, %c0_i32_0 : i32
    scf.if %2 {
      %cst_49 = arith.constant 0xFF800000 : f32
      %103 = vector.broadcast %cst_49 : f32 to vector<2x1xf32>
      %c0_50 = arith.constant 0 : index
      %c0_51 = arith.constant 0 : index
      %104 = vector.load %arg14[%c0_50, %c0_51] : memref<2x1xf32, #tpu.memory_space<vmem>>, vector<2x1xf32>
      tpu.vector_store %arg14[%c0_50, %c0_51], %103 {strides = array<i32>} : memref<2x1xf32, #tpu.memory_space<vmem>>, vector<2x1xf32>,
      %cst_52 = arith.constant 0.000000e+00 : f32
      %105 = vector.broadcast %cst_52 : f32 to vector<2x1xf32>
      %c0_53 = arith.constant 0 : index
      %c0_54 = arith.constant 0 : index
      %106 = vector.load %arg15[%c0_53, %c0_54] : memref<2x1xf32, #tpu.memory_space<vmem>>, vector<2x1xf32>
      tpu.vector_store %arg15[%c0_53, %c0_54], %105 {strides = array<i32>} : memref<2x1xf32, #tpu.memory_space<vmem>>, vector<2x1xf32>,
      %cst_55 = arith.constant 0.000000e+00 : f32
      %107 = vector.broadcast %cst_55 : f32 to vector<2x32xf32>
      %c0_56 = arith.constant 0 : index
      %c0_57 = arith.constant 0 : index
      %108 = vector.load %arg16[%c0_56, %c0_57] : memref<2x32xf32, #tpu.memory_space<vmem>>, vector<2x32xf32>
      tpu.vector_store %arg16[%c0_56, %c0_57], %107 {strides = array<i32>} : memref<2x32xf32, #tpu.memory_space<vmem>>, vector<2x32xf32>,
      %cst_58 = arith.constant 0.000000e+00 : f32
      %109 = vector.broadcast %cst_58 : f32 to vector<2x32xf32>
      %c0_59 = arith.constant 0 : index
      %c0_60 = arith.constant 0 : index
      %110 = vector.load %arg17[%c0_59, %c0_60] : memref<2x32xf32, #tpu.memory_space<vmem>>, vector<2x32xf32>
      tpu.vector_store %arg17[%c0_59, %c0_60], %109 {strides = array<i32>} : memref<2x32xf32, #tpu.memory_space<vmem>>, vector<2x32xf32>,
    } else {
    }
    %c0 = arith.constant 0 : index
    %c0_1 = arith.constant 0 : index
    %c0_2 = arith.constant 0 : index
    %3 = vector.load %arg1[%c0, %c0_1, %c0_2] : memref<8x2x32xf32, #tpu.memory_space<vmem>>, vector<8x2x32xf32>
    %c0_3 = arith.constant 0 : index
    %c0_4 = arith.constant 0 : index
    %c0_5 = arith.constant 0 : index
    %4 = vector.load %arg2[%c0_3, %c0_4, %c0_5] : memref<8x2x32xf32, #tpu.memory_space<vmem>>, vector<8x2x32xf32>
    %cst = arith.constant dense<0.000000e+00> : vector<8x2xf32>
    %5 = vector.multi_reduction <add>, %3, %cst [2] : vector<8x2x32xf32> to vector<8x2xf32>
    %6 = vector.shape_cast %5 : vector<8x2xf32> to vector<8x2x1xf32>
    %cst_6 = arith.constant dense<0.000000e+00> : vector<8x2xf32>
    %7 = vector.multi_reduction <add>, %4, %cst_6 [2] : vector<8x2x32xf32> to vector<8x2xf32>
    %8 = vector.shape_cast %7 : vector<8x2xf32> to vector<8x2x1xf32>
    %9 = arith.addf %6, %8 : vector<8x2x1xf32>
    %cst_7 = arith.constant 6.400000e+01 : f32
    %10 = vector.broadcast %cst_7 : f32 to vector<8x2x1xf32>
    %11 = arith.divf %9, %10 : vector<8x2x1xf32>
    %12 = vector.broadcast %11 : vector<8x2x1xf32> to vector<8x2x32xf32>
    %13 = arith.subf %3, %12 : vector<8x2x32xf32>
    %14 = arith.mulf %13, %13 : vector<8x2x32xf32>
    %cst_8 = arith.constant dense<0.000000e+00> : vector<8x2xf32>
    %15 = vector.multi_reduction <add>, %14, %cst_8 [2] : vector<8x2x32xf32> to vector<8x2xf32>
    %16 = vector.shape_cast %15 : vector<8x2xf32> to vector<8x2x1xf32>
    %17 = vector.broadcast %11 : vector<8x2x1xf32> to vector<8x2x32xf32>
    %18 = arith.subf %4, %17 : vector<8x2x32xf32>
    %19 = arith.mulf %18, %18 : vector<8x2x32xf32>
    %cst_9 = arith.constant dense<0.000000e+00> : vector<8x2xf32>
    %20 = vector.multi_reduction <add>, %19, %cst_9 [2] : vector<8x2x32xf32> to vector<8x2xf32>
    %21 = vector.shape_cast %20 : vector<8x2xf32> to vector<8x2x1xf32>
    %22 = arith.addf %16, %21 : vector<8x2x1xf32>
    %cst_10 = arith.constant 6.400000e+01 : f32
    %23 = vector.broadcast %cst_10 : f32 to vector<8x2x1xf32>
    %24 = arith.divf %22, %23 : vector<8x2x1xf32>
    %cst_11 = arith.constant 9.99999974E-6 : f32
    %25 = vector.broadcast %cst_11 : f32 to vector<8x2x1xf32>
    %26 = arith.addf %24, %25 : vector<8x2x1xf32>
    %27 = math.rsqrt %26 : vector<8x2x1xf32>
    %28 = vector.broadcast %11 : vector<8x2x1xf32> to vector<8x2x32xf32>
    %29 = arith.subf %3, %28 : vector<8x2x32xf32>
    %30 = vector.broadcast %27 : vector<8x2x1xf32> to vector<8x2x32xf32>
    %31 = arith.mulf %29, %30 : vector<8x2x32xf32>
    %c0_12 = arith.constant 0 : index
    %c0_13 = arith.constant 0 : index
    %32 = vector.load %arg3[%c0_12, %c0_13] : memref<1x32xf32, #tpu.memory_space<vmem>>, vector<1x32xf32>
    %33 = vector.shape_cast %32 : vector<1x32xf32> to vector<1x1x32xf32>
    %34 = vector.broadcast %33 : vector<1x1x32xf32> to vector<8x2x32xf32>
    %35 = arith.mulf %31, %34 : vector<8x2x32xf32>
    %c0_14 = arith.constant 0 : index
    %c0_15 = arith.constant 0 : index
    %36 = vector.load %arg5[%c0_14, %c0_15] : memref<1x32xf32, #tpu.memory_space<vmem>>, vector<1x32xf32>
    %37 = vector.shape_cast %36 : vector<1x32xf32> to vector<1x1x32xf32>
    %38 = vector.broadcast %37 : vector<1x1x32xf32> to vector<8x2x32xf32>
    %39 = arith.addf %35, %38 : vector<8x2x32xf32>
    %40 = vector.broadcast %11 : vector<8x2x1xf32> to vector<8x2x32xf32>
    %41 = arith.subf %4, %40 : vector<8x2x32xf32>
    %42 = vector.broadcast %27 : vector<8x2x1xf32> to vector<8x2x32xf32>
    %43 = arith.mulf %41, %42 : vector<8x2x32xf32>
    %c0_16 = arith.constant 0 : index
    %c0_17 = arith.constant 0 : index
    %44 = vector.load %arg4[%c0_16, %c0_17] : memref<1x32xf32, #tpu.memory_space<vmem>>, vector<1x32xf32>
    %45 = vector.shape_cast %44 : vector<1x32xf32> to vector<1x1x32xf32>
    %46 = vector.broadcast %45 : vector<1x1x32xf32> to vector<8x2x32xf32>
    %47 = arith.mulf %43, %46 : vector<8x2x32xf32>
    %c0_18 = arith.constant 0 : index
    %c0_19 = arith.constant 0 : index
    %48 = vector.load %arg6[%c0_18, %c0_19] : memref<1x32xf32, #tpu.memory_space<vmem>>, vector<1x32xf32>
    %49 = vector.shape_cast %48 : vector<1x32xf32> to vector<1x1x32xf32>
    %50 = vector.broadcast %49 : vector<1x1x32xf32> to vector<8x2x32xf32>
    %51 = arith.addf %47, %50 : vector<8x2x32xf32>
    %c0_20 = arith.constant 0 : index
    %c0_21 = arith.constant 0 : index
    %52 = vector.load %arg7[%c0_20, %c0_21] : memref<1x32xf32, #tpu.memory_space<vmem>>, vector<1x32xf32>
    %53 = vector.shape_cast %52 : vector<1x32xf32> to vector<1x1x32xf32>
    %54 = vector.broadcast %53 : vector<1x1x32xf32> to vector<8x2x32xf32>
    %55 = arith.mulf %39, %54 : vector<8x2x32xf32>
    %cst_22 = arith.constant dense<0.000000e+00> : vector<8x2xf32>
    %56 = vector.multi_reduction <add>, %55, %cst_22 [2] : vector<8x2x32xf32> to vector<8x2xf32>
    %57 = vector.shape_cast %56 : vector<8x2xf32> to vector<8x2x1xf32>
    %c0_23 = arith.constant 0 : index
    %c0_24 = arith.constant 0 : index
    %58 = vector.load %arg8[%c0_23, %c0_24] : memref<1x32xf32, #tpu.memory_space<vmem>>, vector<1x32xf32>
    %59 = vector.shape_cast %58 : vector<1x32xf32> to vector<1x1x32xf32>
    %60 = vector.broadcast %59 : vector<1x1x32xf32> to vector<8x2x32xf32>
    %61 = arith.mulf %51, %60 : vector<8x2x32xf32>
    %cst_25 = arith.constant dense<0.000000e+00> : vector<8x2xf32>
    %62 = vector.multi_reduction <add>, %61, %cst_25 [2] : vector<8x2x32xf32> to vector<8x2xf32>
    %63 = vector.shape_cast %62 : vector<8x2xf32> to vector<8x2x1xf32>
    %64 = arith.addf %57, %63 : vector<8x2x1xf32>
    %c0_26 = arith.constant 0 : index
    %c0_27 = arith.constant 0 : index
    %65 = vector.load %arg9[%c0_26, %c0_27] : memref<1x1xf32, #tpu.memory_space<vmem>>, vector<1x1xf32>
    %66 = vector.shape_cast %65 : vector<1x1xf32> to vector<1x1x1xf32>
    %67 = vector.broadcast %66 : vector<1x1x1xf32> to vector<8x2x1xf32>
    %68 = arith.addf %64, %67 : vector<8x2x1xf32>
    %c0_28 = arith.constant 0 : index
    %c0_29 = arith.constant 0 : index
    %69 = vector.load %arg14[%c0_28, %c0_29] : memref<2x1xf32, #tpu.memory_space<vmem>>, vector<2x1xf32>
    %cst_30 = arith.constant dense<0xFF800000> : vector<2x1xf32>
    %70 = vector.multi_reduction <maximumf>, %68, %cst_30 [0] : vector<8x2x1xf32> to vector<2x1xf32>
    %71 = arith.maximumf %69, %70 : vector<2x1xf32>
    %72 = arith.subf %69, %71 : vector<2x1xf32>
    %73 = math.exp %72 : vector<2x1xf32>
    %74 = vector.shape_cast %71 : vector<2x1xf32> to vector<1x2x1xf32>
    %75 = vector.broadcast %74 : vector<1x2x1xf32> to vector<8x2x1xf32>
    %76 = arith.subf %68, %75 : vector<8x2x1xf32>
    %77 = math.exp %76 : vector<8x2x1xf32>
    %c0_31 = arith.constant 0 : index
    %c0_32 = arith.constant 0 : index
    %78 = vector.load %arg15[%c0_31, %c0_32] : memref<2x1xf32, #tpu.memory_space<vmem>>, vector<2x1xf32>
    %79 = arith.mulf %73, %78 : vector<2x1xf32>
    %cst_33 = arith.constant dense<0.000000e+00> : vector<2x1xf32>
    %80 = vector.multi_reduction <add>, %77, %cst_33 [0] : vector<8x2x1xf32> to vector<2x1xf32>
    %81 = arith.addf %79, %80 : vector<2x1xf32>
    %c0_34 = arith.constant 0 : index
    %c0_35 = arith.constant 0 : index
    %82 = vector.load %arg15[%c0_34, %c0_35] : memref<2x1xf32, #tpu.memory_space<vmem>>, vector<2x1xf32>
    tpu.vector_store %arg15[%c0_34, %c0_35], %81 {strides = array<i32>} : memref<2x1xf32, #tpu.memory_space<vmem>>, vector<2x1xf32>,
    %c0_36 = arith.constant 0 : index
    %c0_37 = arith.constant 0 : index
    %83 = vector.load %arg16[%c0_36, %c0_37] : memref<2x32xf32, #tpu.memory_space<vmem>>, vector<2x32xf32>
    %84 = vector.broadcast %73 : vector<2x1xf32> to vector<2x32xf32>
    %85 = arith.mulf %84, %83 : vector<2x32xf32>
    %86 = vector.broadcast %77 : vector<8x2x1xf32> to vector<8x2x32xf32>
    %87 = arith.mulf %86, %39 : vector<8x2x32xf32>
    %cst_38 = arith.constant dense<0.000000e+00> : vector<2x32xf32>
    %88 = vector.multi_reduction <add>, %87, %cst_38 [0] : vector<8x2x32xf32> to vector<2x32xf32>
    %89 = arith.addf %85, %88 : vector<2x32xf32>
    %c0_39 = arith.constant 0 : index
    %c0_40 = arith.constant 0 : index
    %90 = vector.load %arg16[%c0_39, %c0_40] : memref<2x32xf32, #tpu.memory_space<vmem>>, vector<2x32xf32>
    tpu.vector_store %arg16[%c0_39, %c0_40], %89 {strides = array<i32>} : memref<2x32xf32, #tpu.memory_space<vmem>>, vector<2x32xf32>,
    %c0_41 = arith.constant 0 : index
    %c0_42 = arith.constant 0 : index
    %91 = vector.load %arg17[%c0_41, %c0_42] : memref<2x32xf32, #tpu.memory_space<vmem>>, vector<2x32xf32>
    %92 = vector.broadcast %73 : vector<2x1xf32> to vector<2x32xf32>
    %93 = arith.mulf %92, %91 : vector<2x32xf32>
    %94 = vector.broadcast %77 : vector<8x2x1xf32> to vector<8x2x32xf32>
    %95 = arith.mulf %94, %51 : vector<8x2x32xf32>
    %cst_43 = arith.constant dense<0.000000e+00> : vector<2x32xf32>
    %96 = vector.multi_reduction <add>, %95, %cst_43 [0] : vector<8x2x32xf32> to vector<2x32xf32>
    %97 = arith.addf %93, %96 : vector<2x32xf32>
    %c0_44 = arith.constant 0 : index
    %c0_45 = arith.constant 0 : index
    %98 = vector.load %arg17[%c0_44, %c0_45] : memref<2x32xf32, #tpu.memory_space<vmem>>, vector<2x32xf32>
    tpu.vector_store %arg17[%c0_44, %c0_45], %97 {strides = array<i32>} : memref<2x32xf32, #tpu.memory_space<vmem>>, vector<2x32xf32>,
    %c0_46 = arith.constant 0 : index
    %c0_47 = arith.constant 0 : index
    %99 = vector.load %arg14[%c0_46, %c0_47] : memref<2x1xf32, #tpu.memory_space<vmem>>, vector<2x1xf32>
    tpu.vector_store %arg14[%c0_46, %c0_47], %71 {strides = array<i32>} : memref<2x1xf32, #tpu.memory_space<vmem>>, vector<2x1xf32>,
    %c3_i32 = arith.constant 3 : i32
    %100 = arith.cmpi eq, %arg0, %c3_i32 : i32
    %101 = arith.extui %100 : i1 to i32
    %c0_i32_48 = arith.constant 0 : i32
    %102 = arith.cmpi ne, %101, %c0_i32_48 : i32
    scf.if %102 {
      %c0_49 = arith.constant 0 : index
      %c0_50 = arith.constant 0 : index
      %103 = vector.load %arg15[%c0_49, %c0_50] : memref<2x1xf32, #tpu.memory_space<vmem>>, vector<2x1xf32>
      %cst_51 = arith.constant 1.000000e+00 : f32
      %104 = vector.broadcast %cst_51 : f32 to vector<2x1xf32>
      %105 = arith.divf %104, %103 : vector<2x1xf32>
      %c0_52 = arith.constant 0 : index
      %c0_53 = arith.constant 0 : index
      %106 = vector.load %arg16[%c0_52, %c0_53] : memref<2x32xf32, #tpu.memory_space<vmem>>, vector<2x32xf32>
      %107 = vector.broadcast %105 : vector<2x1xf32> to vector<2x32xf32>
      %108 = arith.mulf %106, %107 : vector<2x32xf32>
      %c0_54 = arith.constant 0 : index
      %c0_55 = arith.constant 0 : index
      %109 = vector.load %arg17[%c0_54, %c0_55] : memref<2x32xf32, #tpu.memory_space<vmem>>, vector<2x32xf32>
      %110 = vector.broadcast %105 : vector<2x1xf32> to vector<2x32xf32>
      %111 = arith.mulf %109, %110 : vector<2x32xf32>
      %c0_56 = arith.constant 0 : index
      %c0_57 = arith.constant 0 : index
      %112 = vector.load %arg10[%c0_56, %c0_57] : memref<32x128xf32, #tpu.memory_space<vmem>>, vector<32x128xf32>
      %cst_58 = arith.constant dense<0.000000e+00> : vector<2x128xf32>
      %113 = tpu.matmul %108, %112, %cst_58 {dimension_numbers = #tpu.dot_dimension_numbers<[1], [0], [0], [1], [0, 0, 1, 1], [], []>} : vector<2x32xf32>, vector<32x128xf32>, vector<2x128xf32> -> vector<2x128xf32>
      %c0_59 = arith.constant 0 : index
      %c0_60 = arith.constant 0 : index
      %114 = vector.load %arg11[%c0_59, %c0_60] : memref<32x128xf32, #tpu.memory_space<vmem>>, vector<32x128xf32>
      %cst_61 = arith.constant dense<0.000000e+00> : vector<2x128xf32>
      %115 = tpu.matmul %111, %114, %cst_61 {dimension_numbers = #tpu.dot_dimension_numbers<[1], [0], [0], [1], [0, 0, 1, 1], [], []>} : vector<2x32xf32>, vector<32x128xf32>, vector<2x128xf32> -> vector<2x128xf32>
      %116 = arith.addf %113, %115 : vector<2x128xf32>
      %c0_62 = arith.constant 0 : index
      %c0_63 = arith.constant 0 : index
      %117 = vector.load %arg12[%c0_62, %c0_63] : memref<1x128xf32, #tpu.memory_space<vmem>>, vector<1x128xf32>
      %118 = vector.broadcast %117 : vector<1x128xf32> to vector<2x128xf32>
      %119 = arith.addf %116, %118 : vector<2x128xf32>
      %c0_64 = arith.constant 0 : index
      %c0_65 = arith.constant 0 : index
      %120 = vector.load %arg13[%c0_64, %c0_65] : memref<2x128xf32, #tpu.memory_space<vmem>>, vector<2x128xf32>
      tpu.vector_store %arg13[%c0_64, %c0_65], %119 {strides = array<i32>} : memref<2x128xf32, #tpu.memory_space<vmem>>, vector<2x128xf32>,
    } else {
    }
    return
  }
  func.func @transform_0(%arg0: i32) -> (i32, i32, i32) {
    %c0_i32 = arith.constant 0 : i32
    %c0_i32_0 = arith.constant 0 : i32
    %c0_i32_1 = arith.constant 0 : i32
    return %arg0, %c0_i32, %c0_i32_0 : i32, i32, i32
  }
  func.func @transform_1(%arg0: i32) -> (i32, i32, i32) {
    %c0_i32 = arith.constant 0 : i32
    %c0_i32_0 = arith.constant 0 : i32
    %c0_i32_1 = arith.constant 0 : i32
    return %arg0, %c0_i32, %c0_i32_0 : i32, i32, i32
  }
  func.func @transform_2(%arg0: i32) -> (i32, i32) {
    %c0_i32 = arith.constant 0 : i32
    %c0_i32_0 = arith.constant 0 : i32
    %c0_i32_1 = arith.constant 0 : i32
    return %c0_i32, %c0_i32_0 : i32, i32
  }
  func.func @transform_3(%arg0: i32) -> (i32, i32) {
    %c0_i32 = arith.constant 0 : i32
    %c0_i32_0 = arith.constant 0 : i32
    %c0_i32_1 = arith.constant 0 : i32
    return %c0_i32, %c0_i32_0 : i32, i32
  }
  func.func @transform_4(%arg0: i32) -> (i32, i32) {
    %c0_i32 = arith.constant 0 : i32
    %c0_i32_0 = arith.constant 0 : i32
    %c0_i32_1 = arith.constant 0 : i32
    return %c0_i32, %c0_i32_0 : i32, i32
  }
  func.func @transform_5(%arg0: i32) -> (i32, i32) {
    %c0_i32 = arith.constant 0 : i32
    %c0_i32_0 = arith.constant 0 : i32
    %c0_i32_1 = arith.constant 0 : i32
    return %c0_i32, %c0_i32_0 : i32, i32
  }
  func.func @transform_6(%arg0: i32) -> (i32, i32) {
    %c0_i32 = arith.constant 0 : i32
    %c0_i32_0 = arith.constant 0 : i32
    %c0_i32_1 = arith.constant 0 : i32
    return %c0_i32, %c0_i32_0 : i32, i32
  }
  func.func @transform_7(%arg0: i32) -> (i32, i32) {
    %c0_i32 = arith.constant 0 : i32
    %c0_i32_0 = arith.constant 0 : i32
    %c0_i32_1 = arith.constant 0 : i32
    return %c0_i32, %c0_i32_0 : i32, i32
  }
  func.func @transform_8(%arg0: i32) -> (i32, i32) {
    %c0_i32 = arith.constant 0 : i32
    %c0_i32_0 = arith.constant 0 : i32
    %c0_i32_1 = arith.constant 0 : i32
    return %c0_i32, %c0_i32_0 : i32, i32
  }
  func.func @transform_9(%arg0: i32) -> (i32, i32) {
    %c0_i32 = arith.constant 0 : i32
    %c0_i32_0 = arith.constant 0 : i32
    %c0_i32_1 = arith.constant 0 : i32
    return %c0_i32, %c0_i32_0 : i32, i32
  }
  func.func @transform_10(%arg0: i32) -> (i32, i32) {
    %c0_i32 = arith.constant 0 : i32
    %c0_i32_0 = arith.constant 0 : i32
    %c0_i32_1 = arith.constant 0 : i32
    return %c0_i32, %c0_i32_0 : i32, i32
  }
  func.func @transform_11(%arg0: i32) -> (i32, i32) {
    %c0_i32 = arith.constant 0 : i32
    %c0_i32_0 = arith.constant 0 : i32
    %c0_i32_1 = arith.constant 0 : i32
    return %c0_i32, %c0_i32_0 : i32, i32
  }
  func.func @transform_12(%arg0: i32) -> (i32, i32) {
    %c0_i32 = arith.constant 0 : i32
    %c0_i32_0 = arith.constant 0 : i32
    %c0_i32_1 = arith.constant 0 : i32
    return %c0_i32, %c0_i32_0 : i32, i32
  }
}

</mosaic_0001>

<llo_original>
// kernel: lstm_model_forward.5
$region0: #{lstm_model_forward.5}
  #allocation0 [shape = 'u32[]', space=smem, size = 0x4, offset = 0x4, fixed_abs, tag = 'smem constant byte address 0x4 - core index']
  #allocation1 [shape = 'u32[144,128]{1,0:T(1,128)}', space=vmem, size = 0x12000, scoped, tag = 'internal scratch']
  #allocation2 [shape = 'f32[2,1]{1,0:T(2,128)}', space=vmem, size = 0x400, scoped, tag = 'scratch operand']
  #allocation3 [shape = 'f32[2,1]{1,0:T(2,128)}', space=vmem, size = 0x400, scoped, tag = 'scratch operand']
  #allocation4 [shape = 'f32[2,32]{1,0:T(2,128)}', space=vmem, size = 0x400, scoped, tag = 'scratch operand']
  #allocation5 [shape = 'f32[2,32]{1,0:T(2,128)}', space=vmem, size = 0x400, scoped, tag = 'scratch operand']
  #allocation6 [shape = 'f32[1,1]{1,0:T(1,128)S(1)}', space=vmem, size = 0x200, scoped, tag = 'scoped memory for lstm_model_forward.5']
  %s0 = inlined_call_operand.vmem [shape: f32[32,2,32], index: 0, kind: input, shape index: {}]
  %s1 = inlined_call_operand.vmem [shape: f32[32,2,32], index: 1, kind: input, shape index: {}]
  %s2 = inlined_call_operand.vmem [shape: f32[1,32], index: 2, kind: input, shape index: {}]
  %s3 = inlined_call_operand.vmem [shape: f32[1,32], index: 3, kind: input, shape index: {}]
  %s4 = inlined_call_operand.vmem [shape: f32[1,32], index: 4, kind: input, shape index: {}]
  %s5 = inlined_call_operand.vmem [shape: f32[1,32], index: 5, kind: input, shape index: {}]
  %s6 = inlined_call_operand.vmem [shape: f32[1,32], index: 6, kind: input, shape index: {}]
  %s7 = inlined_call_operand.vmem [shape: f32[1,32], index: 7, kind: input, shape index: {}]
  %s8 = inlined_call_operand.<no memory space> [shape: f32[1,1], index: 8, kind: input, shape index: {}]
  %s9 = inlined_call_operand.vmem [shape: f32[32,128], index: 9, kind: input, shape index: {}]
  %s10 = inlined_call_operand.vmem [shape: f32[32,128], index: 10, kind: input, shape index: {}]
  %s11 = inlined_call_operand.vmem [shape: f32[1,128], index: 11, kind: input, shape index: {}]
  %s12 = inlined_call_operand.hbm [shape: f32[2,128], index: 12, kind: output, shape index: {}]
  %s13 = sld [smem:[#allocation0]]
  $region89: #{lstm_model_forward.5} parent=0
    _
  %s15 = ssub.s32 1, %s13
  %s16 = scalar_select 0, %s15, %s13
  %v17 = vstv %s8
  %18 = vst [vmem:[#allocation6] sm:$0x1] %v17
  $region1: #{lstm_model_forward.5} parent=0
    #allocation7 [shape = 'u8[1024]{0}', space=vmem, size = 0x400, scoped, tag = 'output window, operand 0, single buffered']
    #allocation8 [shape = 's32[2]{0}', space=sflag, size = 0x8, scoped, tag = 'scoped memory for lstm_model_forward.5']
    %19 = vsyncpa [#allocation8], 0
    loop: start=0, step=1, limit=6
    $region2: #{lstm_model_forward.5} parent=1 // loop_pre_header
      _
    $region3: #{lstm_model_forward.5} parent=1 // loop_header
      %s21 = sphi 0, %s25
      %p22 = scmp.ge.s32.totalorder %s21, 6
      %s31 = sphi 0, %s33
      %s34 = sphi 0, %s31
      %s35 = sphi 0, %s34
      %s51 = sphi 0, %s35
      %s57 = sphi 0, %s59
      %s60 = sphi 0, %s57
      %s61 = sphi 0, %s60
      %s77 = sphi 0, %s61
      %s81 = sphi 0, %s81
      %s83 = sphi 0, %s81
      %s84 = sphi 0, %s83
      %s98 = sphi 0, %s84
      %s102 = sphi 0, %s102
      %s104 = sphi 0, %s102
      %s105 = sphi 0, %s104
      %s119 = sphi 0, %s105
      %s123 = sphi 0, %s123
      %s125 = sphi 0, %s123
      %s126 = sphi 0, %s125
      %s140 = sphi 0, %s126
      %s144 = sphi 0, %s144
      %s146 = sphi 0, %s144
      %s147 = sphi 0, %s146
      %s161 = sphi 0, %s147
      %s165 = sphi 0, %s165
      %s167 = sphi 0, %s165
      %s168 = sphi 0, %s167
      %s182 = sphi 0, %s168
      %s186 = sphi 0, %s186
      %s188 = sphi 0, %s186
      %s189 = sphi 0, %s188
      %s203 = sphi 0, %s189
      %s207 = sphi 0, %s207
      %s209 = sphi 0, %s207
      %s210 = sphi 0, %s209
      %s224 = sphi 0, %s210
      %s228 = sphi 0, %s228
      %s230 = sphi 0, %s228
      %s231 = sphi 0, %s230
      %s245 = sphi 0, %s231
      %s249 = sphi 0, %s249
      %s251 = sphi 0, %s249
      %s252 = sphi 0, %s251
      %s266 = sphi 0, %s252
      %s270 = sphi 0, %s270
      %s272 = sphi 0, %s270
      %s273 = sphi 0, %s272
      %s287 = sphi 0, %s273
      %s291 = sphi 0, %s291
      %s293 = sphi 0, %s291
      %s294 = sphi 0, %s293
      %s308 = sphi 0, %s294
    $region4: #{lstm_model_forward.5} parent=1 // loop_header_branch
      %24 = sbr.rel (%p22) target = $region8
    $region5: #{lstm_model_forward.5} parent=1 // loop_body
      %s26 = ssub.s32 %s21, 1
      %s27 = ssub.s32 %s21, 2
      %s28 = sadd.s32 %s21, 1
      %s29 = ssub.s32 %s21, %s28
      %p30 = scmp.eq.s32.totalorder %s29, 0
      %s32 = sadd.s32 %s31, 1
      %s33 = scalar_select %p30, %s31, %s32
      %p36 = pneg %p30
      %p37 = scmp.eq.s32.totalorder %s21, 3
      %p38 = por %p36, %p37
      %p39 = scmp.ne.s32.totalorder %s31, %s34
      %p40 = scmp.eq.s32.totalorder %s21, 0
      %p41 = por %p39, %p40
      %p42 = scmp.ne.s32.totalorder %s31, %s34
      %p43 = scmp.eq.s32.totalorder %s26, 3
      %p44 = por %p42, %p43
      %p45 = scmp.ne.s32.totalorder %s34, %s35
      %p46 = scmp.eq.s32.totalorder %s26, 0
      %p47 = por %p45, %p46
      %p48 = scmp.ne.s32.totalorder %s34, %s35
      %p49 = scmp.eq.s32.totalorder %s27, 3
      %p50 = por %p48, %p49
      %p52 = scmp.ne.s32.totalorder %s35, %s51
      %p53 = scmp.eq.s32.totalorder %s27, 0
      %p54 = por %p52, %p53
      %s55 = ssub.s32 %s21, %s28
      %p56 = scmp.eq.s32.totalorder %s55, 0
      %s58 = sadd.s32 %s57, 1
      %s59 = scalar_select %p56, %s57, %s58
      %p62 = pneg %p56
      %p63 = scmp.eq.s32.totalorder %s21, 3
      %p64 = por %p62, %p63
      %p65 = scmp.ne.s32.totalorder %s57, %s60
      %p66 = scmp.eq.s32.totalorder %s21, 0
      %p67 = por %p65, %p66
      %p68 = scmp.ne.s32.totalorder %s57, %s60
      %p69 = scmp.eq.s32.totalorder %s26, 3
      %p70 = por %p68, %p69
      %p71 = scmp.ne.s32.totalorder %s60, %s61
      %p72 = scmp.eq.s32.totalorder %s26, 0
      %p73 = por %p71, %p72
      %p74 = scmp.ne.s32.totalorder %s60, %s61
      %p75 = scmp.eq.s32.totalorder %s27, 3
      %p76 = por %p74, %p75
      %p78 = scmp.ne.s32.totalorder %s61, %s77
      %p79 = scmp.eq.s32.totalorder %s27, 0
      %p80 = por %p78, %p79
      %s82 = sadd.s32 %s81, 1
      %p85 = scmp.eq.s32.totalorder %s21, 3
      %p86 = scmp.ne.s32.totalorder %s81, %s83
      %p87 = scmp.eq.s32.totalorder %s21, 0
      %p88 = por %p86, %p87
      %p89 = scmp.ne.s32.totalorder %s81, %s83
      %p90 = scmp.eq.s32.totalorder %s26, 3
      %p91 = por %p89, %p90
      %p92 = scmp.ne.s32.totalorder %s83, %s84
      %p93 = scmp.eq.s32.totalorder %s26, 0
      %p94 = por %p92, %p93
      %p95 = scmp.ne.s32.totalorder %s83, %s84
      %p96 = scmp.eq.s32.totalorder %s27, 3
      %p97 = por %p95, %p96
      %p99 = scmp.ne.s32.totalorder %s84, %s98
      %p100 = scmp.eq.s32.totalorder %s27, 0
      %p101 = por %p99, %p100
      %s103 = sadd.s32 %s102, 1
      %p106 = scmp.eq.s32.totalorder %s21, 3
      %p107 = scmp.ne.s32.totalorder %s102, %s104
      %p108 = scmp.eq.s32.totalorder %s21, 0
      %p109 = por %p107, %p108
      %p110 = scmp.ne.s32.totalorder %s102, %s104
      %p111 = scmp.eq.s32.totalorder %s26, 3
      %p112 = por %p110, %p111
      %p113 = scmp.ne.s32.totalorder %s104, %s105
      %p114 = scmp.eq.s32.totalorder %s26, 0
      %p115 = por %p113, %p114
      %p116 = scmp.ne.s32.totalorder %s104, %s105
      %p117 = scmp.eq.s32.totalorder %s27, 3
      %p118 = por %p116, %p117
      %p120 = scmp.ne.s32.totalorder %s105, %s119
      %p121 = scmp.eq.s32.totalorder %s27, 0
      %p122 = por %p120, %p121
      %s124 = sadd.s32 %s123, 1
      %p127 = scmp.eq.s32.totalorder %s21, 3
      %p128 = scmp.ne.s32.totalorder %s123, %s125
      %p129 = scmp.eq.s32.totalorder %s21, 0
      %p130 = por %p128, %p129
      %p131 = scmp.ne.s32.totalorder %s123, %s125
      %p132 = scmp.eq.s32.totalorder %s26, 3
      %p133 = por %p131, %p132
      %p134 = scmp.ne.s32.totalorder %s125, %s126
      %p135 = scmp.eq.s32.totalorder %s26, 0
      %p136 = por %p134, %p135
      %p137 = scmp.ne.s32.totalorder %s125, %s126
      %p138 = scmp.eq.s32.totalorder %s27, 3
      %p139 = por %p137, %p138
      %p141 = scmp.ne.s32.totalorder %s126, %s140
      %p142 = scmp.eq.s32.totalorder %s27, 0
      %p143 = por %p141, %p142
      %s145 = sadd.s32 %s144, 1
      %p148 = scmp.eq.s32.totalorder %s21, 3
      %p149 = scmp.ne.s32.totalorder %s144, %s146
      %p150 = scmp.eq.s32.totalorder %s21, 0
      %p151 = por %p149, %p150
      %p152 = scmp.ne.s32.totalorder %s144, %s146
      %p153 = scmp.eq.s32.totalorder %s26, 3
      %p154 = por %p152, %p153
      %p155 = scmp.ne.s32.totalorder %s146, %s147
      %p156 = scmp.eq.s32.totalorder %s26, 0
      %p157 = por %p155, %p156
      %p158 = scmp.ne.s32.totalorder %s146, %s147
      %p159 = scmp.eq.s32.totalorder %s27, 3
      %p160 = por %p158, %p159
      %p162 = scmp.ne.s32.totalorder %s147, %s161
      %p163 = scmp.eq.s32.totalorder %s27, 0
      %p164 = por %p162, %p163
      %s166 = sadd.s32 %s165, 1
      %p169 = scmp.eq.s32.totalorder %s21, 3
      %p170 = scmp.ne.s32.totalorder %s165, %s167
      %p171 = scmp.eq.s32.totalorder %s21, 0
      %p172 = por %p170, %p171
      %p173 = scmp.ne.s32.totalorder %s165, %s167
      %p174 = scmp.eq.s32.totalorder %s26, 3
      %p175 = por %p173, %p174
      %p176 = scmp.ne.s32.totalorder %s167, %s168
      %p177 = scmp.eq.s32.totalorder %s26, 0
      %p178 = por %p176, %p177
      %p179 = scmp.ne.s32.totalorder %s167, %s168
      %p180 = scmp.eq.s32.totalorder %s27, 3
      %p181 = por %p179, %p180
      %p183 = scmp.ne.s32.totalorder %s168, %s182
      %p184 = scmp.eq.s32.totalorder %s27, 0
      %p185 = por %p183, %p184
      %s187 = sadd.s32 %s186, 1
      %p190 = scmp.eq.s32.totalorder %s21, 3
      %p191 = scmp.ne.s32.totalorder %s186, %s188
      %p192 = scmp.eq.s32.totalorder %s21, 0
      %p193 = por %p191, %p192
      %p194 = scmp.ne.s32.totalorder %s186, %s188
      %p195 = scmp.eq.s32.totalorder %s26, 3
      %p196 = por %p194, %p195
      %p197 = scmp.ne.s32.totalorder %s188, %s189
      %p198 = scmp.eq.s32.totalorder %s26, 0
      %p199 = por %p197, %p198
      %p200 = scmp.ne.s32.totalorder %s188, %s189
      %p201 = scmp.eq.s32.totalorder %s27, 3
      %p202 = por %p200, %p201
      %p204 = scmp.ne.s32.totalorder %s189, %s203
      %p205 = scmp.eq.s32.totalorder %s27, 0
      %p206 = por %p204, %p205
      %s208 = sadd.s32 %s207, 1
      %p211 = scmp.eq.s32.totalorder %s21, 3
      %p212 = scmp.ne.s32.totalorder %s207, %s209
      %p213 = scmp.eq.s32.totalorder %s21, 0
      %p214 = por %p212, %p213
      %p215 = scmp.ne.s32.totalorder %s207, %s209
      %p216 = scmp.eq.s32.totalorder %s26, 3
      %p217 = por %p215, %p216
      %p218 = scmp.ne.s32.totalorder %s209, %s210
      %p219 = scmp.eq.s32.totalorder %s26, 0
      %p220 = por %p218, %p219
      %p221 = scmp.ne.s32.totalorder %s209, %s210
      %p222 = scmp.eq.s32.totalorder %s27, 3
      %p223 = por %p221, %p222
      %p225 = scmp.ne.s32.totalorder %s210, %s224
      %p226 = scmp.eq.s32.totalorder %s27, 0
      %p227 = por %p225, %p226
      %s229 = sadd.s32 %s228, 1
      %p232 = scmp.eq.s32.totalorder %s21, 3
      %p233 = scmp.ne.s32.totalorder %s228, %s230
      %p234 = scmp.eq.s32.totalorder %s21, 0
      %p235 = por %p233, %p234
      %p236 = scmp.ne.s32.totalorder %s228, %s230
      %p237 = scmp.eq.s32.totalorder %s26, 3
      %p238 = por %p236, %p237
      %p239 = scmp.ne.s32.totalorder %s230, %s231
      %p240 = scmp.eq.s32.totalorder %s26, 0
      %p241 = por %p239, %p240
      %p242 = scmp.ne.s32.totalorder %s230, %s231
      %p243 = scmp.eq.s32.totalorder %s27, 3
      %p244 = por %p242, %p243
      %p246 = scmp.ne.s32.totalorder %s231, %s245
      %p247 = scmp.eq.s32.totalorder %s27, 0
      %p248 = por %p246, %p247
      %s250 = sadd.s32 %s249, 1
      %p253 = scmp.eq.s32.totalorder %s21, 3
      %p254 = scmp.ne.s32.totalorder %s249, %s251
      %p255 = scmp.eq.s32.totalorder %s21, 0
      %p256 = por %p254, %p255
      %p257 = scmp.ne.s32.totalorder %s249, %s251
      %p258 = scmp.eq.s32.totalorder %s26, 3
      %p259 = por %p257, %p258
      %p260 = scmp.ne.s32.totalorder %s251, %s252
      %p261 = scmp.eq.s32.totalorder %s26, 0
      %p262 = por %p260, %p261
      %p263 = scmp.ne.s32.totalorder %s251, %s252
      %p264 = scmp.eq.s32.totalorder %s27, 3
      %p265 = por %p263, %p264
      %p267 = scmp.ne.s32.totalorder %s252, %s266
      %p268 = scmp.eq.s32.totalorder %s27, 0
      %p269 = por %p267, %p268
      %s271 = sadd.s32 %s270, 1
      %p274 = scmp.eq.s32.totalorder %s21, 3
      %p275 = scmp.ne.s32.totalorder %s270, %s272
      %p276 = scmp.eq.s32.totalorder %s21, 0
      %p277 = por %p275, %p276
      %p278 = scmp.ne.s32.totalorder %s270, %s272
      %p279 = scmp.eq.s32.totalorder %s26, 3
      %p280 = por %p278, %p279
      %p281 = scmp.ne.s32.totalorder %s272, %s273
      %p282 = scmp.eq.s32.totalorder %s26, 0
      %p283 = por %p281, %p282
      %p284 = scmp.ne.s32.totalorder %s272, %s273
      %p285 = scmp.eq.s32.totalorder %s27, 3
      %p286 = por %p284, %p285
      %p288 = scmp.ne.s32.totalorder %s273, %s287
      %p289 = scmp.eq.s32.totalorder %s27, 0
      %p290 = por %p288, %p289
      %s292 = sadd.s32 %s291, 1
      %p295 = scmp.eq.s32.totalorder %s21, 3
      %p296 = scmp.ne.s32.totalorder %s291, %s293
      %p297 = scmp.eq.s32.totalorder %s21, 0
      %p298 = por %p296, %p297
      %p299 = scmp.ne.s32.totalorder %s291, %s293
      %p300 = scmp.eq.s32.totalorder %s26, 3
      %p301 = por %p299, %p300
      %p302 = scmp.ne.s32.totalorder %s293, %s294
      %p303 = scmp.eq.s32.totalorder %s26, 0
      %p304 = por %p302, %p303
      %p305 = scmp.ne.s32.totalorder %s293, %s294
      %p306 = scmp.eq.s32.totalorder %s27, 3
      %p307 = por %p305, %p306
      %p309 = scmp.ne.s32.totalorder %s294, %s308
      %p310 = scmp.eq.s32.totalorder %s27, 0
      %p311 = por %p309, %p310
      %p312 = scmp.le.s32.totalorder 1, %s21
      %p313 = scmp.lt.s32.totalorder %s21, 5
      %p314 = pnand %p312, %p313
      %p315 = pneg %p314
      // Predicated region
      $region9: #{lstm_model_forward.5} parent=5 // pred_check
        _
      $region10: #{lstm_model_forward.5} parent=5 // pred_check_branch
        %317 = sbr.rel (%p314) target = $region12
      $region11: #{lstm_model_forward.5} parent=5 // pred_region
        %s318 = ssub.s32 %s21, 1
        // Predicated region
        $region13: #{lstm_model_forward.5} parent=11 // pred_check
          %p319 = pneg %p94
        $region14: #{lstm_model_forward.5} parent=11 // pred_check_branch
          %321 = sbr.rel (%p319) target = $region16
        $region15: #{lstm_model_forward.5} parent=11 // pred_region
          _
        $region16: #{lstm_model_forward.5} parent=11 // pred_fallthru
          _
        // Predicated region
        $region17: #{lstm_model_forward.5} parent=11 // pred_check
          %p322 = pneg %p115
        $region18: #{lstm_model_forward.5} parent=11 // pred_check_branch
          %324 = sbr.rel (%p322) target = $region20
        $region19: #{lstm_model_forward.5} parent=11 // pred_region
          _
        $region20: #{lstm_model_forward.5} parent=11 // pred_fallthru
          _
        // Predicated region
        $region21: #{lstm_model_forward.5} parent=11 // pred_check
          %p325 = pneg %p136
        $region22: #{lstm_model_forward.5} parent=11 // pred_check_branch
          %327 = sbr.rel (%p325) target = $region24
        $region23: #{lstm_model_forward.5} parent=11 // pred_region
          _
        $region24: #{lstm_model_forward.5} parent=11 // pred_fallthru
          _
        // Predicated region
        $region25: #{lstm_model_forward.5} parent=11 // pred_check
          %p328 = pneg %p157
        $region26: #{lstm_model_forward.5} parent=11 // pred_check_branch
          %330 = sbr.rel (%p328) target = $region28
        $region27: #{lstm_model_forward.5} parent=11 // pred_region
          _
        $region28: #{lstm_model_forward.5} parent=11 // pred_fallthru
          _
        // Predicated region
        $region29: #{lstm_model_forward.5} parent=11 // pred_check
          %p331 = pneg %p178
        $region30: #{lstm_model_forward.5} parent=11 // pred_check_branch
          %333 = sbr.rel (%p331) target = $region32
        $region31: #{lstm_model_forward.5} parent=11 // pred_region
          _
        $region32: #{lstm_model_forward.5} parent=11 // pred_fallthru
          _
        // Predicated region
        $region33: #{lstm_model_forward.5} parent=11 // pred_check
          %p334 = pneg %p199
        $region34: #{lstm_model_forward.5} parent=11 // pred_check_branch
          %336 = sbr.rel (%p334) target = $region36
        $region35: #{lstm_model_forward.5} parent=11 // pred_region
          _
        $region36: #{lstm_model_forward.5} parent=11 // pred_fallthru
          _
        // Predicated region
        $region37: #{lstm_model_forward.5} parent=11 // pred_check
          %p337 = pneg %p220
        $region38: #{lstm_model_forward.5} parent=11 // pred_check_branch
          %339 = sbr.rel (%p337) target = $region40
        $region39: #{lstm_model_forward.5} parent=11 // pred_region
          _
        $region40: #{lstm_model_forward.5} parent=11 // pred_fallthru
          _
        // Predicated region
        $region41: #{lstm_model_forward.5} parent=11 // pred_check
          %p340 = pneg %p241
        $region42: #{lstm_model_forward.5} parent=11 // pred_check_branch
          %342 = sbr.rel (%p340) target = $region44
        $region43: #{lstm_model_forward.5} parent=11 // pred_region
          _
        $region44: #{lstm_model_forward.5} parent=11 // pred_fallthru
          _
        // Predicated region
        $region45: #{lstm_model_forward.5} parent=11 // pred_check
          %p343 = pneg %p262
        $region46: #{lstm_model_forward.5} parent=11 // pred_check_branch
          %345 = sbr.rel (%p343) target = $region48
        $region47: #{lstm_model_forward.5} parent=11 // pred_region
          _
        $region48: #{lstm_model_forward.5} parent=11 // pred_fallthru
          _
        // Predicated region
        $region49: #{lstm_model_forward.5} parent=11 // pred_check
          %p346 = pneg %p283
        $region50: #{lstm_model_forward.5} parent=11 // pred_check_branch
          %348 = sbr.rel (%p346) target = $region52
        $region51: #{lstm_model_forward.5} parent=11 // pred_region
          _
        $region52: #{lstm_model_forward.5} parent=11 // pred_fallthru
          _
      $region12: #{lstm_model_forward.5} parent=5 // pred_fallthru
        _
      %p349 = scmp.lt.s32.totalorder %s21, 4
      // Predicated region
      $region53: #{lstm_model_forward.5} parent=5 // pred_check
        %p350 = pneg %p349
      $region54: #{lstm_model_forward.5} parent=5 // pred_check_branch
        %352 = sbr.rel (%p350) target = $region56
      $region55: #{lstm_model_forward.5} parent=5 // pred_region
        // Predicated region
        $region57: #{lstm_model_forward.5} parent=55 // pred_check
          %p353 = pneg %p41
        $region58: #{lstm_model_forward.5} parent=55 // pred_check_branch
          %355 = sbr.rel (%p353) target = $region60
        $region59: #{lstm_model_forward.5} parent=55 // pred_region
          %s356 = smul.u32 8, %s21
          %p357 = scmp.lt.s32.totalorder %s356, 31
          %s358 = scalar_select %p357, %s356, 31
          %s359 = smul.addr %s358, 2
          %s360 = scalar_lea.vmem %s0, %s359
          %s361 = smul.u32 8, %s21
        $region60: #{lstm_model_forward.5} parent=55 // pred_fallthru
          _
        // Predicated region
        $region61: #{lstm_model_forward.5} parent=55 // pred_check
          %p362 = pneg %p67
        $region62: #{lstm_model_forward.5} parent=55 // pred_check_branch
          %364 = sbr.rel (%p362) target = $region64
        $region63: #{lstm_model_forward.5} parent=55 // pred_region
          %s365 = smul.u32 8, %s21
          %p366 = scmp.lt.s32.totalorder %s365, 31
          %s367 = scalar_select %p366, %s365, 31
          %s368 = smul.addr %s367, 2
          %s369 = scalar_lea.vmem %s1, %s368
          %s370 = smul.u32 8, %s21
        $region64: #{lstm_model_forward.5} parent=55 // pred_fallthru
          _
      $region56: #{lstm_model_forward.5} parent=5 // pred_fallthru
        _
      %p371 = scmp.le.s32.totalorder 1, %s21
      %p372 = scmp.lt.s32.totalorder %s21, 5
      %p373 = pnand %p371, %p372
      %p374 = pneg %p373
      // Predicated region
      $region65: #{lstm_model_forward.5} parent=5 // pred_check
        _
      $region66: #{lstm_model_forward.5} parent=5 // pred_check_branch
        %376 = sbr.rel (%p373) target = $region68
      $region67: #{lstm_model_forward.5} parent=5 // pred_region
        %s377 = ssub.s32 %s21, 1
        %s378 = smul.u32 8, %s26
        %p379 = scmp.lt.s32.totalorder %s378, 31
        %s380 = scalar_select %p379, %s378, 31
        %s381 = smul.addr %s380, 2
        %s382 = scalar_lea.vmem %s0, %s381
        %p383 = pneg %p47
        %p384 = pneg %p44
        %s385 = smul.u32 8, %s26
        %p386 = scmp.lt.s32.totalorder %s385, 31
        %s387 = scalar_select %p386, %s385, 31
        %s388 = smul.addr %s387, 2
        %s389 = scalar_lea.vmem %s1, %s388
        %p390 = pneg %p73
        %p391 = pneg %p70
        %p392 = pneg %p94
        %p393 = pneg %p91
        %p394 = pneg %p115
        %p395 = pneg %p112
        %p396 = pneg %p136
        %p397 = pneg %p133
        %p398 = pneg %p157
        %p399 = pneg %p154
        %p400 = pneg %p178
        %p401 = pneg %p175
        %p402 = pneg %p199
        %p403 = pneg %p196
        %p404 = pneg %p220
        %p405 = pneg %p217
        %p406 = pneg %p241
        %p407 = pneg %p238
        %p408 = pneg %p262
        %p409 = pneg %p259
        %p410 = pneg %p283
        %p411 = pneg %p280
        %p412 = pneg %p304
        %p413 = pneg %p301
        %s414 = smul.u32 8, %s26
        %p415 = scmp.lt.s32.totalorder %s414, 31
        %s416 = scalar_select %p415, %s414, 31
        %s417 = smul.addr %s416, 2
        %s418 = scalar_lea.vmem %s0, %s417
        %s419 = smul.u32 8, %s26
        %s420 = smul.u32 8, %s26
        %p421 = scmp.lt.s32.totalorder %s420, 31
        %s422 = scalar_select %p421, %s420, 31
        %s423 = smul.addr %s422, 2
        %s424 = scalar_lea.vmem %s1, %s423
        %s425 = smul.u32 8, %s26
        %p426 = scmp.eq.s32.totalorder %s26, 0
        // Predicated region
        $region69: #{lstm_model_forward.5} parent=67 // pred_check
          %p427 = pneg %p426
        $region70: #{lstm_model_forward.5} parent=67 // pred_check_branch
          %429 = sbr.rel (%p427) target = $region72
        $region71: #{lstm_model_forward.5} parent=67 // pred_region
          %vm430 = vcmask 1024
          %431 = vst.msk [vmem:[#allocation2] sm:$0x3] %vm430, -inf
          %432 = vst.msk [vmem:[#allocation3] sm:$0x3] %vm430, 0.0
          %vm433 = vcmask 254976
          %434 = vst.msk [vmem:[#allocation4] sm:$0x3] %vm433, 0.0
          %435 = vst.msk [vmem:[#allocation5] sm:$0x3] %vm433, 0.0
        $region72: #{lstm_model_forward.5} parent=67 // pred_fallthru
          _
        %v436 = vld [vmem:[%s418] sm:$0x3]
        %v437 = vld [vmem:[%s418 + $0x2] sm:$0x3]
        %v438 = vld [vmem:[%s418 + $0x4] sm:$0x3]
        %v439 = vld [vmem:[%s418 + $0x6] sm:$0x3]
        %v440 = vld [vmem:[%s418 + $0x8] sm:$0x3]
        %v441 = vld [vmem:[%s418 + $0xa] sm:$0x3]
        %v442 = vld [vmem:[%s418 + $0xc] sm:$0x3]
        %v443 = vld [vmem:[%s418 + $0xe] sm:$0x3]
        %v444 = vld [vmem:[%s424] sm:$0x3]
        %v445 = vld [vmem:[%s424 + $0x2] sm:$0x3]
        %v446 = vld [vmem:[%s424 + $0x4] sm:$0x3]
        %v447 = vld [vmem:[%s424 + $0x6] sm:$0x3]
        %v448 = vld [vmem:[%s424 + $0x8] sm:$0x3]
        %v449 = vld [vmem:[%s424 + $0xa] sm:$0x3]
        %v450 = vld [vmem:[%s424 + $0xc] sm:$0x3]
        %v451 = vld [vmem:[%s424 + $0xe] sm:$0x3]
        %vm452 = vcmask 254976
        %v453 = vsel %vm452, %v436, 0.0
        %454 = vadd.xlane.f32.xlu0 %v453
        %v455 = vpop.xlane.xlu0 %454
        %v456 = vsel %vm452, %v437, 0.0
        %457 = vadd.xlane.f32.xlu0 %v456
        %v458 = vpop.xlane.xlu0 %457
        %v459 = vsel %vm452, %v438, 0.0
        %460 = vadd.xlane.f32.xlu0 %v459
        %v461 = vpop.xlane.xlu0 %460
        %v462 = vsel %vm452, %v439, 0.0
        %463 = vadd.xlane.f32.xlu0 %v462
        %v464 = vpop.xlane.xlu0 %463
        %v465 = vsel %vm452, %v440, 0.0
        %466 = vadd.xlane.f32.xlu0 %v465
        %v467 = vpop.xlane.xlu0 %466
        %v468 = vsel %vm452, %v441, 0.0
        %469 = vadd.xlane.f32.xlu0 %v468
        %v470 = vpop.xlane.xlu0 %469
        %v471 = vsel %vm452, %v442, 0.0
        %472 = vadd.xlane.f32.xlu0 %v471
        %v473 = vpop.xlane.xlu0 %472
        %v474 = vsel %vm452, %v443, 0.0
        %475 = vadd.xlane.f32.xlu0 %v474
        %v476 = vpop.xlane.xlu0 %475
        %v477 = vsel %vm452, %v444, 0.0
        %478 = vadd.xlane.f32.xlu0 %v477
        %v479 = vpop.xlane.xlu0 %478
        %v480 = vsel %vm452, %v445, 0.0
        %481 = vadd.xlane.f32.xlu0 %v480
        %v482 = vpop.xlane.xlu0 %481
        %v483 = vsel %vm452, %v446, 0.0
        %484 = vadd.xlane.f32.xlu0 %v483
        %v485 = vpop.xlane.xlu0 %484
        %v486 = vsel %vm452, %v447, 0.0
        %487 = vadd.xlane.f32.xlu0 %v486
        %v488 = vpop.xlane.xlu0 %487
        %v489 = vsel %vm452, %v448, 0.0
        %490 = vadd.xlane.f32.xlu0 %v489
        %v491 = vpop.xlane.xlu0 %490
        %v492 = vsel %vm452, %v449, 0.0
        %493 = vadd.xlane.f32.xlu0 %v492
        %v494 = vpop.xlane.xlu0 %493
        %v495 = vsel %vm452, %v450, 0.0
        %496 = vadd.xlane.f32.xlu0 %v495
        %v497 = vpop.xlane.xlu0 %496
        %v498 = vsel %vm452, %v451, 0.0
        %499 = vadd.xlane.f32.xlu0 %v498
        %v500 = vpop.xlane.xlu0 %499
        %v501 = vadd.f32 %v455, %v479
        %v502 = vadd.f32 %v458, %v482
        %v503 = vadd.f32 %v461, %v485
        %v504 = vadd.f32 %v464, %v488
        %v505 = vadd.f32 %v467, %v491
        %v506 = vadd.f32 %v470, %v494
        %v507 = vadd.f32 %v473, %v497
        %v508 = vadd.f32 %v476, %v500
        %v509 = vrcp.pop 64.0
        %v510 = vmul.f32 %v501, %v509
        %v511 = vmul.f32 %v502, %v509
        %v512 = vmul.f32 %v503, %v509
        %v513 = vmul.f32 %v504, %v509
        %v514 = vmul.f32 %v505, %v509
        %v515 = vmul.f32 %v506, %v509
        %v516 = vmul.f32 %v507, %v509
        %v517 = vmul.f32 %v508, %v509
        %v518 = vsub.f32 %v436, %v510
        %v519 = vsub.f32 %v437, %v511
        %v520 = vsub.f32 %v438, %v512
        %v521 = vsub.f32 %v439, %v513
        %v522 = vsub.f32 %v440, %v514
        %v523 = vsub.f32 %v441, %v515
        %v524 = vsub.f32 %v442, %v516
        %v525 = vsub.f32 %v443, %v517
        %v526 = vmul.f32 %v518, %v518
        %v527 = vmul.f32 %v519, %v519
        %v528 = vmul.f32 %v520, %v520
        %v529 = vmul.f32 %v521, %v521
        %v530 = vmul.f32 %v522, %v522
        %v531 = vmul.f32 %v523, %v523
        %v532 = vmul.f32 %v524, %v524
        %v533 = vmul.f32 %v525, %v525
        %v534 = vsel %vm452, %v526, 0.0
        %535 = vadd.xlane.f32.xlu0 %v534
        %v536 = vpop.xlane.xlu0 %535
        %v537 = vsel %vm452, %v527, 0.0
        %538 = vadd.xlane.f32.xlu0 %v537
        %v539 = vpop.xlane.xlu0 %538
        %v540 = vsel %vm452, %v528, 0.0
        %541 = vadd.xlane.f32.xlu0 %v540
        %v542 = vpop.xlane.xlu0 %541
        %v543 = vsel %vm452, %v529, 0.0
        %544 = vadd.xlane.f32.xlu0 %v543
        %v545 = vpop.xlane.xlu0 %544
        %v546 = vsel %vm452, %v530, 0.0
        %547 = vadd.xlane.f32.xlu0 %v546
        %v548 = vpop.xlane.xlu0 %547
        %v549 = vsel %vm452, %v531, 0.0
        %550 = vadd.xlane.f32.xlu0 %v549
        %v551 = vpop.xlane.xlu0 %550
        %v552 = vsel %vm452, %v532, 0.0
        %553 = vadd.xlane.f32.xlu0 %v552
        %v554 = vpop.xlane.xlu0 %553
        %v555 = vsel %vm452, %v533, 0.0
        %556 = vadd.xlane.f32.xlu0 %v555
        %v557 = vpop.xlane.xlu0 %556
        %v558 = vsub.f32 %v444, %v510
        %v559 = vsub.f32 %v445, %v511
        %v560 = vsub.f32 %v446, %v512
        %v561 = vsub.f32 %v447, %v513
        %v562 = vsub.f32 %v448, %v514
        %v563 = vsub.f32 %v449, %v515
        %v564 = vsub.f32 %v450, %v516
        %v565 = vsub.f32 %v451, %v517
        %v566 = vmul.f32 %v558, %v558
        %v567 = vmul.f32 %v559, %v559
        %v568 = vmul.f32 %v560, %v560
        %v569 = vmul.f32 %v561, %v561
        %v570 = vmul.f32 %v562, %v562
        %v571 = vmul.f32 %v563, %v563
        %v572 = vmul.f32 %v564, %v564
        %v573 = vmul.f32 %v565, %v565
        %v574 = vsel %vm452, %v566, 0.0
        %575 = vadd.xlane.f32.xlu0 %v574
        %v576 = vpop.xlane.xlu0 %575
        %v577 = vsel %vm452, %v567, 0.0
        %578 = vadd.xlane.f32.xlu0 %v577
        %v579 = vpop.xlane.xlu0 %578
        %v580 = vsel %vm452, %v568, 0.0
        %581 = vadd.xlane.f32.xlu0 %v580
        %v582 = vpop.xlane.xlu0 %581
        %v583 = vsel %vm452, %v569, 0.0
        %584 = vadd.xlane.f32.xlu0 %v583
        %v585 = vpop.xlane.xlu0 %584
        %v586 = vsel %vm452, %v570, 0.0
        %587 = vadd.xlane.f32.xlu0 %v586
        %v588 = vpop.xlane.xlu0 %587
        %v589 = vsel %vm452, %v571, 0.0
        %590 = vadd.xlane.f32.xlu0 %v589
        %v591 = vpop.xlane.xlu0 %590
        %v592 = vsel %vm452, %v572, 0.0
        %593 = vadd.xlane.f32.xlu0 %v592
        %v594 = vpop.xlane.xlu0 %593
        %v595 = vsel %vm452, %v573, 0.0
        %596 = vadd.xlane.f32.xlu0 %v595
        %v597 = vpop.xlane.xlu0 %596
        %v598 = vadd.f32 %v536, %v576
        %v599 = vadd.f32 %v539, %v579
        %v600 = vadd.f32 %v542, %v582
        %v601 = vadd.f32 %v545, %v585
        %v602 = vadd.f32 %v548, %v588
        %v603 = vadd.f32 %v551, %v591
        %v604 = vadd.f32 %v554, %v594
        %v605 = vadd.f32 %v557, %v597
        %v606 = vmul.f32 %v598, %v509
        %v607 = vmul.f32 %v599, %v509
        %v608 = vmul.f32 %v600, %v509
        %v609 = vmul.f32 %v601, %v509
        %v610 = vmul.f32 %v602, %v509
        %v611 = vmul.f32 %v603, %v509
        %v612 = vmul.f32 %v604, %v509
        %v613 = vmul.f32 %v605, %v509
        %v614 = vadd.f32 %v606, 1e-05
        %v615 = vadd.f32 %v607, 1e-05
        %v616 = vadd.f32 %v608, 1e-05
        %v617 = vadd.f32 %v609, 1e-05
        %v618 = vadd.f32 %v610, 1e-05
        %v619 = vadd.f32 %v611, 1e-05
        %v620 = vadd.f32 %v612, 1e-05
        %v621 = vadd.f32 %v613, 1e-05
        %v622 = vrsqrt.pop %v614
        %v623 = vrsqrt.pop %v615
        %v624 = vrsqrt.pop %v616
        %v625 = vrsqrt.pop %v617
        %v626 = vrsqrt.pop %v618
        %v627 = vrsqrt.pop %v619
        %v628 = vrsqrt.pop %v620
        %v629 = vrsqrt.pop %v621
        %v630 = vmul.f32 %v518, %v622
        %v631 = vmul.f32 %v519, %v623
        %v632 = vmul.f32 %v520, %v624
        %v633 = vmul.f32 %v521, %v625
        %v634 = vmul.f32 %v522, %v626
        %v635 = vmul.f32 %v523, %v627
        %v636 = vmul.f32 %v524, %v628
        %v637 = vmul.f32 %v525, %v629
        %v638 = vld [vmem:[%s2] sm:$0x1]
        %v640 = vlaneseq
        %v641 = vshrl.u32 %v640, 7
        %v642 = vsub.s32 0, %v641
        %v643 = vrot.slane %v638, %v642
        %v645 = vmul.f32 %v630, %v643
        %v646 = vmul.f32 %v631, %v643
        %v647 = vmul.f32 %v632, %v643
        %v648 = vmul.f32 %v633, %v643
        %v649 = vmul.f32 %v634, %v643
        %v650 = vmul.f32 %v635, %v643
        %v651 = vmul.f32 %v636, %v643
        %v652 = vmul.f32 %v637, %v643
        %v653 = vld [vmem:[%s4] sm:$0x1]
        %v655 = vlaneseq
        %v656 = vshrl.u32 %v655, 7
        %v657 = vsub.s32 0, %v656
        %v658 = vrot.slane %v653, %v657
        %v660 = vadd.f32 %v645, %v658
        %v661 = vadd.f32 %v646, %v658
        %v662 = vadd.f32 %v647, %v658
        %v663 = vadd.f32 %v648, %v658
        %v664 = vadd.f32 %v649, %v658
        %v665 = vadd.f32 %v650, %v658
        %v666 = vadd.f32 %v651, %v658
        %v667 = vadd.f32 %v652, %v658
        %v668 = vmul.f32 %v558, %v622
        %v669 = vmul.f32 %v559, %v623
        %v670 = vmul.f32 %v560, %v624
        %v671 = vmul.f32 %v561, %v625
        %v672 = vmul.f32 %v562, %v626
        %v673 = vmul.f32 %v563, %v627
        %v674 = vmul.f32 %v564, %v628
        %v675 = vmul.f32 %v565, %v629
        %v676 = vld [vmem:[%s3] sm:$0x1]
        %v678 = vlaneseq
        %v679 = vshrl.u32 %v678, 7
        %v680 = vsub.s32 0, %v679
        %v681 = vrot.slane %v676, %v680
        %v683 = vmul.f32 %v668, %v681
        %v684 = vmul.f32 %v669, %v681
        %v685 = vmul.f32 %v670, %v681
        %v686 = vmul.f32 %v671, %v681
        %v687 = vmul.f32 %v672, %v681
        %v688 = vmul.f32 %v673, %v681
        %v689 = vmul.f32 %v674, %v681
        %v690 = vmul.f32 %v675, %v681
        %v691 = vld [vmem:[%s5] sm:$0x1]
        %v693 = vlaneseq
        %v694 = vshrl.u32 %v693, 7
        %v695 = vsub.s32 0, %v694
        %v696 = vrot.slane %v691, %v695
        %v698 = vadd.f32 %v683, %v696
        %v699 = vadd.f32 %v684, %v696
        %v700 = vadd.f32 %v685, %v696
        %v701 = vadd.f32 %v686, %v696
        %v702 = vadd.f32 %v687, %v696
        %v703 = vadd.f32 %v688, %v696
        %v704 = vadd.f32 %v689, %v696
        %v705 = vadd.f32 %v690, %v696
        %v706 = vld [vmem:[%s6] sm:$0x1]
        %v708 = vlaneseq
        %v709 = vshrl.u32 %v708, 7
        %v710 = vsub.s32 0, %v709
        %v711 = vrot.slane %v706, %v710
        %v713 = vmul.f32 %v660, %v711
        %v714 = vmul.f32 %v661, %v711
        %v715 = vmul.f32 %v662, %v711
        %v716 = vmul.f32 %v663, %v711
        %v717 = vmul.f32 %v664, %v711
        %v718 = vmul.f32 %v665, %v711
        %v719 = vmul.f32 %v666, %v711
        %v720 = vmul.f32 %v667, %v711
        %v721 = vsel %vm452, %v713, 0.0
        %722 = vadd.xlane.f32.xlu0 %v721
        %v723 = vpop.xlane.xlu0 %722
        %v724 = vsel %vm452, %v714, 0.0
        %725 = vadd.xlane.f32.xlu0 %v724
        %v726 = vpop.xlane.xlu0 %725
        %v727 = vsel %vm452, %v715, 0.0
        %728 = vadd.xlane.f32.xlu0 %v727
        %v729 = vpop.xlane.xlu0 %728
        %v730 = vsel %vm452, %v716, 0.0
        %731 = vadd.xlane.f32.xlu0 %v730
        %v732 = vpop.xlane.xlu0 %731
        %v733 = vsel %vm452, %v717, 0.0
        %734 = vadd.xlane.f32.xlu0 %v733
        %v735 = vpop.xlane.xlu0 %734
        %v736 = vsel %vm452, %v718, 0.0
        %737 = vadd.xlane.f32.xlu0 %v736
        %v738 = vpop.xlane.xlu0 %737
        %v739 = vsel %vm452, %v719, 0.0
        %740 = vadd.xlane.f32.xlu0 %v739
        %v741 = vpop.xlane.xlu0 %740
        %v742 = vsel %vm452, %v720, 0.0
        %743 = vadd.xlane.f32.xlu0 %v742
        %v744 = vpop.xlane.xlu0 %743
        %v745 = vld [vmem:[%s7] sm:$0x1]
        %v747 = vlaneseq
        %v748 = vshrl.u32 %v747, 7
        %v749 = vsub.s32 0, %v748
        %v750 = vrot.slane %v745, %v749
        %v752 = vmul.f32 %v698, %v750
        %v753 = vmul.f32 %v699, %v750
        %v754 = vmul.f32 %v700, %v750
        %v755 = vmul.f32 %v701, %v750
        %v756 = vmul.f32 %v702, %v750
        %v757 = vmul.f32 %v703, %v750
        %v758 = vmul.f32 %v704, %v750
        %v759 = vmul.f32 %v705, %v750
        %v760 = vsel %vm452, %v752, 0.0
        %761 = vadd.xlane.f32.xlu0 %v760
        %v762 = vpop.xlane.xlu0 %761
        %v763 = vsel %vm452, %v753, 0.0
        %764 = vadd.xlane.f32.xlu0 %v763
        %v765 = vpop.xlane.xlu0 %764
        %v766 = vsel %vm452, %v754, 0.0
        %767 = vadd.xlane.f32.xlu0 %v766
        %v768 = vpop.xlane.xlu0 %767
        %v769 = vsel %vm452, %v755, 0.0
        %770 = vadd.xlane.f32.xlu0 %v769
        %v771 = vpop.xlane.xlu0 %770
        %v772 = vsel %vm452, %v756, 0.0
        %773 = vadd.xlane.f32.xlu0 %v772
        %v774 = vpop.xlane.xlu0 %773
        %v775 = vsel %vm452, %v757, 0.0
        %776 = vadd.xlane.f32.xlu0 %v775
        %v777 = vpop.xlane.xlu0 %776
        %v778 = vsel %vm452, %v758, 0.0
        %779 = vadd.xlane.f32.xlu0 %v778
        %v780 = vpop.xlane.xlu0 %779
        %v781 = vsel %vm452, %v759, 0.0
        %782 = vadd.xlane.f32.xlu0 %v781
        %v783 = vpop.xlane.xlu0 %782
        %v784 = vadd.f32 %v723, %v762
        %v785 = vadd.f32 %v726, %v765
        %v786 = vadd.f32 %v729, %v768
        %v787 = vadd.f32 %v732, %v771
        %v788 = vadd.f32 %v735, %v774
        %v789 = vadd.f32 %v738, %v777
        %v790 = vadd.f32 %v741, %v780
        %v791 = vadd.f32 %v744, %v783
        %v792 = vld [vmem:[#allocation6] sm:$0x1]
        %v794 = vlaneseq
        %v795 = vshrl.u32 %v794, 7
        %v796 = vsub.s32 0, %v795
        %v797 = vrot.slane %v792, %v796
        %v799 = vadd.f32 %v784, %v797
        %v800 = vadd.f32 %v785, %v797
        %v801 = vadd.f32 %v786, %v797
        %v802 = vadd.f32 %v787, %v797
        %v803 = vadd.f32 %v788, %v797
        %v804 = vadd.f32 %v789, %v797
        %v805 = vadd.f32 %v790, %v797
        %v806 = vadd.f32 %v791, %v797
        %v807 = vld [vmem:[#allocation2] sm:$0x3]
        %vm808 = vcmask 1024
        %v809 = vsel %vm808, %v799, -inf
        %v810 = vsel %vm808, %v800, -inf
        %v811 = vsel %vm808, %v801, -inf
        %v812 = vsel %vm808, %v802, -inf
        %v813 = vsel %vm808, %v803, -inf
        %v814 = vmax.f32 %v809, %v813
        %v815 = vsel %vm808, %v804, -inf
        %v816 = vmax.f32 %v810, %v815
        %v817 = vsel %vm808, %v805, -inf
        %v818 = vmax.f32 %v811, %v817
        %v819 = vsel %vm808, %v806, -inf
        %v820 = vmax.f32 %v812, %v819
        %v821 = vmax.f32 %v814, %v816
        %v822 = vmax.f32 %v818, %v820
        %v823 = vmax.f32 %v821, %v822
        %v824 = vmax.f32 %v807, %v823
        %v825 = vsub.f32 %v807, %v824
        %v826 = vmul.f32 %v825, 1.442695
        %v827 = vpow.pop %v826
        %v828 = vsub.f32 %v799, %v824
        %v829 = vsub.f32 %v800, %v824
        %v830 = vsub.f32 %v801, %v824
        %v831 = vsub.f32 %v802, %v824
        %v832 = vsub.f32 %v803, %v824
        %v833 = vsub.f32 %v804, %v824
        %v834 = vsub.f32 %v805, %v824
        %v835 = vsub.f32 %v806, %v824
        %v836 = vmul.f32 %v828, 1.442695
        %v837 = vpow.pop %v836
        %v838 = vmul.f32 %v829, 1.442695
        %v839 = vpow.pop %v838
        %v840 = vmul.f32 %v830, 1.442695
        %v841 = vpow.pop %v840
        %v842 = vmul.f32 %v831, 1.442695
        %v843 = vpow.pop %v842
        %v844 = vmul.f32 %v832, 1.442695
        %v845 = vpow.pop %v844
        %v846 = vmul.f32 %v833, 1.442695
        %v847 = vpow.pop %v846
        %v848 = vmul.f32 %v834, 1.442695
        %v849 = vpow.pop %v848
        %v850 = vmul.f32 %v835, 1.442695
        %v851 = vpow.pop %v850
        %v852 = vld [vmem:[#allocation3] sm:$0x3]
        %v853 = vmul.f32 %v827, %v852
        %v854 = vsel %vm808, %v837, 0.0
        %v855 = vsel %vm808, %v839, 0.0
        %v856 = vadd.f32 %v854, %v855
        %v857 = vsel %vm808, %v841, 0.0
        %v858 = vadd.f32 %v856, %v857
        %v859 = vsel %vm808, %v843, 0.0
        %v860 = vadd.f32 %v858, %v859
        %v861 = vsel %vm808, %v845, 0.0
        %v862 = vadd.f32 %v860, %v861
        %v863 = vsel %vm808, %v847, 0.0
        %v864 = vadd.f32 %v862, %v863
        %v865 = vsel %vm808, %v849, 0.0
        %v866 = vadd.f32 %v864, %v865
        %v867 = vsel %vm808, %v851, 0.0
        %v868 = vadd.f32 %v866, %v867
        %v869 = vadd.f32 %v853, %v868
        %870 = vst.msk [vmem:[#allocation3] sm:$0x3] %vm808, %v869
        %v871 = vld [vmem:[#allocation4] sm:$0x3]
        %873 = vset.pattern.permute.xlu0 0
        %874 = vperm.xlu0 %873, %v827
        %v875 = vpop.permute.xlu0 %874
        %v877 = vmul.f32 %v875, %v871
        %879 = vset.pattern.permute.xlu0 0
        %880 = vperm.xlu0 %879, %v837
        %v881 = vpop.permute.xlu0 %880
        %884 = vset.pattern.permute.xlu0 0
        %885 = vperm.xlu0 %884, %v839
        %v886 = vpop.permute.xlu0 %885
        %889 = vset.pattern.permute.xlu0 0
        %890 = vperm.xlu0 %889, %v841
        %v891 = vpop.permute.xlu0 %890
        %894 = vset.pattern.permute.xlu0 0
        %895 = vperm.xlu0 %894, %v843
        %v896 = vpop.permute.xlu0 %895
        %899 = vset.pattern.permute.xlu0 0
        %900 = vperm.xlu0 %899, %v845
        %v901 = vpop.permute.xlu0 %900
        %904 = vset.pattern.permute.xlu0 0
        %905 = vperm.xlu0 %904, %v847
        %v906 = vpop.permute.xlu0 %905
        %909 = vset.pattern.permute.xlu0 0
        %910 = vperm.xlu0 %909, %v849
        %v911 = vpop.permute.xlu0 %910
        %914 = vset.pattern.permute.xlu0 0
        %915 = vperm.xlu0 %914, %v851
        %v916 = vpop.permute.xlu0 %915
        %v918 = vmul.f32 %v881, %v660
        %v919 = vmul.f32 %v886, %v661
        %v920 = vmul.f32 %v891, %v662
        %v921 = vmul.f32 %v896, %v663
        %v922 = vmul.f32 %v901, %v664
        %v923 = vmul.f32 %v906, %v665
        %v924 = vmul.f32 %v911, %v666
        %v925 = vmul.f32 %v916, %v667
        %v926 = vsel %vm452, %v918, 0.0
        %v927 = vsel %vm452, %v919, 0.0
        %v928 = vadd.f32 %v926, %v927
        %v929 = vsel %vm452, %v920, 0.0
        %v930 = vadd.f32 %v928, %v929
        %v931 = vsel %vm452, %v921, 0.0
        %v932 = vadd.f32 %v930, %v931
        %v933 = vsel %vm452, %v922, 0.0
        %v934 = vadd.f32 %v932, %v933
        %v935 = vsel %vm452, %v923, 0.0
        %v936 = vadd.f32 %v934, %v935
        %v937 = vsel %vm452, %v924, 0.0
        %v938 = vadd.f32 %v936, %v937
        %v939 = vsel %vm452, %v925, 0.0
        %v940 = vadd.f32 %v938, %v939
        %v941 = vadd.f32 %v877, %v940
        %942 = vst.msk [vmem:[#allocation4] sm:$0x3] %vm452, %v941
        %v943 = vld [vmem:[#allocation5] sm:$0x3]
        %v944 = vmul.f32 %v875, %v943
        %v945 = vmul.f32 %v881, %v698
        %v946 = vmul.f32 %v886, %v699
        %v947 = vmul.f32 %v891, %v700
        %v948 = vmul.f32 %v896, %v701
        %v949 = vmul.f32 %v901, %v702
        %v950 = vmul.f32 %v906, %v703
        %v951 = vmul.f32 %v911, %v704
        %v952 = vmul.f32 %v916, %v705
        %v953 = vsel %vm452, %v945, 0.0
        %v954 = vsel %vm452, %v946, 0.0
        %v955 = vadd.f32 %v953, %v954
        %v956 = vsel %vm452, %v947, 0.0
        %v957 = vadd.f32 %v955, %v956
        %v958 = vsel %vm452, %v948, 0.0
        %v959 = vadd.f32 %v957, %v958
        %v960 = vsel %vm452, %v949, 0.0
        %v961 = vadd.f32 %v959, %v960
        %v962 = vsel %vm452, %v950, 0.0
        %v963 = vadd.f32 %v961, %v962
        %v964 = vsel %vm452, %v951, 0.0
        %v965 = vadd.f32 %v963, %v964
        %v966 = vsel %vm452, %v952, 0.0
        %v967 = vadd.f32 %v965, %v966
        %v968 = vadd.f32 %v944, %v967
        %969 = vst.msk [vmem:[#allocation5] sm:$0x3] %vm452, %v968
        %970 = vst.msk [vmem:[#allocation2] sm:$0x3] %vm808, %v824
        %p971 = scmp.eq.s32.totalorder %s26, 3
        // Predicated region
        $region73: #{lstm_model_forward.5} parent=67 // pred_check
          %p972 = pneg %p971
        $region74: #{lstm_model_forward.5} parent=67 // pred_check_branch
          %974 = sbr.rel (%p972) target = $region76
        $region75: #{lstm_model_forward.5} parent=67 // pred_region
          %v975 = vld [vmem:[#allocation3] sm:$0x3]
          %v976 = vrcp.pop %v975
          %v977 = vmul.f32 1.0, %v976
          %v978 = vld [vmem:[#allocation4] sm:$0x3]
          %980 = vset.pattern.permute.xlu0 0
          %981 = vperm.xlu0 %980, %v977
          %v982 = vpop.permute.xlu0 %981
          %v984 = vmul.f32 %v978, %v982
          %v985 = vld [vmem:[#allocation5] sm:$0x3]
          %v986 = vmul.f32 %v985, %v982
          %v987 = vld [vmem:[%s9] sm:$0xff]
          %v988 = vld [vmem:[%s9 + $0x8] sm:$0xff]
          %v989 = vld [vmem:[%s9 + $0x10] sm:$0xff]
          %v990 = vld [vmem:[%s9 + $0x18] sm:$0xff]
          %v991 = vld [vmem:[%s10] sm:$0xff]
          %v992 = vld [vmem:[%s10 + $0x8] sm:$0xff]
          %v993 = vld [vmem:[%s10 + $0x10] sm:$0xff]
          %v994 = vld [vmem:[%s10 + $0x18] sm:$0xff]
          %vm995 = vcmask 261120
          %v997 = vsel %vm995, %v986, 0
          %999 = vmatprep.subr.mxu0 0.0
          %1000 = vmatpush1.msra.mxu0 %v991
          %1001 = vmatprep.subr.mxu0 0.0
          %1002 = vmatpush1.msra.mxu0 %v992
          %1003 = vmatprep.subr.mxu0 0.0
          %1004 = vmatpush1.msra.mxu0 %v993
          %1005 = vmatprep.subr.mxu0 0.0
          %1006 = vmatpush1.msra.mxu0 %v994
          %1007 = vmatprep.subr.mxu0 0.0
          %1008 = vmatpush1.msra.mxu0 0.0
          %1009 = vmatprep.subr.mxu0 0.0
          %1010 = vmatpush1.msra.mxu0 0.0
          %1011 = vmatprep.subr.mxu0 0.0
          %1012 = vmatpush1.msra.mxu0 0.0
          %1013 = vmatprep.subr.mxu0 0.0
          %1014 = vmatpush1.msra.mxu0 0.0
          %1015 = vmatprep.subr.mxu0 0.0
          %1016 = vmatpush1.msra.mxu0 0.0
          %1017 = vmatprep.subr.mxu0 0.0
          %1018 = vmatpush1.msra.mxu0 0.0
          %1019 = vmatprep.subr.mxu0 0.0
          %1020 = vmatpush1.msra.mxu0 0.0
          %1021 = vmatprep.subr.mxu0 0.0
          %1022 = vmatpush1.msra.mxu0 0.0
          %1023 = vmatprep.subr.mxu0 0.0
          %1024 = vmatpush1.msra.mxu0 0.0
          %1025 = vmatprep.subr.mxu0 0.0
          %1026 = vmatpush1.msra.mxu0 0.0
          %1027 = vmatprep.subr.mxu0 0.0
          %1028 = vmatpush1.msra.mxu0 0.0
          %1029 = vmatprep.subr.mxu0 0.0
          %1030 = vmatpush1.msra.mxu0 0.0
          %1031 = vmatprep.subr.mxu0 0.0
          %1032 = vmatpush1.msra.mxu0 0.0
          %1033 = vmatprep.subr.mxu0 0.0
          %1034 = vmatpush1.msra.mxu0 0.0
          %1035 = vmatprep.subr.mxu0 0.0
          %1036 = vmatpush1.msra.mxu0 0.0
          %1037 = vmatprep.subr.mxu0 0.0
          %1038 = vmatpush1.msra.mxu0 0.0
          %1039 = vmatprep.subr.mxu0 0.0
          %1040 = vmatpush1.msra.mxu0 0.0
          %1041 = vmatprep.subr.mxu0 0.0
          %1042 = vmatpush1.msra.mxu0 0.0
          %1043 = vmatprep.subr.mxu0 0.0
          %1044 = vmatpush1.msra.mxu0 0.0
          %1045 = vmatprep.subr.mxu0 0.0
          %1046 = vmatpush1.msra.mxu0 0.0
          %1047 = vmatprep.subr.mxu0 0.0
          %1048 = vmatpush1.msra.mxu0 0.0
          %1049 = vmatprep.subr.mxu0 0.0
          %1050 = vmatpush1.msra.mxu0 0.0
          %1051 = vmatprep.subr.mxu0 0.0
          %1052 = vmatpush1.msra.mxu0 0.0
          %1053 = vmatprep.subr.mxu0 0.0
          %1054 = vmatpush1.msra.mxu0 0.0
          %1055 = vmatprep.subr.mxu0 0.0
          %1056 = vmatpush1.msra.mxu0 0.0
          %1057 = vmatprep.subr.mxu0 0.0
          %1058 = vmatpush1.msra.mxu0 0.0
          %1059 = vmatprep.subr.mxu0 0.0
          %1060 = vmatpush1.msra.mxu0 0.0
          %1061 = vmatprep.subr.mxu0 0.0
          %1062 = vmatpush1.msra.mxu0 0.0
          %1063 = vmatprep.mubr.f32.mxu0 0.0
          %1064 = vmatmul.mubr.f32.gmra.mrb[0].mxu0 %v997
          %v1065 = vpop.f32.mrb[0].mxu0
          %v1066 = vadd.f32 0.0, %v1065
          %v1067 = vpop.f32.mrb[0].mxu0
          %1068 = vdwg.mxu0
          %v1070 = vsel %vm995, %v984, 0
          %1072 = vmatprep.subr.mxu0 0.0
          %1073 = vmatpush1.msra.mxu0 %v987
          %1074 = vmatprep.subr.mxu0 0.0
          %1075 = vmatpush1.msra.mxu0 %v988
          %1076 = vmatprep.subr.mxu0 0.0
          %1077 = vmatpush1.msra.mxu0 %v989
          %1078 = vmatprep.subr.mxu0 0.0
          %1079 = vmatpush1.msra.mxu0 %v990
          %1080 = vmatprep.subr.mxu0 0.0
          %1081 = vmatpush1.msra.mxu0 0.0
          %1082 = vmatprep.subr.mxu0 0.0
          %1083 = vmatpush1.msra.mxu0 0.0
          %1084 = vmatprep.subr.mxu0 0.0
          %1085 = vmatpush1.msra.mxu0 0.0
          %1086 = vmatprep.subr.mxu0 0.0
          %1087 = vmatpush1.msra.mxu0 0.0
          %1088 = vmatprep.subr.mxu0 0.0
          %1089 = vmatpush1.msra.mxu0 0.0
          %1090 = vmatprep.subr.mxu0 0.0
          %1091 = vmatpush1.msra.mxu0 0.0
          %1092 = vmatprep.subr.mxu0 0.0
          %1093 = vmatpush1.msra.mxu0 0.0
          %1094 = vmatprep.subr.mxu0 0.0
          %1095 = vmatpush1.msra.mxu0 0.0
          %1096 = vmatprep.subr.mxu0 0.0
          %1097 = vmatpush1.msra.mxu0 0.0
          %1098 = vmatprep.subr.mxu0 0.0
          %1099 = vmatpush1.msra.mxu0 0.0
          %1100 = vmatprep.subr.mxu0 0.0
          %1101 = vmatpush1.msra.mxu0 0.0
          %1102 = vmatprep.subr.mxu0 0.0
          %1103 = vmatpush1.msra.mxu0 0.0
          %1104 = vmatprep.subr.mxu0 0.0
          %1105 = vmatpush1.msra.mxu0 0.0
          %1106 = vmatprep.subr.mxu0 0.0
          %1107 = vmatpush1.msra.mxu0 0.0
          %1108 = vmatprep.subr.mxu0 0.0
          %1109 = vmatpush1.msra.mxu0 0.0
          %1110 = vmatprep.subr.mxu0 0.0
          %1111 = vmatpush1.msra.mxu0 0.0
          %1112 = vmatprep.subr.mxu0 0.0
          %1113 = vmatpush1.msra.mxu0 0.0
          %1114 = vmatprep.subr.mxu0 0.0
          %1115 = vmatpush1.msra.mxu0 0.0
          %1116 = vmatprep.subr.mxu0 0.0
          %1117 = vmatpush1.msra.mxu0 0.0
          %1118 = vmatprep.subr.mxu0 0.0
          %1119 = vmatpush1.msra.mxu0 0.0
          %1120 = vmatprep.subr.mxu0 0.0
          %1121 = vmatpush1.msra.mxu0 0.0
          %1122 = vmatprep.subr.mxu0 0.0
          %1123 = vmatpush1.msra.mxu0 0.0
          %1124 = vmatprep.subr.mxu0 0.0
          %1125 = vmatpush1.msra.mxu0 0.0
          %1126 = vmatprep.subr.mxu0 0.0
          %1127 = vmatpush1.msra.mxu0 0.0
          %1128 = vmatprep.subr.mxu0 0.0
          %1129 = vmatpush1.msra.mxu0 0.0
          %1130 = vmatprep.subr.mxu0 0.0
          %1131 = vmatpush1.msra.mxu0 0.0
          %1132 = vmatprep.subr.mxu0 0.0
          %1133 = vmatpush1.msra.mxu0 0.0
          %1134 = vmatprep.subr.mxu0 0.0
          %1135 = vmatpush1.msra.mxu0 0.0
          %1136 = vmatprep.mubr.f32.mxu0 0.0
          %1137 = vmatmul.mubr.f32.gmra.mrb[0].mxu0 %v1070
          %v1138 = vpop.f32.mrb[0].mxu0
          %v1139 = vadd.f32 %v1066, %v1138
          %v1140 = vpop.f32.mrb[0].mxu0
          %1141 = vdwg.mxu0
          %v1142 = vld [vmem:[%s11] sm:$0x1]
          %v1144 = vlaneseq
          %v1145 = vshrl.u32 %v1144, 7
          %v1146 = vsub.s32 0, %v1145
          %v1147 = vrot.slane %v1142, %v1146
          %v1149 = vadd.f32 %v1139, %v1147
          %1150 = vst [vmem:[#allocation7] sm:$0x3] %v1149
        $region76: #{lstm_model_forward.5} parent=67 // pred_fallthru
          _
        // Predicated region
        $region77: #{lstm_model_forward.5} parent=67 // pred_check
          %p1151 = pneg %p301
        $region78: #{lstm_model_forward.5} parent=67 // pred_check_branch
          %1153 = sbr.rel (%p1151) target = $region80
        $region79: #{lstm_model_forward.5} parent=67 // pred_region
          %s1155 = ssub.s32 32, 32
          %1156 = vsyncadd [#allocation8], %s1155
          %s1158 = sshll.u32 [#allocation7], 4
          %s1159 = int_to_ptr.vmem [resolvable:$true] %s1158
          %1161 = dma.vmem_to_hbm [thread:$0]  %s1159, 32, %s12, [#allocation8]
        $region80: #{lstm_model_forward.5} parent=67 // pred_fallthru
          _
        // Predicated region
        $region81: #{lstm_model_forward.5} parent=67 // pred_check
          %p1162 = pneg %p301
        $region82: #{lstm_model_forward.5} parent=67 // pred_check_branch
          %1164 = sbr.rel (%p1162) target = $region84
        $region83: #{lstm_model_forward.5} parent=67 // pred_region
          %1165 = dma.done [#allocation8], 32
        $region84: #{lstm_model_forward.5} parent=67 // pred_fallthru
          _
      $region68: #{lstm_model_forward.5} parent=5 // pred_fallthru
        _
      %p1166 = scmp.le.s32.totalorder 2, %s21
      // Predicated region
      $region85: #{lstm_model_forward.5} parent=5 // pred_check
        %p1167 = pneg %p1166
      $region86: #{lstm_model_forward.5} parent=5 // pred_check_branch
        %1169 = sbr.rel (%p1167) target = $region88
      $region87: #{lstm_model_forward.5} parent=5 // pred_region
        %s1170 = ssub.s32 %s21, 2
      $region88: #{lstm_model_forward.5} parent=5 // pred_fallthru
        _
    $region6: #{lstm_model_forward.5} parent=1 // loop_footer
      %s25 = sadd.s32 1, %s21
    $region7: #{lstm_model_forward.5} parent=1 // loop_footer_branch
      %20 = sbr.rel target = $region3
    $region8: #{lstm_model_forward.5} parent=1 // loop_exit
      _
    %1171 = vsyncpa [#allocation8], 1
    %s1172 = scalar_lea.sflag [#allocation8], 1
    %1173 = vsyncpa %s1172, 1

// kernel: lstm_model_forward.3
$region0: #{lstm_model_forward.3}
  #allocation0 [shape = 'u32[]', space=smem, size = 0x4, offset = 0x4, fixed_abs, tag = 'smem constant byte address 0x4 - core index']
  #allocation1 [shape = 'u32[144,128]{1,0:T(1,128)}', space=vmem, size = 0x12000, scoped, tag = 'internal scratch']
  #allocation2 [shape = 'f32[2,2,32]{2,1,0:T(2,128)}', space=vmem, size = 0x800, scoped, tag = 'scratch operand']
  #allocation3 [shape = 'f32[2,2,32]{2,1,0:T(2,128)}', space=vmem, size = 0x800, scoped, tag = 'scratch operand']
  %s0 = inlined_call_operand.vmem [shape: f32[32,2,128], index: 0, kind: input, shape index: {}]
  %s1 = inlined_call_operand.vmem [shape: f32[32,2,128], index: 1, kind: input, shape index: {}]
  %s2 = inlined_call_operand.vmem [shape: f32[32,128], index: 2, kind: input, shape index: {}]
  %s3 = inlined_call_operand.vmem [shape: f32[32,128], index: 3, kind: input, shape index: {}]
  %s4 = inlined_call_operand.vmem [shape: f32[32,2,32], index: 4, kind: output, shape index: {0}]
  %s5 = inlined_call_operand.vmem [shape: f32[32,2,32], index: 5, kind: output, shape index: {1}]
  %6 = xla_tuple %s4, %s5
  %s7 = sld [smem:[#allocation0]]
  $region61: #{lstm_model_forward.3} parent=0
    _
  %s9 = ssub.s32 1, %s7
  %s10 = scalar_select 0, %s9, %s7
  loop: start=0, step=1, limit=4
  $region2: #{lstm_model_forward.3} parent=0 // loop_pre_header
    _
  $region3: #{lstm_model_forward.3} parent=0 // loop_header
    %s12 = sphi 0, %s16
    %p13 = scmp.ge.s32.totalorder %s12, 4
    %s22 = sphi 0, %s24
    %s25 = sphi 0, %s22
    %s26 = sphi 0, %s25
    %s42 = sphi 0, %s26
    %s50 = sphi 0, %s52
    %s53 = sphi 0, %s50
    %s54 = sphi 0, %s53
    %s70 = sphi 0, %s54
    %s74 = sphi 0, %s74
    %s76 = sphi 0, %s74
    %s77 = sphi 0, %s76
    %s91 = sphi 0, %s77
    %s95 = sphi 0, %s95
    %s97 = sphi 0, %s95
    %s98 = sphi 0, %s97
    %s112 = sphi 0, %s98
    %s118 = sphi 0, %s120
    %s121 = sphi 0, %s118
    %s122 = sphi 0, %s121
    %s138 = sphi 0, %s122
    %s146 = sphi 0, %s148
    %s149 = sphi 0, %s146
    %s150 = sphi 0, %s149
    %s166 = sphi 0, %s150
  $region4: #{lstm_model_forward.3} parent=0 // loop_header_branch
    %15 = sbr.rel (%p13) target = $region8
  $region5: #{lstm_model_forward.3} parent=0 // loop_body
    %s17 = ssub.s32 %s12, 1
    %s18 = ssub.s32 %s12, 2
    %s19 = sadd.s32 %s12, 1
    %s20 = ssub.s32 %s12, %s19
    %p21 = scmp.eq.s32.totalorder %s20, 0
    %s23 = sadd.s32 %s22, 1
    %s24 = scalar_select %p21, %s22, %s23
    %p27 = pneg %p21
    %p28 = scmp.eq.s32.totalorder %s12, 1
    %p29 = por %p27, %p28
    %p30 = scmp.ne.s32.totalorder %s22, %s25
    %p31 = scmp.eq.s32.totalorder %s12, 0
    %p32 = por %p30, %p31
    %p33 = scmp.ne.s32.totalorder %s22, %s25
    %p34 = scmp.eq.s32.totalorder %s17, 1
    %p35 = por %p33, %p34
    %p36 = scmp.ne.s32.totalorder %s25, %s26
    %p37 = scmp.eq.s32.totalorder %s17, 0
    %p38 = por %p36, %p37
    %p39 = scmp.ne.s32.totalorder %s25, %s26
    %p40 = scmp.eq.s32.totalorder %s18, 1
    %p41 = por %p39, %p40
    %p43 = scmp.ne.s32.totalorder %s26, %s42
    %p44 = scmp.eq.s32.totalorder %s18, 0
    %p45 = por %p43, %p44
    %s46 = ssub.s32 1, %s12
    %s47 = ssub.s32 1, %s19
    %s48 = ssub.s32 %s46, %s47
    %p49 = scmp.eq.s32.totalorder %s48, 0
    %s51 = sadd.s32 %s50, 1
    %s52 = scalar_select %p49, %s50, %s51
    %p55 = pneg %p49
    %p56 = scmp.eq.s32.totalorder %s12, 1
    %p57 = por %p55, %p56
    %p58 = scmp.ne.s32.totalorder %s50, %s53
    %p59 = scmp.eq.s32.totalorder %s12, 0
    %p60 = por %p58, %p59
    %p61 = scmp.ne.s32.totalorder %s50, %s53
    %p62 = scmp.eq.s32.totalorder %s17, 1
    %p63 = por %p61, %p62
    %p64 = scmp.ne.s32.totalorder %s53, %s54
    %p65 = scmp.eq.s32.totalorder %s17, 0
    %p66 = por %p64, %p65
    %p67 = scmp.ne.s32.totalorder %s53, %s54
    %p68 = scmp.eq.s32.totalorder %s18, 1
    %p69 = por %p67, %p68
    %p71 = scmp.ne.s32.totalorder %s54, %s70
    %p72 = scmp.eq.s32.totalorder %s18, 0
    %p73 = por %p71, %p72
    %s75 = sadd.s32 %s74, 1
    %p78 = scmp.eq.s32.totalorder %s12, 1
    %p79 = scmp.ne.s32.totalorder %s74, %s76
    %p80 = scmp.eq.s32.totalorder %s12, 0
    %p81 = por %p79, %p80
    %p82 = scmp.ne.s32.totalorder %s74, %s76
    %p83 = scmp.eq.s32.totalorder %s17, 1
    %p84 = por %p82, %p83
    %p85 = scmp.ne.s32.totalorder %s76, %s77
    %p86 = scmp.eq.s32.totalorder %s17, 0
    %p87 = por %p85, %p86
    %p88 = scmp.ne.s32.totalorder %s76, %s77
    %p89 = scmp.eq.s32.totalorder %s18, 1
    %p90 = por %p88, %p89
    %p92 = scmp.ne.s32.totalorder %s77, %s91
    %p93 = scmp.eq.s32.totalorder %s18, 0
    %p94 = por %p92, %p93
    %s96 = sadd.s32 %s95, 1
    %p99 = scmp.eq.s32.totalorder %s12, 1
    %p100 = scmp.ne.s32.totalorder %s95, %s97
    %p101 = scmp.eq.s32.totalorder %s12, 0
    %p102 = por %p100, %p101
    %p103 = scmp.ne.s32.totalorder %s95, %s97
    %p104 = scmp.eq.s32.totalorder %s17, 1
    %p105 = por %p103, %p104
    %p106 = scmp.ne.s32.totalorder %s97, %s98
    %p107 = scmp.eq.s32.totalorder %s17, 0
    %p108 = por %p106, %p107
    %p109 = scmp.ne.s32.totalorder %s97, %s98
    %p110 = scmp.eq.s32.totalorder %s18, 1
    %p111 = por %p109, %p110
    %p113 = scmp.ne.s32.totalorder %s98, %s112
    %p114 = scmp.eq.s32.totalorder %s18, 0
    %p115 = por %p113, %p114
    %s116 = ssub.s32 %s12, %s19
    %p117 = scmp.eq.s32.totalorder %s116, 0
    %s119 = sadd.s32 %s118, 1
    %s120 = scalar_select %p117, %s118, %s119
    %p123 = pneg %p117
    %p124 = scmp.eq.s32.totalorder %s12, 1
    %p125 = por %p123, %p124
    %p126 = scmp.ne.s32.totalorder %s118, %s121
    %p127 = scmp.eq.s32.totalorder %s12, 0
    %p128 = por %p126, %p127
    %p129 = scmp.ne.s32.totalorder %s118, %s121
    %p130 = scmp.eq.s32.totalorder %s17, 1
    %p131 = por %p129, %p130
    %p132 = scmp.ne.s32.totalorder %s121, %s122
    %p133 = scmp.eq.s32.totalorder %s17, 0
    %p134 = por %p132, %p133
    %p135 = scmp.ne.s32.totalorder %s121, %s122
    %p136 = scmp.eq.s32.totalorder %s18, 1
    %p137 = por %p135, %p136
    %p139 = scmp.ne.s32.totalorder %s122, %s138
    %p140 = scmp.eq.s32.totalorder %s18, 0
    %p141 = por %p139, %p140
    %s142 = ssub.s32 1, %s12
    %s143 = ssub.s32 1, %s19
    %s144 = ssub.s32 %s142, %s143
    %p145 = scmp.eq.s32.totalorder %s144, 0
    %s147 = sadd.s32 %s146, 1
    %s148 = scalar_select %p145, %s146, %s147
    %p151 = pneg %p145
    %p152 = scmp.eq.s32.totalorder %s12, 1
    %p153 = por %p151, %p152
    %p154 = scmp.ne.s32.totalorder %s146, %s149
    %p155 = scmp.eq.s32.totalorder %s12, 0
    %p156 = por %p154, %p155
    %p157 = scmp.ne.s32.totalorder %s146, %s149
    %p158 = scmp.eq.s32.totalorder %s17, 1
    %p159 = por %p157, %p158
    %p160 = scmp.ne.s32.totalorder %s149, %s150
    %p161 = scmp.eq.s32.totalorder %s17, 0
    %p162 = por %p160, %p161
    %p163 = scmp.ne.s32.totalorder %s149, %s150
    %p164 = scmp.eq.s32.totalorder %s18, 1
    %p165 = por %p163, %p164
    %p167 = scmp.ne.s32.totalorder %s150, %s166
    %p168 = scmp.eq.s32.totalorder %s18, 0
    %p169 = por %p167, %p168
    %p170 = scmp.le.s32.totalorder 1, %s12
    %p171 = scmp.lt.s32.totalorder %s12, 3
    %p172 = pnand %p170, %p171
    %p173 = pneg %p172
    // Predicated region
    $region9: #{lstm_model_forward.3} parent=5 // pred_check
      _
    $region10: #{lstm_model_forward.3} parent=5 // pred_check_branch
      %175 = sbr.rel (%p172) target = $region12
    $region11: #{lstm_model_forward.3} parent=5 // pred_region
      %s176 = ssub.s32 %s12, 1
      // Predicated region
      $region13: #{lstm_model_forward.3} parent=11 // pred_check
        %p177 = pneg %p87
      $region14: #{lstm_model_forward.3} parent=11 // pred_check_branch
        %179 = sbr.rel (%p177) target = $region16
      $region15: #{lstm_model_forward.3} parent=11 // pred_region
        _
      $region16: #{lstm_model_forward.3} parent=11 // pred_fallthru
        _
      // Predicated region
      $region17: #{lstm_model_forward.3} parent=11 // pred_check
        %p180 = pneg %p108
      $region18: #{lstm_model_forward.3} parent=11 // pred_check_branch
        %182 = sbr.rel (%p180) target = $region20
      $region19: #{lstm_model_forward.3} parent=11 // pred_region
        _
      $region20: #{lstm_model_forward.3} parent=11 // pred_fallthru
        _
    $region12: #{lstm_model_forward.3} parent=5 // pred_fallthru
      _
    %p183 = scmp.lt.s32.totalorder %s12, 2
    // Predicated region
    $region21: #{lstm_model_forward.3} parent=5 // pred_check
      %p184 = pneg %p183
    $region22: #{lstm_model_forward.3} parent=5 // pred_check_branch
      %186 = sbr.rel (%p184) target = $region24
    $region23: #{lstm_model_forward.3} parent=5 // pred_region
      // Predicated region
      $region25: #{lstm_model_forward.3} parent=23 // pred_check
        %p187 = pneg %p32
      $region26: #{lstm_model_forward.3} parent=23 // pred_check_branch
        %189 = sbr.rel (%p187) target = $region28
      $region27: #{lstm_model_forward.3} parent=23 // pred_region
        %s190 = smul.u32 16, %s12
        %p191 = scmp.lt.s32.totalorder %s190, 31
        %s192 = scalar_select %p191, %s190, 31
        %s193 = smul.addr %s192, 2
        %s194 = scalar_lea.vmem %s0, %s193
        %s195 = smul.u32 16, %s12
      $region28: #{lstm_model_forward.3} parent=23 // pred_fallthru
        _
      // Predicated region
      $region29: #{lstm_model_forward.3} parent=23 // pred_check
        %p196 = pneg %p60
      $region30: #{lstm_model_forward.3} parent=23 // pred_check_branch
        %198 = sbr.rel (%p196) target = $region32
      $region31: #{lstm_model_forward.3} parent=23 // pred_region
        %s199 = ssub.s32 1, %s12
        %s200 = smul.u32 16, %s199
        %p201 = scmp.lt.s32.totalorder %s200, 31
        %s202 = scalar_select %p201, %s200, 31
        %s203 = smul.addr %s202, 2
        %s204 = scalar_lea.vmem %s1, %s203
        %s205 = ssub.s32 1, %s12
        %s206 = smul.u32 16, %s205
      $region32: #{lstm_model_forward.3} parent=23 // pred_fallthru
        _
    $region24: #{lstm_model_forward.3} parent=5 // pred_fallthru
      _
    %p207 = scmp.le.s32.totalorder 1, %s12
    %p208 = scmp.lt.s32.totalorder %s12, 3
    %p209 = pnand %p207, %p208
    %p210 = pneg %p209
    // Predicated region
    $region33: #{lstm_model_forward.3} parent=5 // pred_check
      _
    $region34: #{lstm_model_forward.3} parent=5 // pred_check_branch
      %212 = sbr.rel (%p209) target = $region36
    $region35: #{lstm_model_forward.3} parent=5 // pred_region
      %s213 = ssub.s32 %s12, 1
      %s214 = smul.u32 16, %s17
      %p215 = scmp.lt.s32.totalorder %s214, 31
      %s216 = scalar_select %p215, %s214, 31
      %s217 = smul.addr %s216, 2
      %s218 = scalar_lea.vmem %s0, %s217
      %p219 = pneg %p38
      %p220 = pneg %p35
      %s221 = ssub.s32 1, %s17
      %s222 = smul.u32 16, %s221
      %p223 = scmp.lt.s32.totalorder %s222, 31
      %s224 = scalar_select %p223, %s222, 31
      %s225 = smul.addr %s224, 2
      %s226 = scalar_lea.vmem %s1, %s225
      %p227 = pneg %p66
      %p228 = pneg %p63
      %p229 = pneg %p87
      %p230 = pneg %p84
      %p231 = pneg %p108
      %p232 = pneg %p105
      %p233 = pneg %p134
      %p234 = pneg %p131
      %s235 = smul.u32 16, %s17
      %p236 = scmp.lt.s32.totalorder %s235, 31
      %s237 = scalar_select %p236, %s235, 31
      %s238 = smul.addr %s237, 2
      %s239 = scalar_lea.vmem %s4, %s238
      %p240 = pneg %p162
      %p241 = pneg %p159
      %s242 = ssub.s32 1, %s17
      %s243 = smul.u32 16, %s242
      %p244 = scmp.lt.s32.totalorder %s243, 31
      %s245 = scalar_select %p244, %s243, 31
      %s246 = smul.addr %s245, 2
      %s247 = scalar_lea.vmem %s5, %s246
      %s248 = smul.u32 16, %s17
      %p249 = scmp.lt.s32.totalorder %s248, 31
      %s250 = scalar_select %p249, %s248, 31
      %s251 = smul.addr %s250, 2
      %s252 = scalar_lea.vmem %s0, %s251
      %s253 = smul.u32 16, %s17
      %s254 = ssub.s32 1, %s17
      %s255 = smul.u32 16, %s254
      %p256 = scmp.lt.s32.totalorder %s255, 31
      %s257 = scalar_select %p256, %s255, 31
      %s258 = smul.addr %s257, 2
      %s259 = scalar_lea.vmem %s1, %s258
      %s260 = ssub.s32 1, %s17
      %s261 = smul.u32 16, %s260
      %s262 = smul.u32 16, %s17
      %p263 = scmp.lt.s32.totalorder %s262, 31
      %s264 = scalar_select %p263, %s262, 31
      %s265 = smul.addr %s264, 2
      %s266 = scalar_lea.vmem %s4, %s265
      %s267 = smul.u32 16, %s17
      %s268 = ssub.s32 1, %s17
      %s269 = smul.u32 16, %s268
      %p270 = scmp.lt.s32.totalorder %s269, 31
      %s271 = scalar_select %p270, %s269, 31
      %s272 = smul.addr %s271, 2
      %s273 = scalar_lea.vmem %s5, %s272
      %s274 = ssub.s32 1, %s17
      %s275 = smul.u32 16, %s274
      %p276 = scmp.eq.s32.totalorder %s17, 0
      // Predicated region
      $region37: #{lstm_model_forward.3} parent=35 // pred_check
        %p277 = pneg %p276
      $region38: #{lstm_model_forward.3} parent=35 // pred_check_branch
        %279 = sbr.rel (%p277) target = $region40
      $region39: #{lstm_model_forward.3} parent=35 // pred_region
        %vm280 = vcmask 254976
        %281 = vst.msk [vmem:[#allocation2] sm:$0x3] %vm280, 0.0
        %282 = vst.msk [vmem:[#allocation2 + $0x2] sm:$0x3] %vm280, 0.0
        %283 = vst.msk [vmem:[#allocation3] sm:$0x3] %vm280, 0.0
        %284 = vst.msk [vmem:[#allocation3 + $0x2] sm:$0x3] %vm280, 0.0
      $region40: #{lstm_model_forward.3} parent=35 // pred_fallthru
        _
      %v285 = vld [vmem:[%s252] sm:$0x3]
      %v286 = vld [vmem:[#allocation2] sm:$0x3]
      %v287 = vld [vmem:[%s2] sm:$0xff]
      %v288 = vld [vmem:[%s2 + $0x8] sm:$0xff]
      %v289 = vld [vmem:[%s2 + $0x10] sm:$0xff]
      %v290 = vld [vmem:[%s2 + $0x18] sm:$0xff]
      %vm291 = vcmask 261120
      %v293 = vsel %vm291, %v286, 0
      %295 = vmatprep.subr.mxu0 0.0
      %296 = vmatpush1.msra.mxu0 %v287
      %297 = vmatprep.subr.mxu0 0.0
      %298 = vmatpush1.msra.mxu0 %v288
      %299 = vmatprep.subr.mxu0 0.0
      %300 = vmatpush1.msra.mxu0 %v289
      %301 = vmatprep.subr.mxu0 0.0
      %302 = vmatpush1.msra.mxu0 %v290
      %303 = vmatprep.subr.mxu0 0.0
      %304 = vmatpush1.msra.mxu0 0.0
      %305 = vmatprep.subr.mxu0 0.0
      %306 = vmatpush1.msra.mxu0 0.0
      %307 = vmatprep.subr.mxu0 0.0
      %308 = vmatpush1.msra.mxu0 0.0
      %309 = vmatprep.subr.mxu0 0.0
      %310 = vmatpush1.msra.mxu0 0.0
      %311 = vmatprep.subr.mxu0 0.0
      %312 = vmatpush1.msra.mxu0 0.0
      %313 = vmatprep.subr.mxu0 0.0
      %314 = vmatpush1.msra.mxu0 0.0
      %315 = vmatprep.subr.mxu0 0.0
      %316 = vmatpush1.msra.mxu0 0.0
      %317 = vmatprep.subr.mxu0 0.0
      %318 = vmatpush1.msra.mxu0 0.0
      %319 = vmatprep.subr.mxu0 0.0
      %320 = vmatpush1.msra.mxu0 0.0
      %321 = vmatprep.subr.mxu0 0.0
      %322 = vmatpush1.msra.mxu0 0.0
      %323 = vmatprep.subr.mxu0 0.0
      %324 = vmatpush1.msra.mxu0 0.0
      %325 = vmatprep.subr.mxu0 0.0
      %326 = vmatpush1.msra.mxu0 0.0
      %327 = vmatprep.subr.mxu0 0.0
      %328 = vmatpush1.msra.mxu0 0.0
      %329 = vmatprep.subr.mxu0 0.0
      %330 = vmatpush1.msra.mxu0 0.0
      %331 = vmatprep.subr.mxu0 0.0
      %332 = vmatpush1.msra.mxu0 0.0
      %333 = vmatprep.subr.mxu0 0.0
      %334 = vmatpush1.msra.mxu0 0.0
      %335 = vmatprep.subr.mxu0 0.0
      %336 = vmatpush1.msra.mxu0 0.0
      %337 = vmatprep.subr.mxu0 0.0
      %338 = vmatpush1.msra.mxu0 0.0
      %339 = vmatprep.subr.mxu0 0.0
      %340 = vmatpush1.msra.mxu0 0.0
      %341 = vmatprep.subr.mxu0 0.0
      %342 = vmatpush1.msra.mxu0 0.0
      %343 = vmatprep.subr.mxu0 0.0
      %344 = vmatpush1.msra.mxu0 0.0
      %345 = vmatprep.subr.mxu0 0.0
      %346 = vmatpush1.msra.mxu0 0.0
      %347 = vmatprep.subr.mxu0 0.0
      %348 = vmatpush1.msra.mxu0 0.0
      %349 = vmatprep.subr.mxu0 0.0
      %350 = vmatpush1.msra.mxu0 0.0
      %351 = vmatprep.subr.mxu0 0.0
      %352 = vmatpush1.msra.mxu0 0.0
      %353 = vmatprep.subr.mxu0 0.0
      %354 = vmatpush1.msra.mxu0 0.0
      %355 = vmatprep.subr.mxu0 0.0
      %356 = vmatpush1.msra.mxu0 0.0
      %357 = vmatprep.subr.mxu0 0.0
      %358 = vmatpush1.msra.mxu0 0.0
      %359 = vmatprep.mubr.f32.mxu0 0.0
      %360 = vmatmul.mubr.f32.gmra.mrb[0].mxu0 %v293
      %v361 = vpop.f32.mrb[0].mxu0
      %v362 = vadd.f32 0.0, %v361
      %v363 = vpop.f32.mrb[0].mxu0
      %364 = vdwg.mxu0
      %v365 = vadd.f32 %v285, %v362
      %s366 = scalar_lea.vmem %s259, 30
      %v367 = vld [vmem:[%s366] sm:$0x3]
      %s368 = scalar_lea.vmem [#allocation2], 2
      %v369 = vld [vmem:[%s368] sm:$0x3]
      %v370 = vld [vmem:[%s3] sm:$0xff]
      %v371 = vld [vmem:[%s3 + $0x8] sm:$0xff]
      %v372 = vld [vmem:[%s3 + $0x10] sm:$0xff]
      %v373 = vld [vmem:[%s3 + $0x18] sm:$0xff]
      %v375 = vsel %vm291, %v369, 0
      %377 = vmatprep.subr.mxu0 0.0
      %378 = vmatpush1.msra.mxu0 %v370
      %379 = vmatprep.subr.mxu0 0.0
      %380 = vmatpush1.msra.mxu0 %v371
      %381 = vmatprep.subr.mxu0 0.0
      %382 = vmatpush1.msra.mxu0 %v372
      %383 = vmatprep.subr.mxu0 0.0
      %384 = vmatpush1.msra.mxu0 %v373
      %385 = vmatprep.subr.mxu0 0.0
      %386 = vmatpush1.msra.mxu0 0.0
      %387 = vmatprep.subr.mxu0 0.0
      %388 = vmatpush1.msra.mxu0 0.0
      %389 = vmatprep.subr.mxu0 0.0
      %390 = vmatpush1.msra.mxu0 0.0
      %391 = vmatprep.subr.mxu0 0.0
      %392 = vmatpush1.msra.mxu0 0.0
      %393 = vmatprep.subr.mxu0 0.0
      %394 = vmatpush1.msra.mxu0 0.0
      %395 = vmatprep.subr.mxu0 0.0
      %396 = vmatpush1.msra.mxu0 0.0
      %397 = vmatprep.subr.mxu0 0.0
      %398 = vmatpush1.msra.mxu0 0.0
      %399 = vmatprep.subr.mxu0 0.0
      %400 = vmatpush1.msra.mxu0 0.0
      %401 = vmatprep.subr.mxu0 0.0
      %402 = vmatpush1.msra.mxu0 0.0
      %403 = vmatprep.subr.mxu0 0.0
      %404 = vmatpush1.msra.mxu0 0.0
      %405 = vmatprep.subr.mxu0 0.0
      %406 = vmatpush1.msra.mxu0 0.0
      %407 = vmatprep.subr.mxu0 0.0
      %408 = vmatpush1.msra.mxu0 0.0
      %409 = vmatprep.subr.mxu0 0.0
      %410 = vmatpush1.msra.mxu0 0.0
      %411 = vmatprep.subr.mxu0 0.0
      %412 = vmatpush1.msra.mxu0 0.0
      %413 = vmatprep.subr.mxu0 0.0
      %414 = vmatpush1.msra.mxu0 0.0
      %415 = vmatprep.subr.mxu0 0.0
      %416 = vmatpush1.msra.mxu0 0.0
      %417 = vmatprep.subr.mxu0 0.0
      %418 = vmatpush1.msra.mxu0 0.0
      %419 = vmatprep.subr.mxu0 0.0
      %420 = vmatpush1.msra.mxu0 0.0
      %421 = vmatprep.subr.mxu0 0.0
      %422 = vmatpush1.msra.mxu0 0.0
      %423 = vmatprep.subr.mxu0 0.0
      %424 = vmatpush1.msra.mxu0 0.0
      %425 = vmatprep.subr.mxu0 0.0
      %426 = vmatpush1.msra.mxu0 0.0
      %427 = vmatprep.subr.mxu0 0.0
      %428 = vmatpush1.msra.mxu0 0.0
      %429 = vmatprep.subr.mxu0 0.0
      %430 = vmatpush1.msra.mxu0 0.0
      %431 = vmatprep.subr.mxu0 0.0
      %432 = vmatpush1.msra.mxu0 0.0
      %433 = vmatprep.subr.mxu0 0.0
      %434 = vmatpush1.msra.mxu0 0.0
      %435 = vmatprep.subr.mxu0 0.0
      %436 = vmatpush1.msra.mxu0 0.0
      %437 = vmatprep.subr.mxu0 0.0
      %438 = vmatpush1.msra.mxu0 0.0
      %439 = vmatprep.subr.mxu0 0.0
      %440 = vmatpush1.msra.mxu0 0.0
      %441 = vmatprep.mubr.f32.mxu0 0.0
      %442 = vmatmul.mubr.f32.gmra.mrb[0].mxu0 %v375
      %v443 = vpop.f32.mrb[0].mxu0
      %v444 = vadd.f32 0.0, %v443
      %v445 = vpop.f32.mrb[0].mxu0
      %446 = vdwg.mxu0
      %v447 = vadd.f32 %v367, %v444
      %v448 = vxor.u32 %v365, 2147483648
      %v449 = vxor.u32 %v447, 2147483648
      %v450 = vmul.f32 %v448, 1.442695
      %v451 = vpow.pop %v450
      %v452 = vmul.f32 %v449, 1.442695
      %v453 = vpow.pop %v452
      %v454 = vadd.f32 %v451, 1.0
      %v455 = vadd.f32 %v453, 1.0
      %v456 = vrcp.pop %v454
      %v457 = vmul.f32 1.0, %v456
      %v458 = vrcp.pop %v455
      %v459 = vmul.f32 1.0, %v458
      %v460 = vtanh.pop %v365
      %v461 = vtanh.pop %v447
      %v462 = vld [vmem:[#allocation3] sm:$0x3]
      %v463 = vld [vmem:[#allocation3 + $0x2] sm:$0x3]
      %466 = vrot.lane.b32.xlu0 %v462, 32
      %v467 = vpop.permute.xlu0 %466
      %468 = vrot.lane.b32.xlu0 %v463, 32
      %v469 = vpop.permute.xlu0 %468
      %v472 = vmul.f32 %v457, %v467
      %v473 = vmul.f32 %v459, %v469
      %476 = vrot.lane.b32.xlu0 %v460, 64
      %v477 = vpop.permute.xlu0 %476
      %478 = vrot.lane.b32.xlu0 %v461, 64
      %v479 = vpop.permute.xlu0 %478
      %v482 = vmul.f32 %v457, %v477
      %v483 = vmul.f32 %v459, %v479
      %486 = vrot.lane.b32.xlu0 %v482, 32
      %v487 = vpop.permute.xlu0 %486
      %488 = vrot.lane.b32.xlu0 %v483, 32
      %v489 = vpop.permute.xlu0 %488
      %v492 = vadd.f32 %v472, %v487
      %v493 = vadd.f32 %v473, %v489
      %v494 = vtanh.pop %v492
      %v495 = vtanh.pop %v493
      %498 = vrot.lane.b32.xlu0 %v494, 64
      %v499 = vpop.permute.xlu0 %498
      %500 = vrot.lane.b32.xlu0 %v495, 64
      %v501 = vpop.permute.xlu0 %500
      %v504 = vmul.f32 %v457, %v499
      %v505 = vmul.f32 %v459, %v501
      %508 = vrot.lane.b32.xlu0 %v504, 32
      %v509 = vpop.permute.xlu0 %508
      %510 = vrot.lane.b32.xlu0 %v505, 32
      %v511 = vpop.permute.xlu0 %510
      %vm514 = vcmask 254976
      %515 = vst.msk [vmem:[#allocation2] sm:$0x3] %vm514, %v509
      %516 = vst.msk [vmem:[#allocation2 + $0x2] sm:$0x3] %vm514, %v511
      %519 = vrot.lane.b32.xlu0 %v492, 96
      %v520 = vpop.permute.xlu0 %519
      %521 = vrot.lane.b32.xlu0 %v493, 96
      %v522 = vpop.permute.xlu0 %521
      %525 = vst.msk [vmem:[#allocation3] sm:$0x3] %vm514, %v520
      %526 = vst.msk [vmem:[#allocation3 + $0x2] sm:$0x3] %vm514, %v522
      %527 = vst.msk [vmem:[%s266] sm:$0x3] %vm514, %v509
      %s528 = scalar_lea.vmem %s273, 30
      %529 = vst.msk [vmem:[%s528] sm:$0x3] %vm514, %v511
      %s530 = scalar_lea.vmem %s252, 2
      %v531 = vld [vmem:[%s530] sm:$0x3]
      %v532 = vld [vmem:[#allocation2] sm:$0x3]
      %v533 = vld [vmem:[%s2] sm:$0xff]
      %v534 = vld [vmem:[%s2 + $0x8] sm:$0xff]
      %v535 = vld [vmem:[%s2 + $0x10] sm:$0xff]
      %v536 = vld [vmem:[%s2 + $0x18] sm:$0xff]
      %v538 = vsel %vm291, %v532, 0
      %540 = vmatprep.subr.mxu0 0.0
      %541 = vmatpush1.msra.mxu0 %v533
      %542 = vmatprep.subr.mxu0 0.0
      %543 = vmatpush1.msra.mxu0 %v534
      %544 = vmatprep.subr.mxu0 0.0
      %545 = vmatpush1.msra.mxu0 %v535
      %546 = vmatprep.subr.mxu0 0.0
      %547 = vmatpush1.msra.mxu0 %v536
      %548 = vmatprep.subr.mxu0 0.0
      %549 = vmatpush1.msra.mxu0 0.0
      %550 = vmatprep.subr.mxu0 0.0
      %551 = vmatpush1.msra.mxu0 0.0
      %552 = vmatprep.subr.mxu0 0.0
      %553 = vmatpush1.msra.mxu0 0.0
      %554 = vmatprep.subr.mxu0 0.0
      %555 = vmatpush1.msra.mxu0 0.0
      %556 = vmatprep.subr.mxu0 0.0
      %557 = vmatpush1.msra.mxu0 0.0
      %558 = vmatprep.subr.mxu0 0.0
      %559 = vmatpush1.msra.mxu0 0.0
      %560 = vmatprep.subr.mxu0 0.0
      %561 = vmatpush1.msra.mxu0 0.0
      %562 = vmatprep.subr.mxu0 0.0
      %563 = vmatpush1.msra.mxu0 0.0
      %564 = vmatprep.subr.mxu0 0.0
      %565 = vmatpush1.msra.mxu0 0.0
      %566 = vmatprep.subr.mxu0 0.0
      %567 = vmatpush1.msra.mxu0 0.0
      %568 = vmatprep.subr.mxu0 0.0
      %569 = vmatpush1.msra.mxu0 0.0
      %570 = vmatprep.subr.mxu0 0.0
      %571 = vmatpush1.msra.mxu0 0.0
      %572 = vmatprep.subr.mxu0 0.0
      %573 = vmatpush1.msra.mxu0 0.0
      %574 = vmatprep.subr.mxu0 0.0
      %575 = vmatpush1.msra.mxu0 0.0
      %576 = vmatprep.subr.mxu0 0.0
      %577 = vmatpush1.msra.mxu0 0.0
      %578 = vmatprep.subr.mxu0 0.0
      %579 = vmatpush1.msra.mxu0 0.0
      %580 = vmatprep.subr.mxu0 0.0
      %581 = vmatpush1.msra.mxu0 0.0
      %582 = vmatprep.subr.mxu0 0.0
      %583 = vmatpush1.msra.mxu0 0.0
      %584 = vmatprep.subr.mxu0 0.0
      %585 = vmatpush1.msra.mxu0 0.0
      %586 = vmatprep.subr.mxu0 0.0
      %587 = vmatpush1.msra.mxu0 0.0
      %588 = vmatprep.subr.mxu0 0.0
      %589 = vmatpush1.msra.mxu0 0.0
      %590 = vmatprep.subr.mxu0 0.0
      %591 = vmatpush1.msra.mxu0 0.0
      %592 = vmatprep.subr.mxu0 0.0
      %593 = vmatpush1.msra.mxu0 0.0
      %594 = vmatprep.subr.mxu0 0.0
      %595 = vmatpush1.msra.mxu0 0.0
      %596 = vmatprep.subr.mxu0 0.0
      %597 = vmatpush1.msra.mxu0 0.0
      %598 = vmatprep.subr.mxu0 0.0
      %599 = vmatpush1.msra.mxu0 0.0
      %600 = vmatprep.subr.mxu0 0.0
      %601 = vmatpush1.msra.mxu0 0.0
      %602 = vmatprep.subr.mxu0 0.0
      %603 = vmatpush1.msra.mxu0 0.0
      %604 = vmatprep.mubr.f32.mxu0 0.0
      %605 = vmatmul.mubr.f32.gmra.mrb[0].mxu0 %v538
      %v606 = vpop.f32.mrb[0].mxu0
      %v607 = vadd.f32 0.0, %v606
      %v608 = vpop.f32.mrb[0].mxu0
      %609 = vdwg.mxu0
      %v610 = vadd.f32 %v531, %v607
      %s611 = scalar_lea.vmem %s259, 28
      %v612 = vld [vmem:[%s611] sm:$0x3]
      %v613 = vld [vmem:[%s368] sm:$0x3]
      %v614 = vld [vmem:[%s3] sm:$0xff]
      %v615 = vld [vmem:[%s3 + $0x8] sm:$0xff]
      %v616 = vld [vmem:[%s3 + $0x10] sm:$0xff]
      %v617 = vld [vmem:[%s3 + $0x18] sm:$0xff]
      %v619 = vsel %vm291, %v613, 0
      %621 = vmatprep.subr.mxu0 0.0
      %622 = vmatpush1.msra.mxu0 %v614
      %623 = vmatprep.subr.mxu0 0.0
      %624 = vmatpush1.msra.mxu0 %v615
      %625 = vmatprep.subr.mxu0 0.0
      %626 = vmatpush1.msra.mxu0 %v616
      %627 = vmatprep.subr.mxu0 0.0
      %628 = vmatpush1.msra.mxu0 %v617
      %629 = vmatprep.subr.mxu0 0.0
      %630 = vmatpush1.msra.mxu0 0.0
      %631 = vmatprep.subr.mxu0 0.0
      %632 = vmatpush1.msra.mxu0 0.0
      %633 = vmatprep.subr.mxu0 0.0
      %634 = vmatpush1.msra.mxu0 0.0
      %635 = vmatprep.subr.mxu0 0.0
      %636 = vmatpush1.msra.mxu0 0.0
      %637 = vmatprep.subr.mxu0 0.0
      %638 = vmatpush1.msra.mxu0 0.0
      %639 = vmatprep.subr.mxu0 0.0
      %640 = vmatpush1.msra.mxu0 0.0
      %641 = vmatprep.subr.mxu0 0.0
      %642 = vmatpush1.msra.mxu0 0.0
      %643 = vmatprep.subr.mxu0 0.0
      %644 = vmatpush1.msra.mxu0 0.0
      %645 = vmatprep.subr.mxu0 0.0
      %646 = vmatpush1.msra.mxu0 0.0
      %647 = vmatprep.subr.mxu0 0.0
      %648 = vmatpush1.msra.mxu0 0.0
      %649 = vmatprep.subr.mxu0 0.0
      %650 = vmatpush1.msra.mxu0 0.0
      %651 = vmatprep.subr.mxu0 0.0
      %652 = vmatpush1.msra.mxu0 0.0
      %653 = vmatprep.subr.mxu0 0.0
      %654 = vmatpush1.msra.mxu0 0.0
      %655 = vmatprep.subr.mxu0 0.0
      %656 = vmatpush1.msra.mxu0 0.0
      %657 = vmatprep.subr.mxu0 0.0
      %658 = vmatpush1.msra.mxu0 0.0
      %659 = vmatprep.subr.mxu0 0.0
      %660 = vmatpush1.msra.mxu0 0.0
      %661 = vmatprep.subr.mxu0 0.0
      %662 = vmatpush1.msra.mxu0 0.0
      %663 = vmatprep.subr.mxu0 0.0
      %664 = vmatpush1.msra.mxu0 0.0
      %665 = vmatprep.subr.mxu0 0.0
      %666 = vmatpush1.msra.mxu0 0.0
      %667 = vmatprep.subr.mxu0 0.0
      %668 = vmatpush1.msra.mxu0 0.0
      %669 = vmatprep.subr.mxu0 0.0
      %670 = vmatpush1.msra.mxu0 0.0
      %671 = vmatprep.subr.mxu0 0.0
      %672 = vmatpush1.msra.mxu0 0.0
      %673 = vmatprep.subr.mxu0 0.0
      %674 = vmatpush1.msra.mxu0 0.0
      %675 = vmatprep.subr.mxu0 0.0
      %676 = vmatpush1.msra.mxu0 0.0
      %677 = vmatprep.subr.mxu0 0.0
      %678 = vmatpush1.msra.mxu0 0.0
      %679 = vmatprep.subr.mxu0 0.0
      %680 = vmatpush1.msra.mxu0 0.0
      %681 = vmatprep.subr.mxu0 0.0
      %682 = vmatpush1.msra.mxu0 0.0
      %683 = vmatprep.subr.mxu0 0.0
      %684 = vmatpush1.msra.mxu0 0.0
      %685 = vmatprep.mubr.f32.mxu0 0.0
      %686 = vmatmul.mubr.f32.gmra.mrb[0].mxu0 %v619
      %v687 = vpop.f32.mrb[0].mxu0
      %v688 = vadd.f32 0.0, %v687
      %v689 = vpop.f32.mrb[0].mxu0
      %690 = vdwg.mxu0
      %v691 = vadd.f32 %v612, %v688
      %v692 = vxor.u32 %v610, 2147483648
      %v693 = vxor.u32 %v691, 2147483648
      %v694 = vmul.f32 %v692, 1.442695
      %v695 = vpow.pop %v694
      %v696 = vmul.f32 %v693, 1.442695
      %v697 = vpow.pop %v696
      %v698 = vadd.f32 %v695, 1.0
      %v699 = vadd.f32 %v697, 1.0
      %v700 = vrcp.pop %v698
      %v701 = vmul.f32 1.0, %v700
      %v702 = vrcp.pop %v699
      %v703 = vmul.f32 1.0, %v702
      %v704 = vtanh.pop %v610
      %v705 = vtanh.pop %v691
      %v706 = vld [vmem:[#allocation3] sm:$0x3]
      %v707 = vld [vmem:[#allocation3 + $0x2] sm:$0x3]
      %710 = vrot.lane.b32.xlu0 %v706, 32
      %v711 = vpop.permute.xlu0 %710
      %712 = vrot.lane.b32.xlu0 %v707, 32
      %v713 = vpop.permute.xlu0 %712
      %v716 = vmul.f32 %v701, %v711
      %v717 = vmul.f32 %v703, %v713
      %720 = vrot.lane.b32.xlu0 %v704, 64
      %v721 = vpop.permute.xlu0 %720
      %722 = vrot.lane.b32.xlu0 %v705, 64
      %v723 = vpop.permute.xlu0 %722
      %v726 = vmul.f32 %v701, %v721
      %v727 = vmul.f32 %v703, %v723
      %730 = vrot.lane.b32.xlu0 %v726, 32
      %v731 = vpop.permute.xlu0 %730
      %732 = vrot.lane.b32.xlu0 %v727, 32
      %v733 = vpop.permute.xlu0 %732
      %v736 = vadd.f32 %v716, %v731
      %v737 = vadd.f32 %v717, %v733
      %v738 = vtanh.pop %v736
      %v739 = vtanh.pop %v737
      %742 = vrot.lane.b32.xlu0 %v738, 64
      %v743 = vpop.permute.xlu0 %742
      %744 = vrot.lane.b32.xlu0 %v739, 64
      %v745 = vpop.permute.xlu0 %744
      %v748 = vmul.f32 %v701, %v743
      %v749 = vmul.f32 %v703, %v745
      %752 = vrot.lane.b32.xlu0 %v748, 32
      %v753 = vpop.permute.xlu0 %752
      %754 = vrot.lane.b32.xlu0 %v749, 32
      %v755 = vpop.permute.xlu0 %754
      %758 = vst.msk [vmem:[#allocation2] sm:$0x3] %vm514, %v753
      %759 = vst.msk [vmem:[#allocation2 + $0x2] sm:$0x3] %vm514, %v755
      %762 = vrot.lane.b32.xlu0 %v736, 96
      %v763 = vpop.permute.xlu0 %762
      %764 = vrot.lane.b32.xlu0 %v737, 96
      %v765 = vpop.permute.xlu0 %764
      %768 = vst.msk [vmem:[#allocation3] sm:$0x3] %vm514, %v763
      %769 = vst.msk [vmem:[#allocation3 + $0x2] sm:$0x3] %vm514, %v765
      %s770 = scalar_lea.vmem %s266, 2
      %771 = vst.msk [vmem:[%s770] sm:$0x3] %vm514, %v753
      %s772 = scalar_lea.vmem %s273, 28
      %773 = vst.msk [vmem:[%s772] sm:$0x3] %vm514, %v755
      %s774 = scalar_lea.vmem %s252, 4
      %v775 = vld [vmem:[%s774] sm:$0x3]
      %v776 = vld [vmem:[#allocation2] sm:$0x3]
      %v777 = vld [vmem:[%s2] sm:$0xff]
      %v778 = vld [vmem:[%s2 + $0x8] sm:$0xff]
      %v779 = vld [vmem:[%s2 + $0x10] sm:$0xff]
      %v780 = vld [vmem:[%s2 + $0x18] sm:$0xff]
      %v782 = vsel %vm291, %v776, 0
      %784 = vmatprep.subr.mxu0 0.0
      %785 = vmatpush1.msra.mxu0 %v777
      %786 = vmatprep.subr.mxu0 0.0
      %787 = vmatpush1.msra.mxu0 %v778
      %788 = vmatprep.subr.mxu0 0.0
      %789 = vmatpush1.msra.mxu0 %v779
      %790 = vmatprep.subr.mxu0 0.0
      %791 = vmatpush1.msra.mxu0 %v780
      %792 = vmatprep.subr.mxu0 0.0
      %793 = vmatpush1.msra.mxu0 0.0
      %794 = vmatprep.subr.mxu0 0.0
      %795 = vmatpush1.msra.mxu0 0.0
      %796 = vmatprep.subr.mxu0 0.0
      %797 = vmatpush1.msra.mxu0 0.0
      %798 = vmatprep.subr.mxu0 0.0
      %799 = vmatpush1.msra.mxu0 0.0
      %800 = vmatprep.subr.mxu0 0.0
      %801 = vmatpush1.msra.mxu0 0.0
      %802 = vmatprep.subr.mxu0 0.0
      %803 = vmatpush1.msra.mxu0 0.0
      %804 = vmatprep.subr.mxu0 0.0
      %805 = vmatpush1.msra.mxu0 0.0
      %806 = vmatprep.subr.mxu0 0.0
      %807 = vmatpush1.msra.mxu0 0.0
      %808 = vmatprep.subr.mxu0 0.0
      %809 = vmatpush1.msra.mxu0 0.0
      %810 = vmatprep.subr.mxu0 0.0
      %811 = vmatpush1.msra.mxu0 0.0
      %812 = vmatprep.subr.mxu0 0.0
      %813 = vmatpush1.msra.mxu0 0.0
      %814 = vmatprep.subr.mxu0 0.0
      %815 = vmatpush1.msra.mxu0 0.0
      %816 = vmatprep.subr.mxu0 0.0
      %817 = vmatpush1.msra.mxu0 0.0
      %818 = vmatprep.subr.mxu0 0.0
      %819 = vmatpush1.msra.mxu0 0.0
      %820 = vmatprep.subr.mxu0 0.0
      %821 = vmatpush1.msra.mxu0 0.0
      %822 = vmatprep.subr.mxu0 0.0
      %823 = vmatpush1.msra.mxu0 0.0
      %824 = vmatprep.subr.mxu0 0.0
      %825 = vmatpush1.msra.mxu0 0.0
      %826 = vmatprep.subr.mxu0 0.0
      %827 = vmatpush1.msra.mxu0 0.0
      %828 = vmatprep.subr.mxu0 0.0
      %829 = vmatpush1.msra.mxu0 0.0
      %830 = vmatprep.subr.mxu0 0.0
      %831 = vmatpush1.msra.mxu0 0.0
      %832 = vmatprep.subr.mxu0 0.0
      %833 = vmatpush1.msra.mxu0 0.0
      %834 = vmatprep.subr.mxu0 0.0
      %835 = vmatpush1.msra.mxu0 0.0
      %836 = vmatprep.subr.mxu0 0.0
      %837 = vmatpush1.msra.mxu0 0.0
      %838 = vmatprep.subr.mxu0 0.0
      %839 = vmatpush1.msra.mxu0 0.0
      %840 = vmatprep.subr.mxu0 0.0
      %841 = vmatpush1.msra.mxu0 0.0
      %842 = vmatprep.subr.mxu0 0.0
      %843 = vmatpush1.msra.mxu0 0.0
      %844 = vmatprep.subr.mxu0 0.0
      %845 = vmatpush1.msra.mxu0 0.0
      %846 = vmatprep.subr.mxu0 0.0
      %847 = vmatpush1.msra.mxu0 0.0
      %848 = vmatprep.mubr.f32.mxu0 0.0
      %849 = vmatmul.mubr.f32.gmra.mrb[0].mxu0 %v782
      %v850 = vpop.f32.mrb[0].mxu0
      %v851 = vadd.f32 0.0, %v850
      %v852 = vpop.f32.mrb[0].mxu0
      %853 = vdwg.mxu0
      %v854 = vadd.f32 %v775, %v851
      %s855 = scalar_lea.vmem %s259, 26
      %v856 = vld [vmem:[%s855] sm:$0x3]
      %v857 = vld [vmem:[%s368] sm:$0x3]
      %v858 = vld [vmem:[%s3] sm:$0xff]
      %v859 = vld [vmem:[%s3 + $0x8] sm:$0xff]
      %v860 = vld [vmem:[%s3 + $0x10] sm:$0xff]
      %v861 = vld [vmem:[%s3 + $0x18] sm:$0xff]
      %v863 = vsel %vm291, %v857, 0
      %865 = vmatprep.subr.mxu0 0.0
      %866 = vmatpush1.msra.mxu0 %v858
      %867 = vmatprep.subr.mxu0 0.0
      %868 = vmatpush1.msra.mxu0 %v859
      %869 = vmatprep.subr.mxu0 0.0
      %870 = vmatpush1.msra.mxu0 %v860
      %871 = vmatprep.subr.mxu0 0.0
      %872 = vmatpush1.msra.mxu0 %v861
      %873 = vmatprep.subr.mxu0 0.0
      %874 = vmatpush1.msra.mxu0 0.0
      %875 = vmatprep.subr.mxu0 0.0
      %876 = vmatpush1.msra.mxu0 0.0
      %877 = vmatprep.subr.mxu0 0.0
      %878 = vmatpush1.msra.mxu0 0.0
      %879 = vmatprep.subr.mxu0 0.0
      %880 = vmatpush1.msra.mxu0 0.0
      %881 = vmatprep.subr.mxu0 0.0
      %882 = vmatpush1.msra.mxu0 0.0
      %883 = vmatprep.subr.mxu0 0.0
      %884 = vmatpush1.msra.mxu0 0.0
      %885 = vmatprep.subr.mxu0 0.0
      %886 = vmatpush1.msra.mxu0 0.0
      %887 = vmatprep.subr.mxu0 0.0
      %888 = vmatpush1.msra.mxu0 0.0
      %889 = vmatprep.subr.mxu0 0.0
      %890 = vmatpush1.msra.mxu0 0.0
      %891 = vmatprep.subr.mxu0 0.0
      %892 = vmatpush1.msra.mxu0 0.0
      %893 = vmatprep.subr.mxu0 0.0
      %894 = vmatpush1.msra.mxu0 0.0
      %895 = vmatprep.subr.mxu0 0.0
      %896 = vmatpush1.msra.mxu0 0.0
      %897 = vmatprep.subr.mxu0 0.0
      %898 = vmatpush1.msra.mxu0 0.0
      %899 = vmatprep.subr.mxu0 0.0
      %900 = vmatpush1.msra.mxu0 0.0
      %901 = vmatprep.subr.mxu0 0.0
      %902 = vmatpush1.msra.mxu0 0.0
      %903 = vmatprep.subr.mxu0 0.0
      %904 = vmatpush1.msra.mxu0 0.0
      %905 = vmatprep.subr.mxu0 0.0
      %906 = vmatpush1.msra.mxu0 0.0
      %907 = vmatprep.subr.mxu0 0.0
      %908 = vmatpush1.msra.mxu0 0.0
      %909 = vmatprep.subr.mxu0 0.0
      %910 = vmatpush1.msra.mxu0 0.0
      %911 = vmatprep.subr.mxu0 0.0
      %912 = vmatpush1.msra.mxu0 0.0
      %913 = vmatprep.subr.mxu0 0.0
      %914 = vmatpush1.msra.mxu0 0.0
      %915 = vmatprep.subr.mxu0 0.0
      %916 = vmatpush1.msra.mxu0 0.0
      %917 = vmatprep.subr.mxu0 0.0
      %918 = vmatpush1.msra.mxu0 0.0
      %919 = vmatprep.subr.mxu0 0.0
      %920 = vmatpush1.msra.mxu0 0.0
      %921 = vmatprep.subr.mxu0 0.0
      %922 = vmatpush1.msra.mxu0 0.0
      %923 = vmatprep.subr.mxu0 0.0
      %924 = vmatpush1.msra.mxu0 0.0
      %925 = vmatprep.subr.mxu0 0.0
      %926 = vmatpush1.msra.mxu0 0.0
      %927 = vmatprep.subr.mxu0 0.0
      %928 = vmatpush1.msra.mxu0 0.0
      %929 = vmatprep.mubr.f32.mxu0 0.0
      %930 = vmatmul.mubr.f32.gmra.mrb[0].mxu0 %v863
      %v931 = vpop.f32.mrb[0].mxu0
      %v932 = vadd.f32 0.0, %v931
      %v933 = vpop.f32.mrb[0].mxu0
      %934 = vdwg.mxu0
      %v935 = vadd.f32 %v856, %v932
      %v936 = vxor.u32 %v854, 2147483648
      %v937 = vxor.u32 %v935, 2147483648
      %v938 = vmul.f32 %v936, 1.442695
      %v939 = vpow.pop %v938
      %v940 = vmul.f32 %v937, 1.442695
      %v941 = vpow.pop %v940
      %v942 = vadd.f32 %v939, 1.0
      %v943 = vadd.f32 %v941, 1.0
      %v944 = vrcp.pop %v942
      %v945 = vmul.f32 1.0, %v944
      %v946 = vrcp.pop %v943
      %v947 = vmul.f32 1.0, %v946
      %v948 = vtanh.pop %v854
      %v949 = vtanh.pop %v935
      %v950 = vld [vmem:[#allocation3] sm:$0x3]
      %v951 = vld [vmem:[#allocation3 + $0x2] sm:$0x3]
      %954 = vrot.lane.b32.xlu0 %v950, 32
      %v955 = vpop.permute.xlu0 %954
      %956 = vrot.lane.b32.xlu0 %v951, 32
      %v957 = vpop.permute.xlu0 %956
      %v960 = vmul.f32 %v945, %v955
      %v961 = vmul.f32 %v947, %v957
      %964 = vrot.lane.b32.xlu0 %v948, 64
      %v965 = vpop.permute.xlu0 %964
      %966 = vrot.lane.b32.xlu0 %v949, 64
      %v967 = vpop.permute.xlu0 %966
      %v970 = vmul.f32 %v945, %v965
      %v971 = vmul.f32 %v947, %v967
      %974 = vrot.lane.b32.xlu0 %v970, 32
      %v975 = vpop.permute.xlu0 %974
      %976 = vrot.lane.b32.xlu0 %v971, 32
      %v977 = vpop.permute.xlu0 %976
      %v980 = vadd.f32 %v960, %v975
      %v981 = vadd.f32 %v961, %v977
      %v982 = vtanh.pop %v980
      %v983 = vtanh.pop %v981
      %986 = vrot.lane.b32.xlu0 %v982, 64
      %v987 = vpop.permute.xlu0 %986
      %988 = vrot.lane.b32.xlu0 %v983, 64
      %v989 = vpop.permute.xlu0 %988
      %v992 = vmul.f32 %v945, %v987
      %v993 = vmul.f32 %v947, %v989
      %996 = vrot.lane.b32.xlu0 %v992, 32
      %v997 = vpop.permute.xlu0 %996
      %998 = vrot.lane.b32.xlu0 %v993, 32
      %v999 = vpop.permute.xlu0 %998
      %1002 = vst.msk [vmem:[#allocation2] sm:$0x3] %vm514, %v997
      %1003 = vst.msk [vmem:[#allocation2 + $0x2] sm:$0x3] %vm514, %v999
      %1006 = vrot.lane.b32.xlu0 %v980, 96
      %v1007 = vpop.permute.xlu0 %1006
      %1008 = vrot.lane.b32.xlu0 %v981, 96
      %v1009 = vpop.permute.xlu0 %1008
      %1012 = vst.msk [vmem:[#allocation3] sm:$0x3] %vm514, %v1007
      %1013 = vst.msk [vmem:[#allocation3 + $0x2] sm:$0x3] %vm514, %v1009
      %s1014 = scalar_lea.vmem %s266, 4
      %1015 = vst.msk [vmem:[%s1014] sm:$0x3] %vm514, %v997
      %s1016 = scalar_lea.vmem %s273, 26
      %1017 = vst.msk [vmem:[%s1016] sm:$0x3] %vm514, %v999
      %s1018 = scalar_lea.vmem %s252, 6
      %v1019 = vld [vmem:[%s1018] sm:$0x3]
      %v1020 = vld [vmem:[#allocation2] sm:$0x3]
      %v1021 = vld [vmem:[%s2] sm:$0xff]
      %v1022 = vld [vmem:[%s2 + $0x8] sm:$0xff]
      %v1023 = vld [vmem:[%s2 + $0x10] sm:$0xff]
      %v1024 = vld [vmem:[%s2 + $0x18] sm:$0xff]
      %v1026 = vsel %vm291, %v1020, 0
      %1028 = vmatprep.subr.mxu0 0.0
      %1029 = vmatpush1.msra.mxu0 %v1021
      %1030 = vmatprep.subr.mxu0 0.0
      %1031 = vmatpush1.msra.mxu0 %v1022
      %1032 = vmatprep.subr.mxu0 0.0
      %1033 = vmatpush1.msra.mxu0 %v1023
      %1034 = vmatprep.subr.mxu0 0.0
      %1035 = vmatpush1.msra.mxu0 %v1024
      %1036 = vmatprep.subr.mxu0 0.0
      %1037 = vmatpush1.msra.mxu0 0.0
      %1038 = vmatprep.subr.mxu0 0.0
      %1039 = vmatpush1.msra.mxu0 0.0
      %1040 = vmatprep.subr.mxu0 0.0
      %1041 = vmatpush1.msra.mxu0 0.0
      %1042 = vmatprep.subr.mxu0 0.0
      %1043 = vmatpush1.msra.mxu0 0.0
      %1044 = vmatprep.subr.mxu0 0.0
      %1045 = vmatpush1.msra.mxu0 0.0
      %1046 = vmatprep.subr.mxu0 0.0
      %1047 = vmatpush1.msra.mxu0 0.0
      %1048 = vmatprep.subr.mxu0 0.0
      %1049 = vmatpush1.msra.mxu0 0.0
      %1050 = vmatprep.subr.mxu0 0.0
      %1051 = vmatpush1.msra.mxu0 0.0
      %1052 = vmatprep.subr.mxu0 0.0
      %1053 = vmatpush1.msra.mxu0 0.0
      %1054 = vmatprep.subr.mxu0 0.0
      %1055 = vmatpush1.msra.mxu0 0.0
      %1056 = vmatprep.subr.mxu0 0.0
      %1057 = vmatpush1.msra.mxu0 0.0
      %1058 = vmatprep.subr.mxu0 0.0
      %1059 = vmatpush1.msra.mxu0 0.0
      %1060 = vmatprep.subr.mxu0 0.0
      %1061 = vmatpush1.msra.mxu0 0.0
      %1062 = vmatprep.subr.mxu0 0.0
      %1063 = vmatpush1.msra.mxu0 0.0
      %1064 = vmatprep.subr.mxu0 0.0
      %1065 = vmatpush1.msra.mxu0 0.0
      %1066 = vmatprep.subr.mxu0 0.0
      %1067 = vmatpush1.msra.mxu0 0.0
      %1068 = vmatprep.subr.mxu0 0.0
      %1069 = vmatpush1.msra.mxu0 0.0
      %1070 = vmatprep.subr.mxu0 0.0
      %1071 = vmatpush1.msra.mxu0 0.0
      %1072 = vmatprep.subr.mxu0 0.0
      %1073 = vmatpush1.msra.mxu0 0.0
      %1074 = vmatprep.subr.mxu0 0.0
      %1075 = vmatpush1.msra.mxu0 0.0
      %1076 = vmatprep.subr.mxu0 0.0
      %1077 = vmatpush1.msra.mxu0 0.0
      %1078 = vmatprep.subr.mxu0 0.0
      %1079 = vmatpush1.msra.mxu0 0.0
      %1080 = vmatprep.subr.mxu0 0.0
      %1081 = vmatpush1.msra.mxu0 0.0
      %1082 = vmatprep.subr.mxu0 0.0
      %1083 = vmatpush1.msra.mxu0 0.0
      %1084 = vmatprep.subr.mxu0 0.0
      %1085 = vmatpush1.msra.mxu0 0.0
      %1086 = vmatprep.subr.mxu0 0.0
      %1087 = vmatpush1.msra.mxu0 0.0
      %1088 = vmatprep.subr.mxu0 0.0
      %1089 = vmatpush1.msra.mxu0 0.0
      %1090 = vmatprep.subr.mxu0 0.0
      %1091 = vmatpush1.msra.mxu0 0.0
      %1092 = vmatprep.mubr.f32.mxu0 0.0
      %1093 = vmatmul.mubr.f32.gmra.mrb[0].mxu0 %v1026
      %v1094 = vpop.f32.mrb[0].mxu0
      %v1095 = vadd.f32 0.0, %v1094
      %v1096 = vpop.f32.mrb[0].mxu0
      %1097 = vdwg.mxu0
      %v1098 = vadd.f32 %v1019, %v1095
      %s1099 = scalar_lea.vmem %s259, 24
      %v1100 = vld [vmem:[%s1099] sm:$0x3]
      %v1101 = vld [vmem:[%s368] sm:$0x3]
      %v1102 = vld [vmem:[%s3] sm:$0xff]
      %v1103 = vld [vmem:[%s3 + $0x8] sm:$0xff]
      %v1104 = vld [vmem:[%s3 + $0x10] sm:$0xff]
      %v1105 = vld [vmem:[%s3 + $0x18] sm:$0xff]
      %v1107 = vsel %vm291, %v1101, 0
      %1109 = vmatprep.subr.mxu0 0.0
      %1110 = vmatpush1.msra.mxu0 %v1102
      %1111 = vmatprep.subr.mxu0 0.0
      %1112 = vmatpush1.msra.mxu0 %v1103
      %1113 = vmatprep.subr.mxu0 0.0
      %1114 = vmatpush1.msra.mxu0 %v1104
      %1115 = vmatprep.subr.mxu0 0.0
      %1116 = vmatpush1.msra.mxu0 %v1105
      %1117 = vmatprep.subr.mxu0 0.0
      %1118 = vmatpush1.msra.mxu0 0.0
      %1119 = vmatprep.subr.mxu0 0.0
      %1120 = vmatpush1.msra.mxu0 0.0
      %1121 = vmatprep.subr.mxu0 0.0
      %1122 = vmatpush1.msra.mxu0 0.0
      %1123 = vmatprep.subr.mxu0 0.0
      %1124 = vmatpush1.msra.mxu0 0.0
      %1125 = vmatprep.subr.mxu0 0.0
      %1126 = vmatpush1.msra.mxu0 0.0
      %1127 = vmatprep.subr.mxu0 0.0
      %1128 = vmatpush1.msra.mxu0 0.0
      %1129 = vmatprep.subr.mxu0 0.0
      %1130 = vmatpush1.msra.mxu0 0.0
      %1131 = vmatprep.subr.mxu0 0.0
      %1132 = vmatpush1.msra.mxu0 0.0
      %1133 = vmatprep.subr.mxu0 0.0
      %1134 = vmatpush1.msra.mxu0 0.0
      %1135 = vmatprep.subr.mxu0 0.0
      %1136 = vmatpush1.msra.mxu0 0.0
      %1137 = vmatprep.subr.mxu0 0.0
      %1138 = vmatpush1.msra.mxu0 0.0
      %1139 = vmatprep.subr.mxu0 0.0
      %1140 = vmatpush1.msra.mxu0 0.0
      %1141 = vmatprep.subr.mxu0 0.0
      %1142 = vmatpush1.msra.mxu0 0.0
      %1143 = vmatprep.subr.mxu0 0.0
      %1144 = vmatpush1.msra.mxu0 0.0
      %1145 = vmatprep.subr.mxu0 0.0
      %1146 = vmatpush1.msra.mxu0 0.0
      %1147 = vmatprep.subr.mxu0 0.0
      %1148 = vmatpush1.msra.mxu0 0.0
      %1149 = vmatprep.subr.mxu0 0.0
      %1150 = vmatpush1.msra.mxu0 0.0
      %1151 = vmatprep.subr.mxu0 0.0
      %1152 = vmatpush1.msra.mxu0 0.0
      %1153 = vmatprep.subr.mxu0 0.0
      %1154 = vmatpush1.msra.mxu0 0.0
      %1155 = vmatprep.subr.mxu0 0.0
      %1156 = vmatpush1.msra.mxu0 0.0
      %1157 = vmatprep.subr.mxu0 0.0
      %1158 = vmatpush1.msra.mxu0 0.0
      %1159 = vmatprep.subr.mxu0 0.0
      %1160 = vmatpush1.msra.mxu0 0.0
      %1161 = vmatprep.subr.mxu0 0.0
      %1162 = vmatpush1.msra.mxu0 0.0
      %1163 = vmatprep.subr.mxu0 0.0
      %1164 = vmatpush1.msra.mxu0 0.0
      %1165 = vmatprep.subr.mxu0 0.0
      %1166 = vmatpush1.msra.mxu0 0.0
      %1167 = vmatprep.subr.mxu0 0.0
      %1168 = vmatpush1.msra.mxu0 0.0
      %1169 = vmatprep.subr.mxu0 0.0
      %1170 = vmatpush1.msra.mxu0 0.0
      %1171 = vmatprep.subr.mxu0 0.0
      %1172 = vmatpush1.msra.mxu0 0.0
      %1173 = vmatprep.mubr.f32.mxu0 0.0
      %1174 = vmatmul.mubr.f32.gmra.mrb[0].mxu0 %v1107
      %v1175 = vpop.f32.mrb[0].mxu0
      %v1176 = vadd.f32 0.0, %v1175
      %v1177 = vpop.f32.mrb[0].mxu0
      %1178 = vdwg.mxu0
      %v1179 = vadd.f32 %v1100, %v1176
      %v1180 = vxor.u32 %v1098, 2147483648
      %v1181 = vxor.u32 %v1179, 2147483648
      %v1182 = vmul.f32 %v1180, 1.442695
      %v1183 = vpow.pop %v1182
      %v1184 = vmul.f32 %v1181, 1.442695
      %v1185 = vpow.pop %v1184
      %v1186 = vadd.f32 %v1183, 1.0
      %v1187 = vadd.f32 %v1185, 1.0
      %v1188 = vrcp.pop %v1186
      %v1189 = vmul.f32 1.0, %v1188
      %v1190 = vrcp.pop %v1187
      %v1191 = vmul.f32 1.0, %v1190
      %v1192 = vtanh.pop %v1098
      %v1193 = vtanh.pop %v1179
      %v1194 = vld [vmem:[#allocation3] sm:$0x3]
      %v1195 = vld [vmem:[#allocation3 + $0x2] sm:$0x3]
      %1198 = vrot.lane.b32.xlu0 %v1194, 32
      %v1199 = vpop.permute.xlu0 %1198
      %1200 = vrot.lane.b32.xlu0 %v1195, 32
      %v1201 = vpop.permute.xlu0 %1200
      %v1204 = vmul.f32 %v1189, %v1199
      %v1205 = vmul.f32 %v1191, %v1201
      %1208 = vrot.lane.b32.xlu0 %v1192, 64
      %v1209 = vpop.permute.xlu0 %1208
      %1210 = vrot.lane.b32.xlu0 %v1193, 64
      %v1211 = vpop.permute.xlu0 %1210
      %v1214 = vmul.f32 %v1189, %v1209
      %v1215 = vmul.f32 %v1191, %v1211
      %1218 = vrot.lane.b32.xlu0 %v1214, 32
      %v1219 = vpop.permute.xlu0 %1218
      %1220 = vrot.lane.b32.xlu0 %v1215, 32
      %v1221 = vpop.permute.xlu0 %1220
      %v1224 = vadd.f32 %v1204, %v1219
      %v1225 = vadd.f32 %v1205, %v1221
      %v1226 = vtanh.pop %v1224
      %v1227 = vtanh.pop %v1225
      %1230 = vrot.lane.b32.xlu0 %v1226, 64
      %v1231 = vpop.permute.xlu0 %1230
      %1232 = vrot.lane.b32.xlu0 %v1227, 64
      %v1233 = vpop.permute.xlu0 %1232
      %v1236 = vmul.f32 %v1189, %v1231
      %v1237 = vmul.f32 %v1191, %v1233
      %1240 = vrot.lane.b32.xlu0 %v1236, 32
      %v1241 = vpop.permute.xlu0 %1240
      %1242 = vrot.lane.b32.xlu0 %v1237, 32
      %v1243 = vpop.permute.xlu0 %1242
      %1246 = vst.msk [vmem:[#allocation2] sm:$0x3] %vm514, %v1241
      %1247 = vst.msk [vmem:[#allocation2 + $0x2] sm:$0x3] %vm514, %v1243
      %1250 = vrot.lane.b32.xlu0 %v1224, 96
      %v1251 = vpop.permute.xlu0 %1250
      %1252 = vrot.lane.b32.xlu0 %v1225, 96
      %v1253 = vpop.permute.xlu0 %1252
      %1256 = vst.msk [vmem:[#allocation3] sm:$0x3] %vm514, %v1251
      %1257 = vst.msk [vmem:[#allocation3 + $0x2] sm:$0x3] %vm514, %v1253
      %s1258 = scalar_lea.vmem %s266, 6
      %1259 = vst.msk [vmem:[%s1258] sm:$0x3] %vm514, %v1241
      %s1260 = scalar_lea.vmem %s273, 24
      %1261 = vst.msk [vmem:[%s1260] sm:$0x3] %vm514, %v1243
      %s1262 = scalar_lea.vmem %s252, 8
      %v1263 = vld [vmem:[%s1262] sm:$0x3]
      %v1264 = vld [vmem:[#allocation2] sm:$0x3]
      %v1265 = vld [vmem:[%s2] sm:$0xff]
      %v1266 = vld [vmem:[%s2 + $0x8] sm:$0xff]
      %v1267 = vld [vmem:[%s2 + $0x10] sm:$0xff]
      %v1268 = vld [vmem:[%s2 + $0x18] sm:$0xff]
      %v1270 = vsel %vm291, %v1264, 0
      %1272 = vmatprep.subr.mxu0 0.0
      %1273 = vmatpush1.msra.mxu0 %v1265
      %1274 = vmatprep.subr.mxu0 0.0
      %1275 = vmatpush1.msra.mxu0 %v1266
      %1276 = vmatprep.subr.mxu0 0.0
      %1277 = vmatpush1.msra.mxu0 %v1267
      %1278 = vmatprep.subr.mxu0 0.0
      %1279 = vmatpush1.msra.mxu0 %v1268
      %1280 = vmatprep.subr.mxu0 0.0
      %1281 = vmatpush1.msra.mxu0 0.0
      %1282 = vmatprep.subr.mxu0 0.0
      %1283 = vmatpush1.msra.mxu0 0.0
      %1284 = vmatprep.subr.mxu0 0.0
      %1285 = vmatpush1.msra.mxu0 0.0
      %1286 = vmatprep.subr.mxu0 0.0
      %1287 = vmatpush1.msra.mxu0 0.0
      %1288 = vmatprep.subr.mxu0 0.0
      %1289 = vmatpush1.msra.mxu0 0.0
      %1290 = vmatprep.subr.mxu0 0.0
      %1291 = vmatpush1.msra.mxu0 0.0
      %1292 = vmatprep.subr.mxu0 0.0
      %1293 = vmatpush1.msra.mxu0 0.0
      %1294 = vmatprep.subr.mxu0 0.0
      %1295 = vmatpush1.msra.mxu0 0.0
      %1296 = vmatprep.subr.mxu0 0.0
      %1297 = vmatpush1.msra.mxu0 0.0
      %1298 = vmatprep.subr.mxu0 0.0
      %1299 = vmatpush1.msra.mxu0 0.0
      %1300 = vmatprep.subr.mxu0 0.0
      %1301 = vmatpush1.msra.mxu0 0.0
      %1302 = vmatprep.subr.mxu0 0.0
      %1303 = vmatpush1.msra.mxu0 0.0
      %1304 = vmatprep.subr.mxu0 0.0
      %1305 = vmatpush1.msra.mxu0 0.0
      %1306 = vmatprep.subr.mxu0 0.0
      %1307 = vmatpush1.msra.mxu0 0.0
      %1308 = vmatprep.subr.mxu0 0.0
      %1309 = vmatpush1.msra.mxu0 0.0
      %1310 = vmatprep.subr.mxu0 0.0
      %1311 = vmatpush1.msra.mxu0 0.0
      %1312 = vmatprep.subr.mxu0 0.0
      %1313 = vmatpush1.msra.mxu0 0.0
      %1314 = vmatprep.subr.mxu0 0.0
      %1315 = vmatpush1.msra.mxu0 0.0
      %1316 = vmatprep.subr.mxu0 0.0
      %1317 = vmatpush1.msra.mxu0 0.0
      %1318 = vmatprep.subr.mxu0 0.0
      %1319 = vmatpush1.msra.mxu0 0.0
      %1320 = vmatprep.subr.mxu0 0.0
      %1321 = vmatpush1.msra.mxu0 0.0
      %1322 = vmatprep.subr.mxu0 0.0
      %1323 = vmatpush1.msra.mxu0 0.0
      %1324 = vmatprep.subr.mxu0 0.0
      %1325 = vmatpush1.msra.mxu0 0.0
      %1326 = vmatprep.subr.mxu0 0.0
      %1327 = vmatpush1.msra.mxu0 0.0
      %1328 = vmatprep.subr.mxu0 0.0
      %1329 = vmatpush1.msra.mxu0 0.0
      %1330 = vmatprep.subr.mxu0 0.0
      %1331 = vmatpush1.msra.mxu0 0.0
      %1332 = vmatprep.subr.mxu0 0.0
      %1333 = vmatpush1.msra.mxu0 0.0
      %1334 = vmatprep.subr.mxu0 0.0
      %1335 = vmatpush1.msra.mxu0 0.0
      %1336 = vmatprep.mubr.f32.mxu0 0.0
      %1337 = vmatmul.mubr.f32.gmra.mrb[0].mxu0 %v1270
      %v1338 = vpop.f32.mrb[0].mxu0
      %v1339 = vadd.f32 0.0, %v1338
      %v1340 = vpop.f32.mrb[0].mxu0
      %1341 = vdwg.mxu0
      %v1342 = vadd.f32 %v1263, %v1339
      %s1343 = scalar_lea.vmem %s259, 22
      %v1344 = vld [vmem:[%s1343] sm:$0x3]
      %v1345 = vld [vmem:[%s368] sm:$0x3]
      %v1346 = vld [vmem:[%s3] sm:$0xff]
      %v1347 = vld [vmem:[%s3 + $0x8] sm:$0xff]
      %v1348 = vld [vmem:[%s3 + $0x10] sm:$0xff]
      %v1349 = vld [vmem:[%s3 + $0x18] sm:$0xff]
      %v1351 = vsel %vm291, %v1345, 0
      %1353 = vmatprep.subr.mxu0 0.0
      %1354 = vmatpush1.msra.mxu0 %v1346
      %1355 = vmatprep.subr.mxu0 0.0
      %1356 = vmatpush1.msra.mxu0 %v1347
      %1357 = vmatprep.subr.mxu0 0.0
      %1358 = vmatpush1.msra.mxu0 %v1348
      %1359 = vmatprep.subr.mxu0 0.0
      %1360 = vmatpush1.msra.mxu0 %v1349
      %1361 = vmatprep.subr.mxu0 0.0
      %1362 = vmatpush1.msra.mxu0 0.0
      %1363 = vmatprep.subr.mxu0 0.0
      %1364 = vmatpush1.msra.mxu0 0.0
      %1365 = vmatprep.subr.mxu0 0.0
      %1366 = vmatpush1.msra.mxu0 0.0
      %1367 = vmatprep.subr.mxu0 0.0
      %1368 = vmatpush1.msra.mxu0 0.0
      %1369 = vmatprep.subr.mxu0 0.0
      %1370 = vmatpush1.msra.mxu0 0.0
      %1371 = vmatprep.subr.mxu0 0.0
      %1372 = vmatpush1.msra.mxu0 0.0
      %1373 = vmatprep.subr.mxu0 0.0
      %1374 = vmatpush1.msra.mxu0 0.0
      %1375 = vmatprep.subr.mxu0 0.0
      %1376 = vmatpush1.msra.mxu0 0.0
      %1377 = vmatprep.subr.mxu0 0.0
      %1378 = vmatpush1.msra.mxu0 0.0
      %1379 = vmatprep.subr.mxu0 0.0
      %1380 = vmatpush1.msra.mxu0 0.0
      %1381 = vmatprep.subr.mxu0 0.0
      %1382 = vmatpush1.msra.mxu0 0.0
      %1383 = vmatprep.subr.mxu0 0.0
      %1384 = vmatpush1.msra.mxu0 0.0
      %1385 = vmatprep.subr.mxu0 0.0
      %1386 = vmatpush1.msra.mxu0 0.0
      %1387 = vmatprep.subr.mxu0 0.0
      %1388 = vmatpush1.msra.mxu0 0.0
      %1389 = vmatprep.subr.mxu0 0.0
      %1390 = vmatpush1.msra.mxu0 0.0
      %1391 = vmatprep.subr.mxu0 0.0
      %1392 = vmatpush1.msra.mxu0 0.0
      %1393 = vmatprep.subr.mxu0 0.0
      %1394 = vmatpush1.msra.mxu0 0.0
      %1395 = vmatprep.subr.mxu0 0.0
      %1396 = vmatpush1.msra.mxu0 0.0
      %1397 = vmatprep.subr.mxu0 0.0
      %1398 = vmatpush1.msra.mxu0 0.0
      %1399 = vmatprep.subr.mxu0 0.0
      %1400 = vmatpush1.msra.mxu0 0.0
      %1401 = vmatprep.subr.mxu0 0.0
      %1402 = vmatpush1.msra.mxu0 0.0
      %1403 = vmatprep.subr.mxu0 0.0
      %1404 = vmatpush1.msra.mxu0 0.0
      %1405 = vmatprep.subr.mxu0 0.0
      %1406 = vmatpush1.msra.mxu0 0.0
      %1407 = vmatprep.subr.mxu0 0.0
      %1408 = vmatpush1.msra.mxu0 0.0
      %1409 = vmatprep.subr.mxu0 0.0
      %1410 = vmatpush1.msra.mxu0 0.0
      %1411 = vmatprep.subr.mxu0 0.0
      %1412 = vmatpush1.msra.mxu0 0.0
      %1413 = vmatprep.subr.mxu0 0.0
      %1414 = vmatpush1.msra.mxu0 0.0
      %1415 = vmatprep.subr.mxu0 0.0
      %1416 = vmatpush1.msra.mxu0 0.0
      %1417 = vmatprep.mubr.f32.mxu0 0.0
      %1418 = vmatmul.mubr.f32.gmra.mrb[0].mxu0 %v1351
      %v1419 = vpop.f32.mrb[0].mxu0
      %v1420 = vadd.f32 0.0, %v1419
      %v1421 = vpop.f32.mrb[0].mxu0
      %1422 = vdwg.mxu0
      %v1423 = vadd.f32 %v1344, %v1420
      %v1424 = vxor.u32 %v1342, 2147483648
      %v1425 = vxor.u32 %v1423, 2147483648
      %v1426 = vmul.f32 %v1424, 1.442695
      %v1427 = vpow.pop %v1426
      %v1428 = vmul.f32 %v1425, 1.442695
      %v1429 = vpow.pop %v1428
      %v1430 = vadd.f32 %v1427, 1.0
      %v1431 = vadd.f32 %v1429, 1.0
      %v1432 = vrcp.pop %v1430
      %v1433 = vmul.f32 1.0, %v1432
      %v1434 = vrcp.pop %v1431
      %v1435 = vmul.f32 1.0, %v1434
      %v1436 = vtanh.pop %v1342
      %v1437 = vtanh.pop %v1423
      %v1438 = vld [vmem:[#allocation3] sm:$0x3]
      %v1439 = vld [vmem:[#allocation3 + $0x2] sm:$0x3]
      %1442 = vrot.lane.b32.xlu0 %v1438, 32
      %v1443 = vpop.permute.xlu0 %1442
      %1444 = vrot.lane.b32.xlu0 %v1439, 32
      %v1445 = vpop.permute.xlu0 %1444
      %v1448 = vmul.f32 %v1433, %v1443
      %v1449 = vmul.f32 %v1435, %v1445
      %1452 = vrot.lane.b32.xlu0 %v1436, 64
      %v1453 = vpop.permute.xlu0 %1452
      %1454 = vrot.lane.b32.xlu0 %v1437, 64
      %v1455 = vpop.permute.xlu0 %1454
      %v1458 = vmul.f32 %v1433, %v1453
      %v1459 = vmul.f32 %v1435, %v1455
      %1462 = vrot.lane.b32.xlu0 %v1458, 32
      %v1463 = vpop.permute.xlu0 %1462
      %1464 = vrot.lane.b32.xlu0 %v1459, 32
      %v1465 = vpop.permute.xlu0 %1464
      %v1468 = vadd.f32 %v1448, %v1463
      %v1469 = vadd.f32 %v1449, %v1465
      %v1470 = vtanh.pop %v1468
      %v1471 = vtanh.pop %v1469
      %1474 = vrot.lane.b32.xlu0 %v1470, 64
      %v1475 = vpop.permute.xlu0 %1474
      %1476 = vrot.lane.b32.xlu0 %v1471, 64
      %v1477 = vpop.permute.xlu0 %1476
      %v1480 = vmul.f32 %v1433, %v1475
      %v1481 = vmul.f32 %v1435, %v1477
      %1484 = vrot.lane.b32.xlu0 %v1480, 32
      %v1485 = vpop.permute.xlu0 %1484
      %1486 = vrot.lane.b32.xlu0 %v1481, 32
      %v1487 = vpop.permute.xlu0 %1486
      %1490 = vst.msk [vmem:[#allocation2] sm:$0x3] %vm514, %v1485
      %1491 = vst.msk [vmem:[#allocation2 + $0x2] sm:$0x3] %vm514, %v1487
      %1494 = vrot.lane.b32.xlu0 %v1468, 96
      %v1495 = vpop.permute.xlu0 %1494
      %1496 = vrot.lane.b32.xlu0 %v1469, 96
      %v1497 = vpop.permute.xlu0 %1496
      %1500 = vst.msk [vmem:[#allocation3] sm:$0x3] %vm514, %v1495
      %1501 = vst.msk [vmem:[#allocation3 + $0x2] sm:$0x3] %vm514, %v1497
      %s1502 = scalar_lea.vmem %s266, 8
      %1503 = vst.msk [vmem:[%s1502] sm:$0x3] %vm514, %v1485
      %s1504 = scalar_lea.vmem %s273, 22
      %1505 = vst.msk [vmem:[%s1504] sm:$0x3] %vm514, %v1487
      %s1506 = scalar_lea.vmem %s252, 10
      %v1507 = vld [vmem:[%s1506] sm:$0x3]
      %v1508 = vld [vmem:[#allocation2] sm:$0x3]
      %v1509 = vld [vmem:[%s2] sm:$0xff]
      %v1510 = vld [vmem:[%s2 + $0x8] sm:$0xff]
      %v1511 = vld [vmem:[%s2 + $0x10] sm:$0xff]
      %v1512 = vld [vmem:[%s2 + $0x18] sm:$0xff]
      %v1514 = vsel %vm291, %v1508, 0
      %1516 = vmatprep.subr.mxu0 0.0
      %1517 = vmatpush1.msra.mxu0 %v1509
      %1518 = vmatprep.subr.mxu0 0.0
      %1519 = vmatpush1.msra.mxu0 %v1510
      %1520 = vmatprep.subr.mxu0 0.0
      %1521 = vmatpush1.msra.mxu0 %v1511
      %1522 = vmatprep.subr.mxu0 0.0
      %1523 = vmatpush1.msra.mxu0 %v1512
      %1524 = vmatprep.subr.mxu0 0.0
      %1525 = vmatpush1.msra.mxu0 0.0
      %1526 = vmatprep.subr.mxu0 0.0
      %1527 = vmatpush1.msra.mxu0 0.0
      %1528 = vmatprep.subr.mxu0 0.0
      %1529 = vmatpush1.msra.mxu0 0.0
      %1530 = vmatprep.subr.mxu0 0.0
      %1531 = vmatpush1.msra.mxu0 0.0
      %1532 = vmatprep.subr.mxu0 0.0
      %1533 = vmatpush1.msra.mxu0 0.0
      %1534 = vmatprep.subr.mxu0 0.0
      %1535 = vmatpush1.msra.mxu0 0.0
      %1536 = vmatprep.subr.mxu0 0.0
      %1537 = vmatpush1.msra.mxu0 0.0
      %1538 = vmatprep.subr.mxu0 0.0
      %1539 = vmatpush1.msra.mxu0 0.0
      %1540 = vmatprep.subr.mxu0 0.0
      %1541 = vmatpush1.msra.mxu0 0.0
      %1542 = vmatprep.subr.mxu0 0.0
      %1543 = vmatpush1.msra.mxu0 0.0
      %1544 = vmatprep.subr.mxu0 0.0
      %1545 = vmatpush1.msra.mxu0 0.0
      %1546 = vmatprep.subr.mxu0 0.0
      %1547 = vmatpush1.msra.mxu0 0.0
      %1548 = vmatprep.subr.mxu0 0.0
      %1549 = vmatpush1.msra.mxu0 0.0
      %1550 = vmatprep.subr.mxu0 0.0
      %1551 = vmatpush1.msra.mxu0 0.0
      %1552 = vmatprep.subr.mxu0 0.0
      %1553 = vmatpush1.msra.mxu0 0.0
      %1554 = vmatprep.subr.mxu0 0.0
      %1555 = vmatpush1.msra.mxu0 0.0
      %1556 = vmatprep.subr.mxu0 0.0
      %1557 = vmatpush1.msra.mxu0 0.0
      %1558 = vmatprep.subr.mxu0 0.0
      %1559 = vmatpush1.msra.mxu0 0.0
      %1560 = vmatprep.subr.mxu0 0.0
      %1561 = vmatpush1.msra.mxu0 0.0
      %1562 = vmatprep.subr.mxu0 0.0
      %1563 = vmatpush1.msra.mxu0 0.0
      %1564 = vmatprep.subr.mxu0 0.0
      %1565 = vmatpush1.msra.mxu0 0.0
      %1566 = vmatprep.subr.mxu0 0.0
      %1567 = vmatpush1.msra.mxu0 0.0
      %1568 = vmatprep.subr.mxu0 0.0
      %1569 = vmatpush1.msra.mxu0 0.0
      %1570 = vmatprep.subr.mxu0 0.0
      %1571 = vmatpush1.msra.mxu0 0.0
      %1572 = vmatprep.subr.mxu0 0.0
      %1573 = vmatpush1.msra.mxu0 0.0
      %1574 = vmatprep.subr.mxu0 0.0
      %1575 = vmatpush1.msra.mxu0 0.0
      %1576 = vmatprep.subr.mxu0 0.0
      %1577 = vmatpush1.msra.mxu0 0.0
      %1578 = vmatprep.subr.mxu0 0.0
      %1579 = vmatpush1.msra.mxu0 0.0
      %1580 = vmatprep.mubr.f32.mxu0 0.0
      %1581 = vmatmul.mubr.f32.gmra.mrb[0].mxu0 %v1514
      %v1582 = vpop.f32.mrb[0].mxu0
      %v1583 = vadd.f32 0.0, %v1582
      %v1584 = vpop.f32.mrb[0].mxu0
      %1585 = vdwg.mxu0
      %v1586 = vadd.f32 %v1507, %v1583
      %s1587 = scalar_lea.vmem %s259, 20
      %v1588 = vld [vmem:[%s1587] sm:$0x3]
      %v1589 = vld [vmem:[%s368] sm:$0x3]
      %v1590 = vld [vmem:[%s3] sm:$0xff]
      %v1591 = vld [vmem:[%s3 + $0x8] sm:$0xff]
      %v1592 = vld [vmem:[%s3 + $0x10] sm:$0xff]
      %v1593 = vld [vmem:[%s3 + $0x18] sm:$0xff]
      %v1595 = vsel %vm291, %v1589, 0
      %1597 = vmatprep.subr.mxu0 0.0
      %1598 = vmatpush1.msra.mxu0 %v1590
      %1599 = vmatprep.subr.mxu0 0.0
      %1600 = vmatpush1.msra.mxu0 %v1591
      %1601 = vmatprep.subr.mxu0 0.0
      %1602 = vmatpush1.msra.mxu0 %v1592
      %1603 = vmatprep.subr.mxu0 0.0
      %1604 = vmatpush1.msra.mxu0 %v1593
      %1605 = vmatprep.subr.mxu0 0.0
      %1606 = vmatpush1.msra.mxu0 0.0
      %1607 = vmatprep.subr.mxu0 0.0
      %1608 = vmatpush1.msra.mxu0 0.0
      %1609 = vmatprep.subr.mxu0 0.0
      %1610 = vmatpush1.msra.mxu0 0.0
      %1611 = vmatprep.subr.mxu0 0.0
      %1612 = vmatpush1.msra.mxu0 0.0
      %1613 = vmatprep.subr.mxu0 0.0
      %1614 = vmatpush1.msra.mxu0 0.0
      %1615 = vmatprep.subr.mxu0 0.0
      %1616 = vmatpush1.msra.mxu0 0.0
      %1617 = vmatprep.subr.mxu0 0.0
      %1618 = vmatpush1.msra.mxu0 0.0
      %1619 = vmatprep.subr.mxu0 0.0
      %1620 = vmatpush1.msra.mxu0 0.0
      %1621 = vmatprep.subr.mxu0 0.0
      %1622 = vmatpush1.msra.mxu0 0.0
      %1623 = vmatprep.subr.mxu0 0.0
      %1624 = vmatpush1.msra.mxu0 0.0
      %1625 = vmatprep.subr.mxu0 0.0
      %1626 = vmatpush1.msra.mxu0 0.0
      %1627 = vmatprep.subr.mxu0 0.0
      %1628 = vmatpush1.msra.mxu0 0.0
      %1629 = vmatprep.subr.mxu0 0.0
      %1630 = vmatpush1.msra.mxu0 0.0
      %1631 = vmatprep.subr.mxu0 0.0
      %1632 = vmatpush1.msra.mxu0 0.0
      %1633 = vmatprep.subr.mxu0 0.0
      %1634 = vmatpush1.msra.mxu0 0.0
      %1635 = vmatprep.subr.mxu0 0.0
      %1636 = vmatpush1.msra.mxu0 0.0
      %1637 = vmatprep.subr.mxu0 0.0
      %1638 = vmatpush1.msra.mxu0 0.0
      %1639 = vmatprep.subr.mxu0 0.0
      %1640 = vmatpush1.msra.mxu0 0.0
      %1641 = vmatprep.subr.mxu0 0.0
      %1642 = vmatpush1.msra.mxu0 0.0
      %1643 = vmatprep.subr.mxu0 0.0
      %1644 = vmatpush1.msra.mxu0 0.0
      %1645 = vmatprep.subr.mxu0 0.0
      %1646 = vmatpush1.msra.mxu0 0.0
      %1647 = vmatprep.subr.mxu0 0.0
      %1648 = vmatpush1.msra.mxu0 0.0
      %1649 = vmatprep.subr.mxu0 0.0
      %1650 = vmatpush1.msra.mxu0 0.0
      %1651 = vmatprep.subr.mxu0 0.0
      %1652 = vmatpush1.msra.mxu0 0.0
      %1653 = vmatprep.subr.mxu0 0.0
      %1654 = vmatpush1.msra.mxu0 0.0
      %1655 = vmatprep.subr.mxu0 0.0
      %1656 = vmatpush1.msra.mxu0 0.0
      %1657 = vmatprep.subr.mxu0 0.0
      %1658 = vmatpush1.msra.mxu0 0.0
      %1659 = vmatprep.subr.mxu0 0.0
      %1660 = vmatpush1.msra.mxu0 0.0
      %1661 = vmatprep.mubr.f32.mxu0 0.0
      %1662 = vmatmul.mubr.f32.gmra.mrb[0].mxu0 %v1595
      %v1663 = vpop.f32.mrb[0].mxu0
      %v1664 = vadd.f32 0.0, %v1663
      %v1665 = vpop.f32.mrb[0].mxu0
      %1666 = vdwg.mxu0
      %v1667 = vadd.f32 %v1588, %v1664
      %v1668 = vxor.u32 %v1586, 2147483648
      %v1669 = vxor.u32 %v1667, 2147483648
      %v1670 = vmul.f32 %v1668, 1.442695
      %v1671 = vpow.pop %v1670
      %v1672 = vmul.f32 %v1669, 1.442695
      %v1673 = vpow.pop %v1672
      %v1674 = vadd.f32 %v1671, 1.0
      %v1675 = vadd.f32 %v1673, 1.0
      %v1676 = vrcp.pop %v1674
      %v1677 = vmul.f32 1.0, %v1676
      %v1678 = vrcp.pop %v1675
      %v1679 = vmul.f32 1.0, %v1678
      %v1680 = vtanh.pop %v1586
      %v1681 = vtanh.pop %v1667
      %v1682 = vld [vmem:[#allocation3] sm:$0x3]
      %v1683 = vld [vmem:[#allocation3 + $0x2] sm:$0x3]
      %1686 = vrot.lane.b32.xlu0 %v1682, 32
      %v1687 = vpop.permute.xlu0 %1686
      %1688 = vrot.lane.b32.xlu0 %v1683, 32
      %v1689 = vpop.permute.xlu0 %1688
      %v1692 = vmul.f32 %v1677, %v1687
      %v1693 = vmul.f32 %v1679, %v1689
      %1696 = vrot.lane.b32.xlu0 %v1680, 64
      %v1697 = vpop.permute.xlu0 %1696
      %1698 = vrot.lane.b32.xlu0 %v1681, 64
      %v1699 = vpop.permute.xlu0 %1698
      %v1702 = vmul.f32 %v1677, %v1697
      %v1703 = vmul.f32 %v1679, %v1699
      %1706 = vrot.lane.b32.xlu0 %v1702, 32
      %v1707 = vpop.permute.xlu0 %1706
      %1708 = vrot.lane.b32.xlu0 %v1703, 32
      %v1709 = vpop.permute.xlu0 %1708
      %v1712 = vadd.f32 %v1692, %v1707
      %v1713 = vadd.f32 %v1693, %v1709
      %v1714 = vtanh.pop %v1712
      %v1715 = vtanh.pop %v1713
      %1718 = vrot.lane.b32.xlu0 %v1714, 64
      %v1719 = vpop.permute.xlu0 %1718
      %1720 = vrot.lane.b32.xlu0 %v1715, 64
      %v1721 = vpop.permute.xlu0 %1720
      %v1724 = vmul.f32 %v1677, %v1719
      %v1725 = vmul.f32 %v1679, %v1721
      %1728 = vrot.lane.b32.xlu0 %v1724, 32
      %v1729 = vpop.permute.xlu0 %1728
      %1730 = vrot.lane.b32.xlu0 %v1725, 32
      %v1731 = vpop.permute.xlu0 %1730
      %1734 = vst.msk [vmem:[#allocation2] sm:$0x3] %vm514, %v1729
      %1735 = vst.msk [vmem:[#allocation2 + $0x2] sm:$0x3] %vm514, %v1731
      %1738 = vrot.lane.b32.xlu0 %v1712, 96
      %v1739 = vpop.permute.xlu0 %1738
      %1740 = vrot.lane.b32.xlu0 %v1713, 96
      %v1741 = vpop.permute.xlu0 %1740
      %1744 = vst.msk [vmem:[#allocation3] sm:$0x3] %vm514, %v1739
      %1745 = vst.msk [vmem:[#allocation3 + $0x2] sm:$0x3] %vm514, %v1741
      %s1746 = scalar_lea.vmem %s266, 10
      %1747 = vst.msk [vmem:[%s1746] sm:$0x3] %vm514, %v1729
      %s1748 = scalar_lea.vmem %s273, 20
      %1749 = vst.msk [vmem:[%s1748] sm:$0x3] %vm514, %v1731
      %s1750 = scalar_lea.vmem %s252, 12
      %v1751 = vld [vmem:[%s1750] sm:$0x3]
      %v1752 = vld [vmem:[#allocation2] sm:$0x3]
      %v1753 = vld [vmem:[%s2] sm:$0xff]
      %v1754 = vld [vmem:[%s2 + $0x8] sm:$0xff]
      %v1755 = vld [vmem:[%s2 + $0x10] sm:$0xff]
      %v1756 = vld [vmem:[%s2 + $0x18] sm:$0xff]
      %v1758 = vsel %vm291, %v1752, 0
      %1760 = vmatprep.subr.mxu0 0.0
      %1761 = vmatpush1.msra.mxu0 %v1753
      %1762 = vmatprep.subr.mxu0 0.0
      %1763 = vmatpush1.msra.mxu0 %v1754
      %1764 = vmatprep.subr.mxu0 0.0
      %1765 = vmatpush1.msra.mxu0 %v1755
      %1766 = vmatprep.subr.mxu0 0.0
      %1767 = vmatpush1.msra.mxu0 %v1756
      %1768 = vmatprep.subr.mxu0 0.0
      %1769 = vmatpush1.msra.mxu0 0.0
      %1770 = vmatprep.subr.mxu0 0.0
      %1771 = vmatpush1.msra.mxu0 0.0
      %1772 = vmatprep.subr.mxu0 0.0
      %1773 = vmatpush1.msra.mxu0 0.0
      %1774 = vmatprep.subr.mxu0 0.0
      %1775 = vmatpush1.msra.mxu0 0.0
      %1776 = vmatprep.subr.mxu0 0.0
      %1777 = vmatpush1.msra.mxu0 0.0
      %1778 = vmatprep.subr.mxu0 0.0
      %1779 = vmatpush1.msra.mxu0 0.0
      %1780 = vmatprep.subr.mxu0 0.0
      %1781 = vmatpush1.msra.mxu0 0.0
      %1782 = vmatprep.subr.mxu0 0.0
      %1783 = vmatpush1.msra.mxu0 0.0
      %1784 = vmatprep.subr.mxu0 0.0
      %1785 = vmatpush1.msra.mxu0 0.0
      %1786 = vmatprep.subr.mxu0 0.0
      %1787 = vmatpush1.msra.mxu0 0.0
      %1788 = vmatprep.subr.mxu0 0.0
      %1789 = vmatpush1.msra.mxu0 0.0
      %1790 = vmatprep.subr.mxu0 0.0
      %1791 = vmatpush1.msra.mxu0 0.0
      %1792 = vmatprep.subr.mxu0 0.0
      %1793 = vmatpush1.msra.mxu0 0.0
      %1794 = vmatprep.subr.mxu0 0.0
      %1795 = vmatpush1.msra.mxu0 0.0
      %1796 = vmatprep.subr.mxu0 0.0
      %1797 = vmatpush1.msra.mxu0 0.0
      %1798 = vmatprep.subr.mxu0 0.0
      %1799 = vmatpush1.msra.mxu0 0.0
      %1800 = vmatprep.subr.mxu0 0.0
      %1801 = vmatpush1.msra.mxu0 0.0
      %1802 = vmatprep.subr.mxu0 0.0
      %1803 = vmatpush1.msra.mxu0 0.0
      %1804 = vmatprep.subr.mxu0 0.0
      %1805 = vmatpush1.msra.mxu0 0.0
      %1806 = vmatprep.subr.mxu0 0.0
      %1807 = vmatpush1.msra.mxu0 0.0
      %1808 = vmatprep.subr.mxu0 0.0
      %1809 = vmatpush1.msra.mxu0 0.0
      %1810 = vmatprep.subr.mxu0 0.0
      %1811 = vmatpush1.msra.mxu0 0.0
      %1812 = vmatprep.subr.mxu0 0.0
      %1813 = vmatpush1.msra.mxu0 0.0
      %1814 = vmatprep.subr.mxu0 0.0
      %1815 = vmatpush1.msra.mxu0 0.0
      %1816 = vmatprep.subr.mxu0 0.0
      %1817 = vmatpush1.msra.mxu0 0.0
      %1818 = vmatprep.subr.mxu0 0.0
      %1819 = vmatpush1.msra.mxu0 0.0
      %1820 = vmatprep.subr.mxu0 0.0
      %1821 = vmatpush1.msra.mxu0 0.0
      %1822 = vmatprep.subr.mxu0 0.0
      %1823 = vmatpush1.msra.mxu0 0.0
      %1824 = vmatprep.mubr.f32.mxu0 0.0
      %1825 = vmatmul.mubr.f32.gmra.mrb[0].mxu0 %v1758
      %v1826 = vpop.f32.mrb[0].mxu0
      %v1827 = vadd.f32 0.0, %v1826
      %v1828 = vpop.f32.mrb[0].mxu0
      %1829 = vdwg.mxu0
      %v1830 = vadd.f32 %v1751, %v1827
      %s1831 = scalar_lea.vmem %s259, 18
      %v1832 = vld [vmem:[%s1831] sm:$0x3]
      %v1833 = vld [vmem:[%s368] sm:$0x3]
      %v1834 = vld [vmem:[%s3] sm:$0xff]
      %v1835 = vld [vmem:[%s3 + $0x8] sm:$0xff]
      %v1836 = vld [vmem:[%s3 + $0x10] sm:$0xff]
      %v1837 = vld [vmem:[%s3 + $0x18] sm:$0xff]
      %v1839 = vsel %vm291, %v1833, 0
      %1841 = vmatprep.subr.mxu0 0.0
      %1842 = vmatpush1.msra.mxu0 %v1834
      %1843 = vmatprep.subr.mxu0 0.0
      %1844 = vmatpush1.msra.mxu0 %v1835
      %1845 = vmatprep.subr.mxu0 0.0
      %1846 = vmatpush1.msra.mxu0 %v1836
      %1847 = vmatprep.subr.mxu0 0.0
      %1848 = vmatpush1.msra.mxu0 %v1837
      %1849 = vmatprep.subr.mxu0 0.0
      %1850 = vmatpush1.msra.mxu0 0.0
      %1851 = vmatprep.subr.mxu0 0.0
      %1852 = vmatpush1.msra.mxu0 0.0
      %1853 = vmatprep.subr.mxu0 0.0
      %1854 = vmatpush1.msra.mxu0 0.0
      %1855 = vmatprep.subr.mxu0 0.0
      %1856 = vmatpush1.msra.mxu0 0.0
      %1857 = vmatprep.subr.mxu0 0.0
      %1858 = vmatpush1.msra.mxu0 0.0
      %1859 = vmatprep.subr.mxu0 0.0
      %1860 = vmatpush1.msra.mxu0 0.0
      %1861 = vmatprep.subr.mxu0 0.0
      %1862 = vmatpush1.msra.mxu0 0.0
      %1863 = vmatprep.subr.mxu0 0.0
      %1864 = vmatpush1.msra.mxu0 0.0
      %1865 = vmatprep.subr.mxu0 0.0
      %1866 = vmatpush1.msra.mxu0 0.0
      %1867 = vmatprep.subr.mxu0 0.0
      %1868 = vmatpush1.msra.mxu0 0.0
      %1869 = vmatprep.subr.mxu0 0.0
      %1870 = vmatpush1.msra.mxu0 0.0
      %1871 = vmatprep.subr.mxu0 0.0
      %1872 = vmatpush1.msra.mxu0 0.0
      %1873 = vmatprep.subr.mxu0 0.0
      %1874 = vmatpush1.msra.mxu0 0.0
      %1875 = vmatprep.subr.mxu0 0.0
      %1876 = vmatpush1.msra.mxu0 0.0
      %1877 = vmatprep.subr.mxu0 0.0
      %1878 = vmatpush1.msra.mxu0 0.0
      %1879 = vmatprep.subr.mxu0 0.0
      %1880 = vmatpush1.msra.mxu0 0.0
      %1881 = vmatprep.subr.mxu0 0.0
      %1882 = vmatpush1.msra.mxu0 0.0
      %1883 = vmatprep.subr.mxu0 0.0
      %1884 = vmatpush1.msra.mxu0 0.0
      %1885 = vmatprep.subr.mxu0 0.0
      %1886 = vmatpush1.msra.mxu0 0.0
      %1887 = vmatprep.subr.mxu0 0.0
      %1888 = vmatpush1.msra.mxu0 0.0
      %1889 = vmatprep.subr.mxu0 0.0
      %1890 = vmatpush1.msra.mxu0 0.0
      %1891 = vmatprep.subr.mxu0 0.0
      %1892 = vmatpush1.msra.mxu0 0.0
      %1893 = vmatprep.subr.mxu0 0.0
      %1894 = vmatpush1.msra.mxu0 0.0
      %1895 = vmatprep.subr.mxu0 0.0
      %1896 = vmatpush1.msra.mxu0 0.0
      %1897 = vmatprep.subr.mxu0 0.0
      %1898 = vmatpush1.msra.mxu0 0.0
      %1899 = vmatprep.subr.mxu0 0.0
      %1900 = vmatpush1.msra.mxu0 0.0
      %1901 = vmatprep.subr.mxu0 0.0
      %1902 = vmatpush1.msra.mxu0 0.0
      %1903 = vmatprep.subr.mxu0 0.0
      %1904 = vmatpush1.msra.mxu0 0.0
      %1905 = vmatprep.mubr.f32.mxu0 0.0
      %1906 = vmatmul.mubr.f32.gmra.mrb[0].mxu0 %v1839
      %v1907 = vpop.f32.mrb[0].mxu0
      %v1908 = vadd.f32 0.0, %v1907
      %v1909 = vpop.f32.mrb[0].mxu0
      %1910 = vdwg.mxu0
      %v1911 = vadd.f32 %v1832, %v1908
      %v1912 = vxor.u32 %v1830, 2147483648
      %v1913 = vxor.u32 %v1911, 2147483648
      %v1914 = vmul.f32 %v1912, 1.442695
      %v1915 = vpow.pop %v1914
      %v1916 = vmul.f32 %v1913, 1.442695
      %v1917 = vpow.pop %v1916
      %v1918 = vadd.f32 %v1915, 1.0
      %v1919 = vadd.f32 %v1917, 1.0
      %v1920 = vrcp.pop %v1918
      %v1921 = vmul.f32 1.0, %v1920
      %v1922 = vrcp.pop %v1919
      %v1923 = vmul.f32 1.0, %v1922
      %v1924 = vtanh.pop %v1830
      %v1925 = vtanh.pop %v1911
      %v1926 = vld [vmem:[#allocation3] sm:$0x3]
      %v1927 = vld [vmem:[#allocation3 + $0x2] sm:$0x3]
      %1930 = vrot.lane.b32.xlu0 %v1926, 32
      %v1931 = vpop.permute.xlu0 %1930
      %1932 = vrot.lane.b32.xlu0 %v1927, 32
      %v1933 = vpop.permute.xlu0 %1932
      %v1936 = vmul.f32 %v1921, %v1931
      %v1937 = vmul.f32 %v1923, %v1933
      %1940 = vrot.lane.b32.xlu0 %v1924, 64
      %v1941 = vpop.permute.xlu0 %1940
      %1942 = vrot.lane.b32.xlu0 %v1925, 64
      %v1943 = vpop.permute.xlu0 %1942
      %v1946 = vmul.f32 %v1921, %v1941
      %v1947 = vmul.f32 %v1923, %v1943
      %1950 = vrot.lane.b32.xlu0 %v1946, 32
      %v1951 = vpop.permute.xlu0 %1950
      %1952 = vrot.lane.b32.xlu0 %v1947, 32
      %v1953 = vpop.permute.xlu0 %1952
      %v1956 = vadd.f32 %v1936, %v1951
      %v1957 = vadd.f32 %v1937, %v1953
      %v1958 = vtanh.pop %v1956
      %v1959 = vtanh.pop %v1957
      %1962 = vrot.lane.b32.xlu0 %v1958, 64
      %v1963 = vpop.permute.xlu0 %1962
      %1964 = vrot.lane.b32.xlu0 %v1959, 64
      %v1965 = vpop.permute.xlu0 %1964
      %v1968 = vmul.f32 %v1921, %v1963
      %v1969 = vmul.f32 %v1923, %v1965
      %1972 = vrot.lane.b32.xlu0 %v1968, 32
      %v1973 = vpop.permute.xlu0 %1972
      %1974 = vrot.lane.b32.xlu0 %v1969, 32
      %v1975 = vpop.permute.xlu0 %1974
      %1978 = vst.msk [vmem:[#allocation2] sm:$0x3] %vm514, %v1973
      %1979 = vst.msk [vmem:[#allocation2 + $0x2] sm:$0x3] %vm514, %v1975
      %1982 = vrot.lane.b32.xlu0 %v1956, 96
      %v1983 = vpop.permute.xlu0 %1982
      %1984 = vrot.lane.b32.xlu0 %v1957, 96
      %v1985 = vpop.permute.xlu0 %1984
      %1988 = vst.msk [vmem:[#allocation3] sm:$0x3] %vm514, %v1983
      %1989 = vst.msk [vmem:[#allocation3 + $0x2] sm:$0x3] %vm514, %v1985
      %s1990 = scalar_lea.vmem %s266, 12
      %1991 = vst.msk [vmem:[%s1990] sm:$0x3] %vm514, %v1973
      %s1992 = scalar_lea.vmem %s273, 18
      %1993 = vst.msk [vmem:[%s1992] sm:$0x3] %vm514, %v1975
      %s1994 = scalar_lea.vmem %s252, 14
      %v1995 = vld [vmem:[%s1994] sm:$0x3]
      %v1996 = vld [vmem:[#allocation2] sm:$0x3]
      %v1997 = vld [vmem:[%s2] sm:$0xff]
      %v1998 = vld [vmem:[%s2 + $0x8] sm:$0xff]
      %v1999 = vld [vmem:[%s2 + $0x10] sm:$0xff]
      %v2000 = vld [vmem:[%s2 + $0x18] sm:$0xff]
      %v2002 = vsel %vm291, %v1996, 0
      %2004 = vmatprep.subr.mxu0 0.0
      %2005 = vmatpush1.msra.mxu0 %v1997
      %2006 = vmatprep.subr.mxu0 0.0
      %2007 = vmatpush1.msra.mxu0 %v1998
      %2008 = vmatprep.subr.mxu0 0.0
      %2009 = vmatpush1.msra.mxu0 %v1999
      %2010 = vmatprep.subr.mxu0 0.0
      %2011 = vmatpush1.msra.mxu0 %v2000
      %2012 = vmatprep.subr.mxu0 0.0
      %2013 = vmatpush1.msra.mxu0 0.0
      %2014 = vmatprep.subr.mxu0 0.0
      %2015 = vmatpush1.msra.mxu0 0.0
      %2016 = vmatprep.subr.mxu0 0.0
      %2017 = vmatpush1.msra.mxu0 0.0
      %2018 = vmatprep.subr.mxu0 0.0
      %2019 = vmatpush1.msra.mxu0 0.0
      %2020 = vmatprep.subr.mxu0 0.0
      %2021 = vmatpush1.msra.mxu0 0.0
      %2022 = vmatprep.subr.mxu0 0.0
      %2023 = vmatpush1.msra.mxu0 0.0
      %2024 = vmatprep.subr.mxu0 0.0
      %2025 = vmatpush1.msra.mxu0 0.0
      %2026 = vmatprep.subr.mxu0 0.0
      %2027 = vmatpush1.msra.mxu0 0.0
      %2028 = vmatprep.subr.mxu0 0.0
      %2029 = vmatpush1.msra.mxu0 0.0
      %2030 = vmatprep.subr.mxu0 0.0
      %2031 = vmatpush1.msra.mxu0 0.0
      %2032 = vmatprep.subr.mxu0 0.0
      %2033 = vmatpush1.msra.mxu0 0.0
      %2034 = vmatprep.subr.mxu0 0.0
      %2035 = vmatpush1.msra.mxu0 0.0
      %2036 = vmatprep.subr.mxu0 0.0
      %2037 = vmatpush1.msra.mxu0 0.0
      %2038 = vmatprep.subr.mxu0 0.0
      %2039 = vmatpush1.msra.mxu0 0.0
      %2040 = vmatprep.subr.mxu0 0.0
      %2041 = vmatpush1.msra.mxu0 0.0
      %2042 = vmatprep.subr.mxu0 0.0
      %2043 = vmatpush1.msra.mxu0 0.0
      %2044 = vmatprep.subr.mxu0 0.0
      %2045 = vmatpush1.msra.mxu0 0.0
      %2046 = vmatprep.subr.mxu0 0.0
      %2047 = vmatpush1.msra.mxu0 0.0
      %2048 = vmatprep.subr.mxu0 0.0
      %2049 = vmatpush1.msra.mxu0 0.0
      %2050 = vmatprep.subr.mxu0 0.0
      %2051 = vmatpush1.msra.mxu0 0.0
      %2052 = vmatprep.subr.mxu0 0.0
      %2053 = vmatpush1.msra.mxu0 0.0
      %2054 = vmatprep.subr.mxu0 0.0
      %2055 = vmatpush1.msra.mxu0 0.0
      %2056 = vmatprep.subr.mxu0 0.0
      %2057 = vmatpush1.msra.mxu0 0.0
      %2058 = vmatprep.subr.mxu0 0.0
      %2059 = vmatpush1.msra.mxu0 0.0
      %2060 = vmatprep.subr.mxu0 0.0
      %2061 = vmatpush1.msra.mxu0 0.0
      %2062 = vmatprep.subr.mxu0 0.0
      %2063 = vmatpush1.msra.mxu0 0.0
      %2064 = vmatprep.subr.mxu0 0.0
      %2065 = vmatpush1.msra.mxu0 0.0
      %2066 = vmatprep.subr.mxu0 0.0
      %2067 = vmatpush1.msra.mxu0 0.0
      %2068 = vmatprep.mubr.f32.mxu0 0.0
      %2069 = vmatmul.mubr.f32.gmra.mrb[0].mxu0 %v2002
      %v2070 = vpop.f32.mrb[0].mxu0
      %v2071 = vadd.f32 0.0, %v2070
      %v2072 = vpop.f32.mrb[0].mxu0
      %2073 = vdwg.mxu0
      %v2074 = vadd.f32 %v1995, %v2071
      %s2075 = scalar_lea.vmem %s259, 16
      %v2076 = vld [vmem:[%s2075] sm:$0x3]
      %v2077 = vld [vmem:[%s368] sm:$0x3]
      %v2078 = vld [vmem:[%s3] sm:$0xff]
      %v2079 = vld [vmem:[%s3 + $0x8] sm:$0xff]
      %v2080 = vld [vmem:[%s3 + $0x10] sm:$0xff]
      %v2081 = vld [vmem:[%s3 + $0x18] sm:$0xff]
      %v2083 = vsel %vm291, %v2077, 0
      %2085 = vmatprep.subr.mxu0 0.0
      %2086 = vmatpush1.msra.mxu0 %v2078
      %2087 = vmatprep.subr.mxu0 0.0
      %2088 = vmatpush1.msra.mxu0 %v2079
      %2089 = vmatprep.subr.mxu0 0.0
      %2090 = vmatpush1.msra.mxu0 %v2080
      %2091 = vmatprep.subr.mxu0 0.0
      %2092 = vmatpush1.msra.mxu0 %v2081
      %2093 = vmatprep.subr.mxu0 0.0
      %2094 = vmatpush1.msra.mxu0 0.0
      %2095 = vmatprep.subr.mxu0 0.0
      %2096 = vmatpush1.msra.mxu0 0.0
      %2097 = vmatprep.subr.mxu0 0.0
      %2098 = vmatpush1.msra.mxu0 0.0
      %2099 = vmatprep.subr.mxu0 0.0
      %2100 = vmatpush1.msra.mxu0 0.0
      %2101 = vmatprep.subr.mxu0 0.0
      %2102 = vmatpush1.msra.mxu0 0.0
      %2103 = vmatprep.subr.mxu0 0.0
      %2104 = vmatpush1.msra.mxu0 0.0
      %2105 = vmatprep.subr.mxu0 0.0
      %2106 = vmatpush1.msra.mxu0 0.0
      %2107 = vmatprep.subr.mxu0 0.0
      %2108 = vmatpush1.msra.mxu0 0.0
      %2109 = vmatprep.subr.mxu0 0.0
      %2110 = vmatpush1.msra.mxu0 0.0
      %2111 = vmatprep.subr.mxu0 0.0
      %2112 = vmatpush1.msra.mxu0 0.0
      %2113 = vmatprep.subr.mxu0 0.0
      %2114 = vmatpush1.msra.mxu0 0.0
      %2115 = vmatprep.subr.mxu0 0.0
      %2116 = vmatpush1.msra.mxu0 0.0
      %2117 = vmatprep.subr.mxu0 0.0
      %2118 = vmatpush1.msra.mxu0 0.0
      %2119 = vmatprep.subr.mxu0 0.0
      %2120 = vmatpush1.msra.mxu0 0.0
      %2121 = vmatprep.subr.mxu0 0.0
      %2122 = vmatpush1.msra.mxu0 0.0
      %2123 = vmatprep.subr.mxu0 0.0
      %2124 = vmatpush1.msra.mxu0 0.0
      %2125 = vmatprep.subr.mxu0 0.0
      %2126 = vmatpush1.msra.mxu0 0.0
      %2127 = vmatprep.subr.mxu0 0.0
      %2128 = vmatpush1.msra.mxu0 0.0
      %2129 = vmatprep.subr.mxu0 0.0
      %2130 = vmatpush1.msra.mxu0 0.0
      %2131 = vmatprep.subr.mxu0 0.0
      %2132 = vmatpush1.msra.mxu0 0.0
      %2133 = vmatprep.subr.mxu0 0.0
      %2134 = vmatpush1.msra.mxu0 0.0
      %2135 = vmatprep.subr.mxu0 0.0
      %2136 = vmatpush1.msra.mxu0 0.0
      %2137 = vmatprep.subr.mxu0 0.0
      %2138 = vmatpush1.msra.mxu0 0.0
      %2139 = vmatprep.subr.mxu0 0.0
      %2140 = vmatpush1.msra.mxu0 0.0
      %2141 = vmatprep.subr.mxu0 0.0
      %2142 = vmatpush1.msra.mxu0 0.0
      %2143 = vmatprep.subr.mxu0 0.0
      %2144 = vmatpush1.msra.mxu0 0.0
      %2145 = vmatprep.subr.mxu0 0.0
      %2146 = vmatpush1.msra.mxu0 0.0
      %2147 = vmatprep.subr.mxu0 0.0
      %2148 = vmatpush1.msra.mxu0 0.0
      %2149 = vmatprep.mubr.f32.mxu0 0.0
      %2150 = vmatmul.mubr.f32.gmra.mrb[0].mxu0 %v2083
      %v2151 = vpop.f32.mrb[0].mxu0
      %v2152 = vadd.f32 0.0, %v2151
      %v2153 = vpop.f32.mrb[0].mxu0
      %2154 = vdwg.mxu0
      %v2155 = vadd.f32 %v2076, %v2152
      %v2156 = vxor.u32 %v2074, 2147483648
      %v2157 = vxor.u32 %v2155, 2147483648
      %v2158 = vmul.f32 %v2156, 1.442695
      %v2159 = vpow.pop %v2158
      %v2160 = vmul.f32 %v2157, 1.442695
      %v2161 = vpow.pop %v2160
      %v2162 = vadd.f32 %v2159, 1.0
      %v2163 = vadd.f32 %v2161, 1.0
      %v2164 = vrcp.pop %v2162
      %v2165 = vmul.f32 1.0, %v2164
      %v2166 = vrcp.pop %v2163
      %v2167 = vmul.f32 1.0, %v2166
      %v2168 = vtanh.pop %v2074
      %v2169 = vtanh.pop %v2155
      %v2170 = vld [vmem:[#allocation3] sm:$0x3]
      %v2171 = vld [vmem:[#allocation3 + $0x2] sm:$0x3]
      %2174 = vrot.lane.b32.xlu0 %v2170, 32
      %v2175 = vpop.permute.xlu0 %2174
      %2176 = vrot.lane.b32.xlu0 %v2171, 32
      %v2177 = vpop.permute.xlu0 %2176
      %v2180 = vmul.f32 %v2165, %v2175
      %v2181 = vmul.f32 %v2167, %v2177
      %2184 = vrot.lane.b32.xlu0 %v2168, 64
      %v2185 = vpop.permute.xlu0 %2184
      %2186 = vrot.lane.b32.xlu0 %v2169, 64
      %v2187 = vpop.permute.xlu0 %2186
      %v2190 = vmul.f32 %v2165, %v2185
      %v2191 = vmul.f32 %v2167, %v2187
      %2194 = vrot.lane.b32.xlu0 %v2190, 32
      %v2195 = vpop.permute.xlu0 %2194
      %2196 = vrot.lane.b32.xlu0 %v2191, 32
      %v2197 = vpop.permute.xlu0 %2196
      %v2200 = vadd.f32 %v2180, %v2195
      %v2201 = vadd.f32 %v2181, %v2197
      %v2202 = vtanh.pop %v2200
      %v2203 = vtanh.pop %v2201
      %2206 = vrot.lane.b32.xlu0 %v2202, 64
      %v2207 = vpop.permute.xlu0 %2206
      %2208 = vrot.lane.b32.xlu0 %v2203, 64
      %v2209 = vpop.permute.xlu0 %2208
      %v2212 = vmul.f32 %v2165, %v2207
      %v2213 = vmul.f32 %v2167, %v2209
      %2216 = vrot.lane.b32.xlu0 %v2212, 32
      %v2217 = vpop.permute.xlu0 %2216
      %2218 = vrot.lane.b32.xlu0 %v2213, 32
      %v2219 = vpop.permute.xlu0 %2218
      %2222 = vst.msk [vmem:[#allocation2] sm:$0x3] %vm514, %v2217
      %2223 = vst.msk [vmem:[#allocation2 + $0x2] sm:$0x3] %vm514, %v2219
      %2226 = vrot.lane.b32.xlu0 %v2200, 96
      %v2227 = vpop.permute.xlu0 %2226
      %2228 = vrot.lane.b32.xlu0 %v2201, 96
      %v2229 = vpop.permute.xlu0 %2228
      %2232 = vst.msk [vmem:[#allocation3] sm:$0x3] %vm514, %v2227
      %2233 = vst.msk [vmem:[#allocation3 + $0x2] sm:$0x3] %vm514, %v2229
      %s2234 = scalar_lea.vmem %s266, 14
      %2235 = vst.msk [vmem:[%s2234] sm:$0x3] %vm514, %v2217
      %s2236 = scalar_lea.vmem %s273, 16
      %2237 = vst.msk [vmem:[%s2236] sm:$0x3] %vm514, %v2219
      %s2238 = scalar_lea.vmem %s252, 16
      %v2239 = vld [vmem:[%s2238] sm:$0x3]
      %v2240 = vld [vmem:[#allocation2] sm:$0x3]
      %v2241 = vld [vmem:[%s2] sm:$0xff]
      %v2242 = vld [vmem:[%s2 + $0x8] sm:$0xff]
      %v2243 = vld [vmem:[%s2 + $0x10] sm:$0xff]
      %v2244 = vld [vmem:[%s2 + $0x18] sm:$0xff]
      %v2246 = vsel %vm291, %v2240, 0
      %2248 = vmatprep.subr.mxu0 0.0
      %2249 = vmatpush1.msra.mxu0 %v2241
      %2250 = vmatprep.subr.mxu0 0.0
      %2251 = vmatpush1.msra.mxu0 %v2242
      %2252 = vmatprep.subr.mxu0 0.0
      %2253 = vmatpush1.msra.mxu0 %v2243
      %2254 = vmatprep.subr.mxu0 0.0
      %2255 = vmatpush1.msra.mxu0 %v2244
      %2256 = vmatprep.subr.mxu0 0.0
      %2257 = vmatpush1.msra.mxu0 0.0
      %2258 = vmatprep.subr.mxu0 0.0
      %2259 = vmatpush1.msra.mxu0 0.0
      %2260 = vmatprep.subr.mxu0 0.0
      %2261 = vmatpush1.msra.mxu0 0.0
      %2262 = vmatprep.subr.mxu0 0.0
      %2263 = vmatpush1.msra.mxu0 0.0
      %2264 = vmatprep.subr.mxu0 0.0
      %2265 = vmatpush1.msra.mxu0 0.0
      %2266 = vmatprep.subr.mxu0 0.0
      %2267 = vmatpush1.msra.mxu0 0.0
      %2268 = vmatprep.subr.mxu0 0.0
      %2269 = vmatpush1.msra.mxu0 0.0
      %2270 = vmatprep.subr.mxu0 0.0
      %2271 = vmatpush1.msra.mxu0 0.0
      %2272 = vmatprep.subr.mxu0 0.0
      %2273 = vmatpush1.msra.mxu0 0.0
      %2274 = vmatprep.subr.mxu0 0.0
      %2275 = vmatpush1.msra.mxu0 0.0
      %2276 = vmatprep.subr.mxu0 0.0
      %2277 = vmatpush1.msra.mxu0 0.0
      %2278 = vmatprep.subr.mxu0 0.0
      %2279 = vmatpush1.msra.mxu0 0.0
      %2280 = vmatprep.subr.mxu0 0.0
      %2281 = vmatpush1.msra.mxu0 0.0
      %2282 = vmatprep.subr.mxu0 0.0
      %2283 = vmatpush1.msra.mxu0 0.0
      %2284 = vmatprep.subr.mxu0 0.0
      %2285 = vmatpush1.msra.mxu0 0.0
      %2286 = vmatprep.subr.mxu0 0.0
      %2287 = vmatpush1.msra.mxu0 0.0
      %2288 = vmatprep.subr.mxu0 0.0
      %2289 = vmatpush1.msra.mxu0 0.0
      %2290 = vmatprep.subr.mxu0 0.0
      %2291 = vmatpush1.msra.mxu0 0.0
      %2292 = vmatprep.subr.mxu0 0.0
      %2293 = vmatpush1.msra.mxu0 0.0
      %2294 = vmatprep.subr.mxu0 0.0
      %2295 = vmatpush1.msra.mxu0 0.0
      %2296 = vmatprep.subr.mxu0 0.0
      %2297 = vmatpush1.msra.mxu0 0.0
      %2298 = vmatprep.subr.mxu0 0.0
      %2299 = vmatpush1.msra.mxu0 0.0
      %2300 = vmatprep.subr.mxu0 0.0
      %2301 = vmatpush1.msra.mxu0 0.0
      %2302 = vmatprep.subr.mxu0 0.0
      %2303 = vmatpush1.msra.mxu0 0.0
      %2304 = vmatprep.subr.mxu0 0.0
      %2305 = vmatpush1.msra.mxu0 0.0
      %2306 = vmatprep.subr.mxu0 0.0
      %2307 = vmatpush1.msra.mxu0 0.0
      %2308 = vmatprep.subr.mxu0 0.0
      %2309 = vmatpush1.msra.mxu0 0.0
      %2310 = vmatprep.subr.mxu0 0.0
      %2311 = vmatpush1.msra.mxu0 0.0
      %2312 = vmatprep.mubr.f32.mxu0 0.0
      %2313 = vmatmul.mubr.f32.gmra.mrb[0].mxu0 %v2246
      %v2314 = vpop.f32.mrb[0].mxu0
      %v2315 = vadd.f32 0.0, %v2314
      %v2316 = vpop.f32.mrb[0].mxu0
      %2317 = vdwg.mxu0
      %v2318 = vadd.f32 %v2239, %v2315
      %s2319 = scalar_lea.vmem %s259, 14
      %v2320 = vld [vmem:[%s2319] sm:$0x3]
      %v2321 = vld [vmem:[%s368] sm:$0x3]
      %v2322 = vld [vmem:[%s3] sm:$0xff]
      %v2323 = vld [vmem:[%s3 + $0x8] sm:$0xff]
      %v2324 = vld [vmem:[%s3 + $0x10] sm:$0xff]
      %v2325 = vld [vmem:[%s3 + $0x18] sm:$0xff]
      %v2327 = vsel %vm291, %v2321, 0
      %2329 = vmatprep.subr.mxu0 0.0
      %2330 = vmatpush1.msra.mxu0 %v2322
      %2331 = vmatprep.subr.mxu0 0.0
      %2332 = vmatpush1.msra.mxu0 %v2323
      %2333 = vmatprep.subr.mxu0 0.0
      %2334 = vmatpush1.msra.mxu0 %v2324
      %2335 = vmatprep.subr.mxu0 0.0
      %2336 = vmatpush1.msra.mxu0 %v2325
      %2337 = vmatprep.subr.mxu0 0.0
      %2338 = vmatpush1.msra.mxu0 0.0
      %2339 = vmatprep.subr.mxu0 0.0
      %2340 = vmatpush1.msra.mxu0 0.0
      %2341 = vmatprep.subr.mxu0 0.0
      %2342 = vmatpush1.msra.mxu0 0.0
      %2343 = vmatprep.subr.mxu0 0.0
      %2344 = vmatpush1.msra.mxu0 0.0
      %2345 = vmatprep.subr.mxu0 0.0
      %2346 = vmatpush1.msra.mxu0 0.0
      %2347 = vmatprep.subr.mxu0 0.0
      %2348 = vmatpush1.msra.mxu0 0.0
      %2349 = vmatprep.subr.mxu0 0.0
      %2350 = vmatpush1.msra.mxu0 0.0
      %2351 = vmatprep.subr.mxu0 0.0
      %2352 = vmatpush1.msra.mxu0 0.0
      %2353 = vmatprep.subr.mxu0 0.0
      %2354 = vmatpush1.msra.mxu0 0.0
      %2355 = vmatprep.subr.mxu0 0.0
      %2356 = vmatpush1.msra.mxu0 0.0
      %2357 = vmatprep.subr.mxu0 0.0
      %2358 = vmatpush1.msra.mxu0 0.0
      %2359 = vmatprep.subr.mxu0 0.0
      %2360 = vmatpush1.msra.mxu0 0.0
      %2361 = vmatprep.subr.mxu0 0.0
      %2362 = vmatpush1.msra.mxu0 0.0
      %2363 = vmatprep.subr.mxu0 0.0
      %2364 = vmatpush1.msra.mxu0 0.0
      %2365 = vmatprep.subr.mxu0 0.0
      %2366 = vmatpush1.msra.mxu0 0.0
      %2367 = vmatprep.subr.mxu0 0.0
      %2368 = vmatpush1.msra.mxu0 0.0
      %2369 = vmatprep.subr.mxu0 0.0
      %2370 = vmatpush1.msra.mxu0 0.0
      %2371 = vmatprep.subr.mxu0 0.0
      %2372 = vmatpush1.msra.mxu0 0.0
      %2373 = vmatprep.subr.mxu0 0.0
      %2374 = vmatpush1.msra.mxu0 0.0
      %2375 = vmatprep.subr.mxu0 0.0
      %2376 = vmatpush1.msra.mxu0 0.0
      %2377 = vmatprep.subr.mxu0 0.0
      %2378 = vmatpush1.msra.mxu0 0.0
      %2379 = vmatprep.subr.mxu0 0.0
      %2380 = vmatpush1.msra.mxu0 0.0
      %2381 = vmatprep.subr.mxu0 0.0
      %2382 = vmatpush1.msra.mxu0 0.0
      %2383 = vmatprep.subr.mxu0 0.0
      %2384 = vmatpush1.msra.mxu0 0.0
      %2385 = vmatprep.subr.mxu0 0.0
      %2386 = vmatpush1.msra.mxu0 0.0
      %2387 = vmatprep.subr.mxu0 0.0
      %2388 = vmatpush1.msra.mxu0 0.0
      %2389 = vmatprep.subr.mxu0 0.0
      %2390 = vmatpush1.msra.mxu0 0.0
      %2391 = vmatprep.subr.mxu0 0.0
      %2392 = vmatpush1.msra.mxu0 0.0
      %2393 = vmatprep.mubr.f32.mxu0 0.0
      %2394 = vmatmul.mubr.f32.gmra.mrb[0].mxu0 %v2327
      %v2395 = vpop.f32.mrb[0].mxu0
      %v2396 = vadd.f32 0.0, %v2395
      %v2397 = vpop.f32.mrb[0].mxu0
      %2398 = vdwg.mxu0
      %v2399 = vadd.f32 %v2320, %v2396
      %v2400 = vxor.u32 %v2318, 2147483648
      %v2401 = vxor.u32 %v2399, 2147483648
      %v2402 = vmul.f32 %v2400, 1.442695
      %v2403 = vpow.pop %v2402
      %v2404 = vmul.f32 %v2401, 1.442695
      %v2405 = vpow.pop %v2404
      %v2406 = vadd.f32 %v2403, 1.0
      %v2407 = vadd.f32 %v2405, 1.0
      %v2408 = vrcp.pop %v2406
      %v2409 = vmul.f32 1.0, %v2408
      %v2410 = vrcp.pop %v2407
      %v2411 = vmul.f32 1.0, %v2410
      %v2412 = vtanh.pop %v2318
      %v2413 = vtanh.pop %v2399
      %v2414 = vld [vmem:[#allocation3] sm:$0x3]
      %v2415 = vld [vmem:[#allocation3 + $0x2] sm:$0x3]
      %2418 = vrot.lane.b32.xlu0 %v2414, 32
      %v2419 = vpop.permute.xlu0 %2418
      %2420 = vrot.lane.b32.xlu0 %v2415, 32
      %v2421 = vpop.permute.xlu0 %2420
      %v2424 = vmul.f32 %v2409, %v2419
      %v2425 = vmul.f32 %v2411, %v2421
      %2428 = vrot.lane.b32.xlu0 %v2412, 64
      %v2429 = vpop.permute.xlu0 %2428
      %2430 = vrot.lane.b32.xlu0 %v2413, 64
      %v2431 = vpop.permute.xlu0 %2430
      %v2434 = vmul.f32 %v2409, %v2429
      %v2435 = vmul.f32 %v2411, %v2431
      %2438 = vrot.lane.b32.xlu0 %v2434, 32
      %v2439 = vpop.permute.xlu0 %2438
      %2440 = vrot.lane.b32.xlu0 %v2435, 32
      %v2441 = vpop.permute.xlu0 %2440
      %v2444 = vadd.f32 %v2424, %v2439
      %v2445 = vadd.f32 %v2425, %v2441
      %v2446 = vtanh.pop %v2444
      %v2447 = vtanh.pop %v2445
      %2450 = vrot.lane.b32.xlu0 %v2446, 64
      %v2451 = vpop.permute.xlu0 %2450
      %2452 = vrot.lane.b32.xlu0 %v2447, 64
      %v2453 = vpop.permute.xlu0 %2452
      %v2456 = vmul.f32 %v2409, %v2451
      %v2457 = vmul.f32 %v2411, %v2453
      %2460 = vrot.lane.b32.xlu0 %v2456, 32
      %v2461 = vpop.permute.xlu0 %2460
      %2462 = vrot.lane.b32.xlu0 %v2457, 32
      %v2463 = vpop.permute.xlu0 %2462
      %2466 = vst.msk [vmem:[#allocation2] sm:$0x3] %vm514, %v2461
      %2467 = vst.msk [vmem:[#allocation2 + $0x2] sm:$0x3] %vm514, %v2463
      %2470 = vrot.lane.b32.xlu0 %v2444, 96
      %v2471 = vpop.permute.xlu0 %2470
      %2472 = vrot.lane.b32.xlu0 %v2445, 96
      %v2473 = vpop.permute.xlu0 %2472
      %2476 = vst.msk [vmem:[#allocation3] sm:$0x3] %vm514, %v2471
      %2477 = vst.msk [vmem:[#allocation3 + $0x2] sm:$0x3] %vm514, %v2473
      %s2478 = scalar_lea.vmem %s266, 16
      %2479 = vst.msk [vmem:[%s2478] sm:$0x3] %vm514, %v2461
      %s2480 = scalar_lea.vmem %s273, 14
      %2481 = vst.msk [vmem:[%s2480] sm:$0x3] %vm514, %v2463
      %s2482 = scalar_lea.vmem %s252, 18
      %v2483 = vld [vmem:[%s2482] sm:$0x3]
      %v2484 = vld [vmem:[#allocation2] sm:$0x3]
      %v2485 = vld [vmem:[%s2] sm:$0xff]
      %v2486 = vld [vmem:[%s2 + $0x8] sm:$0xff]
      %v2487 = vld [vmem:[%s2 + $0x10] sm:$0xff]
      %v2488 = vld [vmem:[%s2 + $0x18] sm:$0xff]
      %v2490 = vsel %vm291, %v2484, 0
      %2492 = vmatprep.subr.mxu0 0.0
      %2493 = vmatpush1.msra.mxu0 %v2485
      %2494 = vmatprep.subr.mxu0 0.0
      %2495 = vmatpush1.msra.mxu0 %v2486
      %2496 = vmatprep.subr.mxu0 0.0
      %2497 = vmatpush1.msra.mxu0 %v2487
      %2498 = vmatprep.subr.mxu0 0.0
      %2499 = vmatpush1.msra.mxu0 %v2488
      %2500 = vmatprep.subr.mxu0 0.0
      %2501 = vmatpush1.msra.mxu0 0.0
      %2502 = vmatprep.subr.mxu0 0.0
      %2503 = vmatpush1.msra.mxu0 0.0
      %2504 = vmatprep.subr.mxu0 0.0
      %2505 = vmatpush1.msra.mxu0 0.0
      %2506 = vmatprep.subr.mxu0 0.0
      %2507 = vmatpush1.msra.mxu0 0.0
      %2508 = vmatprep.subr.mxu0 0.0
      %2509 = vmatpush1.msra.mxu0 0.0
      %2510 = vmatprep.subr.mxu0 0.0
      %2511 = vmatpush1.msra.mxu0 0.0
      %2512 = vmatprep.subr.mxu0 0.0
      %2513 = vmatpush1.msra.mxu0 0.0
      %2514 = vmatprep.subr.mxu0 0.0
      %2515 = vmatpush1.msra.mxu0 0.0
      %2516 = vmatprep.subr.mxu0 0.0
      %2517 = vmatpush1.msra.mxu0 0.0
      %2518 = vmatprep.subr.mxu0 0.0
      %2519 = vmatpush1.msra.mxu0 0.0
      %2520 = vmatprep.subr.mxu0 0.0
      %2521 = vmatpush1.msra.mxu0 0.0
      %2522 = vmatprep.subr.mxu0 0.0
      %2523 = vmatpush1.msra.mxu0 0.0
      %2524 = vmatprep.subr.mxu0 0.0
      %2525 = vmatpush1.msra.mxu0 0.0
      %2526 = vmatprep.subr.mxu0 0.0
      %2527 = vmatpush1.msra.mxu0 0.0
      %2528 = vmatprep.subr.mxu0 0.0
      %2529 = vmatpush1.msra.mxu0 0.0
      %2530 = vmatprep.subr.mxu0 0.0
      %2531 = vmatpush1.msra.mxu0 0.0
      %2532 = vmatprep.subr.mxu0 0.0
      %2533 = vmatpush1.msra.mxu0 0.0
      %2534 = vmatprep.subr.mxu0 0.0
      %2535 = vmatpush1.msra.mxu0 0.0
      %2536 = vmatprep.subr.mxu0 0.0
      %2537 = vmatpush1.msra.mxu0 0.0
      %2538 = vmatprep.subr.mxu0 0.0
      %2539 = vmatpush1.msra.mxu0 0.0
      %2540 = vmatprep.subr.mxu0 0.0
      %2541 = vmatpush1.msra.mxu0 0.0
      %2542 = vmatprep.subr.mxu0 0.0
      %2543 = vmatpush1.msra.mxu0 0.0
      %2544 = vmatprep.subr.mxu0 0.0
      %2545 = vmatpush1.msra.mxu0 0.0
      %2546 = vmatprep.subr.mxu0 0.0
      %2547 = vmatpush1.msra.mxu0 0.0
      %2548 = vmatprep.subr.mxu0 0.0
      %2549 = vmatpush1.msra.mxu0 0.0
      %2550 = vmatprep.subr.mxu0 0.0
      %2551 = vmatpush1.msra.mxu0 0.0
      %2552 = vmatprep.subr.mxu0 0.0
      %2553 = vmatpush1.msra.mxu0 0.0
      %2554 = vmatprep.subr.mxu0 0.0
      %2555 = vmatpush1.msra.mxu0 0.0
      %2556 = vmatprep.mubr.f32.mxu0 0.0
      %2557 = vmatmul.mubr.f32.gmra.mrb[0].mxu0 %v2490
      %v2558 = vpop.f32.mrb[0].mxu0
      %v2559 = vadd.f32 0.0, %v2558
      %v2560 = vpop.f32.mrb[0].mxu0
      %2561 = vdwg.mxu0
      %v2562 = vadd.f32 %v2483, %v2559
      %s2563 = scalar_lea.vmem %s259, 12
      %v2564 = vld [vmem:[%s2563] sm:$0x3]
      %v2565 = vld [vmem:[%s368] sm:$0x3]
      %v2566 = vld [vmem:[%s3] sm:$0xff]
      %v2567 = vld [vmem:[%s3 + $0x8] sm:$0xff]
      %v2568 = vld [vmem:[%s3 + $0x10] sm:$0xff]
      %v2569 = vld [vmem:[%s3 + $0x18] sm:$0xff]
      %v2571 = vsel %vm291, %v2565, 0
      %2573 = vmatprep.subr.mxu0 0.0
      %2574 = vmatpush1.msra.mxu0 %v2566
      %2575 = vmatprep.subr.mxu0 0.0
      %2576 = vmatpush1.msra.mxu0 %v2567
      %2577 = vmatprep.subr.mxu0 0.0
      %2578 = vmatpush1.msra.mxu0 %v2568
      %2579 = vmatprep.subr.mxu0 0.0
      %2580 = vmatpush1.msra.mxu0 %v2569
      %2581 = vmatprep.subr.mxu0 0.0
      %2582 = vmatpush1.msra.mxu0 0.0
      %2583 = vmatprep.subr.mxu0 0.0
      %2584 = vmatpush1.msra.mxu0 0.0
      %2585 = vmatprep.subr.mxu0 0.0
      %2586 = vmatpush1.msra.mxu0 0.0
      %2587 = vmatprep.subr.mxu0 0.0
      %2588 = vmatpush1.msra.mxu0 0.0
      %2589 = vmatprep.subr.mxu0 0.0
      %2590 = vmatpush1.msra.mxu0 0.0
      %2591 = vmatprep.subr.mxu0 0.0
      %2592 = vmatpush1.msra.mxu0 0.0
      %2593 = vmatprep.subr.mxu0 0.0
      %2594 = vmatpush1.msra.mxu0 0.0
      %2595 = vmatprep.subr.mxu0 0.0
      %2596 = vmatpush1.msra.mxu0 0.0
      %2597 = vmatprep.subr.mxu0 0.0
      %2598 = vmatpush1.msra.mxu0 0.0
      %2599 = vmatprep.subr.mxu0 0.0
      %2600 = vmatpush1.msra.mxu0 0.0
      %2601 = vmatprep.subr.mxu0 0.0
      %2602 = vmatpush1.msra.mxu0 0.0
      %2603 = vmatprep.subr.mxu0 0.0
      %2604 = vmatpush1.msra.mxu0 0.0
      %2605 = vmatprep.subr.mxu0 0.0
      %2606 = vmatpush1.msra.mxu0 0.0
      %2607 = vmatprep.subr.mxu0 0.0
      %2608 = vmatpush1.msra.mxu0 0.0
      %2609 = vmatprep.subr.mxu0 0.0
      %2610 = vmatpush1.msra.mxu0 0.0
      %2611 = vmatprep.subr.mxu0 0.0
      %2612 = vmatpush1.msra.mxu0 0.0
      %2613 = vmatprep.subr.mxu0 0.0
      %2614 = vmatpush1.msra.mxu0 0.0
      %2615 = vmatprep.subr.mxu0 0.0
      %2616 = vmatpush1.msra.mxu0 0.0
      %2617 = vmatprep.subr.mxu0 0.0
      %2618 = vmatpush1.msra.mxu0 0.0
      %2619 = vmatprep.subr.mxu0 0.0
      %2620 = vmatpush1.msra.mxu0 0.0
      %2621 = vmatprep.subr.mxu0 0.0
      %2622 = vmatpush1.msra.mxu0 0.0
      %2623 = vmatprep.subr.mxu0 0.0
      %2624 = vmatpush1.msra.mxu0 0.0
      %2625 = vmatprep.subr.mxu0 0.0
      %2626 = vmatpush1.msra.mxu0 0.0
      %2627 = vmatprep.subr.mxu0 0.0
      %2628 = vmatpush1.msra.mxu0 0.0
      %2629 = vmatprep.subr.mxu0 0.0
      %2630 = vmatpush1.msra.mxu0 0.0
      %2631 = vmatprep.subr.mxu0 0.0
      %2632 = vmatpush1.msra.mxu0 0.0
      %2633 = vmatprep.subr.mxu0 0.0
      %2634 = vmatpush1.msra.mxu0 0.0
      %2635 = vmatprep.subr.mxu0 0.0
      %2636 = vmatpush1.msra.mxu0 0.0
      %2637 = vmatprep.mubr.f32.mxu0 0.0
      %2638 = vmatmul.mubr.f32.gmra.mrb[0].mxu0 %v2571
      %v2639 = vpop.f32.mrb[0].mxu0
      %v2640 = vadd.f32 0.0, %v2639
      %v2641 = vpop.f32.mrb[0].mxu0
      %2642 = vdwg.mxu0
      %v2643 = vadd.f32 %v2564, %v2640
      %v2644 = vxor.u32 %v2562, 2147483648
      %v2645 = vxor.u32 %v2643, 2147483648
      %v2646 = vmul.f32 %v2644, 1.442695
      %v2647 = vpow.pop %v2646
      %v2648 = vmul.f32 %v2645, 1.442695
      %v2649 = vpow.pop %v2648
      %v2650 = vadd.f32 %v2647, 1.0
      %v2651 = vadd.f32 %v2649, 1.0
      %v2652 = vrcp.pop %v2650
      %v2653 = vmul.f32 1.0, %v2652
      %v2654 = vrcp.pop %v2651
      %v2655 = vmul.f32 1.0, %v2654
      %v2656 = vtanh.pop %v2562
      %v2657 = vtanh.pop %v2643
      %v2658 = vld [vmem:[#allocation3] sm:$0x3]
      %v2659 = vld [vmem:[#allocation3 + $0x2] sm:$0x3]
      %2662 = vrot.lane.b32.xlu0 %v2658, 32
      %v2663 = vpop.permute.xlu0 %2662
      %2664 = vrot.lane.b32.xlu0 %v2659, 32
      %v2665 = vpop.permute.xlu0 %2664
      %v2668 = vmul.f32 %v2653, %v2663
      %v2669 = vmul.f32 %v2655, %v2665
      %2672 = vrot.lane.b32.xlu0 %v2656, 64
      %v2673 = vpop.permute.xlu0 %2672
      %2674 = vrot.lane.b32.xlu0 %v2657, 64
      %v2675 = vpop.permute.xlu0 %2674
      %v2678 = vmul.f32 %v2653, %v2673
      %v2679 = vmul.f32 %v2655, %v2675
      %2682 = vrot.lane.b32.xlu0 %v2678, 32
      %v2683 = vpop.permute.xlu0 %2682
      %2684 = vrot.lane.b32.xlu0 %v2679, 32
      %v2685 = vpop.permute.xlu0 %2684
      %v2688 = vadd.f32 %v2668, %v2683
      %v2689 = vadd.f32 %v2669, %v2685
      %v2690 = vtanh.pop %v2688
      %v2691 = vtanh.pop %v2689
      %2694 = vrot.lane.b32.xlu0 %v2690, 64
      %v2695 = vpop.permute.xlu0 %2694
      %2696 = vrot.lane.b32.xlu0 %v2691, 64
      %v2697 = vpop.permute.xlu0 %2696
      %v2700 = vmul.f32 %v2653, %v2695
      %v2701 = vmul.f32 %v2655, %v2697
      %2704 = vrot.lane.b32.xlu0 %v2700, 32
      %v2705 = vpop.permute.xlu0 %2704
      %2706 = vrot.lane.b32.xlu0 %v2701, 32
      %v2707 = vpop.permute.xlu0 %2706
      %2710 = vst.msk [vmem:[#allocation2] sm:$0x3] %vm514, %v2705
      %2711 = vst.msk [vmem:[#allocation2 + $0x2] sm:$0x3] %vm514, %v2707
      %2714 = vrot.lane.b32.xlu0 %v2688, 96
      %v2715 = vpop.permute.xlu0 %2714
      %2716 = vrot.lane.b32.xlu0 %v2689, 96
      %v2717 = vpop.permute.xlu0 %2716
      %2720 = vst.msk [vmem:[#allocation3] sm:$0x3] %vm514, %v2715
      %2721 = vst.msk [vmem:[#allocation3 + $0x2] sm:$0x3] %vm514, %v2717
      %s2722 = scalar_lea.vmem %s266, 18
      %2723 = vst.msk [vmem:[%s2722] sm:$0x3] %vm514, %v2705
      %s2724 = scalar_lea.vmem %s273, 12
      %2725 = vst.msk [vmem:[%s2724] sm:$0x3] %vm514, %v2707
      %s2726 = scalar_lea.vmem %s252, 20
      %v2727 = vld [vmem:[%s2726] sm:$0x3]
      %v2728 = vld [vmem:[#allocation2] sm:$0x3]
      %v2729 = vld [vmem:[%s2] sm:$0xff]
      %v2730 = vld [vmem:[%s2 + $0x8] sm:$0xff]
      %v2731 = vld [vmem:[%s2 + $0x10] sm:$0xff]
      %v2732 = vld [vmem:[%s2 + $0x18] sm:$0xff]
      %v2734 = vsel %vm291, %v2728, 0
      %2736 = vmatprep.subr.mxu0 0.0
      %2737 = vmatpush1.msra.mxu0 %v2729
      %2738 = vmatprep.subr.mxu0 0.0
      %2739 = vmatpush1.msra.mxu0 %v2730
      %2740 = vmatprep.subr.mxu0 0.0
      %2741 = vmatpush1.msra.mxu0 %v2731
      %2742 = vmatprep.subr.mxu0 0.0
      %2743 = vmatpush1.msra.mxu0 %v2732
      %2744 = vmatprep.subr.mxu0 0.0
      %2745 = vmatpush1.msra.mxu0 0.0
      %2746 = vmatprep.subr.mxu0 0.0
      %2747 = vmatpush1.msra.mxu0 0.0
      %2748 = vmatprep.subr.mxu0 0.0
      %2749 = vmatpush1.msra.mxu0 0.0
      %2750 = vmatprep.subr.mxu0 0.0
      %2751 = vmatpush1.msra.mxu0 0.0
      %2752 = vmatprep.subr.mxu0 0.0
      %2753 = vmatpush1.msra.mxu0 0.0
      %2754 = vmatprep.subr.mxu0 0.0
      %2755 = vmatpush1.msra.mxu0 0.0
      %2756 = vmatprep.subr.mxu0 0.0
      %2757 = vmatpush1.msra.mxu0 0.0
      %2758 = vmatprep.subr.mxu0 0.0
      %2759 = vmatpush1.msra.mxu0 0.0
      %2760 = vmatprep.subr.mxu0 0.0
      %2761 = vmatpush1.msra.mxu0 0.0
      %2762 = vmatprep.subr.mxu0 0.0
      %2763 = vmatpush1.msra.mxu0 0.0
      %2764 = vmatprep.subr.mxu0 0.0
      %2765 = vmatpush1.msra.mxu0 0.0
      %2766 = vmatprep.subr.mxu0 0.0
      %2767 = vmatpush1.msra.mxu0 0.0
      %2768 = vmatprep.subr.mxu0 0.0
      %2769 = vmatpush1.msra.mxu0 0.0
      %2770 = vmatprep.subr.mxu0 0.0
      %2771 = vmatpush1.msra.mxu0 0.0
      %2772 = vmatprep.subr.mxu0 0.0
      %2773 = vmatpush1.msra.mxu0 0.0
      %2774 = vmatprep.subr.mxu0 0.0
      %2775 = vmatpush1.msra.mxu0 0.0
      %2776 = vmatprep.subr.mxu0 0.0
      %2777 = vmatpush1.msra.mxu0 0.0
      %2778 = vmatprep.subr.mxu0 0.0
      %2779 = vmatpush1.msra.mxu0 0.0
      %2780 = vmatprep.subr.mxu0 0.0
      %2781 = vmatpush1.msra.mxu0 0.0
      %2782 = vmatprep.subr.mxu0 0.0
      %2783 = vmatpush1.msra.mxu0 0.0
      %2784 = vmatprep.subr.mxu0 0.0
      %2785 = vmatpush1.msra.mxu0 0.0
      %2786 = vmatprep.subr.mxu0 0.0
      %2787 = vmatpush1.msra.mxu0 0.0
      %2788 = vmatprep.subr.mxu0 0.0
      %2789 = vmatpush1.msra.mxu0 0.0
      %2790 = vmatprep.subr.mxu0 0.0
      %2791 = vmatpush1.msra.mxu0 0.0
      %2792 = vmatprep.subr.mxu0 0.0
      %2793 = vmatpush1.msra.mxu0 0.0
      %2794 = vmatprep.subr.mxu0 0.0
      %2795 = vmatpush1.msra.mxu0 0.0
      %2796 = vmatprep.subr.mxu0 0.0
      %2797 = vmatpush1.msra.mxu0 0.0
      %2798 = vmatprep.subr.mxu0 0.0
      %2799 = vmatpush1.msra.mxu0 0.0
      %2800 = vmatprep.mubr.f32.mxu0 0.0
      %2801 = vmatmul.mubr.f32.gmra.mrb[0].mxu0 %v2734
      %v2802 = vpop.f32.mrb[0].mxu0
      %v2803 = vadd.f32 0.0, %v2802
      %v2804 = vpop.f32.mrb[0].mxu0
      %2805 = vdwg.mxu0
      %v2806 = vadd.f32 %v2727, %v2803
      %s2807 = scalar_lea.vmem %s259, 10
      %v2808 = vld [vmem:[%s2807] sm:$0x3]
      %v2809 = vld [vmem:[%s368] sm:$0x3]
      %v2810 = vld [vmem:[%s3] sm:$0xff]
      %v2811 = vld [vmem:[%s3 + $0x8] sm:$0xff]
      %v2812 = vld [vmem:[%s3 + $0x10] sm:$0xff]
      %v2813 = vld [vmem:[%s3 + $0x18] sm:$0xff]
      %v2815 = vsel %vm291, %v2809, 0
      %2817 = vmatprep.subr.mxu0 0.0
      %2818 = vmatpush1.msra.mxu0 %v2810
      %2819 = vmatprep.subr.mxu0 0.0
      %2820 = vmatpush1.msra.mxu0 %v2811
      %2821 = vmatprep.subr.mxu0 0.0
      %2822 = vmatpush1.msra.mxu0 %v2812
      %2823 = vmatprep.subr.mxu0 0.0
      %2824 = vmatpush1.msra.mxu0 %v2813
      %2825 = vmatprep.subr.mxu0 0.0
      %2826 = vmatpush1.msra.mxu0 0.0
      %2827 = vmatprep.subr.mxu0 0.0
      %2828 = vmatpush1.msra.mxu0 0.0
      %2829 = vmatprep.subr.mxu0 0.0
      %2830 = vmatpush1.msra.mxu0 0.0
      %2831 = vmatprep.subr.mxu0 0.0
      %2832 = vmatpush1.msra.mxu0 0.0
      %2833 = vmatprep.subr.mxu0 0.0
      %2834 = vmatpush1.msra.mxu0 0.0
      %2835 = vmatprep.subr.mxu0 0.0
      %2836 = vmatpush1.msra.mxu0 0.0
      %2837 = vmatprep.subr.mxu0 0.0
      %2838 = vmatpush1.msra.mxu0 0.0
      %2839 = vmatprep.subr.mxu0 0.0
      %2840 = vmatpush1.msra.mxu0 0.0
      %2841 = vmatprep.subr.mxu0 0.0
      %2842 = vmatpush1.msra.mxu0 0.0
      %2843 = vmatprep.subr.mxu0 0.0
      %2844 = vmatpush1.msra.mxu0 0.0
      %2845 = vmatprep.subr.mxu0 0.0
      %2846 = vmatpush1.msra.mxu0 0.0
      %2847 = vmatprep.subr.mxu0 0.0
      %2848 = vmatpush1.msra.mxu0 0.0
      %2849 = vmatprep.subr.mxu0 0.0
      %2850 = vmatpush1.msra.mxu0 0.0
      %2851 = vmatprep.subr.mxu0 0.0
      %2852 = vmatpush1.msra.mxu0 0.0
      %2853 = vmatprep.subr.mxu0 0.0
      %2854 = vmatpush1.msra.mxu0 0.0
      %2855 = vmatprep.subr.mxu0 0.0
      %2856 = vmatpush1.msra.mxu0 0.0
      %2857 = vmatprep.subr.mxu0 0.0
      %2858 = vmatpush1.msra.mxu0 0.0
      %2859 = vmatprep.subr.mxu0 0.0
      %2860 = vmatpush1.msra.mxu0 0.0
      %2861 = vmatprep.subr.mxu0 0.0
      %2862 = vmatpush1.msra.mxu0 0.0
      %2863 = vmatprep.subr.mxu0 0.0
      %2864 = vmatpush1.msra.mxu0 0.0
      %2865 = vmatprep.subr.mxu0 0.0
      %2866 = vmatpush1.msra.mxu0 0.0
      %2867 = vmatprep.subr.mxu0 0.0
      %2868 = vmatpush1.msra.mxu0 0.0
      %2869 = vmatprep.subr.mxu0 0.0
      %2870 = vmatpush1.msra.mxu0 0.0
      %2871 = vmatprep.subr.mxu0 0.0
      %2872 = vmatpush1.msra.mxu0 0.0
      %2873 = vmatprep.subr.mxu0 0.0
      %2874 = vmatpush1.msra.mxu0 0.0
      %2875 = vmatprep.subr.mxu0 0.0
      %2876 = vmatpush1.msra.mxu0 0.0
      %2877 = vmatprep.subr.mxu0 0.0
      %2878 = vmatpush1.msra.mxu0 0.0
      %2879 = vmatprep.subr.mxu0 0.0
      %2880 = vmatpush1.msra.mxu0 0.0
      %2881 = vmatprep.mubr.f32.mxu0 0.0
      %2882 = vmatmul.mubr.f32.gmra.mrb[0].mxu0 %v2815
      %v2883 = vpop.f32.mrb[0].mxu0
      %v2884 = vadd.f32 0.0, %v2883
      %v2885 = vpop.f32.mrb[0].mxu0
      %2886 = vdwg.mxu0
      %v2887 = vadd.f32 %v2808, %v2884
      %v2888 = vxor.u32 %v2806, 2147483648
      %v2889 = vxor.u32 %v2887, 2147483648
      %v2890 = vmul.f32 %v2888, 1.442695
      %v2891 = vpow.pop %v2890
      %v2892 = vmul.f32 %v2889, 1.442695
      %v2893 = vpow.pop %v2892
      %v2894 = vadd.f32 %v2891, 1.0
      %v2895 = vadd.f32 %v2893, 1.0
      %v2896 = vrcp.pop %v2894
      %v2897 = vmul.f32 1.0, %v2896
      %v2898 = vrcp.pop %v2895
      %v2899 = vmul.f32 1.0, %v2898
      %v2900 = vtanh.pop %v2806
      %v2901 = vtanh.pop %v2887
      %v2902 = vld [vmem:[#allocation3] sm:$0x3]
      %v2903 = vld [vmem:[#allocation3 + $0x2] sm:$0x3]
      %2906 = vrot.lane.b32.xlu0 %v2902, 32
      %v2907 = vpop.permute.xlu0 %2906
      %2908 = vrot.lane.b32.xlu0 %v2903, 32
      %v2909 = vpop.permute.xlu0 %2908
      %v2912 = vmul.f32 %v2897, %v2907
      %v2913 = vmul.f32 %v2899, %v2909
      %2916 = vrot.lane.b32.xlu0 %v2900, 64
      %v2917 = vpop.permute.xlu0 %2916
      %2918 = vrot.lane.b32.xlu0 %v2901, 64
      %v2919 = vpop.permute.xlu0 %2918
      %v2922 = vmul.f32 %v2897, %v2917
      %v2923 = vmul.f32 %v2899, %v2919
      %2926 = vrot.lane.b32.xlu0 %v2922, 32
      %v2927 = vpop.permute.xlu0 %2926
      %2928 = vrot.lane.b32.xlu0 %v2923, 32
      %v2929 = vpop.permute.xlu0 %2928
      %v2932 = vadd.f32 %v2912, %v2927
      %v2933 = vadd.f32 %v2913, %v2929
      %v2934 = vtanh.pop %v2932
      %v2935 = vtanh.pop %v2933
      %2938 = vrot.lane.b32.xlu0 %v2934, 64
      %v2939 = vpop.permute.xlu0 %2938
      %2940 = vrot.lane.b32.xlu0 %v2935, 64
      %v2941 = vpop.permute.xlu0 %2940
      %v2944 = vmul.f32 %v2897, %v2939
      %v2945 = vmul.f32 %v2899, %v2941
      %2948 = vrot.lane.b32.xlu0 %v2944, 32
      %v2949 = vpop.permute.xlu0 %2948
      %2950 = vrot.lane.b32.xlu0 %v2945, 32
      %v2951 = vpop.permute.xlu0 %2950
      %2954 = vst.msk [vmem:[#allocation2] sm:$0x3] %vm514, %v2949
      %2955 = vst.msk [vmem:[#allocation2 + $0x2] sm:$0x3] %vm514, %v2951
      %2958 = vrot.lane.b32.xlu0 %v2932, 96
      %v2959 = vpop.permute.xlu0 %2958
      %2960 = vrot.lane.b32.xlu0 %v2933, 96
      %v2961 = vpop.permute.xlu0 %2960
      %2964 = vst.msk [vmem:[#allocation3] sm:$0x3] %vm514, %v2959
      %2965 = vst.msk [vmem:[#allocation3 + $0x2] sm:$0x3] %vm514, %v2961
      %s2966 = scalar_lea.vmem %s266, 20
      %2967 = vst.msk [vmem:[%s2966] sm:$0x3] %vm514, %v2949
      %s2968 = scalar_lea.vmem %s273, 10
      %2969 = vst.msk [vmem:[%s2968] sm:$0x3] %vm514, %v2951
      %s2970 = scalar_lea.vmem %s252, 22
      %v2971 = vld [vmem:[%s2970] sm:$0x3]
      %v2972 = vld [vmem:[#allocation2] sm:$0x3]
      %v2973 = vld [vmem:[%s2] sm:$0xff]
      %v2974 = vld [vmem:[%s2 + $0x8] sm:$0xff]
      %v2975 = vld [vmem:[%s2 + $0x10] sm:$0xff]
      %v2976 = vld [vmem:[%s2 + $0x18] sm:$0xff]
      %v2978 = vsel %vm291, %v2972, 0
      %2980 = vmatprep.subr.mxu0 0.0
      %2981 = vmatpush1.msra.mxu0 %v2973
      %2982 = vmatprep.subr.mxu0 0.0
      %2983 = vmatpush1.msra.mxu0 %v2974
      %2984 = vmatprep.subr.mxu0 0.0
      %2985 = vmatpush1.msra.mxu0 %v2975
      %2986 = vmatprep.subr.mxu0 0.0
      %2987 = vmatpush1.msra.mxu0 %v2976
      %2988 = vmatprep.subr.mxu0 0.0
      %2989 = vmatpush1.msra.mxu0 0.0
      %2990 = vmatprep.subr.mxu0 0.0
      %2991 = vmatpush1.msra.mxu0 0.0
      %2992 = vmatprep.subr.mxu0 0.0
      %2993 = vmatpush1.msra.mxu0 0.0
      %2994 = vmatprep.subr.mxu0 0.0
      %2995 = vmatpush1.msra.mxu0 0.0
      %2996 = vmatprep.subr.mxu0 0.0
      %2997 = vmatpush1.msra.mxu0 0.0
      %2998 = vmatprep.subr.mxu0 0.0
      %2999 = vmatpush1.msra.mxu0 0.0
      %3000 = vmatprep.subr.mxu0 0.0
      %3001 = vmatpush1.msra.mxu0 0.0
      %3002 = vmatprep.subr.mxu0 0.0
      %3003 = vmatpush1.msra.mxu0 0.0
      %3004 = vmatprep.subr.mxu0 0.0
      %3005 = vmatpush1.msra.mxu0 0.0
      %3006 = vmatprep.subr.mxu0 0.0
      %3007 = vmatpush1.msra.mxu0 0.0
      %3008 = vmatprep.subr.mxu0 0.0
      %3009 = vmatpush1.msra.mxu0 0.0
      %3010 = vmatprep.subr.mxu0 0.0
      %3011 = vmatpush1.msra.mxu0 0.0
      %3012 = vmatprep.subr.mxu0 0.0
      %3013 = vmatpush1.msra.mxu0 0.0
      %3014 = vmatprep.subr.mxu0 0.0
      %3015 = vmatpush1.msra.mxu0 0.0
      %3016 = vmatprep.subr.mxu0 0.0
      %3017 = vmatpush1.msra.mxu0 0.0
      %3018 = vmatprep.subr.mxu0 0.0
      %3019 = vmatpush1.msra.mxu0 0.0
      %3020 = vmatprep.subr.mxu0 0.0
      %3021 = vmatpush1.msra.mxu0 0.0
      %3022 = vmatprep.subr.mxu0 0.0
      %3023 = vmatpush1.msra.mxu0 0.0
      %3024 = vmatprep.subr.mxu0 0.0
      %3025 = vmatpush1.msra.mxu0 0.0
      %3026 = vmatprep.subr.mxu0 0.0
      %3027 = vmatpush1.msra.mxu0 0.0
      %3028 = vmatprep.subr.mxu0 0.0
      %3029 = vmatpush1.msra.mxu0 0.0
      %3030 = vmatprep.subr.mxu0 0.0
      %3031 = vmatpush1.msra.mxu0 0.0
      %3032 = vmatprep.subr.mxu0 0.0
      %3033 = vmatpush1.msra.mxu0 0.0
      %3034 = vmatprep.subr.mxu0 0.0
      %3035 = vmatpush1.msra.mxu0 0.0
      %3036 = vmatprep.subr.mxu0 0.0
      %3037 = vmatpush1.msra.mxu0 0.0
      %3038 = vmatprep.subr.mxu0 0.0
      %3039 = vmatpush1.msra.mxu0 0.0
      %3040 = vmatprep.subr.mxu0 0.0
      %3041 = vmatpush1.msra.mxu0 0.0
      %3042 = vmatprep.subr.mxu0 0.0
      %3043 = vmatpush1.msra.mxu0 0.0
      %3044 = vmatprep.mubr.f32.mxu0 0.0
      %3045 = vmatmul.mubr.f32.gmra.mrb[0].mxu0 %v2978
      %v3046 = vpop.f32.mrb[0].mxu0
      %v3047 = vadd.f32 0.0, %v3046
      %v3048 = vpop.f32.mrb[0].mxu0
      %3049 = vdwg.mxu0
      %v3050 = vadd.f32 %v2971, %v3047
      %s3051 = scalar_lea.vmem %s259, 8
      %v3052 = vld [vmem:[%s3051] sm:$0x3]
      %v3053 = vld [vmem:[%s368] sm:$0x3]
      %v3054 = vld [vmem:[%s3] sm:$0xff]
      %v3055 = vld [vmem:[%s3 + $0x8] sm:$0xff]
      %v3056 = vld [vmem:[%s3 + $0x10] sm:$0xff]
      %v3057 = vld [vmem:[%s3 + $0x18] sm:$0xff]
      %v3059 = vsel %vm291, %v3053, 0
      %3061 = vmatprep.subr.mxu0 0.0
      %3062 = vmatpush1.msra.mxu0 %v3054
      %3063 = vmatprep.subr.mxu0 0.0
      %3064 = vmatpush1.msra.mxu0 %v3055
      %3065 = vmatprep.subr.mxu0 0.0
      %3066 = vmatpush1.msra.mxu0 %v3056
      %3067 = vmatprep.subr.mxu0 0.0
      %3068 = vmatpush1.msra.mxu0 %v3057
      %3069 = vmatprep.subr.mxu0 0.0
      %3070 = vmatpush1.msra.mxu0 0.0
      %3071 = vmatprep.subr.mxu0 0.0
      %3072 = vmatpush1.msra.mxu0 0.0
      %3073 = vmatprep.subr.mxu0 0.0
      %3074 = vmatpush1.msra.mxu0 0.0
      %3075 = vmatprep.subr.mxu0 0.0
      %3076 = vmatpush1.msra.mxu0 0.0
      %3077 = vmatprep.subr.mxu0 0.0
      %3078 = vmatpush1.msra.mxu0 0.0
      %3079 = vmatprep.subr.mxu0 0.0
      %3080 = vmatpush1.msra.mxu0 0.0
      %3081 = vmatprep.subr.mxu0 0.0
      %3082 = vmatpush1.msra.mxu0 0.0
      %3083 = vmatprep.subr.mxu0 0.0
      %3084 = vmatpush1.msra.mxu0 0.0
      %3085 = vmatprep.subr.mxu0 0.0
      %3086 = vmatpush1.msra.mxu0 0.0
      %3087 = vmatprep.subr.mxu0 0.0
      %3088 = vmatpush1.msra.mxu0 0.0
      %3089 = vmatprep.subr.mxu0 0.0
      %3090 = vmatpush1.msra.mxu0 0.0
      %3091 = vmatprep.subr.mxu0 0.0
      %3092 = vmatpush1.msra.mxu0 0.0
      %3093 = vmatprep.subr.mxu0 0.0
      %3094 = vmatpush1.msra.mxu0 0.0
      %3095 = vmatprep.subr.mxu0 0.0
      %3096 = vmatpush1.msra.mxu0 0.0
      %3097 = vmatprep.subr.mxu0 0.0
      %3098 = vmatpush1.msra.mxu0 0.0
      %3099 = vmatprep.subr.mxu0 0.0
      %3100 = vmatpush1.msra.mxu0 0.0
      %3101 = vmatprep.subr.mxu0 0.0
      %3102 = vmatpush1.msra.mxu0 0.0
      %3103 = vmatprep.subr.mxu0 0.0
      %3104 = vmatpush1.msra.mxu0 0.0
      %3105 = vmatprep.subr.mxu0 0.0
      %3106 = vmatpush1.msra.mxu0 0.0
      %3107 = vmatprep.subr.mxu0 0.0
      %3108 = vmatpush1.msra.mxu0 0.0
      %3109 = vmatprep.subr.mxu0 0.0
      %3110 = vmatpush1.msra.mxu0 0.0
      %3111 = vmatprep.subr.mxu0 0.0
      %3112 = vmatpush1.msra.mxu0 0.0
      %3113 = vmatprep.subr.mxu0 0.0
      %3114 = vmatpush1.msra.mxu0 0.0
      %3115 = vmatprep.subr.mxu0 0.0
      %3116 = vmatpush1.msra.mxu0 0.0
      %3117 = vmatprep.subr.mxu0 0.0
      %3118 = vmatpush1.msra.mxu0 0.0
      %3119 = vmatprep.subr.mxu0 0.0
      %3120 = vmatpush1.msra.mxu0 0.0
      %3121 = vmatprep.subr.mxu0 0.0
      %3122 = vmatpush1.msra.mxu0 0.0
      %3123 = vmatprep.subr.mxu0 0.0
      %3124 = vmatpush1.msra.mxu0 0.0
      %3125 = vmatprep.mubr.f32.mxu0 0.0
      %3126 = vmatmul.mubr.f32.gmra.mrb[0].mxu0 %v3059
      %v3127 = vpop.f32.mrb[0].mxu0
      %v3128 = vadd.f32 0.0, %v3127
      %v3129 = vpop.f32.mrb[0].mxu0
      %3130 = vdwg.mxu0
      %v3131 = vadd.f32 %v3052, %v3128
      %v3132 = vxor.u32 %v3050, 2147483648
      %v3133 = vxor.u32 %v3131, 2147483648
      %v3134 = vmul.f32 %v3132, 1.442695
      %v3135 = vpow.pop %v3134
      %v3136 = vmul.f32 %v3133, 1.442695
      %v3137 = vpow.pop %v3136
      %v3138 = vadd.f32 %v3135, 1.0
      %v3139 = vadd.f32 %v3137, 1.0
      %v3140 = vrcp.pop %v3138
      %v3141 = vmul.f32 1.0, %v3140
      %v3142 = vrcp.pop %v3139
      %v3143 = vmul.f32 1.0, %v3142
      %v3144 = vtanh.pop %v3050
      %v3145 = vtanh.pop %v3131
      %v3146 = vld [vmem:[#allocation3] sm:$0x3]
      %v3147 = vld [vmem:[#allocation3 + $0x2] sm:$0x3]
      %3150 = vrot.lane.b32.xlu0 %v3146, 32
      %v3151 = vpop.permute.xlu0 %3150
      %3152 = vrot.lane.b32.xlu0 %v3147, 32
      %v3153 = vpop.permute.xlu0 %3152
      %v3156 = vmul.f32 %v3141, %v3151
      %v3157 = vmul.f32 %v3143, %v3153
      %3160 = vrot.lane.b32.xlu0 %v3144, 64
      %v3161 = vpop.permute.xlu0 %3160
      %3162 = vrot.lane.b32.xlu0 %v3145, 64
      %v3163 = vpop.permute.xlu0 %3162
      %v3166 = vmul.f32 %v3141, %v3161
      %v3167 = vmul.f32 %v3143, %v3163
      %3170 = vrot.lane.b32.xlu0 %v3166, 32
      %v3171 = vpop.permute.xlu0 %3170
      %3172 = vrot.lane.b32.xlu0 %v3167, 32
      %v3173 = vpop.permute.xlu0 %3172
      %v3176 = vadd.f32 %v3156, %v3171
      %v3177 = vadd.f32 %v3157, %v3173
      %v3178 = vtanh.pop %v3176
      %v3179 = vtanh.pop %v3177
      %3182 = vrot.lane.b32.xlu0 %v3178, 64
      %v3183 = vpop.permute.xlu0 %3182
      %3184 = vrot.lane.b32.xlu0 %v3179, 64
      %v3185 = vpop.permute.xlu0 %3184
      %v3188 = vmul.f32 %v3141, %v3183
      %v3189 = vmul.f32 %v3143, %v3185
      %3192 = vrot.lane.b32.xlu0 %v3188, 32
      %v3193 = vpop.permute.xlu0 %3192
      %3194 = vrot.lane.b32.xlu0 %v3189, 32
      %v3195 = vpop.permute.xlu0 %3194
      %3198 = vst.msk [vmem:[#allocation2] sm:$0x3] %vm514, %v3193
      %3199 = vst.msk [vmem:[#allocation2 + $0x2] sm:$0x3] %vm514, %v3195
      %3202 = vrot.lane.b32.xlu0 %v3176, 96
      %v3203 = vpop.permute.xlu0 %3202
      %3204 = vrot.lane.b32.xlu0 %v3177, 96
      %v3205 = vpop.permute.xlu0 %3204
      %3208 = vst.msk [vmem:[#allocation3] sm:$0x3] %vm514, %v3203
      %3209 = vst.msk [vmem:[#allocation3 + $0x2] sm:$0x3] %vm514, %v3205
      %s3210 = scalar_lea.vmem %s266, 22
      %3211 = vst.msk [vmem:[%s3210] sm:$0x3] %vm514, %v3193
      %s3212 = scalar_lea.vmem %s273, 8
      %3213 = vst.msk [vmem:[%s3212] sm:$0x3] %vm514, %v3195
      %s3214 = scalar_lea.vmem %s252, 24
      %v3215 = vld [vmem:[%s3214] sm:$0x3]
      %v3216 = vld [vmem:[#allocation2] sm:$0x3]
      %v3217 = vld [vmem:[%s2] sm:$0xff]
      %v3218 = vld [vmem:[%s2 + $0x8] sm:$0xff]
      %v3219 = vld [vmem:[%s2 + $0x10] sm:$0xff]
      %v3220 = vld [vmem:[%s2 + $0x18] sm:$0xff]
      %v3222 = vsel %vm291, %v3216, 0
      %3224 = vmatprep.subr.mxu0 0.0
      %3225 = vmatpush1.msra.mxu0 %v3217
      %3226 = vmatprep.subr.mxu0 0.0
      %3227 = vmatpush1.msra.mxu0 %v3218
      %3228 = vmatprep.subr.mxu0 0.0
      %3229 = vmatpush1.msra.mxu0 %v3219
      %3230 = vmatprep.subr.mxu0 0.0
      %3231 = vmatpush1.msra.mxu0 %v3220
      %3232 = vmatprep.subr.mxu0 0.0
      %3233 = vmatpush1.msra.mxu0 0.0
      %3234 = vmatprep.subr.mxu0 0.0
      %3235 = vmatpush1.msra.mxu0 0.0
      %3236 = vmatprep.subr.mxu0 0.0
      %3237 = vmatpush1.msra.mxu0 0.0
      %3238 = vmatprep.subr.mxu0 0.0
      %3239 = vmatpush1.msra.mxu0 0.0
      %3240 = vmatprep.subr.mxu0 0.0
      %3241 = vmatpush1.msra.mxu0 0.0
      %3242 = vmatprep.subr.mxu0 0.0
      %3243 = vmatpush1.msra.mxu0 0.0
      %3244 = vmatprep.subr.mxu0 0.0
      %3245 = vmatpush1.msra.mxu0 0.0
      %3246 = vmatprep.subr.mxu0 0.0
      %3247 = vmatpush1.msra.mxu0 0.0
      %3248 = vmatprep.subr.mxu0 0.0
      %3249 = vmatpush1.msra.mxu0 0.0
      %3250 = vmatprep.subr.mxu0 0.0
      %3251 = vmatpush1.msra.mxu0 0.0
      %3252 = vmatprep.subr.mxu0 0.0
      %3253 = vmatpush1.msra.mxu0 0.0
      %3254 = vmatprep.subr.mxu0 0.0
      %3255 = vmatpush1.msra.mxu0 0.0
      %3256 = vmatprep.subr.mxu0 0.0
      %3257 = vmatpush1.msra.mxu0 0.0
      %3258 = vmatprep.subr.mxu0 0.0
      %3259 = vmatpush1.msra.mxu0 0.0
      %3260 = vmatprep.subr.mxu0 0.0
      %3261 = vmatpush1.msra.mxu0 0.0
      %3262 = vmatprep.subr.mxu0 0.0
      %3263 = vmatpush1.msra.mxu0 0.0
      %3264 = vmatprep.subr.mxu0 0.0
      %3265 = vmatpush1.msra.mxu0 0.0
      %3266 = vmatprep.subr.mxu0 0.0
      %3267 = vmatpush1.msra.mxu0 0.0
      %3268 = vmatprep.subr.mxu0 0.0
      %3269 = vmatpush1.msra.mxu0 0.0
      %3270 = vmatprep.subr.mxu0 0.0
      %3271 = vmatpush1.msra.mxu0 0.0
      %3272 = vmatprep.subr.mxu0 0.0
      %3273 = vmatpush1.msra.mxu0 0.0
      %3274 = vmatprep.subr.mxu0 0.0
      %3275 = vmatpush1.msra.mxu0 0.0
      %3276 = vmatprep.subr.mxu0 0.0
      %3277 = vmatpush1.msra.mxu0 0.0
      %3278 = vmatprep.subr.mxu0 0.0
      %3279 = vmatpush1.msra.mxu0 0.0
      %3280 = vmatprep.subr.mxu0 0.0
      %3281 = vmatpush1.msra.mxu0 0.0
      %3282 = vmatprep.subr.mxu0 0.0
      %3283 = vmatpush1.msra.mxu0 0.0
      %3284 = vmatprep.subr.mxu0 0.0
      %3285 = vmatpush1.msra.mxu0 0.0
      %3286 = vmatprep.subr.mxu0 0.0
      %3287 = vmatpush1.msra.mxu0 0.0
      %3288 = vmatprep.mubr.f32.mxu0 0.0
      %3289 = vmatmul.mubr.f32.gmra.mrb[0].mxu0 %v3222
      %v3290 = vpop.f32.mrb[0].mxu0
      %v3291 = vadd.f32 0.0, %v3290
      %v3292 = vpop.f32.mrb[0].mxu0
      %3293 = vdwg.mxu0
      %v3294 = vadd.f32 %v3215, %v3291
      %s3295 = scalar_lea.vmem %s259, 6
      %v3296 = vld [vmem:[%s3295] sm:$0x3]
      %v3297 = vld [vmem:[%s368] sm:$0x3]
      %v3298 = vld [vmem:[%s3] sm:$0xff]
      %v3299 = vld [vmem:[%s3 + $0x8] sm:$0xff]
      %v3300 = vld [vmem:[%s3 + $0x10] sm:$0xff]
      %v3301 = vld [vmem:[%s3 + $0x18] sm:$0xff]
      %v3303 = vsel %vm291, %v3297, 0
      %3305 = vmatprep.subr.mxu0 0.0
      %3306 = vmatpush1.msra.mxu0 %v3298
      %3307 = vmatprep.subr.mxu0 0.0
      %3308 = vmatpush1.msra.mxu0 %v3299
      %3309 = vmatprep.subr.mxu0 0.0
      %3310 = vmatpush1.msra.mxu0 %v3300
      %3311 = vmatprep.subr.mxu0 0.0
      %3312 = vmatpush1.msra.mxu0 %v3301
      %3313 = vmatprep.subr.mxu0 0.0
      %3314 = vmatpush1.msra.mxu0 0.0
      %3315 = vmatprep.subr.mxu0 0.0
      %3316 = vmatpush1.msra.mxu0 0.0
      %3317 = vmatprep.subr.mxu0 0.0
      %3318 = vmatpush1.msra.mxu0 0.0
      %3319 = vmatprep.subr.mxu0 0.0
      %3320 = vmatpush1.msra.mxu0 0.0
      %3321 = vmatprep.subr.mxu0 0.0
      %3322 = vmatpush1.msra.mxu0 0.0
      %3323 = vmatprep.subr.mxu0 0.0
      %3324 = vmatpush1.msra.mxu0 0.0
      %3325 = vmatprep.subr.mxu0 0.0
      %3326 = vmatpush1.msra.mxu0 0.0
      %3327 = vmatprep.subr.mxu0 0.0
      %3328 = vmatpush1.msra.mxu0 0.0
      %3329 = vmatprep.subr.mxu0 0.0
      %3330 = vmatpush1.msra.mxu0 0.0
      %3331 = vmatprep.subr.mxu0 0.0
      %3332 = vmatpush1.msra.mxu0 0.0
      %3333 = vmatprep.subr.mxu0 0.0
      %3334 = vmatpush1.msra.mxu0 0.0
      %3335 = vmatprep.subr.mxu0 0.0
      %3336 = vmatpush1.msra.mxu0 0.0
      %3337 = vmatprep.subr.mxu0 0.0
      %3338 = vmatpush1.msra.mxu0 0.0
      %3339 = vmatprep.subr.mxu0 0.0
      %3340 = vmatpush1.msra.mxu0 0.0
      %3341 = vmatprep.subr.mxu0 0.0
      %3342 = vmatpush1.msra.mxu0 0.0
      %3343 = vmatprep.subr.mxu0 0.0
      %3344 = vmatpush1.msra.mxu0 0.0
      %3345 = vmatprep.subr.mxu0 0.0
      %3346 = vmatpush1.msra.mxu0 0.0
      %3347 = vmatprep.subr.mxu0 0.0
      %3348 = vmatpush1.msra.mxu0 0.0
      %3349 = vmatprep.subr.mxu0 0.0
      %3350 = vmatpush1.msra.mxu0 0.0
      %3351 = vmatprep.subr.mxu0 0.0
      %3352 = vmatpush1.msra.mxu0 0.0
      %3353 = vmatprep.subr.mxu0 0.0
      %3354 = vmatpush1.msra.mxu0 0.0
      %3355 = vmatprep.subr.mxu0 0.0
      %3356 = vmatpush1.msra.mxu0 0.0
      %3357 = vmatprep.subr.mxu0 0.0
      %3358 = vmatpush1.msra.mxu0 0.0
      %3359 = vmatprep.subr.mxu0 0.0
      %3360 = vmatpush1.msra.mxu0 0.0
      %3361 = vmatprep.subr.mxu0 0.0
      %3362 = vmatpush1.msra.mxu0 0.0
      %3363 = vmatprep.subr.mxu0 0.0
      %3364 = vmatpush1.msra.mxu0 0.0
      %3365 = vmatprep.subr.mxu0 0.0
      %3366 = vmatpush1.msra.mxu0 0.0
      %3367 = vmatprep.subr.mxu0 0.0
      %3368 = vmatpush1.msra.mxu0 0.0
      %3369 = vmatprep.mubr.f32.mxu0 0.0
      %3370 = vmatmul.mubr.f32.gmra.mrb[0].mxu0 %v3303
      %v3371 = vpop.f32.mrb[0].mxu0
      %v3372 = vadd.f32 0.0, %v3371
      %v3373 = vpop.f32.mrb[0].mxu0
      %3374 = vdwg.mxu0
      %v3375 = vadd.f32 %v3296, %v3372
      %v3376 = vxor.u32 %v3294, 2147483648
      %v3377 = vxor.u32 %v3375, 2147483648
      %v3378 = vmul.f32 %v3376, 1.442695
      %v3379 = vpow.pop %v3378
      %v3380 = vmul.f32 %v3377, 1.442695
      %v3381 = vpow.pop %v3380
      %v3382 = vadd.f32 %v3379, 1.0
      %v3383 = vadd.f32 %v3381, 1.0
      %v3384 = vrcp.pop %v3382
      %v3385 = vmul.f32 1.0, %v3384
      %v3386 = vrcp.pop %v3383
      %v3387 = vmul.f32 1.0, %v3386
      %v3388 = vtanh.pop %v3294
      %v3389 = vtanh.pop %v3375
      %v3390 = vld [vmem:[#allocation3] sm:$0x3]
      %v3391 = vld [vmem:[#allocation3 + $0x2] sm:$0x3]
      %3394 = vrot.lane.b32.xlu0 %v3390, 32
      %v3395 = vpop.permute.xlu0 %3394
      %3396 = vrot.lane.b32.xlu0 %v3391, 32
      %v3397 = vpop.permute.xlu0 %3396
      %v3400 = vmul.f32 %v3385, %v3395
      %v3401 = vmul.f32 %v3387, %v3397
      %3404 = vrot.lane.b32.xlu0 %v3388, 64
      %v3405 = vpop.permute.xlu0 %3404
      %3406 = vrot.lane.b32.xlu0 %v3389, 64
      %v3407 = vpop.permute.xlu0 %3406
      %v3410 = vmul.f32 %v3385, %v3405
      %v3411 = vmul.f32 %v3387, %v3407
      %3414 = vrot.lane.b32.xlu0 %v3410, 32
      %v3415 = vpop.permute.xlu0 %3414
      %3416 = vrot.lane.b32.xlu0 %v3411, 32
      %v3417 = vpop.permute.xlu0 %3416
      %v3420 = vadd.f32 %v3400, %v3415
      %v3421 = vadd.f32 %v3401, %v3417
      %v3422 = vtanh.pop %v3420
      %v3423 = vtanh.pop %v3421
      %3426 = vrot.lane.b32.xlu0 %v3422, 64
      %v3427 = vpop.permute.xlu0 %3426
      %3428 = vrot.lane.b32.xlu0 %v3423, 64
      %v3429 = vpop.permute.xlu0 %3428
      %v3432 = vmul.f32 %v3385, %v3427
      %v3433 = vmul.f32 %v3387, %v3429
      %3436 = vrot.lane.b32.xlu0 %v3432, 32
      %v3437 = vpop.permute.xlu0 %3436
      %3438 = vrot.lane.b32.xlu0 %v3433, 32
      %v3439 = vpop.permute.xlu0 %3438
      %3442 = vst.msk [vmem:[#allocation2] sm:$0x3] %vm514, %v3437
      %3443 = vst.msk [vmem:[#allocation2 + $0x2] sm:$0x3] %vm514, %v3439
      %3446 = vrot.lane.b32.xlu0 %v3420, 96
      %v3447 = vpop.permute.xlu0 %3446
      %3448 = vrot.lane.b32.xlu0 %v3421, 96
      %v3449 = vpop.permute.xlu0 %3448
      %3452 = vst.msk [vmem:[#allocation3] sm:$0x3] %vm514, %v3447
      %3453 = vst.msk [vmem:[#allocation3 + $0x2] sm:$0x3] %vm514, %v3449
      %s3454 = scalar_lea.vmem %s266, 24
      %3455 = vst.msk [vmem:[%s3454] sm:$0x3] %vm514, %v3437
      %s3456 = scalar_lea.vmem %s273, 6
      %3457 = vst.msk [vmem:[%s3456] sm:$0x3] %vm514, %v3439
      %s3458 = scalar_lea.vmem %s252, 26
      %v3459 = vld [vmem:[%s3458] sm:$0x3]
      %v3460 = vld [vmem:[#allocation2] sm:$0x3]
      %v3461 = vld [vmem:[%s2] sm:$0xff]
      %v3462 = vld [vmem:[%s2 + $0x8] sm:$0xff]
      %v3463 = vld [vmem:[%s2 + $0x10] sm:$0xff]
      %v3464 = vld [vmem:[%s2 + $0x18] sm:$0xff]
      %v3466 = vsel %vm291, %v3460, 0
      %3468 = vmatprep.subr.mxu0 0.0
      %3469 = vmatpush1.msra.mxu0 %v3461
      %3470 = vmatprep.subr.mxu0 0.0
      %3471 = vmatpush1.msra.mxu0 %v3462
      %3472 = vmatprep.subr.mxu0 0.0
      %3473 = vmatpush1.msra.mxu0 %v3463
      %3474 = vmatprep.subr.mxu0 0.0
      %3475 = vmatpush1.msra.mxu0 %v3464
      %3476 = vmatprep.subr.mxu0 0.0
      %3477 = vmatpush1.msra.mxu0 0.0
      %3478 = vmatprep.subr.mxu0 0.0
      %3479 = vmatpush1.msra.mxu0 0.0
      %3480 = vmatprep.subr.mxu0 0.0
      %3481 = vmatpush1.msra.mxu0 0.0
      %3482 = vmatprep.subr.mxu0 0.0
      %3483 = vmatpush1.msra.mxu0 0.0
      %3484 = vmatprep.subr.mxu0 0.0
      %3485 = vmatpush1.msra.mxu0 0.0
      %3486 = vmatprep.subr.mxu0 0.0
      %3487 = vmatpush1.msra.mxu0 0.0
      %3488 = vmatprep.subr.mxu0 0.0
      %3489 = vmatpush1.msra.mxu0 0.0
      %3490 = vmatprep.subr.mxu0 0.0
      %3491 = vmatpush1.msra.mxu0 0.0
      %3492 = vmatprep.subr.mxu0 0.0
      %3493 = vmatpush1.msra.mxu0 0.0
      %3494 = vmatprep.subr.mxu0 0.0
      %3495 = vmatpush1.msra.mxu0 0.0
      %3496 = vmatprep.subr.mxu0 0.0
      %3497 = vmatpush1.msra.mxu0 0.0
      %3498 = vmatprep.subr.mxu0 0.0
      %3499 = vmatpush1.msra.mxu0 0.0
      %3500 = vmatprep.subr.mxu0 0.0
      %3501 = vmatpush1.msra.mxu0 0.0
      %3502 = vmatprep.subr.mxu0 0.0
      %3503 = vmatpush1.msra.mxu0 0.0
      %3504 = vmatprep.subr.mxu0 0.0
      %3505 = vmatpush1.msra.mxu0 0.0
      %3506 = vmatprep.subr.mxu0 0.0
      %3507 = vmatpush1.msra.mxu0 0.0
      %3508 = vmatprep.subr.mxu0 0.0
      %3509 = vmatpush1.msra.mxu0 0.0
      %3510 = vmatprep.subr.mxu0 0.0
      %3511 = vmatpush1.msra.mxu0 0.0
      %3512 = vmatprep.subr.mxu0 0.0
      %3513 = vmatpush1.msra.mxu0 0.0
      %3514 = vmatprep.subr.mxu0 0.0
      %3515 = vmatpush1.msra.mxu0 0.0
      %3516 = vmatprep.subr.mxu0 0.0
      %3517 = vmatpush1.msra.mxu0 0.0
      %3518 = vmatprep.subr.mxu0 0.0
      %3519 = vmatpush1.msra.mxu0 0.0
      %3520 = vmatprep.subr.mxu0 0.0
      %3521 = vmatpush1.msra.mxu0 0.0
      %3522 = vmatprep.subr.mxu0 0.0
      %3523 = vmatpush1.msra.mxu0 0.0
      %3524 = vmatprep.subr.mxu0 0.0
      %3525 = vmatpush1.msra.mxu0 0.0
      %3526 = vmatprep.subr.mxu0 0.0
      %3527 = vmatpush1.msra.mxu0 0.0
      %3528 = vmatprep.subr.mxu0 0.0
      %3529 = vmatpush1.msra.mxu0 0.0
      %3530 = vmatprep.subr.mxu0 0.0
      %3531 = vmatpush1.msra.mxu0 0.0
      %3532 = vmatprep.mubr.f32.mxu0 0.0
      %3533 = vmatmul.mubr.f32.gmra.mrb[0].mxu0 %v3466
      %v3534 = vpop.f32.mrb[0].mxu0
      %v3535 = vadd.f32 0.0, %v3534
      %v3536 = vpop.f32.mrb[0].mxu0
      %3537 = vdwg.mxu0
      %v3538 = vadd.f32 %v3459, %v3535
      %s3539 = scalar_lea.vmem %s259, 4
      %v3540 = vld [vmem:[%s3539] sm:$0x3]
      %v3541 = vld [vmem:[%s368] sm:$0x3]
      %v3542 = vld [vmem:[%s3] sm:$0xff]
      %v3543 = vld [vmem:[%s3 + $0x8] sm:$0xff]
      %v3544 = vld [vmem:[%s3 + $0x10] sm:$0xff]
      %v3545 = vld [vmem:[%s3 + $0x18] sm:$0xff]
      %v3547 = vsel %vm291, %v3541, 0
      %3549 = vmatprep.subr.mxu0 0.0
      %3550 = vmatpush1.msra.mxu0 %v3542
      %3551 = vmatprep.subr.mxu0 0.0
      %3552 = vmatpush1.msra.mxu0 %v3543
      %3553 = vmatprep.subr.mxu0 0.0
      %3554 = vmatpush1.msra.mxu0 %v3544
      %3555 = vmatprep.subr.mxu0 0.0
      %3556 = vmatpush1.msra.mxu0 %v3545
      %3557 = vmatprep.subr.mxu0 0.0
      %3558 = vmatpush1.msra.mxu0 0.0
      %3559 = vmatprep.subr.mxu0 0.0
      %3560 = vmatpush1.msra.mxu0 0.0
      %3561 = vmatprep.subr.mxu0 0.0
      %3562 = vmatpush1.msra.mxu0 0.0
      %3563 = vmatprep.subr.mxu0 0.0
      %3564 = vmatpush1.msra.mxu0 0.0
      %3565 = vmatprep.subr.mxu0 0.0
      %3566 = vmatpush1.msra.mxu0 0.0
      %3567 = vmatprep.subr.mxu0 0.0
      %3568 = vmatpush1.msra.mxu0 0.0
      %3569 = vmatprep.subr.mxu0 0.0
      %3570 = vmatpush1.msra.mxu0 0.0
      %3571 = vmatprep.subr.mxu0 0.0
      %3572 = vmatpush1.msra.mxu0 0.0
      %3573 = vmatprep.subr.mxu0 0.0
      %3574 = vmatpush1.msra.mxu0 0.0
      %3575 = vmatprep.subr.mxu0 0.0
      %3576 = vmatpush1.msra.mxu0 0.0
      %3577 = vmatprep.subr.mxu0 0.0
      %3578 = vmatpush1.msra.mxu0 0.0
      %3579 = vmatprep.subr.mxu0 0.0
      %3580 = vmatpush1.msra.mxu0 0.0
      %3581 = vmatprep.subr.mxu0 0.0
      %3582 = vmatpush1.msra.mxu0 0.0
      %3583 = vmatprep.subr.mxu0 0.0
      %3584 = vmatpush1.msra.mxu0 0.0
      %3585 = vmatprep.subr.mxu0 0.0
      %3586 = vmatpush1.msra.mxu0 0.0
      %3587 = vmatprep.subr.mxu0 0.0
      %3588 = vmatpush1.msra.mxu0 0.0
      %3589 = vmatprep.subr.mxu0 0.0
      %3590 = vmatpush1.msra.mxu0 0.0
      %3591 = vmatprep.subr.mxu0 0.0
      %3592 = vmatpush1.msra.mxu0 0.0
      %3593 = vmatprep.subr.mxu0 0.0
      %3594 = vmatpush1.msra.mxu0 0.0
      %3595 = vmatprep.subr.mxu0 0.0
      %3596 = vmatpush1.msra.mxu0 0.0
      %3597 = vmatprep.subr.mxu0 0.0
      %3598 = vmatpush1.msra.mxu0 0.0
      %3599 = vmatprep.subr.mxu0 0.0
      %3600 = vmatpush1.msra.mxu0 0.0
      %3601 = vmatprep.subr.mxu0 0.0
      %3602 = vmatpush1.msra.mxu0 0.0
      %3603 = vmatprep.subr.mxu0 0.0
      %3604 = vmatpush1.msra.mxu0 0.0
      %3605 = vmatprep.subr.mxu0 0.0
      %3606 = vmatpush1.msra.mxu0 0.0
      %3607 = vmatprep.subr.mxu0 0.0
      %3608 = vmatpush1.msra.mxu0 0.0
      %3609 = vmatprep.subr.mxu0 0.0
      %3610 = vmatpush1.msra.mxu0 0.0
      %3611 = vmatprep.subr.mxu0 0.0
      %3612 = vmatpush1.msra.mxu0 0.0
      %3613 = vmatprep.mubr.f32.mxu0 0.0
      %3614 = vmatmul.mubr.f32.gmra.mrb[0].mxu0 %v3547
      %v3615 = vpop.f32.mrb[0].mxu0
      %v3616 = vadd.f32 0.0, %v3615
      %v3617 = vpop.f32.mrb[0].mxu0
      %3618 = vdwg.mxu0
      %v3619 = vadd.f32 %v3540, %v3616
      %v3620 = vxor.u32 %v3538, 2147483648
      %v3621 = vxor.u32 %v3619, 2147483648
      %v3622 = vmul.f32 %v3620, 1.442695
      %v3623 = vpow.pop %v3622
      %v3624 = vmul.f32 %v3621, 1.442695
      %v3625 = vpow.pop %v3624
      %v3626 = vadd.f32 %v3623, 1.0
      %v3627 = vadd.f32 %v3625, 1.0
      %v3628 = vrcp.pop %v3626
      %v3629 = vmul.f32 1.0, %v3628
      %v3630 = vrcp.pop %v3627
      %v3631 = vmul.f32 1.0, %v3630
      %v3632 = vtanh.pop %v3538
      %v3633 = vtanh.pop %v3619
      %v3634 = vld [vmem:[#allocation3] sm:$0x3]
      %v3635 = vld [vmem:[#allocation3 + $0x2] sm:$0x3]
      %3638 = vrot.lane.b32.xlu0 %v3634, 32
      %v3639 = vpop.permute.xlu0 %3638
      %3640 = vrot.lane.b32.xlu0 %v3635, 32
      %v3641 = vpop.permute.xlu0 %3640
      %v3644 = vmul.f32 %v3629, %v3639
      %v3645 = vmul.f32 %v3631, %v3641
      %3648 = vrot.lane.b32.xlu0 %v3632, 64
      %v3649 = vpop.permute.xlu0 %3648
      %3650 = vrot.lane.b32.xlu0 %v3633, 64
      %v3651 = vpop.permute.xlu0 %3650
      %v3654 = vmul.f32 %v3629, %v3649
      %v3655 = vmul.f32 %v3631, %v3651
      %3658 = vrot.lane.b32.xlu0 %v3654, 32
      %v3659 = vpop.permute.xlu0 %3658
      %3660 = vrot.lane.b32.xlu0 %v3655, 32
      %v3661 = vpop.permute.xlu0 %3660
      %v3664 = vadd.f32 %v3644, %v3659
      %v3665 = vadd.f32 %v3645, %v3661
      %v3666 = vtanh.pop %v3664
      %v3667 = vtanh.pop %v3665
      %3670 = vrot.lane.b32.xlu0 %v3666, 64
      %v3671 = vpop.permute.xlu0 %3670
      %3672 = vrot.lane.b32.xlu0 %v3667, 64
      %v3673 = vpop.permute.xlu0 %3672
      %v3676 = vmul.f32 %v3629, %v3671
      %v3677 = vmul.f32 %v3631, %v3673
      %3680 = vrot.lane.b32.xlu0 %v3676, 32
      %v3681 = vpop.permute.xlu0 %3680
      %3682 = vrot.lane.b32.xlu0 %v3677, 32
      %v3683 = vpop.permute.xlu0 %3682
      %3686 = vst.msk [vmem:[#allocation2] sm:$0x3] %vm514, %v3681
      %3687 = vst.msk [vmem:[#allocation2 + $0x2] sm:$0x3] %vm514, %v3683
      %3690 = vrot.lane.b32.xlu0 %v3664, 96
      %v3691 = vpop.permute.xlu0 %3690
      %3692 = vrot.lane.b32.xlu0 %v3665, 96
      %v3693 = vpop.permute.xlu0 %3692
      %3696 = vst.msk [vmem:[#allocation3] sm:$0x3] %vm514, %v3691
      %3697 = vst.msk [vmem:[#allocation3 + $0x2] sm:$0x3] %vm514, %v3693
      %s3698 = scalar_lea.vmem %s266, 26
      %3699 = vst.msk [vmem:[%s3698] sm:$0x3] %vm514, %v3681
      %s3700 = scalar_lea.vmem %s273, 4
      %3701 = vst.msk [vmem:[%s3700] sm:$0x3] %vm514, %v3683
      %s3702 = scalar_lea.vmem %s252, 28
      %v3703 = vld [vmem:[%s3702] sm:$0x3]
      %v3704 = vld [vmem:[#allocation2] sm:$0x3]
      %v3705 = vld [vmem:[%s2] sm:$0xff]
      %v3706 = vld [vmem:[%s2 + $0x8] sm:$0xff]
      %v3707 = vld [vmem:[%s2 + $0x10] sm:$0xff]
      %v3708 = vld [vmem:[%s2 + $0x18] sm:$0xff]
      %v3710 = vsel %vm291, %v3704, 0
      %3712 = vmatprep.subr.mxu0 0.0
      %3713 = vmatpush1.msra.mxu0 %v3705
      %3714 = vmatprep.subr.mxu0 0.0
      %3715 = vmatpush1.msra.mxu0 %v3706
      %3716 = vmatprep.subr.mxu0 0.0
      %3717 = vmatpush1.msra.mxu0 %v3707
      %3718 = vmatprep.subr.mxu0 0.0
      %3719 = vmatpush1.msra.mxu0 %v3708
      %3720 = vmatprep.subr.mxu0 0.0
      %3721 = vmatpush1.msra.mxu0 0.0
      %3722 = vmatprep.subr.mxu0 0.0
      %3723 = vmatpush1.msra.mxu0 0.0
      %3724 = vmatprep.subr.mxu0 0.0
      %3725 = vmatpush1.msra.mxu0 0.0
      %3726 = vmatprep.subr.mxu0 0.0
      %3727 = vmatpush1.msra.mxu0 0.0
      %3728 = vmatprep.subr.mxu0 0.0
      %3729 = vmatpush1.msra.mxu0 0.0
      %3730 = vmatprep.subr.mxu0 0.0
      %3731 = vmatpush1.msra.mxu0 0.0
      %3732 = vmatprep.subr.mxu0 0.0
      %3733 = vmatpush1.msra.mxu0 0.0
      %3734 = vmatprep.subr.mxu0 0.0
      %3735 = vmatpush1.msra.mxu0 0.0
      %3736 = vmatprep.subr.mxu0 0.0
      %3737 = vmatpush1.msra.mxu0 0.0
      %3738 = vmatprep.subr.mxu0 0.0
      %3739 = vmatpush1.msra.mxu0 0.0
      %3740 = vmatprep.subr.mxu0 0.0
      %3741 = vmatpush1.msra.mxu0 0.0
      %3742 = vmatprep.subr.mxu0 0.0
      %3743 = vmatpush1.msra.mxu0 0.0
      %3744 = vmatprep.subr.mxu0 0.0
      %3745 = vmatpush1.msra.mxu0 0.0
      %3746 = vmatprep.subr.mxu0 0.0
      %3747 = vmatpush1.msra.mxu0 0.0
      %3748 = vmatprep.subr.mxu0 0.0
      %3749 = vmatpush1.msra.mxu0 0.0
      %3750 = vmatprep.subr.mxu0 0.0
      %3751 = vmatpush1.msra.mxu0 0.0
      %3752 = vmatprep.subr.mxu0 0.0
      %3753 = vmatpush1.msra.mxu0 0.0
      %3754 = vmatprep.subr.mxu0 0.0
      %3755 = vmatpush1.msra.mxu0 0.0
      %3756 = vmatprep.subr.mxu0 0.0
      %3757 = vmatpush1.msra.mxu0 0.0
      %3758 = vmatprep.subr.mxu0 0.0
      %3759 = vmatpush1.msra.mxu0 0.0
      %3760 = vmatprep.subr.mxu0 0.0
      %3761 = vmatpush1.msra.mxu0 0.0
      %3762 = vmatprep.subr.mxu0 0.0
      %3763 = vmatpush1.msra.mxu0 0.0
      %3764 = vmatprep.subr.mxu0 0.0
      %3765 = vmatpush1.msra.mxu0 0.0
      %3766 = vmatprep.subr.mxu0 0.0
      %3767 = vmatpush1.msra.mxu0 0.0
      %3768 = vmatprep.subr.mxu0 0.0
      %3769 = vmatpush1.msra.mxu0 0.0
      %3770 = vmatprep.subr.mxu0 0.0
      %3771 = vmatpush1.msra.mxu0 0.0
      %3772 = vmatprep.subr.mxu0 0.0
      %3773 = vmatpush1.msra.mxu0 0.0
      %3774 = vmatprep.subr.mxu0 0.0
      %3775 = vmatpush1.msra.mxu0 0.0
      %3776 = vmatprep.mubr.f32.mxu0 0.0
      %3777 = vmatmul.mubr.f32.gmra.mrb[0].mxu0 %v3710
      %v3778 = vpop.f32.mrb[0].mxu0
      %v3779 = vadd.f32 0.0, %v3778
      %v3780 = vpop.f32.mrb[0].mxu0
      %3781 = vdwg.mxu0
      %v3782 = vadd.f32 %v3703, %v3779
      %s3783 = scalar_lea.vmem %s259, 2
      %v3784 = vld [vmem:[%s3783] sm:$0x3]
      %v3785 = vld [vmem:[%s368] sm:$0x3]
      %v3786 = vld [vmem:[%s3] sm:$0xff]
      %v3787 = vld [vmem:[%s3 + $0x8] sm:$0xff]
      %v3788 = vld [vmem:[%s3 + $0x10] sm:$0xff]
      %v3789 = vld [vmem:[%s3 + $0x18] sm:$0xff]
      %v3791 = vsel %vm291, %v3785, 0
      %3793 = vmatprep.subr.mxu0 0.0
      %3794 = vmatpush1.msra.mxu0 %v3786
      %3795 = vmatprep.subr.mxu0 0.0
      %3796 = vmatpush1.msra.mxu0 %v3787
      %3797 = vmatprep.subr.mxu0 0.0
      %3798 = vmatpush1.msra.mxu0 %v3788
      %3799 = vmatprep.subr.mxu0 0.0
      %3800 = vmatpush1.msra.mxu0 %v3789
      %3801 = vmatprep.subr.mxu0 0.0
      %3802 = vmatpush1.msra.mxu0 0.0
      %3803 = vmatprep.subr.mxu0 0.0
      %3804 = vmatpush1.msra.mxu0 0.0
      %3805 = vmatprep.subr.mxu0 0.0
      %3806 = vmatpush1.msra.mxu0 0.0
      %3807 = vmatprep.subr.mxu0 0.0
      %3808 = vmatpush1.msra.mxu0 0.0
      %3809 = vmatprep.subr.mxu0 0.0
      %3810 = vmatpush1.msra.mxu0 0.0
      %3811 = vmatprep.subr.mxu0 0.0
      %3812 = vmatpush1.msra.mxu0 0.0
      %3813 = vmatprep.subr.mxu0 0.0
      %3814 = vmatpush1.msra.mxu0 0.0
      %3815 = vmatprep.subr.mxu0 0.0
      %3816 = vmatpush1.msra.mxu0 0.0
      %3817 = vmatprep.subr.mxu0 0.0
      %3818 = vmatpush1.msra.mxu0 0.0
      %3819 = vmatprep.subr.mxu0 0.0
      %3820 = vmatpush1.msra.mxu0 0.0
      %3821 = vmatprep.subr.mxu0 0.0
      %3822 = vmatpush1.msra.mxu0 0.0
      %3823 = vmatprep.subr.mxu0 0.0
      %3824 = vmatpush1.msra.mxu0 0.0
      %3825 = vmatprep.subr.mxu0 0.0
      %3826 = vmatpush1.msra.mxu0 0.0
      %3827 = vmatprep.subr.mxu0 0.0
      %3828 = vmatpush1.msra.mxu0 0.0
      %3829 = vmatprep.subr.mxu0 0.0
      %3830 = vmatpush1.msra.mxu0 0.0
      %3831 = vmatprep.subr.mxu0 0.0
      %3832 = vmatpush1.msra.mxu0 0.0
      %3833 = vmatprep.subr.mxu0 0.0
      %3834 = vmatpush1.msra.mxu0 0.0
      %3835 = vmatprep.subr.mxu0 0.0
      %3836 = vmatpush1.msra.mxu0 0.0
      %3837 = vmatprep.subr.mxu0 0.0
      %3838 = vmatpush1.msra.mxu0 0.0
      %3839 = vmatprep.subr.mxu0 0.0
      %3840 = vmatpush1.msra.mxu0 0.0
      %3841 = vmatprep.subr.mxu0 0.0
      %3842 = vmatpush1.msra.mxu0 0.0
      %3843 = vmatprep.subr.mxu0 0.0
      %3844 = vmatpush1.msra.mxu0 0.0
      %3845 = vmatprep.subr.mxu0 0.0
      %3846 = vmatpush1.msra.mxu0 0.0
      %3847 = vmatprep.subr.mxu0 0.0
      %3848 = vmatpush1.msra.mxu0 0.0
      %3849 = vmatprep.subr.mxu0 0.0
      %3850 = vmatpush1.msra.mxu0 0.0
      %3851 = vmatprep.subr.mxu0 0.0
      %3852 = vmatpush1.msra.mxu0 0.0
      %3853 = vmatprep.subr.mxu0 0.0
      %3854 = vmatpush1.msra.mxu0 0.0
      %3855 = vmatprep.subr.mxu0 0.0
      %3856 = vmatpush1.msra.mxu0 0.0
      %3857 = vmatprep.mubr.f32.mxu0 0.0
      %3858 = vmatmul.mubr.f32.gmra.mrb[0].mxu0 %v3791
      %v3859 = vpop.f32.mrb[0].mxu0
      %v3860 = vadd.f32 0.0, %v3859
      %v3861 = vpop.f32.mrb[0].mxu0
      %3862 = vdwg.mxu0
      %v3863 = vadd.f32 %v3784, %v3860
      %v3864 = vxor.u32 %v3782, 2147483648
      %v3865 = vxor.u32 %v3863, 2147483648
      %v3866 = vmul.f32 %v3864, 1.442695
      %v3867 = vpow.pop %v3866
      %v3868 = vmul.f32 %v3865, 1.442695
      %v3869 = vpow.pop %v3868
      %v3870 = vadd.f32 %v3867, 1.0
      %v3871 = vadd.f32 %v3869, 1.0
      %v3872 = vrcp.pop %v3870
      %v3873 = vmul.f32 1.0, %v3872
      %v3874 = vrcp.pop %v3871
      %v3875 = vmul.f32 1.0, %v3874
      %v3876 = vtanh.pop %v3782
      %v3877 = vtanh.pop %v3863
      %v3878 = vld [vmem:[#allocation3] sm:$0x3]
      %v3879 = vld [vmem:[#allocation3 + $0x2] sm:$0x3]
      %3882 = vrot.lane.b32.xlu0 %v3878, 32
      %v3883 = vpop.permute.xlu0 %3882
      %3884 = vrot.lane.b32.xlu0 %v3879, 32
      %v3885 = vpop.permute.xlu0 %3884
      %v3888 = vmul.f32 %v3873, %v3883
      %v3889 = vmul.f32 %v3875, %v3885
      %3892 = vrot.lane.b32.xlu0 %v3876, 64
      %v3893 = vpop.permute.xlu0 %3892
      %3894 = vrot.lane.b32.xlu0 %v3877, 64
      %v3895 = vpop.permute.xlu0 %3894
      %v3898 = vmul.f32 %v3873, %v3893
      %v3899 = vmul.f32 %v3875, %v3895
      %3902 = vrot.lane.b32.xlu0 %v3898, 32
      %v3903 = vpop.permute.xlu0 %3902
      %3904 = vrot.lane.b32.xlu0 %v3899, 32
      %v3905 = vpop.permute.xlu0 %3904
      %v3908 = vadd.f32 %v3888, %v3903
      %v3909 = vadd.f32 %v3889, %v3905
      %v3910 = vtanh.pop %v3908
      %v3911 = vtanh.pop %v3909
      %3914 = vrot.lane.b32.xlu0 %v3910, 64
      %v3915 = vpop.permute.xlu0 %3914
      %3916 = vrot.lane.b32.xlu0 %v3911, 64
      %v3917 = vpop.permute.xlu0 %3916
      %v3920 = vmul.f32 %v3873, %v3915
      %v3921 = vmul.f32 %v3875, %v3917
      %3924 = vrot.lane.b32.xlu0 %v3920, 32
      %v3925 = vpop.permute.xlu0 %3924
      %3926 = vrot.lane.b32.xlu0 %v3921, 32
      %v3927 = vpop.permute.xlu0 %3926
      %3930 = vst.msk [vmem:[#allocation2] sm:$0x3] %vm514, %v3925
      %3931 = vst.msk [vmem:[#allocation2 + $0x2] sm:$0x3] %vm514, %v3927
      %3934 = vrot.lane.b32.xlu0 %v3908, 96
      %v3935 = vpop.permute.xlu0 %3934
      %3936 = vrot.lane.b32.xlu0 %v3909, 96
      %v3937 = vpop.permute.xlu0 %3936
      %3940 = vst.msk [vmem:[#allocation3] sm:$0x3] %vm514, %v3935
      %3941 = vst.msk [vmem:[#allocation3 + $0x2] sm:$0x3] %vm514, %v3937
      %s3942 = scalar_lea.vmem %s266, 28
      %3943 = vst.msk [vmem:[%s3942] sm:$0x3] %vm514, %v3925
      %s3944 = scalar_lea.vmem %s273, 2
      %3945 = vst.msk [vmem:[%s3944] sm:$0x3] %vm514, %v3927
      %s3946 = scalar_lea.vmem %s252, 30
      %v3947 = vld [vmem:[%s3946] sm:$0x3]
      %v3948 = vld [vmem:[#allocation2] sm:$0x3]
      %v3949 = vld [vmem:[%s2] sm:$0xff]
      %v3950 = vld [vmem:[%s2 + $0x8] sm:$0xff]
      %v3951 = vld [vmem:[%s2 + $0x10] sm:$0xff]
      %v3952 = vld [vmem:[%s2 + $0x18] sm:$0xff]
      %v3954 = vsel %vm291, %v3948, 0
      %3956 = vmatprep.subr.mxu0 0.0
      %3957 = vmatpush1.msra.mxu0 %v3949
      %3958 = vmatprep.subr.mxu0 0.0
      %3959 = vmatpush1.msra.mxu0 %v3950
      %3960 = vmatprep.subr.mxu0 0.0
      %3961 = vmatpush1.msra.mxu0 %v3951
      %3962 = vmatprep.subr.mxu0 0.0
      %3963 = vmatpush1.msra.mxu0 %v3952
      %3964 = vmatprep.subr.mxu0 0.0
      %3965 = vmatpush1.msra.mxu0 0.0
      %3966 = vmatprep.subr.mxu0 0.0
      %3967 = vmatpush1.msra.mxu0 0.0
      %3968 = vmatprep.subr.mxu0 0.0
      %3969 = vmatpush1.msra.mxu0 0.0
      %3970 = vmatprep.subr.mxu0 0.0
      %3971 = vmatpush1.msra.mxu0 0.0
      %3972 = vmatprep.subr.mxu0 0.0
      %3973 = vmatpush1.msra.mxu0 0.0
      %3974 = vmatprep.subr.mxu0 0.0
      %3975 = vmatpush1.msra.mxu0 0.0
      %3976 = vmatprep.subr.mxu0 0.0
      %3977 = vmatpush1.msra.mxu0 0.0
      %3978 = vmatprep.subr.mxu0 0.0
      %3979 = vmatpush1.msra.mxu0 0.0
      %3980 = vmatprep.subr.mxu0 0.0
      %3981 = vmatpush1.msra.mxu0 0.0
      %3982 = vmatprep.subr.mxu0 0.0
      %3983 = vmatpush1.msra.mxu0 0.0
      %3984 = vmatprep.subr.mxu0 0.0
      %3985 = vmatpush1.msra.mxu0 0.0
      %3986 = vmatprep.subr.mxu0 0.0
      %3987 = vmatpush1.msra.mxu0 0.0
      %3988 = vmatprep.subr.mxu0 0.0
      %3989 = vmatpush1.msra.mxu0 0.0
      %3990 = vmatprep.subr.mxu0 0.0
      %3991 = vmatpush1.msra.mxu0 0.0
      %3992 = vmatprep.subr.mxu0 0.0
      %3993 = vmatpush1.msra.mxu0 0.0
      %3994 = vmatprep.subr.mxu0 0.0
      %3995 = vmatpush1.msra.mxu0 0.0
      %3996 = vmatprep.subr.mxu0 0.0
      %3997 = vmatpush1.msra.mxu0 0.0
      %3998 = vmatprep.subr.mxu0 0.0
      %3999 = vmatpush1.msra.mxu0 0.0
      %4000 = vmatprep.subr.mxu0 0.0
      %4001 = vmatpush1.msra.mxu0 0.0
      %4002 = vmatprep.subr.mxu0 0.0
      %4003 = vmatpush1.msra.mxu0 0.0
      %4004 = vmatprep.subr.mxu0 0.0
      %4005 = vmatpush1.msra.mxu0 0.0
      %4006 = vmatprep.subr.mxu0 0.0
      %4007 = vmatpush1.msra.mxu0 0.0
      %4008 = vmatprep.subr.mxu0 0.0
      %4009 = vmatpush1.msra.mxu0 0.0
      %4010 = vmatprep.subr.mxu0 0.0
      %4011 = vmatpush1.msra.mxu0 0.0
      %4012 = vmatprep.subr.mxu0 0.0
      %4013 = vmatpush1.msra.mxu0 0.0
      %4014 = vmatprep.subr.mxu0 0.0
      %4015 = vmatpush1.msra.mxu0 0.0
      %4016 = vmatprep.subr.mxu0 0.0
      %4017 = vmatpush1.msra.mxu0 0.0
      %4018 = vmatprep.subr.mxu0 0.0
      %4019 = vmatpush1.msra.mxu0 0.0
      %4020 = vmatprep.mubr.f32.mxu0 0.0
      %4021 = vmatmul.mubr.f32.gmra.mrb[0].mxu0 %v3954
      %v4022 = vpop.f32.mrb[0].mxu0
      %v4023 = vadd.f32 0.0, %v4022
      %v4024 = vpop.f32.mrb[0].mxu0
      %4025 = vdwg.mxu0
      %v4026 = vadd.f32 %v3947, %v4023
      %v4027 = vld [vmem:[%s259] sm:$0x3]
      %v4028 = vld [vmem:[%s368] sm:$0x3]
      %v4029 = vld [vmem:[%s3] sm:$0xff]
      %v4030 = vld [vmem:[%s3 + $0x8] sm:$0xff]
      %v4031 = vld [vmem:[%s3 + $0x10] sm:$0xff]
      %v4032 = vld [vmem:[%s3 + $0x18] sm:$0xff]
      %v4034 = vsel %vm291, %v4028, 0
      %4036 = vmatprep.subr.mxu0 0.0
      %4037 = vmatpush1.msra.mxu0 %v4029
      %4038 = vmatprep.subr.mxu0 0.0
      %4039 = vmatpush1.msra.mxu0 %v4030
      %4040 = vmatprep.subr.mxu0 0.0
      %4041 = vmatpush1.msra.mxu0 %v4031
      %4042 = vmatprep.subr.mxu0 0.0
      %4043 = vmatpush1.msra.mxu0 %v4032
      %4044 = vmatprep.subr.mxu0 0.0
      %4045 = vmatpush1.msra.mxu0 0.0
      %4046 = vmatprep.subr.mxu0 0.0
      %4047 = vmatpush1.msra.mxu0 0.0
      %4048 = vmatprep.subr.mxu0 0.0
      %4049 = vmatpush1.msra.mxu0 0.0
      %4050 = vmatprep.subr.mxu0 0.0
      %4051 = vmatpush1.msra.mxu0 0.0
      %4052 = vmatprep.subr.mxu0 0.0
      %4053 = vmatpush1.msra.mxu0 0.0
      %4054 = vmatprep.subr.mxu0 0.0
      %4055 = vmatpush1.msra.mxu0 0.0
      %4056 = vmatprep.subr.mxu0 0.0
      %4057 = vmatpush1.msra.mxu0 0.0
      %4058 = vmatprep.subr.mxu0 0.0
      %4059 = vmatpush1.msra.mxu0 0.0
      %4060 = vmatprep.subr.mxu0 0.0
      %4061 = vmatpush1.msra.mxu0 0.0
      %4062 = vmatprep.subr.mxu0 0.0
      %4063 = vmatpush1.msra.mxu0 0.0
      %4064 = vmatprep.subr.mxu0 0.0
      %4065 = vmatpush1.msra.mxu0 0.0
      %4066 = vmatprep.subr.mxu0 0.0
      %4067 = vmatpush1.msra.mxu0 0.0
      %4068 = vmatprep.subr.mxu0 0.0
      %4069 = vmatpush1.msra.mxu0 0.0
      %4070 = vmatprep.subr.mxu0 0.0
      %4071 = vmatpush1.msra.mxu0 0.0
      %4072 = vmatprep.subr.mxu0 0.0
      %4073 = vmatpush1.msra.mxu0 0.0
      %4074 = vmatprep.subr.mxu0 0.0
      %4075 = vmatpush1.msra.mxu0 0.0
      %4076 = vmatprep.subr.mxu0 0.0
      %4077 = vmatpush1.msra.mxu0 0.0
      %4078 = vmatprep.subr.mxu0 0.0
      %4079 = vmatpush1.msra.mxu0 0.0
      %4080 = vmatprep.subr.mxu0 0.0
      %4081 = vmatpush1.msra.mxu0 0.0
      %4082 = vmatprep.subr.mxu0 0.0
      %4083 = vmatpush1.msra.mxu0 0.0
      %4084 = vmatprep.subr.mxu0 0.0
      %4085 = vmatpush1.msra.mxu0 0.0
      %4086 = vmatprep.subr.mxu0 0.0
      %4087 = vmatpush1.msra.mxu0 0.0
      %4088 = vmatprep.subr.mxu0 0.0
      %4089 = vmatpush1.msra.mxu0 0.0
      %4090 = vmatprep.subr.mxu0 0.0
      %4091 = vmatpush1.msra.mxu0 0.0
      %4092 = vmatprep.subr.mxu0 0.0
      %4093 = vmatpush1.msra.mxu0 0.0
      %4094 = vmatprep.subr.mxu0 0.0
      %4095 = vmatpush1.msra.mxu0 0.0
      %4096 = vmatprep.subr.mxu0 0.0
      %4097 = vmatpush1.msra.mxu0 0.0
      %4098 = vmatprep.subr.mxu0 0.0
      %4099 = vmatpush1.msra.mxu0 0.0
      %4100 = vmatprep.mubr.f32.mxu0 0.0
      %4101 = vmatmul.mubr.f32.gmra.mrb[0].mxu0 %v4034
      %v4102 = vpop.f32.mrb[0].mxu0
      %v4103 = vadd.f32 0.0, %v4102
      %v4104 = vpop.f32.mrb[0].mxu0
      %4105 = vdwg.mxu0
      %v4106 = vadd.f32 %v4027, %v4103
      %v4107 = vxor.u32 %v4026, 2147483648
      %v4108 = vxor.u32 %v4106, 2147483648
      %v4109 = vmul.f32 %v4107, 1.442695
      %v4110 = vpow.pop %v4109
      %v4111 = vmul.f32 %v4108, 1.442695
      %v4112 = vpow.pop %v4111
      %v4113 = vadd.f32 %v4110, 1.0
      %v4114 = vadd.f32 %v4112, 1.0
      %v4115 = vrcp.pop %v4113
      %v4116 = vmul.f32 1.0, %v4115
      %v4117 = vrcp.pop %v4114
      %v4118 = vmul.f32 1.0, %v4117
      %v4119 = vtanh.pop %v4026
      %v4120 = vtanh.pop %v4106
      %v4121 = vld [vmem:[#allocation3] sm:$0x3]
      %v4122 = vld [vmem:[#allocation3 + $0x2] sm:$0x3]
      %4125 = vrot.lane.b32.xlu0 %v4121, 32
      %v4126 = vpop.permute.xlu0 %4125
      %4127 = vrot.lane.b32.xlu0 %v4122, 32
      %v4128 = vpop.permute.xlu0 %4127
      %v4131 = vmul.f32 %v4116, %v4126
      %v4132 = vmul.f32 %v4118, %v4128
      %4135 = vrot.lane.b32.xlu0 %v4119, 64
      %v4136 = vpop.permute.xlu0 %4135
      %4137 = vrot.lane.b32.xlu0 %v4120, 64
      %v4138 = vpop.permute.xlu0 %4137
      %v4141 = vmul.f32 %v4116, %v4136
      %v4142 = vmul.f32 %v4118, %v4138
      %4145 = vrot.lane.b32.xlu0 %v4141, 32
      %v4146 = vpop.permute.xlu0 %4145
      %4147 = vrot.lane.b32.xlu0 %v4142, 32
      %v4148 = vpop.permute.xlu0 %4147
      %v4151 = vadd.f32 %v4131, %v4146
      %v4152 = vadd.f32 %v4132, %v4148
      %v4153 = vtanh.pop %v4151
      %v4154 = vtanh.pop %v4152
      %4157 = vrot.lane.b32.xlu0 %v4153, 64
      %v4158 = vpop.permute.xlu0 %4157
      %4159 = vrot.lane.b32.xlu0 %v4154, 64
      %v4160 = vpop.permute.xlu0 %4159
      %v4163 = vmul.f32 %v4116, %v4158
      %v4164 = vmul.f32 %v4118, %v4160
      %4167 = vrot.lane.b32.xlu0 %v4163, 32
      %v4168 = vpop.permute.xlu0 %4167
      %4169 = vrot.lane.b32.xlu0 %v4164, 32
      %v4170 = vpop.permute.xlu0 %4169
      %4173 = vst.msk [vmem:[#allocation2] sm:$0x3] %vm514, %v4168
      %4174 = vst.msk [vmem:[#allocation2 + $0x2] sm:$0x3] %vm514, %v4170
      %4177 = vrot.lane.b32.xlu0 %v4151, 96
      %v4178 = vpop.permute.xlu0 %4177
      %4179 = vrot.lane.b32.xlu0 %v4152, 96
      %v4180 = vpop.permute.xlu0 %4179
      %4183 = vst.msk [vmem:[#allocation3] sm:$0x3] %vm514, %v4178
      %4184 = vst.msk [vmem:[#allocation3 + $0x2] sm:$0x3] %vm514, %v4180
      %s4185 = scalar_lea.vmem %s266, 30
      %4186 = vst.msk [vmem:[%s4185] sm:$0x3] %vm514, %v4168
      %4187 = vst.msk [vmem:[%s273] sm:$0x3] %vm514, %v4170
      %s4188 = smul.u32 16, %s17
      %p4189 = scmp.lt.s32.totalorder %s4188, 31
      %s4190 = scalar_select %p4189, %s4188, 31
      %s4191 = smul.addr %s4190, 2
      %s4192 = scalar_lea.vmem %s4, %s4191
      %s4193 = ssub.s32 1, %s17
      %s4194 = smul.u32 16, %s4193
      %p4195 = scmp.lt.s32.totalorder %s4194, 31
      %s4196 = scalar_select %p4195, %s4194, 31
      %s4197 = smul.addr %s4196, 2
      %s4198 = scalar_lea.vmem %s5, %s4197
      // Predicated region
      $region41: #{lstm_model_forward.3} parent=35 // pred_check
        %p4199 = pneg %p131
      $region42: #{lstm_model_forward.3} parent=35 // pred_check_branch
        %4201 = sbr.rel (%p4199) target = $region44
      $region43: #{lstm_model_forward.3} parent=35 // pred_region
        %s4202 = smul.u32 16, %s17
      $region44: #{lstm_model_forward.3} parent=35 // pred_fallthru
        _
      // Predicated region
      $region45: #{lstm_model_forward.3} parent=35 // pred_check
        %p4203 = pneg %p159
      $region46: #{lstm_model_forward.3} parent=35 // pred_check_branch
        %4205 = sbr.rel (%p4203) target = $region48
      $region47: #{lstm_model_forward.3} parent=35 // pred_region
        %s4206 = ssub.s32 1, %s17
        %s4207 = smul.u32 16, %s4206
      $region48: #{lstm_model_forward.3} parent=35 // pred_fallthru
        _
    $region36: #{lstm_model_forward.3} parent=5 // pred_fallthru
      _
    %p4208 = scmp.le.s32.totalorder 2, %s12
    // Predicated region
    $region49: #{lstm_model_forward.3} parent=5 // pred_check
      %p4209 = pneg %p4208
    $region50: #{lstm_model_forward.3} parent=5 // pred_check_branch
      %4211 = sbr.rel (%p4209) target = $region52
    $region51: #{lstm_model_forward.3} parent=5 // pred_region
      %s4212 = ssub.s32 %s12, 2
      // Predicated region
      $region53: #{lstm_model_forward.3} parent=51 // pred_check
        %p4213 = pneg %p137
      $region54: #{lstm_model_forward.3} parent=51 // pred_check_branch
        %4215 = sbr.rel (%p4213) target = $region56
      $region55: #{lstm_model_forward.3} parent=51 // pred_region
        %s4216 = smul.u32 16, %s18
        %p4217 = scmp.lt.s32.totalorder %s4216, 31
        %s4218 = scalar_select %p4217, %s4216, 31
        %s4219 = smul.addr %s4218, 2
        %s4220 = scalar_lea.vmem %s4, %s4219
      $region56: #{lstm_model_forward.3} parent=51 // pred_fallthru
        _
      // Predicated region
      $region57: #{lstm_model_forward.3} parent=51 // pred_check
        %p4221 = pneg %p165
      $region58: #{lstm_model_forward.3} parent=51 // pred_check_branch
        %4223 = sbr.rel (%p4221) target = $region60
      $region59: #{lstm_model_forward.3} parent=51 // pred_region
        %s4224 = ssub.s32 1, %s18
        %s4225 = smul.u32 16, %s4224
        %p4226 = scmp.lt.s32.totalorder %s4225, 31
        %s4227 = scalar_select %p4226, %s4225, 31
        %s4228 = smul.addr %s4227, 2
        %s4229 = scalar_lea.vmem %s5, %s4228
      $region60: #{lstm_model_forward.3} parent=51 // pred_fallthru
        _
    $region52: #{lstm_model_forward.3} parent=5 // pred_fallthru
      _
  $region6: #{lstm_model_forward.3} parent=0 // loop_footer
    %s16 = sadd.s32 1, %s12
  $region7: #{lstm_model_forward.3} parent=0 // loop_footer_branch
    %11 = sbr.rel target = $region3
  $region8: #{lstm_model_forward.3} parent=0 // loop_exit
    _

</llo_original>
